<compile_context>
chip_gen: v5e
topology: v5e:2x2
jax: 0.10.0
libtpu: 0.0.40
codegen_flags: <defaults>
</compile_context>

<pallas_src>
import functools
import numpy as np
import jax
import jax.numpy as jnp
from jax import lax
from jax.experimental import pallas as pl
from jax.experimental.pallas import tpu as pltpu


# Static geometry forced by fc1.in_features == 528 = 8*6*11 with 2 input channels:
#   (Cin, Cout, H, W, Hp, Wp) per conv stage (H, W = input spatial; Hp, Wp = pooled out)
_STAGES = (
    (2, 8, 68, 104, 33, 51),
    (8, 16, 33, 51, 15, 24),
    (16, 8, 15, 24, 6, 11),
)


def _round_up(v, m):
    return ((v + m - 1) // m) * m


# ----------------------------------------------------------------------------
# Pallas kernel
# ----------------------------------------------------------------------------
def _stage(act, b_ref, bias_ref, sw_ref, cout_hp, wc):
    """conv3x3(valid) + bias + ReLU + maxpool(2,2), fully in VMEM, ONE conv matmul.

    act      : [Cin*H, W]             activation, channel-major rows (row = ci*H + y)
    b_ref    : [2*Cout*Hp, 3*Cin*H]   block-Toeplitz weights (rows: 2 pool-row phases,
                                      cols: 3 kx blocks of Cin*H)
    bias_ref : [Cout*Hp, 1]
    sw_ref   : [wc-1, Wp]             exact 0/1 stride-2 column-selection matrix
    returns  : [Cout*Hp, Wp]
    """
    # Shifted slab: one K=3*Cin*H matmul instead of three K=Cin*H matmuls.
    slab = jnp.concatenate([act[:, 0:wc], act[:, 1:1 + wc], act[:, 2:2 + wc]], axis=0)
    both = jnp.dot(b_ref[...], slab, preferred_element_type=jnp.float32)  # [2*Cout*Hp, wc]
    m = jnp.maximum(both[0:cout_hp, :], both[cout_hp:2 * cout_hp, :])     # max over pool rows
    m = jnp.maximum(m[:, 0:wc - 1], m[:, 1:wc])                           # max over pool cols
    pooled = jnp.dot(m, sw_ref[...], preferred_element_type=jnp.float32)  # stride-2 decimation
    # bias + ReLU hoisted out of the pool max (ReLU monotone, bias const per window)
    return jnp.maximum(pooled + bias_ref[...], 0.0)


def _fused_forward_kernel(x_ref,
                          b1_ref, c1b_ref, sw1_ref,
                          b2_ref, c2b_ref, sw2_ref,
                          b3_ref, c3b_ref, sw3_ref,
                          w1_ref, f1b_ref, w2_ref, f2b_ref, w3_ref, f3b_ref,
                          o_ref, acts_ref):
    tb = x_ref.shape[0]

    # --- conv stages, one image at a time; stage-3 activations parked in VMEM scratch.
    def conv_body(t, carry):
        act = x_ref[t]                                                      # [2*68, 104]
        act = _stage(act, b1_ref, c1b_ref, sw1_ref, cout_hp=264, wc=102)    # [8*33, 51]
        act = _stage(act, b2_ref, c2b_ref, sw2_ref, cout_hp=240, wc=49)     # [16*15, 24]
        act = _stage(act, b3_ref, c3b_ref, sw3_ref, cout_hp=48, wc=22)      # [8*6, 11]
        acts_ref[t] = act
        return carry

    lax.fori_loop(0, tb, conv_body, 0, unroll=False)

    # --- MLP on a TB-wide RHS.  fc1 = 11 independent [TB,48]x[48,256] matmuls (one per
    # spatial column of the stage-3 map; the PyTorch flatten order is absorbed into the
    # pre-packed weight w1_ref), combined with a pairwise tree sum.
    parts = [jnp.dot(acts_ref[:, :, c], w1_ref[c], preferred_element_type=jnp.float32)
             for c in range(11)]
    while len(parts) > 1:
        nxt = [parts[i] + parts[i + 1] for i in range(0, len(parts) - 1, 2)]
        if len(parts) % 2:
            nxt.append(parts[-1])
        parts = nxt
    h = jnp.maximum(parts[0] + f1b_ref[...], 0.0)                           # [TB, 256]
    h = jnp.maximum(jnp.dot(h, w2_ref[...], preferred_element_type=jnp.float32)
                    + f2b_ref[...], 0.0)                                    # [TB, 64]
    h = jnp.maximum(jnp.dot(h, w3_ref[...], preferred_element_type=jnp.float32)
                    + f3b_ref[...], 0.0)                                    # [TB, 32]
    o_ref[...] = h


# ----------------------------------------------------------------------------
# Wrapper-side constant construction (pure layout/weight re-packing, tiny tensors)
# ----------------------------------------------------------------------------
def _conv_block_weights(w, H, Hp):
    """[Cout,Cin,3,3] -> [2*Cout*Hp, 3*Cin*H] fused block-Toeplitz matrix.

    Row block p (pool-row phase), row co*Hp+i; column block kx, column ci*H+u:
        sum_ky w[co, ci, ky, kx] * (u == 2*i + p + ky)
    so dot(B, slab) yields conv rows 2*i+p for every output column in one matmul.
    """
    cout, cin = w.shape[0], w.shape[1]
    D = np.zeros((2, Hp, 3, H), np.float32)
    for p in range(2):
        for i in range(Hp):
            for ky in range(3):
                D[p, i, ky, 2 * i + p + ky] = 1.0
    B = jnp.einsum('ocyk,piyu->pkoicu', w, jnp.asarray(D))
    B = B.reshape(2, 3, cout * Hp, cin * H)
    return jnp.concatenate(
        [jnp.concatenate([B[p, k] for k in range(3)], axis=1) for p in range(2)], axis=0)


def _pool_col_select(W, Wp):
    """Exact 0/1 matrix [Wc-1, Wp] selecting every second column (stride-2 pooling)."""
    wc = W - 2
    s = np.zeros((wc - 1, Wp), np.float32)
    s[2 * np.arange(Wp), np.arange(Wp)] = 1.0
    return jnp.asarray(s)


def conv_encoder_forward(x, params, *, tb=128):
    """Pallas implementation of ConvEncoder.forward. x: [N, 2, 68, 104] (NCHW)."""
    N = x.shape[0]
    tb = int(min(tb, _round_up(max(N, 1), 8)))
    tb = _round_up(tb, 8)                      # (8,128) rule on the (TB,32) output block
    npad = _round_up(N, tb)

    x2d = x.reshape(N, 2 * 68, 104)            # channel-major rows: row = ci*68 + y
    if npad != N:
        x2d = jnp.concatenate(
            [x2d, jnp.zeros((npad - N, 2 * 68, 104), x2d.dtype)], axis=0)

    ops = []
    in_specs = [pl.BlockSpec((tb, 2 * 68, 104), lambda n: (n, 0, 0))]

    def add_const(a):
        a = jnp.asarray(a, jnp.float32)
        ops.append(a)
        # Constant block index -> fetched once, stays VMEM-resident across grid steps.
        in_specs.append(pl.BlockSpec(a.shape, lambda n, _nd=a.ndim: (0,) * _nd))

    for s_idx, (cin, cout, H, W, Hp, Wp) in enumerate(_STAGES, start=1):
        add_const(_conv_block_weights(params[f"conv{s_idx}_w"], H, Hp))
        add_const(jnp.repeat(params[f"conv{s_idx}_b"], Hp)[:, None])   # [Cout*Hp, 1]
        add_const(_pool_col_select(W, Wp))

    # fc1 weight packed as [11, 48, 256] so that w1[c][r, o] = fc1_w[r*11 + c, o]
    # (stage-3 activation row r = ch*6 + y, column c = x; flat index = r*11 + c).
    add_const(params["fc1_w"].reshape(48, 11, 256).transpose(1, 0, 2))
    add_const(params["fc1_b"][None, :])        # [1, 256]
    add_const(params["fc2_w"])                 # [256, 64]
    add_const(params["fc2_b"][None, :])        # [1, 64]
    add_const(params["fc3_w"])                 # [64, 32]
    add_const(params["fc3_b"][None, :])        # [1, 32]

    # VMEM budget: 2x input block (double-buffered) + 2x resident constants + padded scratch
    # + slack; capped at 48 MiB so it also fits v7x's 64 MiB/TC.
    const_bytes = sum(int(np.prod(o.shape)) * 4 for o in ops)
    in_block_bytes = tb * 2 * 68 * 104 * 4
    scratch_bytes = tb * 48 * 128 * 4          # lane-padded estimate of (tb,48,11) scratch
    vmem_limit = int(min(48 * 1024 * 1024,
                         max(24 * 1024 * 1024,
                             2 * in_block_bytes + 2 * const_bytes + scratch_bytes
                             + 8 * 1024 * 1024)))

    out = pl.pallas_call(
        _fused_forward_kernel,
        out_shape=jax.ShapeDtypeStruct((npad, 32), jnp.float32),
        grid_spec=pltpu.PrefetchScalarGridSpec(
            num_scalar_prefetch=0,
            grid=(npad // tb,),
            in_specs=in_specs,
            out_specs=pl.BlockSpec((tb, 32), lambda n: (n, 0)),
            scratch_shapes=[pltpu.VMEM((tb, 48, 11), jnp.float32)],
        ),
        compiler_params=pltpu.CompilerParams(
            dimension_semantics=("parallel",),   # batch steps shard across v7x's 2 TCs
            vmem_limit_bytes=vmem_limit,
        ),
    )(x2d, *ops)
    return out[:N]


# ----------------------------------------------------------------------------
# Deterministic parameter init (PyTorch-default-style uniform(+/- 1/sqrt(fan_in)))
# ----------------------------------------------------------------------------
def init_params(key):
    def conv_init(k, cout, cin, ks=3):
        bound = 1.0 / np.sqrt(cin * ks * ks)
        kw, kb = jax.random.split(k)
        w = jax.random.uniform(kw, (cout, cin, ks, ks), jnp.float32, -bound, bound)
        b = jax.random.uniform(kb, (cout,), jnp.float32, -bound, bound)
        return w, b

    def linear_init(k, din, dout):
        bound = 1.0 / np.sqrt(din)
        kw, kb = jax.random.split(k)
        w = jax.random.uniform(kw, (din, dout), jnp.float32, -bound, bound)
        b = jax.random.uniform(kb, (dout,), jnp.float32, -bound, bound)
        return w, b

    ks = jax.random.split(key, 6)
    p = {}
    p["conv1_w"], p["conv1_b"] = conv_init(ks[0], 8, 2)
    p["conv2_w"], p["conv2_b"] = conv_init(ks[1], 16, 8)
    p["conv3_w"], p["conv3_b"] = conv_init(ks[2], 8, 16)
    p["fc1_w"], p["fc1_b"] = linear_init(ks[3], 528, 256)
    p["fc2_w"], p["fc2_b"] = linear_init(ks[4], 256, 64)
    p["fc3_w"], p["fc3_b"] = linear_init(ks[5], 64, 32)
    return p


# ----------------------------------------------------------------------------
# Pure-JAX reference (mirrors the PyTorch forward) for a correctness check
# ----------------------------------------------------------------------------
def reference_forward(x, p):
    dn = ("NCHW", "OIHW", "NCHW")

    def conv(h, w, b):
        y = jax.lax.conv_general_dilated(h, w, (1, 1), "VALID", dimension_numbers=dn,
                                         precision=jax.lax.Precision.HIGHEST)
        return y + b.reshape(1, -1, 1, 1)

    def pool(h):
        return jax.lax.reduce_window(h, -jnp.inf, jax.lax.max,
                                     (1, 1, 2, 2), (1, 1, 2, 2), "VALID")

    h = pool(jax.nn.relu(conv(x, p["conv1_w"], p["conv1_b"])))
    h = pool(jax.nn.relu(conv(h, p["conv2_w"], p["conv2_b"])))
    h = pool(jax.nn.relu(conv(h, p["conv3_w"], p["conv3_b"])))
    h = h.reshape(h.shape[0], -1)
    hp = jax.lax.Precision.HIGHEST
    h = jax.nn.relu(jnp.dot(h, p["fc1_w"], precision=hp) + p["fc1_b"])
    h = jax.nn.relu(jnp.dot(h, p["fc2_w"], precision=hp) + p["fc2_b"])
    h = jax.nn.relu(jnp.dot(h, p["fc3_w"], precision=hp) + p["fc3_b"])
    return h


# ----------------------------------------------------------------------------
if __name__ == "__main__":
    key = jax.random.PRNGKey(0)
    kx, kp = jax.random.split(key)
    # fc1.in_features = 528 = 8*6*11 forces a 68x104 spatial input with 2 channels.
    # Small batch of 16 with TB=8 -> grid=(2,) exercises the batched pipeline.
    x = jax.random.normal(kx, (16, 2, 68, 104), dtype=jnp.float32)
    params = init_params(kp)

    fwd = jax.jit(functools.partial(conv_encoder_forward, tb=8))
    out = jax.block_until_ready(fwd(x, params))
    assert out.shape == (16, 32), out.shape

    ref = jax.block_until_ready(reference_forward(x, params))
    max_diff = float(np.max(np.abs(np.asarray(out) - np.asarray(ref))))
    # All-f32 pipeline: only summation-order / per-chip f32-matmul-path differences remain.
    if not np.allclose(np.asarray(out), np.asarray(ref), atol=1e-3, rtol=1e-3):
        raise AssertionError(f"Pallas output mismatch: max abs diff = {max_diff}")

    print("KERNEL_OK")
</pallas_src>

<mosaic_0001>
module attributes {stable_mosaic.version = 11 : i64} {
  func.func @_fused_forward_kernel(%arg0: i32, %arg1: memref<8x136x104xf32, #tpu.memory_space<vmem>>, %arg2: memref<528x408xf32, #tpu.memory_space<vmem>>, %arg3: memref<264x1xf32, #tpu.memory_space<vmem>>, %arg4: memref<101x51xf32, #tpu.memory_space<vmem>>, %arg5: memref<480x792xf32, #tpu.memory_space<vmem>>, %arg6: memref<240x1xf32, #tpu.memory_space<vmem>>, %arg7: memref<48x24xf32, #tpu.memory_space<vmem>>, %arg8: memref<96x720xf32, #tpu.memory_space<vmem>>, %arg9: memref<48x1xf32, #tpu.memory_space<vmem>>, %arg10: memref<21x11xf32, #tpu.memory_space<vmem>>, %arg11: memref<11x48x256xf32, #tpu.memory_space<vmem>>, %arg12: memref<1x256xf32, #tpu.memory_space<vmem>>, %arg13: memref<256x64xf32, #tpu.memory_space<vmem>>, %arg14: memref<1x64xf32, #tpu.memory_space<vmem>>, %arg15: memref<64x32xf32, #tpu.memory_space<vmem>>, %arg16: memref<1x32xf32, #tpu.memory_space<vmem>>, %arg17: memref<8x32xf32, #tpu.memory_space<vmem>>, %arg18: memref<8x48x11xf32, #tpu.memory_space<vmem>>) attributes {dimension_semantics = [#tpu.dimension_semantics<parallel>], iteration_bounds = array<i64: 2>, scalar_prefetch = 0 : i64, scratch_operands = 1 : i64, tpu.core_type = #tpu.core_type<tc>, window_params = [{transform_indices = @transform_0, window_bounds = array<i64: 8, 136, 104>}, {pipeline_mode = #tpu.pipeline_mode<synchronous>, transform_indices = @transform_1, window_bounds = array<i64: 528, 408>}, {pipeline_mode = #tpu.pipeline_mode<synchronous>, transform_indices = @transform_2, window_bounds = array<i64: 264, 1>}, {pipeline_mode = #tpu.pipeline_mode<synchronous>, transform_indices = @transform_3, window_bounds = array<i64: 101, 51>}, {pipeline_mode = #tpu.pipeline_mode<synchronous>, transform_indices = @transform_4, window_bounds = array<i64: 480, 792>}, {pipeline_mode = #tpu.pipeline_mode<synchronous>, transform_indices = @transform_5, window_bounds = array<i64: 240, 1>}, {pipeline_mode = #tpu.pipeline_mode<synchronous>, transform_indices = @transform_6, window_bounds = array<i64: 48, 24>}, {pipeline_mode = #tpu.pipeline_mode<synchronous>, transform_indices = @transform_7, window_bounds = array<i64: 96, 720>}, {pipeline_mode = #tpu.pipeline_mode<synchronous>, transform_indices = @transform_8, window_bounds = array<i64: 48, 1>}, {pipeline_mode = #tpu.pipeline_mode<synchronous>, transform_indices = @transform_9, window_bounds = array<i64: 21, 11>}, {pipeline_mode = #tpu.pipeline_mode<synchronous>, transform_indices = @transform_10, window_bounds = array<i64: 11, 48, 256>}, {pipeline_mode = #tpu.pipeline_mode<synchronous>, transform_indices = @transform_11, window_bounds = array<i64: 1, 256>}, {pipeline_mode = #tpu.pipeline_mode<synchronous>, transform_indices = @transform_12, window_bounds = array<i64: 256, 64>}, {pipeline_mode = #tpu.pipeline_mode<synchronous>, transform_indices = @transform_13, window_bounds = array<i64: 1, 64>}, {pipeline_mode = #tpu.pipeline_mode<synchronous>, transform_indices = @transform_14, window_bounds = array<i64: 64, 32>}, {pipeline_mode = #tpu.pipeline_mode<synchronous>, transform_indices = @transform_15, window_bounds = array<i64: 1, 32>}, {transform_indices = @transform_16, window_bounds = array<i64: 8, 32>}]} {
    %c0_i32 = arith.constant 0 : i32
    %c8_i32 = arith.constant 8 : i32
    %0 = arith.addi %c0_i32, %c8_i32 : i32
    %c1_i32 = arith.constant 1 : i32
    scf.for %arg19 = %c0_i32 to %0 step %c1_i32  : i32 {
      %86 = arith.index_cast %arg19 : i32 to index
      %c0_83 = arith.constant 0 : index
      %c0_84 = arith.constant 0 : index
      %87 = vector.load %arg1[%86, %c0_83, %c0_84] : memref<8x136x104xf32, #tpu.memory_space<vmem>>, vector<1x136x104xf32>
      %88 = vector.shape_cast %87 : vector<1x136x104xf32> to vector<136x104xf32>
      %89 = vector.extract_strided_slice %88 {offsets = [0, 0], sizes = [136, 102], strides = [1, 1]} : vector<136x104xf32> to vector<136x102xf32>
      %90 = vector.extract_strided_slice %88 {offsets = [0, 1], sizes = [136, 102], strides = [1, 1]} : vector<136x104xf32> to vector<136x102xf32>
      %91 = vector.extract_strided_slice %88 {offsets = [0, 2], sizes = [136, 102], strides = [1, 1]} : vector<136x104xf32> to vector<136x102xf32>
      %92 = tpu.concatenate %89, %90, %91 in 0 : vector<136x102xf32>, vector<136x102xf32>, vector<136x102xf32> -> vector<408x102xf32>
      %c0_85 = arith.constant 0 : index
      %c0_86 = arith.constant 0 : index
      %93 = vector.load %arg2[%c0_85, %c0_86] : memref<528x408xf32, #tpu.memory_space<vmem>>, vector<528x408xf32>
      %cst_87 = arith.constant dense<0.000000e+00> : vector<528x102xf32>
      %94 = tpu.matmul %93, %92, %cst_87 {dimension_numbers = #tpu.dot_dimension_numbers<[1], [0], [0], [1], [0, 0, 1, 1], [], []>} : vector<528x408xf32>, vector<408x102xf32>, vector<528x102xf32> -> vector<528x102xf32>
      %95 = vector.extract_strided_slice %94 {offsets = [0, 0], sizes = [264, 102], strides = [1, 1]} : vector<528x102xf32> to vector<264x102xf32>
      %96 = vector.extract_strided_slice %94 {offsets = [264, 0], sizes = [264, 102], strides = [1, 1]} : vector<528x102xf32> to vector<264x102xf32>
      %97 = arith.maximumf %95, %96 : vector<264x102xf32>
      %98 = vector.extract_strided_slice %97 {offsets = [0, 0], sizes = [264, 101], strides = [1, 1]} : vector<264x102xf32> to vector<264x101xf32>
      %99 = vector.extract_strided_slice %97 {offsets = [0, 1], sizes = [264, 101], strides = [1, 1]} : vector<264x102xf32> to vector<264x101xf32>
      %100 = arith.maximumf %98, %99 : vector<264x101xf32>
      %c0_88 = arith.constant 0 : index
      %c0_89 = arith.constant 0 : index
      %101 = vector.load %arg4[%c0_88, %c0_89] : memref<101x51xf32, #tpu.memory_space<vmem>>, vector<101x51xf32>
      %cst_90 = arith.constant dense<0.000000e+00> : vector<264x51xf32>
      %102 = tpu.matmul %100, %101, %cst_90 {dimension_numbers = #tpu.dot_dimension_numbers<[1], [0], [0], [1], [0, 0, 1, 1], [], []>} : vector<264x101xf32>, vector<101x51xf32>, vector<264x51xf32> -> vector<264x51xf32>
      %c0_91 = arith.constant 0 : index
      %c0_92 = arith.constant 0 : index
      %103 = vector.load %arg3[%c0_91, %c0_92] : memref<264x1xf32, #tpu.memory_space<vmem>>, vector<264x1xf32>
      %104 = vector.broadcast %103 : vector<264x1xf32> to vector<264x51xf32>
      %105 = arith.addf %102, %104 : vector<264x51xf32>
      %cst_93 = arith.constant 0.000000e+00 : f32
      %106 = vector.broadcast %cst_93 : f32 to vector<264x51xf32>
      %107 = arith.maximumf %105, %106 : vector<264x51xf32>
      %108 = vector.extract_strided_slice %107 {offsets = [0, 0], sizes = [264, 49], strides = [1, 1]} : vector<264x51xf32> to vector<264x49xf32>
      %109 = vector.extract_strided_slice %107 {offsets = [0, 1], sizes = [264, 49], strides = [1, 1]} : vector<264x51xf32> to vector<264x49xf32>
      %110 = vector.extract_strided_slice %107 {offsets = [0, 2], sizes = [264, 49], strides = [1, 1]} : vector<264x51xf32> to vector<264x49xf32>
      %111 = tpu.concatenate %108, %109, %110 in 0 : vector<264x49xf32>, vector<264x49xf32>, vector<264x49xf32> -> vector<792x49xf32>
      %c0_94 = arith.constant 0 : index
      %c0_95 = arith.constant 0 : index
      %112 = vector.load %arg5[%c0_94, %c0_95] : memref<480x792xf32, #tpu.memory_space<vmem>>, vector<480x792xf32>
      %cst_96 = arith.constant dense<0.000000e+00> : vector<480x49xf32>
      %113 = tpu.matmul %112, %111, %cst_96 {dimension_numbers = #tpu.dot_dimension_numbers<[1], [0], [0], [1], [0, 0, 1, 1], [], []>} : vector<480x792xf32>, vector<792x49xf32>, vector<480x49xf32> -> vector<480x49xf32>
      %114 = vector.extract_strided_slice %113 {offsets = [0, 0], sizes = [240, 49], strides = [1, 1]} : vector<480x49xf32> to vector<240x49xf32>
      %115 = vector.extract_strided_slice %113 {offsets = [240, 0], sizes = [240, 49], strides = [1, 1]} : vector<480x49xf32> to vector<240x49xf32>
      %116 = arith.maximumf %114, %115 : vector<240x49xf32>
      %117 = vector.extract_strided_slice %116 {offsets = [0, 0], sizes = [240, 48], strides = [1, 1]} : vector<240x49xf32> to vector<240x48xf32>
      %118 = vector.extract_strided_slice %116 {offsets = [0, 1], sizes = [240, 48], strides = [1, 1]} : vector<240x49xf32> to vector<240x48xf32>
      %119 = arith.maximumf %117, %118 : vector<240x48xf32>
      %c0_97 = arith.constant 0 : index
      %c0_98 = arith.constant 0 : index
      %120 = vector.load %arg7[%c0_97, %c0_98] : memref<48x24xf32, #tpu.memory_space<vmem>>, vector<48x24xf32>
      %cst_99 = arith.constant dense<0.000000e+00> : vector<240x24xf32>
      %121 = tpu.matmul %119, %120, %cst_99 {dimension_numbers = #tpu.dot_dimension_numbers<[1], [0], [0], [1], [0, 0, 1, 1], [], []>} : vector<240x48xf32>, vector<48x24xf32>, vector<240x24xf32> -> vector<240x24xf32>
      %c0_100 = arith.constant 0 : index
      %c0_101 = arith.constant 0 : index
      %122 = vector.load %arg6[%c0_100, %c0_101] : memref<240x1xf32, #tpu.memory_space<vmem>>, vector<240x1xf32>
      %123 = vector.broadcast %122 : vector<240x1xf32> to vector<240x24xf32>
      %124 = arith.addf %121, %123 : vector<240x24xf32>
      %cst_102 = arith.constant 0.000000e+00 : f32
      %125 = vector.broadcast %cst_102 : f32 to vector<240x24xf32>
      %126 = arith.maximumf %124, %125 : vector<240x24xf32>
      %127 = vector.extract_strided_slice %126 {offsets = [0, 0], sizes = [240, 22], strides = [1, 1]} : vector<240x24xf32> to vector<240x22xf32>
      %128 = vector.extract_strided_slice %126 {offsets = [0, 1], sizes = [240, 22], strides = [1, 1]} : vector<240x24xf32> to vector<240x22xf32>
      %129 = vector.extract_strided_slice %126 {offsets = [0, 2], sizes = [240, 22], strides = [1, 1]} : vector<240x24xf32> to vector<240x22xf32>
      %130 = tpu.concatenate %127, %128, %129 in 0 : vector<240x22xf32>, vector<240x22xf32>, vector<240x22xf32> -> vector<720x22xf32>
      %c0_103 = arith.constant 0 : index
      %c0_104 = arith.constant 0 : index
      %131 = vector.load %arg8[%c0_103, %c0_104] : memref<96x720xf32, #tpu.memory_space<vmem>>, vector<96x720xf32>
      %cst_105 = arith.constant dense<0.000000e+00> : vector<96x22xf32>
      %132 = tpu.matmul %131, %130, %cst_105 {dimension_numbers = #tpu.dot_dimension_numbers<[1], [0], [0], [1], [0, 0, 1, 1], [], []>} : vector<96x720xf32>, vector<720x22xf32>, vector<96x22xf32> -> vector<96x22xf32>
      %133 = vector.extract_strided_slice %132 {offsets = [0, 0], sizes = [48, 22], strides = [1, 1]} : vector<96x22xf32> to vector<48x22xf32>
      %134 = vector.extract_strided_slice %132 {offsets = [48, 0], sizes = [48, 22], strides = [1, 1]} : vector<96x22xf32> to vector<48x22xf32>
      %135 = arith.maximumf %133, %134 : vector<48x22xf32>
      %136 = vector.extract_strided_slice %135 {offsets = [0, 0], sizes = [48, 21], strides = [1, 1]} : vector<48x22xf32> to vector<48x21xf32>
      %137 = vector.extract_strided_slice %135 {offsets = [0, 1], sizes = [48, 21], strides = [1, 1]} : vector<48x22xf32> to vector<48x21xf32>
      %138 = arith.maximumf %136, %137 : vector<48x21xf32>
      %c0_106 = arith.constant 0 : index
      %c0_107 = arith.constant 0 : index
      %139 = vector.load %arg10[%c0_106, %c0_107] : memref<21x11xf32, #tpu.memory_space<vmem>>, vector<21x11xf32>
      %cst_108 = arith.constant dense<0.000000e+00> : vector<48x11xf32>
      %140 = tpu.matmul %138, %139, %cst_108 {dimension_numbers = #tpu.dot_dimension_numbers<[1], [0], [0], [1], [0, 0, 1, 1], [], []>} : vector<48x21xf32>, vector<21x11xf32>, vector<48x11xf32> -> vector<48x11xf32>
      %c0_109 = arith.constant 0 : index
      %c0_110 = arith.constant 0 : index
      %141 = vector.load %arg9[%c0_109, %c0_110] : memref<48x1xf32, #tpu.memory_space<vmem>>, vector<48x1xf32>
      %142 = vector.broadcast %141 : vector<48x1xf32> to vector<48x11xf32>
      %143 = arith.addf %140, %142 : vector<48x11xf32>
      %cst_111 = arith.constant 0.000000e+00 : f32
      %144 = vector.broadcast %cst_111 : f32 to vector<48x11xf32>
      %145 = arith.maximumf %143, %144 : vector<48x11xf32>
      %146 = arith.index_cast %arg19 : i32 to index
      %c0_112 = arith.constant 0 : index
      %c0_113 = arith.constant 0 : index
      %147 = vector.load %arg18[%146, %c0_112, %c0_113] : memref<8x48x11xf32, #tpu.memory_space<vmem>>, vector<1x48x11xf32>
      %148 = vector.shape_cast %147 : vector<1x48x11xf32> to vector<48x11xf32>
      %149 = vector.shape_cast %145 : vector<48x11xf32> to vector<1x48x11xf32>
      tpu.vector_store %arg18[%146, %c0_112, %c0_113], %149 {strides = array<i32>} : memref<8x48x11xf32, #tpu.memory_space<vmem>>, vector<1x48x11xf32>,
    }
    %c8_i32_0 = arith.constant 8 : i32
    %c0 = arith.constant 0 : index
    %c0_1 = arith.constant 0 : index
    %c0_2 = arith.constant 0 : index
    %1 = vector.load %arg18[%c0, %c0_1, %c0_2] : memref<8x48x11xf32, #tpu.memory_space<vmem>>, vector<8x48x1xf32>
    %2 = vector.shape_cast %1 : vector<8x48x1xf32> to vector<8x48xf32>
    %c0_3 = arith.constant 0 : index
    %c0_4 = arith.constant 0 : index
    %c0_5 = arith.constant 0 : index
    %3 = vector.load %arg11[%c0_3, %c0_4, %c0_5] : memref<11x48x256xf32, #tpu.memory_space<vmem>>, vector<1x48x256xf32>
    %4 = vector.shape_cast %3 : vector<1x48x256xf32> to vector<48x256xf32>
    %cst = arith.constant dense<0.000000e+00> : vector<8x256xf32>
    %5 = tpu.matmul %2, %4, %cst {dimension_numbers = #tpu.dot_dimension_numbers<[1], [0], [0], [1], [0, 0, 1, 1], [], []>} : vector<8x48xf32>, vector<48x256xf32>, vector<8x256xf32> -> vector<8x256xf32>
    %c0_6 = arith.constant 0 : index
    %c0_7 = arith.constant 0 : index
    %c1 = arith.constant 1 : index
    %6 = vector.load %arg18[%c0_6, %c0_7, %c1] : memref<8x48x11xf32, #tpu.memory_space<vmem>>, vector<8x48x1xf32>
    %7 = vector.shape_cast %6 : vector<8x48x1xf32> to vector<8x48xf32>
    %c1_8 = arith.constant 1 : index
    %c0_9 = arith.constant 0 : index
    %c0_10 = arith.constant 0 : index
    %8 = vector.load %arg11[%c1_8, %c0_9, %c0_10] : memref<11x48x256xf32, #tpu.memory_space<vmem>>, vector<1x48x256xf32>
    %9 = vector.shape_cast %8 : vector<1x48x256xf32> to vector<48x256xf32>
    %cst_11 = arith.constant dense<0.000000e+00> : vector<8x256xf32>
    %10 = tpu.matmul %7, %9, %cst_11 {dimension_numbers = #tpu.dot_dimension_numbers<[1], [0], [0], [1], [0, 0, 1, 1], [], []>} : vector<8x48xf32>, vector<48x256xf32>, vector<8x256xf32> -> vector<8x256xf32>
    %c0_12 = arith.constant 0 : index
    %c0_13 = arith.constant 0 : index
    %c2 = arith.constant 2 : index
    %11 = vector.load %arg18[%c0_12, %c0_13, %c2] : memref<8x48x11xf32, #tpu.memory_space<vmem>>, vector<8x48x1xf32>
    %12 = vector.shape_cast %11 : vector<8x48x1xf32> to vector<8x48xf32>
    %c2_14 = arith.constant 2 : index
    %c0_15 = arith.constant 0 : index
    %c0_16 = arith.constant 0 : index
    %13 = vector.load %arg11[%c2_14, %c0_15, %c0_16] : memref<11x48x256xf32, #tpu.memory_space<vmem>>, vector<1x48x256xf32>
    %14 = vector.shape_cast %13 : vector<1x48x256xf32> to vector<48x256xf32>
    %cst_17 = arith.constant dense<0.000000e+00> : vector<8x256xf32>
    %15 = tpu.matmul %12, %14, %cst_17 {dimension_numbers = #tpu.dot_dimension_numbers<[1], [0], [0], [1], [0, 0, 1, 1], [], []>} : vector<8x48xf32>, vector<48x256xf32>, vector<8x256xf32> -> vector<8x256xf32>
    %c0_18 = arith.constant 0 : index
    %c0_19 = arith.constant 0 : index
    %c3 = arith.constant 3 : index
    %16 = vector.load %arg18[%c0_18, %c0_19, %c3] : memref<8x48x11xf32, #tpu.memory_space<vmem>>, vector<8x48x1xf32>
    %17 = vector.shape_cast %16 : vector<8x48x1xf32> to vector<8x48xf32>
    %c3_20 = arith.constant 3 : index
    %c0_21 = arith.constant 0 : index
    %c0_22 = arith.constant 0 : index
    %18 = vector.load %arg11[%c3_20, %c0_21, %c0_22] : memref<11x48x256xf32, #tpu.memory_space<vmem>>, vector<1x48x256xf32>
    %19 = vector.shape_cast %18 : vector<1x48x256xf32> to vector<48x256xf32>
    %cst_23 = arith.constant dense<0.000000e+00> : vector<8x256xf32>
    %20 = tpu.matmul %17, %19, %cst_23 {dimension_numbers = #tpu.dot_dimension_numbers<[1], [0], [0], [1], [0, 0, 1, 1], [], []>} : vector<8x48xf32>, vector<48x256xf32>, vector<8x256xf32> -> vector<8x256xf32>
    %c0_24 = arith.constant 0 : index
    %c0_25 = arith.constant 0 : index
    %c4 = arith.constant 4 : index
    %21 = vector.load %arg18[%c0_24, %c0_25, %c4] : memref<8x48x11xf32, #tpu.memory_space<vmem>>, vector<8x48x1xf32>
    %22 = vector.shape_cast %21 : vector<8x48x1xf32> to vector<8x48xf32>
    %c4_26 = arith.constant 4 : index
    %c0_27 = arith.constant 0 : index
    %c0_28 = arith.constant 0 : index
    %23 = vector.load %arg11[%c4_26, %c0_27, %c0_28] : memref<11x48x256xf32, #tpu.memory_space<vmem>>, vector<1x48x256xf32>
    %24 = vector.shape_cast %23 : vector<1x48x256xf32> to vector<48x256xf32>
    %cst_29 = arith.constant dense<0.000000e+00> : vector<8x256xf32>
    %25 = tpu.matmul %22, %24, %cst_29 {dimension_numbers = #tpu.dot_dimension_numbers<[1], [0], [0], [1], [0, 0, 1, 1], [], []>} : vector<8x48xf32>, vector<48x256xf32>, vector<8x256xf32> -> vector<8x256xf32>
    %c0_30 = arith.constant 0 : index
    %c0_31 = arith.constant 0 : index
    %c5 = arith.constant 5 : index
    %26 = vector.load %arg18[%c0_30, %c0_31, %c5] : memref<8x48x11xf32, #tpu.memory_space<vmem>>, vector<8x48x1xf32>
    %27 = vector.shape_cast %26 : vector<8x48x1xf32> to vector<8x48xf32>
    %c5_32 = arith.constant 5 : index
    %c0_33 = arith.constant 0 : index
    %c0_34 = arith.constant 0 : index
    %28 = vector.load %arg11[%c5_32, %c0_33, %c0_34] : memref<11x48x256xf32, #tpu.memory_space<vmem>>, vector<1x48x256xf32>
    %29 = vector.shape_cast %28 : vector<1x48x256xf32> to vector<48x256xf32>
    %cst_35 = arith.constant dense<0.000000e+00> : vector<8x256xf32>
    %30 = tpu.matmul %27, %29, %cst_35 {dimension_numbers = #tpu.dot_dimension_numbers<[1], [0], [0], [1], [0, 0, 1, 1], [], []>} : vector<8x48xf32>, vector<48x256xf32>, vector<8x256xf32> -> vector<8x256xf32>
    %c0_36 = arith.constant 0 : index
    %c0_37 = arith.constant 0 : index
    %c6 = arith.constant 6 : index
    %31 = vector.load %arg18[%c0_36, %c0_37, %c6] : memref<8x48x11xf32, #tpu.memory_space<vmem>>, vector<8x48x1xf32>
    %32 = vector.shape_cast %31 : vector<8x48x1xf32> to vector<8x48xf32>
    %c6_38 = arith.constant 6 : index
    %c0_39 = arith.constant 0 : index
    %c0_40 = arith.constant 0 : index
    %33 = vector.load %arg11[%c6_38, %c0_39, %c0_40] : memref<11x48x256xf32, #tpu.memory_space<vmem>>, vector<1x48x256xf32>
    %34 = vector.shape_cast %33 : vector<1x48x256xf32> to vector<48x256xf32>
    %cst_41 = arith.constant dense<0.000000e+00> : vector<8x256xf32>
    %35 = tpu.matmul %32, %34, %cst_41 {dimension_numbers = #tpu.dot_dimension_numbers<[1], [0], [0], [1], [0, 0, 1, 1], [], []>} : vector<8x48xf32>, vector<48x256xf32>, vector<8x256xf32> -> vector<8x256xf32>
    %c0_42 = arith.constant 0 : index
    %c0_43 = arith.constant 0 : index
    %c7 = arith.constant 7 : index
    %36 = vector.load %arg18[%c0_42, %c0_43, %c7] : memref<8x48x11xf32, #tpu.memory_space<vmem>>, vector<8x48x1xf32>
    %37 = vector.shape_cast %36 : vector<8x48x1xf32> to vector<8x48xf32>
    %c7_44 = arith.constant 7 : index
    %c0_45 = arith.constant 0 : index
    %c0_46 = arith.constant 0 : index
    %38 = vector.load %arg11[%c7_44, %c0_45, %c0_46] : memref<11x48x256xf32, #tpu.memory_space<vmem>>, vector<1x48x256xf32>
    %39 = vector.shape_cast %38 : vector<1x48x256xf32> to vector<48x256xf32>
    %cst_47 = arith.constant dense<0.000000e+00> : vector<8x256xf32>
    %40 = tpu.matmul %37, %39, %cst_47 {dimension_numbers = #tpu.dot_dimension_numbers<[1], [0], [0], [1], [0, 0, 1, 1], [], []>} : vector<8x48xf32>, vector<48x256xf32>, vector<8x256xf32> -> vector<8x256xf32>
    %c0_48 = arith.constant 0 : index
    %c0_49 = arith.constant 0 : index
    %c8 = arith.constant 8 : index
    %41 = vector.load %arg18[%c0_48, %c0_49, %c8] : memref<8x48x11xf32, #tpu.memory_space<vmem>>, vector<8x48x1xf32>
    %42 = vector.shape_cast %41 : vector<8x48x1xf32> to vector<8x48xf32>
    %c8_50 = arith.constant 8 : index
    %c0_51 = arith.constant 0 : index
    %c0_52 = arith.constant 0 : index
    %43 = vector.load %arg11[%c8_50, %c0_51, %c0_52] : memref<11x48x256xf32, #tpu.memory_space<vmem>>, vector<1x48x256xf32>
    %44 = vector.shape_cast %43 : vector<1x48x256xf32> to vector<48x256xf32>
    %cst_53 = arith.constant dense<0.000000e+00> : vector<8x256xf32>
    %45 = tpu.matmul %42, %44, %cst_53 {dimension_numbers = #tpu.dot_dimension_numbers<[1], [0], [0], [1], [0, 0, 1, 1], [], []>} : vector<8x48xf32>, vector<48x256xf32>, vector<8x256xf32> -> vector<8x256xf32>
    %c0_54 = arith.constant 0 : index
    %c0_55 = arith.constant 0 : index
    %c9 = arith.constant 9 : index
    %46 = vector.load %arg18[%c0_54, %c0_55, %c9] : memref<8x48x11xf32, #tpu.memory_space<vmem>>, vector<8x48x1xf32>
    %47 = vector.shape_cast %46 : vector<8x48x1xf32> to vector<8x48xf32>
    %c9_56 = arith.constant 9 : index
    %c0_57 = arith.constant 0 : index
    %c0_58 = arith.constant 0 : index
    %48 = vector.load %arg11[%c9_56, %c0_57, %c0_58] : memref<11x48x256xf32, #tpu.memory_space<vmem>>, vector<1x48x256xf32>
    %49 = vector.shape_cast %48 : vector<1x48x256xf32> to vector<48x256xf32>
    %cst_59 = arith.constant dense<0.000000e+00> : vector<8x256xf32>
    %50 = tpu.matmul %47, %49, %cst_59 {dimension_numbers = #tpu.dot_dimension_numbers<[1], [0], [0], [1], [0, 0, 1, 1], [], []>} : vector<8x48xf32>, vector<48x256xf32>, vector<8x256xf32> -> vector<8x256xf32>
    %c0_60 = arith.constant 0 : index
    %c0_61 = arith.constant 0 : index
    %c10 = arith.constant 10 : index
    %51 = vector.load %arg18[%c0_60, %c0_61, %c10] : memref<8x48x11xf32, #tpu.memory_space<vmem>>, vector<8x48x1xf32>
    %52 = vector.shape_cast %51 : vector<8x48x1xf32> to vector<8x48xf32>
    %c10_62 = arith.constant 10 : index
    %c0_63 = arith.constant 0 : index
    %c0_64 = arith.constant 0 : index
    %53 = vector.load %arg11[%c10_62, %c0_63, %c0_64] : memref<11x48x256xf32, #tpu.memory_space<vmem>>, vector<1x48x256xf32>
    %54 = vector.shape_cast %53 : vector<1x48x256xf32> to vector<48x256xf32>
    %cst_65 = arith.constant dense<0.000000e+00> : vector<8x256xf32>
    %55 = tpu.matmul %52, %54, %cst_65 {dimension_numbers = #tpu.dot_dimension_numbers<[1], [0], [0], [1], [0, 0, 1, 1], [], []>} : vector<8x48xf32>, vector<48x256xf32>, vector<8x256xf32> -> vector<8x256xf32>
    %56 = arith.addf %5, %10 : vector<8x256xf32>
    %57 = arith.addf %15, %20 : vector<8x256xf32>
    %58 = arith.addf %25, %30 : vector<8x256xf32>
    %59 = arith.addf %35, %40 : vector<8x256xf32>
    %60 = arith.addf %45, %50 : vector<8x256xf32>
    %61 = arith.addf %56, %57 : vector<8x256xf32>
    %62 = arith.addf %58, %59 : vector<8x256xf32>
    %63 = arith.addf %60, %55 : vector<8x256xf32>
    %64 = arith.addf %61, %62 : vector<8x256xf32>
    %65 = arith.addf %64, %63 : vector<8x256xf32>
    %c0_66 = arith.constant 0 : index
    %c0_67 = arith.constant 0 : index
    %66 = vector.load %arg12[%c0_66, %c0_67] : memref<1x256xf32, #tpu.memory_space<vmem>>, vector<1x256xf32>
    %67 = vector.broadcast %66 : vector<1x256xf32> to vector<8x256xf32>
    %68 = arith.addf %65, %67 : vector<8x256xf32>
    %cst_68 = arith.constant 0.000000e+00 : f32
    %69 = vector.broadcast %cst_68 : f32 to vector<8x256xf32>
    %70 = arith.maximumf %68, %69 : vector<8x256xf32>
    %c0_69 = arith.constant 0 : index
    %c0_70 = arith.constant 0 : index
    %71 = vector.load %arg13[%c0_69, %c0_70] : memref<256x64xf32, #tpu.memory_space<vmem>>, vector<256x64xf32>
    %cst_71 = arith.constant dense<0.000000e+00> : vector<8x64xf32>
    %72 = tpu.matmul %70, %71, %cst_71 {dimension_numbers = #tpu.dot_dimension_numbers<[1], [0], [0], [1], [0, 0, 1, 1], [], []>} : vector<8x256xf32>, vector<256x64xf32>, vector<8x64xf32> -> vector<8x64xf32>
    %c0_72 = arith.constant 0 : index
    %c0_73 = arith.constant 0 : index
    %73 = vector.load %arg14[%c0_72, %c0_73] : memref<1x64xf32, #tpu.memory_space<vmem>>, vector<1x64xf32>
    %74 = vector.broadcast %73 : vector<1x64xf32> to vector<8x64xf32>
    %75 = arith.addf %72, %74 : vector<8x64xf32>
    %cst_74 = arith.constant 0.000000e+00 : f32
    %76 = vector.broadcast %cst_74 : f32 to vector<8x64xf32>
    %77 = arith.maximumf %75, %76 : vector<8x64xf32>
    %c0_75 = arith.constant 0 : index
    %c0_76 = arith.constant 0 : index
    %78 = vector.load %arg15[%c0_75, %c0_76] : memref<64x32xf32, #tpu.memory_space<vmem>>, vector<64x32xf32>
    %cst_77 = arith.constant dense<0.000000e+00> : vector<8x32xf32>
    %79 = tpu.matmul %77, %78, %cst_77 {dimension_numbers = #tpu.dot_dimension_numbers<[1], [0], [0], [1], [0, 0, 1, 1], [], []>} : vector<8x64xf32>, vector<64x32xf32>, vector<8x32xf32> -> vector<8x32xf32>
    %c0_78 = arith.constant 0 : index
    %c0_79 = arith.constant 0 : index
    %80 = vector.load %arg16[%c0_78, %c0_79] : memref<1x32xf32, #tpu.memory_space<vmem>>, vector<1x32xf32>
    %81 = vector.broadcast %80 : vector<1x32xf32> to vector<8x32xf32>
    %82 = arith.addf %79, %81 : vector<8x32xf32>
    %cst_80 = arith.constant 0.000000e+00 : f32
    %83 = vector.broadcast %cst_80 : f32 to vector<8x32xf32>
    %84 = arith.maximumf %82, %83 : vector<8x32xf32>
    %c0_81 = arith.constant 0 : index
    %c0_82 = arith.constant 0 : index
    %85 = vector.load %arg17[%c0_81, %c0_82] : memref<8x32xf32, #tpu.memory_space<vmem>>, vector<8x32xf32>
    tpu.vector_store %arg17[%c0_81, %c0_82], %84 {strides = array<i32>} : memref<8x32xf32, #tpu.memory_space<vmem>>, vector<8x32xf32>,
    return
  }
  func.func @transform_0(%arg0: i32) -> (i32, i32, i32) {
    %c0_i32 = arith.constant 0 : i32
    %c0_i32_0 = arith.constant 0 : i32
    %c0_i32_1 = arith.constant 0 : i32
    return %arg0, %c0_i32, %c0_i32_0 : i32, i32, i32
  }
  func.func @transform_1(%arg0: i32) -> (i32, i32) {
    %c0_i32 = arith.constant 0 : i32
    %c0_i32_0 = arith.constant 0 : i32
    %c0_i32_1 = arith.constant 0 : i32
    return %c0_i32, %c0_i32_0 : i32, i32
  }
  func.func @transform_2(%arg0: i32) -> (i32, i32) {
    %c0_i32 = arith.constant 0 : i32
    %c0_i32_0 = arith.constant 0 : i32
    %c0_i32_1 = arith.constant 0 : i32
    return %c0_i32, %c0_i32_0 : i32, i32
  }
  func.func @transform_3(%arg0: i32) -> (i32, i32) {
    %c0_i32 = arith.constant 0 : i32
    %c0_i32_0 = arith.constant 0 : i32
    %c0_i32_1 = arith.constant 0 : i32
    return %c0_i32, %c0_i32_0 : i32, i32
  }
  func.func @transform_4(%arg0: i32) -> (i32, i32) {
    %c0_i32 = arith.constant 0 : i32
    %c0_i32_0 = arith.constant 0 : i32
    %c0_i32_1 = arith.constant 0 : i32
    return %c0_i32, %c0_i32_0 : i32, i32
  }
  func.func @transform_5(%arg0: i32) -> (i32, i32) {
    %c0_i32 = arith.constant 0 : i32
    %c0_i32_0 = arith.constant 0 : i32
    %c0_i32_1 = arith.constant 0 : i32
    return %c0_i32, %c0_i32_0 : i32, i32
  }
  func.func @transform_6(%arg0: i32) -> (i32, i32) {
    %c0_i32 = arith.constant 0 : i32
    %c0_i32_0 = arith.constant 0 : i32
    %c0_i32_1 = arith.constant 0 : i32
    return %c0_i32, %c0_i32_0 : i32, i32
  }
  func.func @transform_7(%arg0: i32) -> (i32, i32) {
    %c0_i32 = arith.constant 0 : i32
    %c0_i32_0 = arith.constant 0 : i32
    %c0_i32_1 = arith.constant 0 : i32
    return %c0_i32, %c0_i32_0 : i32, i32
  }
  func.func @transform_8(%arg0: i32) -> (i32, i32) {
    %c0_i32 = arith.constant 0 : i32
    %c0_i32_0 = arith.constant 0 : i32
    %c0_i32_1 = arith.constant 0 : i32
    return %c0_i32, %c0_i32_0 : i32, i32
  }
  func.func @transform_9(%arg0: i32) -> (i32, i32) {
    %c0_i32 = arith.constant 0 : i32
    %c0_i32_0 = arith.constant 0 : i32
    %c0_i32_1 = arith.constant 0 : i32
    return %c0_i32, %c0_i32_0 : i32, i32
  }
  func.func @transform_10(%arg0: i32) -> (i32, i32, i32) {
    %c0_i32 = arith.constant 0 : i32
    %c0_i32_0 = arith.constant 0 : i32
    %c0_i32_1 = arith.constant 0 : i32
    %c0_i32_2 = arith.constant 0 : i32
    return %c0_i32, %c0_i32_0, %c0_i32_1 : i32, i32, i32
  }
  func.func @transform_11(%arg0: i32) -> (i32, i32) {
    %c0_i32 = arith.constant 0 : i32
    %c0_i32_0 = arith.constant 0 : i32
    %c0_i32_1 = arith.constant 0 : i32
    return %c0_i32, %c0_i32_0 : i32, i32
  }
  func.func @transform_12(%arg0: i32) -> (i32, i32) {
    %c0_i32 = arith.constant 0 : i32
    %c0_i32_0 = arith.constant 0 : i32
    %c0_i32_1 = arith.constant 0 : i32
    return %c0_i32, %c0_i32_0 : i32, i32
  }
  func.func @transform_13(%arg0: i32) -> (i32, i32) {
    %c0_i32 = arith.constant 0 : i32
    %c0_i32_0 = arith.constant 0 : i32
    %c0_i32_1 = arith.constant 0 : i32
    return %c0_i32, %c0_i32_0 : i32, i32
  }
  func.func @transform_14(%arg0: i32) -> (i32, i32) {
    %c0_i32 = arith.constant 0 : i32
    %c0_i32_0 = arith.constant 0 : i32
    %c0_i32_1 = arith.constant 0 : i32
    return %c0_i32, %c0_i32_0 : i32, i32
  }
  func.func @transform_15(%arg0: i32) -> (i32, i32) {
    %c0_i32 = arith.constant 0 : i32
    %c0_i32_0 = arith.constant 0 : i32
    %c0_i32_1 = arith.constant 0 : i32
    return %c0_i32, %c0_i32_0 : i32, i32
  }
  func.func @transform_16(%arg0: i32) -> (i32, i32) {
    %c0_i32 = arith.constant 0 : i32
    %c0_i32_0 = arith.constant 0 : i32
    return %arg0, %c0_i32 : i32, i32
  }
}

</mosaic_0001>

<llo_original>
// kernel: conv_encoder_forward.1
$region0: #{conv_encoder_forward.1}
  #allocation0 [shape = 'u32[]', space=smem, size = 0x4, offset = 0x4, fixed_abs, tag = 'smem constant byte address 0x4 - core index']
  #allocation1 [shape = 'u32[72,128]{1,0:T(1,128)}', space=vmem, size = 0x9000, scoped, tag = 'internal scratch']
  #allocation2 [shape = 'f32[8,48,11]{2,1,0:T(8,128)}', space=vmem, size = 0x30000, scoped, tag = 'scratch operand']
  %s0 = inlined_call_operand.vmem [shape: f32[16,136,104], index: 0, kind: input, shape index: {}]
  %s1 = inlined_call_operand.vmem [shape: f32[528,408], index: 1, kind: input, shape index: {}]
  %s2 = inlined_call_operand.vmem [shape: f32[264,1], index: 2, kind: input, shape index: {}]
  %s3 = inlined_call_operand.vmem [shape: f32[101,51], index: 3, kind: input, shape index: {}]
  %s4 = inlined_call_operand.vmem [shape: f32[480,792], index: 4, kind: input, shape index: {}]
  %s5 = inlined_call_operand.vmem [shape: f32[240,1], index: 5, kind: input, shape index: {}]
  %s6 = inlined_call_operand.vmem [shape: f32[48,24], index: 6, kind: input, shape index: {}]
  %s7 = inlined_call_operand.vmem [shape: f32[96,720], index: 7, kind: input, shape index: {}]
  %s8 = inlined_call_operand.vmem [shape: f32[48,1], index: 8, kind: input, shape index: {}]
  %s9 = inlined_call_operand.vmem [shape: f32[21,11], index: 9, kind: input, shape index: {}]
  %s10 = inlined_call_operand.vmem [shape: f32[11,48,256], index: 10, kind: input, shape index: {}]
  %s11 = inlined_call_operand.vmem [shape: f32[1,256], index: 11, kind: input, shape index: {}]
  %s12 = inlined_call_operand.vmem [shape: f32[256,64], index: 12, kind: input, shape index: {}]
  %s13 = inlined_call_operand.vmem [shape: f32[1,64], index: 13, kind: input, shape index: {}]
  %s14 = inlined_call_operand.vmem [shape: f32[64,32], index: 14, kind: input, shape index: {}]
  %s15 = inlined_call_operand.vmem [shape: f32[1,32], index: 15, kind: input, shape index: {}]
  %s16 = inlined_call_operand.hbm [shape: f32[16,32], index: 16, kind: output, shape index: {}]
  %s17 = sld [smem:[#allocation0]]
  $region104: #{conv_encoder_forward.1} parent=0
    _
  %s19 = ssub.s32 1, %s17
  %s20 = scalar_select 0, %s19, %s17
  $region1: #{conv_encoder_forward.1} parent=0
    #allocation3 [shape = 'u8[8192]{0}', space=vmem, size = 0x2000, scoped, tag = 'output window, operand 0']
    #allocation4 [shape = 's32[2]{0}', space=sflag, size = 0x8, scoped, tag = 'scoped memory for conv_encoder_forward.1']
    %21 = vsyncpa [#allocation4], 0
    %s22 = scalar_lea.sflag [#allocation4], 1
    %23 = vsyncpa %s22, 0
    loop: start=0, step=1, limit=4
    $region2: #{conv_encoder_forward.1} parent=1 // loop_pre_header
      _
    $region3: #{conv_encoder_forward.1} parent=1 // loop_header
      %s25 = sphi 0, %s29
      %p26 = scmp.ge.s32.totalorder %s25, 4
      %s35 = sphi 0, %s37
      %s38 = sphi 0, %s35
      %s39 = sphi 0, %s38
      %s55 = sphi 0, %s39
      %s59 = sphi 0, %s59
      %s61 = sphi 0, %s59
      %s62 = sphi 0, %s61
      %s76 = sphi 0, %s62
      %s80 = sphi 0, %s80
      %s82 = sphi 0, %s80
      %s83 = sphi 0, %s82
      %s97 = sphi 0, %s83
      %s101 = sphi 0, %s101
      %s103 = sphi 0, %s101
      %s104 = sphi 0, %s103
      %s118 = sphi 0, %s104
      %s122 = sphi 0, %s122
      %s124 = sphi 0, %s122
      %s125 = sphi 0, %s124
      %s139 = sphi 0, %s125
      %s143 = sphi 0, %s143
      %s145 = sphi 0, %s143
      %s146 = sphi 0, %s145
      %s160 = sphi 0, %s146
      %s164 = sphi 0, %s164
      %s166 = sphi 0, %s164
      %s167 = sphi 0, %s166
      %s181 = sphi 0, %s167
      %s185 = sphi 0, %s185
      %s187 = sphi 0, %s185
      %s188 = sphi 0, %s187
      %s202 = sphi 0, %s188
      %s206 = sphi 0, %s206
      %s208 = sphi 0, %s206
      %s209 = sphi 0, %s208
      %s223 = sphi 0, %s209
      %s227 = sphi 0, %s227
      %s229 = sphi 0, %s227
      %s230 = sphi 0, %s229
      %s244 = sphi 0, %s230
      %s248 = sphi 0, %s248
      %s250 = sphi 0, %s248
      %s251 = sphi 0, %s250
      %s265 = sphi 0, %s251
      %s269 = sphi 0, %s269
      %s271 = sphi 0, %s269
      %s272 = sphi 0, %s271
      %s286 = sphi 0, %s272
      %s290 = sphi 0, %s290
      %s292 = sphi 0, %s290
      %s293 = sphi 0, %s292
      %s307 = sphi 0, %s293
      %s311 = sphi 0, %s311
      %s313 = sphi 0, %s311
      %s314 = sphi 0, %s313
      %s328 = sphi 0, %s314
      %s332 = sphi 0, %s332
      %s334 = sphi 0, %s332
      %s335 = sphi 0, %s334
      %s349 = sphi 0, %s335
      %s353 = sphi 0, %s353
      %s355 = sphi 0, %s353
      %s356 = sphi 0, %s355
      %s370 = sphi 0, %s356
      %s376 = sphi 0, %s378
      %s379 = sphi 0, %s376
      %s380 = sphi 0, %s379
      %s396 = sphi 0, %s380
    $region4: #{conv_encoder_forward.1} parent=1 // loop_header_branch
      %28 = sbr.rel (%p26) target = $region8
    $region5: #{conv_encoder_forward.1} parent=1 // loop_body
      %s30 = ssub.s32 %s25, 1
      %s31 = ssub.s32 %s25, 2
      %s32 = sadd.s32 %s25, 1
      %s33 = ssub.s32 %s25, %s32
      %p34 = scmp.eq.s32.totalorder %s33, 0
      %s36 = sadd.s32 %s35, 1
      %s37 = scalar_select %p34, %s35, %s36
      %p40 = pneg %p34
      %p41 = scmp.eq.s32.totalorder %s25, 1
      %p42 = por %p40, %p41
      %p43 = scmp.ne.s32.totalorder %s35, %s38
      %p44 = scmp.eq.s32.totalorder %s25, 0
      %p45 = por %p43, %p44
      %p46 = scmp.ne.s32.totalorder %s35, %s38
      %p47 = scmp.eq.s32.totalorder %s30, 1
      %p48 = por %p46, %p47
      %p49 = scmp.ne.s32.totalorder %s38, %s39
      %p50 = scmp.eq.s32.totalorder %s30, 0
      %p51 = por %p49, %p50
      %p52 = scmp.ne.s32.totalorder %s38, %s39
      %p53 = scmp.eq.s32.totalorder %s31, 1
      %p54 = por %p52, %p53
      %p56 = scmp.ne.s32.totalorder %s39, %s55
      %p57 = scmp.eq.s32.totalorder %s31, 0
      %p58 = por %p56, %p57
      %s60 = sadd.s32 %s59, 1
      %p63 = scmp.eq.s32.totalorder %s25, 1
      %p64 = scmp.ne.s32.totalorder %s59, %s61
      %p65 = scmp.eq.s32.totalorder %s25, 0
      %p66 = por %p64, %p65
      %p67 = scmp.ne.s32.totalorder %s59, %s61
      %p68 = scmp.eq.s32.totalorder %s30, 1
      %p69 = por %p67, %p68
      %p70 = scmp.ne.s32.totalorder %s61, %s62
      %p71 = scmp.eq.s32.totalorder %s30, 0
      %p72 = por %p70, %p71
      %p73 = scmp.ne.s32.totalorder %s61, %s62
      %p74 = scmp.eq.s32.totalorder %s31, 1
      %p75 = por %p73, %p74
      %p77 = scmp.ne.s32.totalorder %s62, %s76
      %p78 = scmp.eq.s32.totalorder %s31, 0
      %p79 = por %p77, %p78
      %s81 = sadd.s32 %s80, 1
      %p84 = scmp.eq.s32.totalorder %s25, 1
      %p85 = scmp.ne.s32.totalorder %s80, %s82
      %p86 = scmp.eq.s32.totalorder %s25, 0
      %p87 = por %p85, %p86
      %p88 = scmp.ne.s32.totalorder %s80, %s82
      %p89 = scmp.eq.s32.totalorder %s30, 1
      %p90 = por %p88, %p89
      %p91 = scmp.ne.s32.totalorder %s82, %s83
      %p92 = scmp.eq.s32.totalorder %s30, 0
      %p93 = por %p91, %p92
      %p94 = scmp.ne.s32.totalorder %s82, %s83
      %p95 = scmp.eq.s32.totalorder %s31, 1
      %p96 = por %p94, %p95
      %p98 = scmp.ne.s32.totalorder %s83, %s97
      %p99 = scmp.eq.s32.totalorder %s31, 0
      %p100 = por %p98, %p99
      %s102 = sadd.s32 %s101, 1
      %p105 = scmp.eq.s32.totalorder %s25, 1
      %p106 = scmp.ne.s32.totalorder %s101, %s103
      %p107 = scmp.eq.s32.totalorder %s25, 0
      %p108 = por %p106, %p107
      %p109 = scmp.ne.s32.totalorder %s101, %s103
      %p110 = scmp.eq.s32.totalorder %s30, 1
      %p111 = por %p109, %p110
      %p112 = scmp.ne.s32.totalorder %s103, %s104
      %p113 = scmp.eq.s32.totalorder %s30, 0
      %p114 = por %p112, %p113
      %p115 = scmp.ne.s32.totalorder %s103, %s104
      %p116 = scmp.eq.s32.totalorder %s31, 1
      %p117 = por %p115, %p116
      %p119 = scmp.ne.s32.totalorder %s104, %s118
      %p120 = scmp.eq.s32.totalorder %s31, 0
      %p121 = por %p119, %p120
      %s123 = sadd.s32 %s122, 1
      %p126 = scmp.eq.s32.totalorder %s25, 1
      %p127 = scmp.ne.s32.totalorder %s122, %s124
      %p128 = scmp.eq.s32.totalorder %s25, 0
      %p129 = por %p127, %p128
      %p130 = scmp.ne.s32.totalorder %s122, %s124
      %p131 = scmp.eq.s32.totalorder %s30, 1
      %p132 = por %p130, %p131
      %p133 = scmp.ne.s32.totalorder %s124, %s125
      %p134 = scmp.eq.s32.totalorder %s30, 0
      %p135 = por %p133, %p134
      %p136 = scmp.ne.s32.totalorder %s124, %s125
      %p137 = scmp.eq.s32.totalorder %s31, 1
      %p138 = por %p136, %p137
      %p140 = scmp.ne.s32.totalorder %s125, %s139
      %p141 = scmp.eq.s32.totalorder %s31, 0
      %p142 = por %p140, %p141
      %s144 = sadd.s32 %s143, 1
      %p147 = scmp.eq.s32.totalorder %s25, 1
      %p148 = scmp.ne.s32.totalorder %s143, %s145
      %p149 = scmp.eq.s32.totalorder %s25, 0
      %p150 = por %p148, %p149
      %p151 = scmp.ne.s32.totalorder %s143, %s145
      %p152 = scmp.eq.s32.totalorder %s30, 1
      %p153 = por %p151, %p152
      %p154 = scmp.ne.s32.totalorder %s145, %s146
      %p155 = scmp.eq.s32.totalorder %s30, 0
      %p156 = por %p154, %p155
      %p157 = scmp.ne.s32.totalorder %s145, %s146
      %p158 = scmp.eq.s32.totalorder %s31, 1
      %p159 = por %p157, %p158
      %p161 = scmp.ne.s32.totalorder %s146, %s160
      %p162 = scmp.eq.s32.totalorder %s31, 0
      %p163 = por %p161, %p162
      %s165 = sadd.s32 %s164, 1
      %p168 = scmp.eq.s32.totalorder %s25, 1
      %p169 = scmp.ne.s32.totalorder %s164, %s166
      %p170 = scmp.eq.s32.totalorder %s25, 0
      %p171 = por %p169, %p170
      %p172 = scmp.ne.s32.totalorder %s164, %s166
      %p173 = scmp.eq.s32.totalorder %s30, 1
      %p174 = por %p172, %p173
      %p175 = scmp.ne.s32.totalorder %s166, %s167
      %p176 = scmp.eq.s32.totalorder %s30, 0
      %p177 = por %p175, %p176
      %p178 = scmp.ne.s32.totalorder %s166, %s167
      %p179 = scmp.eq.s32.totalorder %s31, 1
      %p180 = por %p178, %p179
      %p182 = scmp.ne.s32.totalorder %s167, %s181
      %p183 = scmp.eq.s32.totalorder %s31, 0
      %p184 = por %p182, %p183
      %s186 = sadd.s32 %s185, 1
      %p189 = scmp.eq.s32.totalorder %s25, 1
      %p190 = scmp.ne.s32.totalorder %s185, %s187
      %p191 = scmp.eq.s32.totalorder %s25, 0
      %p192 = por %p190, %p191
      %p193 = scmp.ne.s32.totalorder %s185, %s187
      %p194 = scmp.eq.s32.totalorder %s30, 1
      %p195 = por %p193, %p194
      %p196 = scmp.ne.s32.totalorder %s187, %s188
      %p197 = scmp.eq.s32.totalorder %s30, 0
      %p198 = por %p196, %p197
      %p199 = scmp.ne.s32.totalorder %s187, %s188
      %p200 = scmp.eq.s32.totalorder %s31, 1
      %p201 = por %p199, %p200
      %p203 = scmp.ne.s32.totalorder %s188, %s202
      %p204 = scmp.eq.s32.totalorder %s31, 0
      %p205 = por %p203, %p204
      %s207 = sadd.s32 %s206, 1
      %p210 = scmp.eq.s32.totalorder %s25, 1
      %p211 = scmp.ne.s32.totalorder %s206, %s208
      %p212 = scmp.eq.s32.totalorder %s25, 0
      %p213 = por %p211, %p212
      %p214 = scmp.ne.s32.totalorder %s206, %s208
      %p215 = scmp.eq.s32.totalorder %s30, 1
      %p216 = por %p214, %p215
      %p217 = scmp.ne.s32.totalorder %s208, %s209
      %p218 = scmp.eq.s32.totalorder %s30, 0
      %p219 = por %p217, %p218
      %p220 = scmp.ne.s32.totalorder %s208, %s209
      %p221 = scmp.eq.s32.totalorder %s31, 1
      %p222 = por %p220, %p221
      %p224 = scmp.ne.s32.totalorder %s209, %s223
      %p225 = scmp.eq.s32.totalorder %s31, 0
      %p226 = por %p224, %p225
      %s228 = sadd.s32 %s227, 1
      %p231 = scmp.eq.s32.totalorder %s25, 1
      %p232 = scmp.ne.s32.totalorder %s227, %s229
      %p233 = scmp.eq.s32.totalorder %s25, 0
      %p234 = por %p232, %p233
      %p235 = scmp.ne.s32.totalorder %s227, %s229
      %p236 = scmp.eq.s32.totalorder %s30, 1
      %p237 = por %p235, %p236
      %p238 = scmp.ne.s32.totalorder %s229, %s230
      %p239 = scmp.eq.s32.totalorder %s30, 0
      %p240 = por %p238, %p239
      %p241 = scmp.ne.s32.totalorder %s229, %s230
      %p242 = scmp.eq.s32.totalorder %s31, 1
      %p243 = por %p241, %p242
      %p245 = scmp.ne.s32.totalorder %s230, %s244
      %p246 = scmp.eq.s32.totalorder %s31, 0
      %p247 = por %p245, %p246
      %s249 = sadd.s32 %s248, 1
      %p252 = scmp.eq.s32.totalorder %s25, 1
      %p253 = scmp.ne.s32.totalorder %s248, %s250
      %p254 = scmp.eq.s32.totalorder %s25, 0
      %p255 = por %p253, %p254
      %p256 = scmp.ne.s32.totalorder %s248, %s250
      %p257 = scmp.eq.s32.totalorder %s30, 1
      %p258 = por %p256, %p257
      %p259 = scmp.ne.s32.totalorder %s250, %s251
      %p260 = scmp.eq.s32.totalorder %s30, 0
      %p261 = por %p259, %p260
      %p262 = scmp.ne.s32.totalorder %s250, %s251
      %p263 = scmp.eq.s32.totalorder %s31, 1
      %p264 = por %p262, %p263
      %p266 = scmp.ne.s32.totalorder %s251, %s265
      %p267 = scmp.eq.s32.totalorder %s31, 0
      %p268 = por %p266, %p267
      %s270 = sadd.s32 %s269, 1
      %p273 = scmp.eq.s32.totalorder %s25, 1
      %p274 = scmp.ne.s32.totalorder %s269, %s271
      %p275 = scmp.eq.s32.totalorder %s25, 0
      %p276 = por %p274, %p275
      %p277 = scmp.ne.s32.totalorder %s269, %s271
      %p278 = scmp.eq.s32.totalorder %s30, 1
      %p279 = por %p277, %p278
      %p280 = scmp.ne.s32.totalorder %s271, %s272
      %p281 = scmp.eq.s32.totalorder %s30, 0
      %p282 = por %p280, %p281
      %p283 = scmp.ne.s32.totalorder %s271, %s272
      %p284 = scmp.eq.s32.totalorder %s31, 1
      %p285 = por %p283, %p284
      %p287 = scmp.ne.s32.totalorder %s272, %s286
      %p288 = scmp.eq.s32.totalorder %s31, 0
      %p289 = por %p287, %p288
      %s291 = sadd.s32 %s290, 1
      %p294 = scmp.eq.s32.totalorder %s25, 1
      %p295 = scmp.ne.s32.totalorder %s290, %s292
      %p296 = scmp.eq.s32.totalorder %s25, 0
      %p297 = por %p295, %p296
      %p298 = scmp.ne.s32.totalorder %s290, %s292
      %p299 = scmp.eq.s32.totalorder %s30, 1
      %p300 = por %p298, %p299
      %p301 = scmp.ne.s32.totalorder %s292, %s293
      %p302 = scmp.eq.s32.totalorder %s30, 0
      %p303 = por %p301, %p302
      %p304 = scmp.ne.s32.totalorder %s292, %s293
      %p305 = scmp.eq.s32.totalorder %s31, 1
      %p306 = por %p304, %p305
      %p308 = scmp.ne.s32.totalorder %s293, %s307
      %p309 = scmp.eq.s32.totalorder %s31, 0
      %p310 = por %p308, %p309
      %s312 = sadd.s32 %s311, 1
      %p315 = scmp.eq.s32.totalorder %s25, 1
      %p316 = scmp.ne.s32.totalorder %s311, %s313
      %p317 = scmp.eq.s32.totalorder %s25, 0
      %p318 = por %p316, %p317
      %p319 = scmp.ne.s32.totalorder %s311, %s313
      %p320 = scmp.eq.s32.totalorder %s30, 1
      %p321 = por %p319, %p320
      %p322 = scmp.ne.s32.totalorder %s313, %s314
      %p323 = scmp.eq.s32.totalorder %s30, 0
      %p324 = por %p322, %p323
      %p325 = scmp.ne.s32.totalorder %s313, %s314
      %p326 = scmp.eq.s32.totalorder %s31, 1
      %p327 = por %p325, %p326
      %p329 = scmp.ne.s32.totalorder %s314, %s328
      %p330 = scmp.eq.s32.totalorder %s31, 0
      %p331 = por %p329, %p330
      %s333 = sadd.s32 %s332, 1
      %p336 = scmp.eq.s32.totalorder %s25, 1
      %p337 = scmp.ne.s32.totalorder %s332, %s334
      %p338 = scmp.eq.s32.totalorder %s25, 0
      %p339 = por %p337, %p338
      %p340 = scmp.ne.s32.totalorder %s332, %s334
      %p341 = scmp.eq.s32.totalorder %s30, 1
      %p342 = por %p340, %p341
      %p343 = scmp.ne.s32.totalorder %s334, %s335
      %p344 = scmp.eq.s32.totalorder %s30, 0
      %p345 = por %p343, %p344
      %p346 = scmp.ne.s32.totalorder %s334, %s335
      %p347 = scmp.eq.s32.totalorder %s31, 1
      %p348 = por %p346, %p347
      %p350 = scmp.ne.s32.totalorder %s335, %s349
      %p351 = scmp.eq.s32.totalorder %s31, 0
      %p352 = por %p350, %p351
      %s354 = sadd.s32 %s353, 1
      %p357 = scmp.eq.s32.totalorder %s25, 1
      %p358 = scmp.ne.s32.totalorder %s353, %s355
      %p359 = scmp.eq.s32.totalorder %s25, 0
      %p360 = por %p358, %p359
      %p361 = scmp.ne.s32.totalorder %s353, %s355
      %p362 = scmp.eq.s32.totalorder %s30, 1
      %p363 = por %p361, %p362
      %p364 = scmp.ne.s32.totalorder %s355, %s356
      %p365 = scmp.eq.s32.totalorder %s30, 0
      %p366 = por %p364, %p365
      %p367 = scmp.ne.s32.totalorder %s355, %s356
      %p368 = scmp.eq.s32.totalorder %s31, 1
      %p369 = por %p367, %p368
      %p371 = scmp.ne.s32.totalorder %s356, %s370
      %p372 = scmp.eq.s32.totalorder %s31, 0
      %p373 = por %p371, %p372
      %s374 = ssub.s32 %s25, %s32
      %p375 = scmp.eq.s32.totalorder %s374, 0
      %s377 = sadd.s32 %s376, 1
      %s378 = scalar_select %p375, %s376, %s377
      %p381 = pneg %p375
      %p382 = scmp.eq.s32.totalorder %s25, 1
      %p383 = por %p381, %p382
      %p384 = scmp.ne.s32.totalorder %s376, %s379
      %p385 = scmp.eq.s32.totalorder %s25, 0
      %p386 = por %p384, %p385
      %p387 = scmp.ne.s32.totalorder %s376, %s379
      %p388 = scmp.eq.s32.totalorder %s30, 1
      %p389 = por %p387, %p388
      %p390 = scmp.ne.s32.totalorder %s379, %s380
      %p391 = scmp.eq.s32.totalorder %s30, 0
      %p392 = por %p390, %p391
      %p393 = scmp.ne.s32.totalorder %s379, %s380
      %p394 = scmp.eq.s32.totalorder %s31, 1
      %p395 = por %p393, %p394
      %p397 = scmp.ne.s32.totalorder %s380, %s396
      %p398 = scmp.eq.s32.totalorder %s31, 0
      %p399 = por %p397, %p398
      %p400 = scmp.le.s32.totalorder 1, %s25
      %p401 = scmp.lt.s32.totalorder %s25, 3
      %p402 = pnand %p400, %p401
      %p403 = pneg %p402
      // Predicated region
      $region9: #{conv_encoder_forward.1} parent=5 // pred_check
        _
      $region10: #{conv_encoder_forward.1} parent=5 // pred_check_branch
        %405 = sbr.rel (%p402) target = $region12
      $region11: #{conv_encoder_forward.1} parent=5 // pred_region
        %s406 = ssub.s32 %s25, 1
        // Predicated region
        $region13: #{conv_encoder_forward.1} parent=11 // pred_check
          %p407 = pneg %p72
        $region14: #{conv_encoder_forward.1} parent=11 // pred_check_branch
          %409 = sbr.rel (%p407) target = $region16
        $region15: #{conv_encoder_forward.1} parent=11 // pred_region
          _
        $region16: #{conv_encoder_forward.1} parent=11 // pred_fallthru
          _
        // Predicated region
        $region17: #{conv_encoder_forward.1} parent=11 // pred_check
          %p410 = pneg %p93
        $region18: #{conv_encoder_forward.1} parent=11 // pred_check_branch
          %412 = sbr.rel (%p410) target = $region20
        $region19: #{conv_encoder_forward.1} parent=11 // pred_region
          _
        $region20: #{conv_encoder_forward.1} parent=11 // pred_fallthru
          _
        // Predicated region
        $region21: #{conv_encoder_forward.1} parent=11 // pred_check
          %p413 = pneg %p114
        $region22: #{conv_encoder_forward.1} parent=11 // pred_check_branch
          %415 = sbr.rel (%p413) target = $region24
        $region23: #{conv_encoder_forward.1} parent=11 // pred_region
          _
        $region24: #{conv_encoder_forward.1} parent=11 // pred_fallthru
          _
        // Predicated region
        $region25: #{conv_encoder_forward.1} parent=11 // pred_check
          %p416 = pneg %p135
        $region26: #{conv_encoder_forward.1} parent=11 // pred_check_branch
          %418 = sbr.rel (%p416) target = $region28
        $region27: #{conv_encoder_forward.1} parent=11 // pred_region
          _
        $region28: #{conv_encoder_forward.1} parent=11 // pred_fallthru
          _
        // Predicated region
        $region29: #{conv_encoder_forward.1} parent=11 // pred_check
          %p419 = pneg %p156
        $region30: #{conv_encoder_forward.1} parent=11 // pred_check_branch
          %421 = sbr.rel (%p419) target = $region32
        $region31: #{conv_encoder_forward.1} parent=11 // pred_region
          _
        $region32: #{conv_encoder_forward.1} parent=11 // pred_fallthru
          _
        // Predicated region
        $region33: #{conv_encoder_forward.1} parent=11 // pred_check
          %p422 = pneg %p177
        $region34: #{conv_encoder_forward.1} parent=11 // pred_check_branch
          %424 = sbr.rel (%p422) target = $region36
        $region35: #{conv_encoder_forward.1} parent=11 // pred_region
          _
        $region36: #{conv_encoder_forward.1} parent=11 // pred_fallthru
          _
        // Predicated region
        $region37: #{conv_encoder_forward.1} parent=11 // pred_check
          %p425 = pneg %p198
        $region38: #{conv_encoder_forward.1} parent=11 // pred_check_branch
          %427 = sbr.rel (%p425) target = $region40
        $region39: #{conv_encoder_forward.1} parent=11 // pred_region
          _
        $region40: #{conv_encoder_forward.1} parent=11 // pred_fallthru
          _
        // Predicated region
        $region41: #{conv_encoder_forward.1} parent=11 // pred_check
          %p428 = pneg %p219
        $region42: #{conv_encoder_forward.1} parent=11 // pred_check_branch
          %430 = sbr.rel (%p428) target = $region44
        $region43: #{conv_encoder_forward.1} parent=11 // pred_region
          _
        $region44: #{conv_encoder_forward.1} parent=11 // pred_fallthru
          _
        // Predicated region
        $region45: #{conv_encoder_forward.1} parent=11 // pred_check
          %p431 = pneg %p240
        $region46: #{conv_encoder_forward.1} parent=11 // pred_check_branch
          %433 = sbr.rel (%p431) target = $region48
        $region47: #{conv_encoder_forward.1} parent=11 // pred_region
          _
        $region48: #{conv_encoder_forward.1} parent=11 // pred_fallthru
          _
        // Predicated region
        $region49: #{conv_encoder_forward.1} parent=11 // pred_check
          %p434 = pneg %p261
        $region50: #{conv_encoder_forward.1} parent=11 // pred_check_branch
          %436 = sbr.rel (%p434) target = $region52
        $region51: #{conv_encoder_forward.1} parent=11 // pred_region
          _
        $region52: #{conv_encoder_forward.1} parent=11 // pred_fallthru
          _
        // Predicated region
        $region53: #{conv_encoder_forward.1} parent=11 // pred_check
          %p437 = pneg %p282
        $region54: #{conv_encoder_forward.1} parent=11 // pred_check_branch
          %439 = sbr.rel (%p437) target = $region56
        $region55: #{conv_encoder_forward.1} parent=11 // pred_region
          _
        $region56: #{conv_encoder_forward.1} parent=11 // pred_fallthru
          _
        // Predicated region
        $region57: #{conv_encoder_forward.1} parent=11 // pred_check
          %p440 = pneg %p303
        $region58: #{conv_encoder_forward.1} parent=11 // pred_check_branch
          %442 = sbr.rel (%p440) target = $region60
        $region59: #{conv_encoder_forward.1} parent=11 // pred_region
          _
        $region60: #{conv_encoder_forward.1} parent=11 // pred_fallthru
          _
        // Predicated region
        $region61: #{conv_encoder_forward.1} parent=11 // pred_check
          %p443 = pneg %p324
        $region62: #{conv_encoder_forward.1} parent=11 // pred_check_branch
          %445 = sbr.rel (%p443) target = $region64
        $region63: #{conv_encoder_forward.1} parent=11 // pred_region
          _
        $region64: #{conv_encoder_forward.1} parent=11 // pred_fallthru
          _
        // Predicated region
        $region65: #{conv_encoder_forward.1} parent=11 // pred_check
          %p446 = pneg %p345
        $region66: #{conv_encoder_forward.1} parent=11 // pred_check_branch
          %448 = sbr.rel (%p446) target = $region68
        $region67: #{conv_encoder_forward.1} parent=11 // pred_region
          _
        $region68: #{conv_encoder_forward.1} parent=11 // pred_fallthru
          _
        // Predicated region
        $region69: #{conv_encoder_forward.1} parent=11 // pred_check
          %p449 = pneg %p366
        $region70: #{conv_encoder_forward.1} parent=11 // pred_check_branch
          %451 = sbr.rel (%p449) target = $region72
        $region71: #{conv_encoder_forward.1} parent=11 // pred_region
          _
        $region72: #{conv_encoder_forward.1} parent=11 // pred_fallthru
          _
      $region12: #{conv_encoder_forward.1} parent=5 // pred_fallthru
        _
      %p452 = scmp.lt.s32.totalorder %s25, 2
      // Predicated region
      $region73: #{conv_encoder_forward.1} parent=5 // pred_check
        %p453 = pneg %p452
      $region74: #{conv_encoder_forward.1} parent=5 // pred_check_branch
        %455 = sbr.rel (%p453) target = $region76
      $region75: #{conv_encoder_forward.1} parent=5 // pred_region
        // Predicated region
        $region77: #{conv_encoder_forward.1} parent=75 // pred_check
          %p456 = pneg %p45
        $region78: #{conv_encoder_forward.1} parent=75 // pred_check_branch
          %458 = sbr.rel (%p456) target = $region80
        $region79: #{conv_encoder_forward.1} parent=75 // pred_region
          %s459 = smul.u32 8, %s25
          %p460 = scmp.lt.s32.totalorder %s459, 15
          %s461 = scalar_select %p460, %s459, 15
          %s462 = smul.addr %s461, 17
          %s463 = smul.addr %s462, 8
          %s464 = scalar_lea.vmem %s0, %s463
          %s465 = smul.u32 8, %s25
        $region80: #{conv_encoder_forward.1} parent=75 // pred_fallthru
          _
      $region76: #{conv_encoder_forward.1} parent=5 // pred_fallthru
        _
      %p466 = scmp.le.s32.totalorder 1, %s25
      %p467 = scmp.lt.s32.totalorder %s25, 3
      %p468 = pnand %p466, %p467
      %p469 = pneg %p468
      // Predicated region
      $region81: #{conv_encoder_forward.1} parent=5 // pred_check
        _
      $region82: #{conv_encoder_forward.1} parent=5 // pred_check_branch
        %471 = sbr.rel (%p468) target = $region84
      $region83: #{conv_encoder_forward.1} parent=5 // pred_region
        %s472 = ssub.s32 %s25, 1
        %s473 = smul.u32 8, %s30
        %p474 = scmp.lt.s32.totalorder %s473, 15
        %s475 = scalar_select %p474, %s473, 15
        %s476 = smul.addr %s475, 17
        %s477 = smul.addr %s476, 8
        %s478 = scalar_lea.vmem %s0, %s477
        %p479 = pneg %p51
        %p480 = pneg %p48
        %p481 = pneg %p72
        %p482 = pneg %p69
        %p483 = pneg %p93
        %p484 = pneg %p90
        %p485 = pneg %p114
        %p486 = pneg %p111
        %p487 = pneg %p135
        %p488 = pneg %p132
        %p489 = pneg %p156
        %p490 = pneg %p153
        %p491 = pneg %p177
        %p492 = pneg %p174
        %p493 = pneg %p198
        %p494 = pneg %p195
        %p495 = pneg %p219
        %p496 = pneg %p216
        %p497 = pneg %p240
        %p498 = pneg %p237
        %p499 = pneg %p261
        %p500 = pneg %p258
        %p501 = pneg %p282
        %p502 = pneg %p279
        %p503 = pneg %p303
        %p504 = pneg %p300
        %p505 = pneg %p324
        %p506 = pneg %p321
        %p507 = pneg %p345
        %p508 = pneg %p342
        %p509 = pneg %p366
        %p510 = pneg %p363
        %p511 = pneg %p392
        %p512 = pneg %p389
        %s513 = sand.u32 %s379, 1
        %s514 = scalar_lea.sflag [#allocation4], %s513
        %s515 = sand.u32 %s379, 1
        %s516 = smul.addr %s515, 8
        %s517 = scalar_lea.vmem [#allocation3], %s516
        %s518 = smul.u32 8, %s30
        %p519 = scmp.lt.s32.totalorder %s518, 15
        %s520 = scalar_select %p519, %s518, 15
        %s521 = smul.addr %s520, 17
        %s522 = smul.addr %s521, 8
        %s523 = scalar_lea.vmem %s0, %s522
        %s524 = smul.u32 8, %s30
        loop: start=0, step=1, limit=8
        $region85: #{conv_encoder_forward.1} parent=83 // loop_pre_header
          _
        $region86: #{conv_encoder_forward.1} parent=83 // loop_header
          %s526 = sphi 0, %s530
          %p527 = scmp.ge.s32.totalorder %s526, 8
        $region87: #{conv_encoder_forward.1} parent=83 // loop_header_branch
          %529 = sbr.rel (%p527) target = $region91
        $region88: #{conv_encoder_forward.1} parent=83 // loop_body
          %s531 = smul.u32 %s526, 136
          %s532 = scalar_lea.vmem %s523, %s531
          %v533 = vld [vmem:[%s532] sm:$0xff]
          %v534 = vld [vmem:[%s532 + $0x8] sm:$0xff]
          %v535 = vld [vmem:[%s532 + $0x10] sm:$0xff]
          %v536 = vld [vmem:[%s532 + $0x18] sm:$0xff]
          %v537 = vld [vmem:[%s532 + $0x20] sm:$0xff]
          %v538 = vld [vmem:[%s532 + $0x28] sm:$0xff]
          %v539 = vld [vmem:[%s532 + $0x30] sm:$0xff]
          %v540 = vld [vmem:[%s532 + $0x38] sm:$0xff]
          %v541 = vld [vmem:[%s532 + $0x40] sm:$0xff]
          %v542 = vld [vmem:[%s532 + $0x48] sm:$0xff]
          %v543 = vld [vmem:[%s532 + $0x50] sm:$0xff]
          %v544 = vld [vmem:[%s532 + $0x58] sm:$0xff]
          %v545 = vld [vmem:[%s532 + $0x60] sm:$0xff]
          %v546 = vld [vmem:[%s532 + $0x68] sm:$0xff]
          %v547 = vld [vmem:[%s532 + $0x70] sm:$0xff]
          %v548 = vld [vmem:[%s532 + $0x78] sm:$0xff]
          %v549 = vld [vmem:[%s532 + $0x80] sm:$0xff]
          %567 = vrot.lane.b32.xlu0 %v533, 127
          %v568 = vpop.permute.xlu0 %567
          %569 = vrot.lane.b32.xlu0 %v534, 127
          %v570 = vpop.permute.xlu0 %569
          %571 = vrot.lane.b32.xlu0 %v535, 127
          %v572 = vpop.permute.xlu0 %571
          %573 = vrot.lane.b32.xlu0 %v536, 127
          %v574 = vpop.permute.xlu0 %573
          %575 = vrot.lane.b32.xlu0 %v537, 127
          %v576 = vpop.permute.xlu0 %575
          %577 = vrot.lane.b32.xlu0 %v538, 127
          %v578 = vpop.permute.xlu0 %577
          %579 = vrot.lane.b32.xlu0 %v539, 127
          %v580 = vpop.permute.xlu0 %579
          %581 = vrot.lane.b32.xlu0 %v540, 127
          %v582 = vpop.permute.xlu0 %581
          %583 = vrot.lane.b32.xlu0 %v541, 127
          %v584 = vpop.permute.xlu0 %583
          %585 = vrot.lane.b32.xlu0 %v542, 127
          %v586 = vpop.permute.xlu0 %585
          %587 = vrot.lane.b32.xlu0 %v543, 127
          %v588 = vpop.permute.xlu0 %587
          %589 = vrot.lane.b32.xlu0 %v544, 127
          %v590 = vpop.permute.xlu0 %589
          %591 = vrot.lane.b32.xlu0 %v545, 127
          %v592 = vpop.permute.xlu0 %591
          %593 = vrot.lane.b32.xlu0 %v546, 127
          %v594 = vpop.permute.xlu0 %593
          %595 = vrot.lane.b32.xlu0 %v547, 127
          %v596 = vpop.permute.xlu0 %595
          %597 = vrot.lane.b32.xlu0 %v548, 127
          %v598 = vpop.permute.xlu0 %597
          %599 = vrot.lane.b32.xlu0 %v549, 127
          %v600 = vpop.permute.xlu0 %599
          %618 = vrot.lane.b32.xlu0 %v533, 126
          %v619 = vpop.permute.xlu0 %618
          %620 = vrot.lane.b32.xlu0 %v534, 126
          %v621 = vpop.permute.xlu0 %620
          %622 = vrot.lane.b32.xlu0 %v535, 126
          %v623 = vpop.permute.xlu0 %622
          %624 = vrot.lane.b32.xlu0 %v536, 126
          %v625 = vpop.permute.xlu0 %624
          %626 = vrot.lane.b32.xlu0 %v537, 126
          %v627 = vpop.permute.xlu0 %626
          %628 = vrot.lane.b32.xlu0 %v538, 126
          %v629 = vpop.permute.xlu0 %628
          %630 = vrot.lane.b32.xlu0 %v539, 126
          %v631 = vpop.permute.xlu0 %630
          %632 = vrot.lane.b32.xlu0 %v540, 126
          %v633 = vpop.permute.xlu0 %632
          %634 = vrot.lane.b32.xlu0 %v541, 126
          %v635 = vpop.permute.xlu0 %634
          %636 = vrot.lane.b32.xlu0 %v542, 126
          %v637 = vpop.permute.xlu0 %636
          %638 = vrot.lane.b32.xlu0 %v543, 126
          %v639 = vpop.permute.xlu0 %638
          %640 = vrot.lane.b32.xlu0 %v544, 126
          %v641 = vpop.permute.xlu0 %640
          %642 = vrot.lane.b32.xlu0 %v545, 126
          %v643 = vpop.permute.xlu0 %642
          %644 = vrot.lane.b32.xlu0 %v546, 126
          %v645 = vpop.permute.xlu0 %644
          %646 = vrot.lane.b32.xlu0 %v547, 126
          %v647 = vpop.permute.xlu0 %646
          %648 = vrot.lane.b32.xlu0 %v548, 126
          %v649 = vpop.permute.xlu0 %648
          %650 = vrot.lane.b32.xlu0 %v549, 126
          %v651 = vpop.permute.xlu0 %650
          %v669 = vld [vmem:[%s1] sm:$0xff]
          %v670 = vld [vmem:[%s1 + $0x8] sm:$0xff]
          %v671 = vld [vmem:[%s1 + $0x10] sm:$0xff]
          %v672 = vld [vmem:[%s1 + $0x18] sm:$0xff]
          %v673 = vld [vmem:[%s1 + $0x20] sm:$0xff]
          %v674 = vld [vmem:[%s1 + $0x28] sm:$0xff]
          %v675 = vld [vmem:[%s1 + $0x30] sm:$0xff]
          %v676 = vld [vmem:[%s1 + $0x38] sm:$0xff]
          %v677 = vld [vmem:[%s1 + $0x40] sm:$0xff]
          %v678 = vld [vmem:[%s1 + $0x48] sm:$0xff]
          %v679 = vld [vmem:[%s1 + $0x50] sm:$0xff]
          %v680 = vld [vmem:[%s1 + $0x58] sm:$0xff]
          %v681 = vld [vmem:[%s1 + $0x60] sm:$0xff]
          %v682 = vld [vmem:[%s1 + $0x68] sm:$0xff]
          %v683 = vld [vmem:[%s1 + $0x70] sm:$0xff]
          %v684 = vld [vmem:[%s1 + $0x78] sm:$0xff]
          %v685 = vld [vmem:[%s1 + $0x80] sm:$0xff]
          %v686 = vld [vmem:[%s1 + $0x88] sm:$0xff]
          %v687 = vld [vmem:[%s1 + $0x90] sm:$0xff]
          %v688 = vld [vmem:[%s1 + $0x98] sm:$0xff]
          %v689 = vld [vmem:[%s1 + $0xa0] sm:$0xff]
          %v690 = vld [vmem:[%s1 + $0xa8] sm:$0xff]
          %v691 = vld [vmem:[%s1 + $0xb0] sm:$0xff]
          %v692 = vld [vmem:[%s1 + $0xb8] sm:$0xff]
          %v693 = vld [vmem:[%s1 + $0xc0] sm:$0xff]
          %v694 = vld [vmem:[%s1 + $0xc8] sm:$0xff]
          %v695 = vld [vmem:[%s1 + $0xd0] sm:$0xff]
          %v696 = vld [vmem:[%s1 + $0xd8] sm:$0xff]
          %v697 = vld [vmem:[%s1 + $0xe0] sm:$0xff]
          %v698 = vld [vmem:[%s1 + $0xe8] sm:$0xff]
          %v699 = vld [vmem:[%s1 + $0xf0] sm:$0xff]
          %v700 = vld [vmem:[%s1 + $0xf8] sm:$0xff]
          %v701 = vld [vmem:[%s1 + $0x100] sm:$0xff]
          %v702 = vld [vmem:[%s1 + $0x108] sm:$0xff]
          %v703 = vld [vmem:[%s1 + $0x110] sm:$0xff]
          %v704 = vld [vmem:[%s1 + $0x118] sm:$0xff]
          %v705 = vld [vmem:[%s1 + $0x120] sm:$0xff]
          %v706 = vld [vmem:[%s1 + $0x128] sm:$0xff]
          %v707 = vld [vmem:[%s1 + $0x130] sm:$0xff]
          %v708 = vld [vmem:[%s1 + $0x138] sm:$0xff]
          %v709 = vld [vmem:[%s1 + $0x140] sm:$0xff]
          %v710 = vld [vmem:[%s1 + $0x148] sm:$0xff]
          %v711 = vld [vmem:[%s1 + $0x150] sm:$0xff]
          %v712 = vld [vmem:[%s1 + $0x158] sm:$0xff]
          %v713 = vld [vmem:[%s1 + $0x160] sm:$0xff]
          %v714 = vld [vmem:[%s1 + $0x168] sm:$0xff]
          %v715 = vld [vmem:[%s1 + $0x170] sm:$0xff]
          %v716 = vld [vmem:[%s1 + $0x178] sm:$0xff]
          %v717 = vld [vmem:[%s1 + $0x180] sm:$0xff]
          %v718 = vld [vmem:[%s1 + $0x188] sm:$0xff]
          %v719 = vld [vmem:[%s1 + $0x190] sm:$0xff]
          %v720 = vld [vmem:[%s1 + $0x198] sm:$0xff]
          %v721 = vld [vmem:[%s1 + $0x1a0] sm:$0xff]
          %v722 = vld [vmem:[%s1 + $0x1a8] sm:$0xff]
          %v723 = vld [vmem:[%s1 + $0x1b0] sm:$0xff]
          %v724 = vld [vmem:[%s1 + $0x1b8] sm:$0xff]
          %v725 = vld [vmem:[%s1 + $0x1c0] sm:$0xff]
          %v726 = vld [vmem:[%s1 + $0x1c8] sm:$0xff]
          %v727 = vld [vmem:[%s1 + $0x1d0] sm:$0xff]
          %v728 = vld [vmem:[%s1 + $0x1d8] sm:$0xff]
          %v729 = vld [vmem:[%s1 + $0x1e0] sm:$0xff]
          %v730 = vld [vmem:[%s1 + $0x1e8] sm:$0xff]
          %v731 = vld [vmem:[%s1 + $0x1f0] sm:$0xff]
          %v732 = vld [vmem:[%s1 + $0x1f8] sm:$0xff]
          %v733 = vld [vmem:[%s1 + $0x200] sm:$0xff]
          %v734 = vld [vmem:[%s1 + $0x208] sm:$0xff]
          %v735 = vld [vmem:[%s1 + $0x210] sm:$0xff]
          %v736 = vld [vmem:[%s1 + $0x218] sm:$0xff]
          %v737 = vld [vmem:[%s1 + $0x220] sm:$0xff]
          %v738 = vld [vmem:[%s1 + $0x228] sm:$0xff]
          %v739 = vld [vmem:[%s1 + $0x230] sm:$0xff]
          %v740 = vld [vmem:[%s1 + $0x238] sm:$0xff]
          %v741 = vld [vmem:[%s1 + $0x240] sm:$0xff]
          %v742 = vld [vmem:[%s1 + $0x248] sm:$0xff]
          %v743 = vld [vmem:[%s1 + $0x250] sm:$0xff]
          %v744 = vld [vmem:[%s1 + $0x258] sm:$0xff]
          %v745 = vld [vmem:[%s1 + $0x260] sm:$0xff]
          %v746 = vld [vmem:[%s1 + $0x268] sm:$0xff]
          %v747 = vld [vmem:[%s1 + $0x270] sm:$0xff]
          %v748 = vld [vmem:[%s1 + $0x278] sm:$0xff]
          %v749 = vld [vmem:[%s1 + $0x280] sm:$0xff]
          %v750 = vld [vmem:[%s1 + $0x288] sm:$0xff]
          %v751 = vld [vmem:[%s1 + $0x290] sm:$0xff]
          %v752 = vld [vmem:[%s1 + $0x298] sm:$0xff]
          %v753 = vld [vmem:[%s1 + $0x2a0] sm:$0xff]
          %v754 = vld [vmem:[%s1 + $0x2a8] sm:$0xff]
          %v755 = vld [vmem:[%s1 + $0x2b0] sm:$0xff]
          %v756 = vld [vmem:[%s1 + $0x2b8] sm:$0xff]
          %v757 = vld [vmem:[%s1 + $0x2c0] sm:$0xff]
          %v758 = vld [vmem:[%s1 + $0x2c8] sm:$0xff]
          %v759 = vld [vmem:[%s1 + $0x2d0] sm:$0xff]
          %v760 = vld [vmem:[%s1 + $0x2d8] sm:$0xff]
          %v761 = vld [vmem:[%s1 + $0x2e0] sm:$0xff]
          %v762 = vld [vmem:[%s1 + $0x2e8] sm:$0xff]
          %v763 = vld [vmem:[%s1 + $0x2f0] sm:$0xff]
          %v764 = vld [vmem:[%s1 + $0x2f8] sm:$0xff]
          %v765 = vld [vmem:[%s1 + $0x300] sm:$0xff]
          %v766 = vld [vmem:[%s1 + $0x308] sm:$0xff]
          %v767 = vld [vmem:[%s1 + $0x310] sm:$0xff]
          %v768 = vld [vmem:[%s1 + $0x318] sm:$0xff]
          %v769 = vld [vmem:[%s1 + $0x320] sm:$0xff]
          %v770 = vld [vmem:[%s1 + $0x328] sm:$0xff]
          %v771 = vld [vmem:[%s1 + $0x330] sm:$0xff]
          %v772 = vld [vmem:[%s1 + $0x338] sm:$0xff]
          %v773 = vld [vmem:[%s1 + $0x340] sm:$0xff]
          %v774 = vld [vmem:[%s1 + $0x348] sm:$0xff]
          %v775 = vld [vmem:[%s1 + $0x350] sm:$0xff]
          %v776 = vld [vmem:[%s1 + $0x358] sm:$0xff]
          %v777 = vld [vmem:[%s1 + $0x360] sm:$0xff]
          %v778 = vld [vmem:[%s1 + $0x368] sm:$0xff]
          %v779 = vld [vmem:[%s1 + $0x370] sm:$0xff]
          %v780 = vld [vmem:[%s1 + $0x378] sm:$0xff]
          %v781 = vld [vmem:[%s1 + $0x380] sm:$0xff]
          %v782 = vld [vmem:[%s1 + $0x388] sm:$0xff]
          %v783 = vld [vmem:[%s1 + $0x390] sm:$0xff]
          %v784 = vld [vmem:[%s1 + $0x398] sm:$0xff]
          %v785 = vld [vmem:[%s1 + $0x3a0] sm:$0xff]
          %v786 = vld [vmem:[%s1 + $0x3a8] sm:$0xff]
          %v787 = vld [vmem:[%s1 + $0x3b0] sm:$0xff]
          %v788 = vld [vmem:[%s1 + $0x3b8] sm:$0xff]
          %v789 = vld [vmem:[%s1 + $0x3c0] sm:$0xff]
          %v790 = vld [vmem:[%s1 + $0x3c8] sm:$0xff]
          %v791 = vld [vmem:[%s1 + $0x3d0] sm:$0xff]
          %v792 = vld [vmem:[%s1 + $0x3d8] sm:$0xff]
          %v793 = vld [vmem:[%s1 + $0x3e0] sm:$0xff]
          %v794 = vld [vmem:[%s1 + $0x3e8] sm:$0xff]
          %v795 = vld [vmem:[%s1 + $0x3f0] sm:$0xff]
          %v796 = vld [vmem:[%s1 + $0x3f8] sm:$0xff]
          %v797 = vld [vmem:[%s1 + $0x400] sm:$0xff]
          %v798 = vld [vmem:[%s1 + $0x408] sm:$0xff]
          %v799 = vld [vmem:[%s1 + $0x410] sm:$0xff]
          %v800 = vld [vmem:[%s1 + $0x418] sm:$0xff]
          %v801 = vld [vmem:[%s1 + $0x420] sm:$0xff]
          %v802 = vld [vmem:[%s1 + $0x428] sm:$0xff]
          %v803 = vld [vmem:[%s1 + $0x430] sm:$0xff]
          %v804 = vld [vmem:[%s1 + $0x438] sm:$0xff]
          %v805 = vld [vmem:[%s1 + $0x440] sm:$0xff]
          %v806 = vld [vmem:[%s1 + $0x448] sm:$0xff]
          %v807 = vld [vmem:[%s1 + $0x450] sm:$0xff]
          %v808 = vld [vmem:[%s1 + $0x458] sm:$0xff]
          %v809 = vld [vmem:[%s1 + $0x460] sm:$0xff]
          %v810 = vld [vmem:[%s1 + $0x468] sm:$0xff]
          %v811 = vld [vmem:[%s1 + $0x470] sm:$0xff]
          %v812 = vld [vmem:[%s1 + $0x478] sm:$0xff]
          %v813 = vld [vmem:[%s1 + $0x480] sm:$0xff]
          %v814 = vld [vmem:[%s1 + $0x488] sm:$0xff]
          %v815 = vld [vmem:[%s1 + $0x490] sm:$0xff]
          %v816 = vld [vmem:[%s1 + $0x498] sm:$0xff]
          %v817 = vld [vmem:[%s1 + $0x4a0] sm:$0xff]
          %v818 = vld [vmem:[%s1 + $0x4a8] sm:$0xff]
          %v819 = vld [vmem:[%s1 + $0x4b0] sm:$0xff]
          %v820 = vld [vmem:[%s1 + $0x4b8] sm:$0xff]
          %v821 = vld [vmem:[%s1 + $0x4c0] sm:$0xff]
          %v822 = vld [vmem:[%s1 + $0x4c8] sm:$0xff]
          %v823 = vld [vmem:[%s1 + $0x4d0] sm:$0xff]
          %v824 = vld [vmem:[%s1 + $0x4d8] sm:$0xff]
          %v825 = vld [vmem:[%s1 + $0x4e0] sm:$0xff]
          %v826 = vld [vmem:[%s1 + $0x4e8] sm:$0xff]
          %v827 = vld [vmem:[%s1 + $0x4f0] sm:$0xff]
          %v828 = vld [vmem:[%s1 + $0x4f8] sm:$0xff]
          %v829 = vld [vmem:[%s1 + $0x500] sm:$0xff]
          %v830 = vld [vmem:[%s1 + $0x508] sm:$0xff]
          %v831 = vld [vmem:[%s1 + $0x510] sm:$0xff]
          %v832 = vld [vmem:[%s1 + $0x518] sm:$0xff]
          %v833 = vld [vmem:[%s1 + $0x520] sm:$0xff]
          %v834 = vld [vmem:[%s1 + $0x528] sm:$0xff]
          %v835 = vld [vmem:[%s1 + $0x530] sm:$0xff]
          %v836 = vld [vmem:[%s1 + $0x538] sm:$0xff]
          %v837 = vld [vmem:[%s1 + $0x540] sm:$0xff]
          %v838 = vld [vmem:[%s1 + $0x548] sm:$0xff]
          %v839 = vld [vmem:[%s1 + $0x550] sm:$0xff]
          %v840 = vld [vmem:[%s1 + $0x558] sm:$0xff]
          %v841 = vld [vmem:[%s1 + $0x560] sm:$0xff]
          %v842 = vld [vmem:[%s1 + $0x568] sm:$0xff]
          %v843 = vld [vmem:[%s1 + $0x570] sm:$0xff]
          %v844 = vld [vmem:[%s1 + $0x578] sm:$0xff]
          %v845 = vld [vmem:[%s1 + $0x580] sm:$0xff]
          %v846 = vld [vmem:[%s1 + $0x588] sm:$0xff]
          %v847 = vld [vmem:[%s1 + $0x590] sm:$0xff]
          %v848 = vld [vmem:[%s1 + $0x598] sm:$0xff]
          %v849 = vld [vmem:[%s1 + $0x5a0] sm:$0xff]
          %v850 = vld [vmem:[%s1 + $0x5a8] sm:$0xff]
          %v851 = vld [vmem:[%s1 + $0x5b0] sm:$0xff]
          %v852 = vld [vmem:[%s1 + $0x5b8] sm:$0xff]
          %v853 = vld [vmem:[%s1 + $0x5c0] sm:$0xff]
          %v854 = vld [vmem:[%s1 + $0x5c8] sm:$0xff]
          %v855 = vld [vmem:[%s1 + $0x5d0] sm:$0xff]
          %v856 = vld [vmem:[%s1 + $0x5d8] sm:$0xff]
          %v857 = vld [vmem:[%s1 + $0x5e0] sm:$0xff]
          %v858 = vld [vmem:[%s1 + $0x5e8] sm:$0xff]
          %v859 = vld [vmem:[%s1 + $0x5f0] sm:$0xff]
          %v860 = vld [vmem:[%s1 + $0x5f8] sm:$0xff]
          %v861 = vld [vmem:[%s1 + $0x600] sm:$0xff]
          %v862 = vld [vmem:[%s1 + $0x608] sm:$0xff]
          %v863 = vld [vmem:[%s1 + $0x610] sm:$0xff]
          %v864 = vld [vmem:[%s1 + $0x618] sm:$0xff]
          %v865 = vld [vmem:[%s1 + $0x620] sm:$0xff]
          %v866 = vld [vmem:[%s1 + $0x628] sm:$0xff]
          %v867 = vld [vmem:[%s1 + $0x630] sm:$0xff]
          %v868 = vld [vmem:[%s1 + $0x638] sm:$0xff]
          %v869 = vld [vmem:[%s1 + $0x640] sm:$0xff]
          %v870 = vld [vmem:[%s1 + $0x648] sm:$0xff]
          %v871 = vld [vmem:[%s1 + $0x650] sm:$0xff]
          %v872 = vld [vmem:[%s1 + $0x658] sm:$0xff]
          %v873 = vld [vmem:[%s1 + $0x660] sm:$0xff]
          %v874 = vld [vmem:[%s1 + $0x668] sm:$0xff]
          %v875 = vld [vmem:[%s1 + $0x670] sm:$0xff]
          %v876 = vld [vmem:[%s1 + $0x678] sm:$0xff]
          %v877 = vld [vmem:[%s1 + $0x680] sm:$0xff]
          %v878 = vld [vmem:[%s1 + $0x688] sm:$0xff]
          %v879 = vld [vmem:[%s1 + $0x690] sm:$0xff]
          %v880 = vld [vmem:[%s1 + $0x698] sm:$0xff]
          %v881 = vld [vmem:[%s1 + $0x6a0] sm:$0xff]
          %v882 = vld [vmem:[%s1 + $0x6a8] sm:$0xff]
          %v883 = vld [vmem:[%s1 + $0x6b0] sm:$0xff]
          %v884 = vld [vmem:[%s1 + $0x6b8] sm:$0xff]
          %v885 = vld [vmem:[%s1 + $0x6c0] sm:$0xff]
          %v886 = vld [vmem:[%s1 + $0x6c8] sm:$0xff]
          %v887 = vld [vmem:[%s1 + $0x6d0] sm:$0xff]
          %v888 = vld [vmem:[%s1 + $0x6d8] sm:$0xff]
          %v889 = vld [vmem:[%s1 + $0x6e0] sm:$0xff]
          %v890 = vld [vmem:[%s1 + $0x6e8] sm:$0xff]
          %v891 = vld [vmem:[%s1 + $0x6f0] sm:$0xff]
          %v892 = vld [vmem:[%s1 + $0x6f8] sm:$0xff]
          %v893 = vld [vmem:[%s1 + $0x700] sm:$0xff]
          %v894 = vld [vmem:[%s1 + $0x708] sm:$0xff]
          %v895 = vld [vmem:[%s1 + $0x710] sm:$0xff]
          %v896 = vld [vmem:[%s1 + $0x718] sm:$0xff]
          %v897 = vld [vmem:[%s1 + $0x720] sm:$0xff]
          %v898 = vld [vmem:[%s1 + $0x728] sm:$0xff]
          %v899 = vld [vmem:[%s1 + $0x730] sm:$0xff]
          %v900 = vld [vmem:[%s1 + $0x738] sm:$0xff]
          %v901 = vld [vmem:[%s1 + $0x740] sm:$0xff]
          %v902 = vld [vmem:[%s1 + $0x748] sm:$0xff]
          %v903 = vld [vmem:[%s1 + $0x750] sm:$0xff]
          %v904 = vld [vmem:[%s1 + $0x758] sm:$0xff]
          %v905 = vld [vmem:[%s1 + $0x760] sm:$0xff]
          %v906 = vld [vmem:[%s1 + $0x768] sm:$0xff]
          %v907 = vld [vmem:[%s1 + $0x770] sm:$0xff]
          %v908 = vld [vmem:[%s1 + $0x778] sm:$0xff]
          %v909 = vld [vmem:[%s1 + $0x780] sm:$0xff]
          %v910 = vld [vmem:[%s1 + $0x788] sm:$0xff]
          %v911 = vld [vmem:[%s1 + $0x790] sm:$0xff]
          %v912 = vld [vmem:[%s1 + $0x798] sm:$0xff]
          %v913 = vld [vmem:[%s1 + $0x7a0] sm:$0xff]
          %v914 = vld [vmem:[%s1 + $0x7a8] sm:$0xff]
          %v915 = vld [vmem:[%s1 + $0x7b0] sm:$0xff]
          %v916 = vld [vmem:[%s1 + $0x7b8] sm:$0xff]
          %v917 = vld [vmem:[%s1 + $0x7c0] sm:$0xff]
          %v918 = vld [vmem:[%s1 + $0x7c8] sm:$0xff]
          %v919 = vld [vmem:[%s1 + $0x7d0] sm:$0xff]
          %v920 = vld [vmem:[%s1 + $0x7d8] sm:$0xff]
          %v921 = vld [vmem:[%s1 + $0x7e0] sm:$0xff]
          %v922 = vld [vmem:[%s1 + $0x7e8] sm:$0xff]
          %v923 = vld [vmem:[%s1 + $0x7f0] sm:$0xff]
          %v924 = vld [vmem:[%s1 + $0x7f8] sm:$0xff]
          %v925 = vld [vmem:[%s1 + $0x800] sm:$0xff]
          %v926 = vld [vmem:[%s1 + $0x808] sm:$0xff]
          %v927 = vld [vmem:[%s1 + $0x810] sm:$0xff]
          %v928 = vld [vmem:[%s1 + $0x818] sm:$0xff]
          %v929 = vld [vmem:[%s1 + $0x820] sm:$0xff]
          %v930 = vld [vmem:[%s1 + $0x828] sm:$0xff]
          %v931 = vld [vmem:[%s1 + $0x830] sm:$0xff]
          %v932 = vld [vmem:[%s1 + $0x838] sm:$0xff]
          %vm933 = vcmask 195584
          %v935 = vsel %vm933, %v672, 0
          %v938 = vsel %vm933, %v676, 0
          %v941 = vsel %vm933, %v680, 0
          %v944 = vsel %vm933, %v684, 0
          %v947 = vsel %vm933, %v688, 0
          %v950 = vsel %vm933, %v692, 0
          %v953 = vsel %vm933, %v696, 0
          %v956 = vsel %vm933, %v700, 0
          %v959 = vsel %vm933, %v704, 0
          %v962 = vsel %vm933, %v708, 0
          %v965 = vsel %vm933, %v712, 0
          %v968 = vsel %vm933, %v716, 0
          %v971 = vsel %vm933, %v720, 0
          %v974 = vsel %vm933, %v724, 0
          %v977 = vsel %vm933, %v728, 0
          %v980 = vsel %vm933, %v732, 0
          %v983 = vsel %vm933, %v736, 0
          %v986 = vsel %vm933, %v740, 0
          %v989 = vsel %vm933, %v744, 0
          %v992 = vsel %vm933, %v748, 0
          %v995 = vsel %vm933, %v752, 0
          %v998 = vsel %vm933, %v756, 0
          %v1001 = vsel %vm933, %v760, 0
          %v1004 = vsel %vm933, %v764, 0
          %v1007 = vsel %vm933, %v768, 0
          %v1010 = vsel %vm933, %v772, 0
          %v1013 = vsel %vm933, %v776, 0
          %v1016 = vsel %vm933, %v780, 0
          %v1019 = vsel %vm933, %v784, 0
          %v1022 = vsel %vm933, %v788, 0
          %v1025 = vsel %vm933, %v792, 0
          %v1028 = vsel %vm933, %v796, 0
          %v1031 = vsel %vm933, %v800, 0
          %v1034 = vsel %vm933, %v804, 0
          %v1037 = vsel %vm933, %v808, 0
          %v1040 = vsel %vm933, %v812, 0
          %v1043 = vsel %vm933, %v816, 0
          %v1046 = vsel %vm933, %v820, 0
          %v1049 = vsel %vm933, %v824, 0
          %v1052 = vsel %vm933, %v828, 0
          %v1055 = vsel %vm933, %v832, 0
          %v1058 = vsel %vm933, %v836, 0
          %v1061 = vsel %vm933, %v840, 0
          %v1064 = vsel %vm933, %v844, 0
          %v1067 = vsel %vm933, %v848, 0
          %v1070 = vsel %vm933, %v852, 0
          %v1073 = vsel %vm933, %v856, 0
          %v1076 = vsel %vm933, %v860, 0
          %v1079 = vsel %vm933, %v864, 0
          %v1082 = vsel %vm933, %v868, 0
          %v1085 = vsel %vm933, %v872, 0
          %v1088 = vsel %vm933, %v876, 0
          %v1091 = vsel %vm933, %v880, 0
          %v1094 = vsel %vm933, %v884, 0
          %v1097 = vsel %vm933, %v888, 0
          %v1100 = vsel %vm933, %v892, 0
          %v1103 = vsel %vm933, %v896, 0
          %v1106 = vsel %vm933, %v900, 0
          %v1109 = vsel %vm933, %v904, 0
          %v1112 = vsel %vm933, %v908, 0
          %v1115 = vsel %vm933, %v912, 0
          %v1118 = vsel %vm933, %v916, 0
          %v1121 = vsel %vm933, %v920, 0
          %v1124 = vsel %vm933, %v924, 0
          %v1127 = vsel %vm933, %v928, 0
          %v1130 = vsel %vm933, %v932, 0
          %1132 = vmatpush.msra.mxu0 %v548
          %1133 = vmatpush.msra.mxu0 %v547
          %1134 = vmatpush.msra.mxu0 %v546
          %1135 = vmatpush.msra.mxu0 %v545
          %1136 = vmatpush.msra.mxu0 %v544
          %1137 = vmatpush.msra.mxu0 %v543
          %1138 = vmatpush.msra.mxu0 %v542
          %1139 = vmatpush.msra.mxu0 %v541
          %1140 = vmatpush.msra.mxu0 %v540
          %1141 = vmatpush.msra.mxu0 %v539
          %1142 = vmatpush.msra.mxu0 %v538
          %1143 = vmatpush.msra.mxu0 %v537
          %1144 = vmatpush.msra.mxu0 %v536
          %1145 = vmatpush.msra.mxu0 %v535
          %1146 = vmatpush.msra.mxu0 %v534
          %1147 = vmatpush.msra.mxu0 %v533
          %1148 = vmatmul.f32.gmra.mxu0 %v669
          %v1149 = vpop.f32.mrf.mxu0
          %v1150 = vadd.f32 0.0, %v1149
          %1151 = vmatmul.f32.gmra.mxu0 %v673
          %v1152 = vpop.f32.mrf.mxu0
          %v1153 = vadd.f32 0.0, %v1152
          %1154 = vmatmul.f32.gmra.mxu0 %v677
          %v1155 = vpop.f32.mrf.mxu0
          %v1156 = vadd.f32 0.0, %v1155
          %1157 = vmatmul.f32.gmra.mxu0 %v681
          %v1158 = vpop.f32.mrf.mxu0
          %v1159 = vadd.f32 0.0, %v1158
          %1160 = vmatmul.f32.gmra.mxu0 %v685
          %v1161 = vpop.f32.mrf.mxu0
          %v1162 = vadd.f32 0.0, %v1161
          %1163 = vmatmul.f32.gmra.mxu0 %v689
          %v1164 = vpop.f32.mrf.mxu0
          %v1165 = vadd.f32 0.0, %v1164
          %1166 = vmatmul.f32.gmra.mxu0 %v693
          %v1167 = vpop.f32.mrf.mxu0
          %v1168 = vadd.f32 0.0, %v1167
          %1169 = vmatmul.f32.gmra.mxu0 %v697
          %v1170 = vpop.f32.mrf.mxu0
          %v1171 = vadd.f32 0.0, %v1170
          %1172 = vmatmul.f32.gmra.mxu0 %v701
          %v1173 = vpop.f32.mrf.mxu0
          %v1174 = vadd.f32 0.0, %v1173
          %1175 = vmatmul.f32.gmra.mxu0 %v705
          %v1176 = vpop.f32.mrf.mxu0
          %v1177 = vadd.f32 0.0, %v1176
          %1178 = vmatmul.f32.gmra.mxu0 %v709
          %v1179 = vpop.f32.mrf.mxu0
          %v1180 = vadd.f32 0.0, %v1179
          %1181 = vmatmul.f32.gmra.mxu0 %v713
          %v1182 = vpop.f32.mrf.mxu0
          %v1183 = vadd.f32 0.0, %v1182
          %1184 = vmatmul.f32.gmra.mxu0 %v717
          %v1185 = vpop.f32.mrf.mxu0
          %v1186 = vadd.f32 0.0, %v1185
          %1187 = vmatmul.f32.gmra.mxu0 %v721
          %v1188 = vpop.f32.mrf.mxu0
          %v1189 = vadd.f32 0.0, %v1188
          %1190 = vmatmul.f32.gmra.mxu0 %v725
          %v1191 = vpop.f32.mrf.mxu0
          %v1192 = vadd.f32 0.0, %v1191
          %1193 = vmatmul.f32.gmra.mxu0 %v729
          %v1194 = vpop.f32.mrf.mxu0
          %v1195 = vadd.f32 0.0, %v1194
          %1196 = vmatmul.f32.gmra.mxu0 %v733
          %v1197 = vpop.f32.mrf.mxu0
          %v1198 = vadd.f32 0.0, %v1197
          %1199 = vmatmul.f32.gmra.mxu0 %v737
          %v1200 = vpop.f32.mrf.mxu0
          %v1201 = vadd.f32 0.0, %v1200
          %1202 = vmatmul.f32.gmra.mxu0 %v741
          %v1203 = vpop.f32.mrf.mxu0
          %v1204 = vadd.f32 0.0, %v1203
          %1205 = vmatmul.f32.gmra.mxu0 %v745
          %v1206 = vpop.f32.mrf.mxu0
          %v1207 = vadd.f32 0.0, %v1206
          %1208 = vmatmul.f32.gmra.mxu0 %v749
          %v1209 = vpop.f32.mrf.mxu0
          %v1210 = vadd.f32 0.0, %v1209
          %1211 = vmatmul.f32.gmra.mxu0 %v753
          %v1212 = vpop.f32.mrf.mxu0
          %v1213 = vadd.f32 0.0, %v1212
          %1214 = vmatmul.f32.gmra.mxu0 %v757
          %v1215 = vpop.f32.mrf.mxu0
          %v1216 = vadd.f32 0.0, %v1215
          %1217 = vmatmul.f32.gmra.mxu0 %v761
          %v1218 = vpop.f32.mrf.mxu0
          %v1219 = vadd.f32 0.0, %v1218
          %1220 = vmatmul.f32.gmra.mxu0 %v765
          %v1221 = vpop.f32.mrf.mxu0
          %v1222 = vadd.f32 0.0, %v1221
          %1223 = vmatmul.f32.gmra.mxu0 %v769
          %v1224 = vpop.f32.mrf.mxu0
          %v1225 = vadd.f32 0.0, %v1224
          %1226 = vmatmul.f32.gmra.mxu0 %v773
          %v1227 = vpop.f32.mrf.mxu0
          %v1228 = vadd.f32 0.0, %v1227
          %1229 = vmatmul.f32.gmra.mxu0 %v777
          %v1230 = vpop.f32.mrf.mxu0
          %v1231 = vadd.f32 0.0, %v1230
          %1232 = vmatmul.f32.gmra.mxu0 %v781
          %v1233 = vpop.f32.mrf.mxu0
          %v1234 = vadd.f32 0.0, %v1233
          %1235 = vmatmul.f32.gmra.mxu0 %v785
          %v1236 = vpop.f32.mrf.mxu0
          %v1237 = vadd.f32 0.0, %v1236
          %1238 = vmatmul.f32.gmra.mxu0 %v789
          %v1239 = vpop.f32.mrf.mxu0
          %v1240 = vadd.f32 0.0, %v1239
          %1241 = vmatmul.f32.gmra.mxu0 %v793
          %v1242 = vpop.f32.mrf.mxu0
          %v1243 = vadd.f32 0.0, %v1242
          %1244 = vmatmul.f32.gmra.mxu0 %v797
          %v1245 = vpop.f32.mrf.mxu0
          %v1246 = vadd.f32 0.0, %v1245
          %1247 = vmatmul.f32.gmra.mxu0 %v801
          %v1248 = vpop.f32.mrf.mxu0
          %v1249 = vadd.f32 0.0, %v1248
          %1250 = vmatmul.f32.gmra.mxu0 %v805
          %v1251 = vpop.f32.mrf.mxu0
          %v1252 = vadd.f32 0.0, %v1251
          %1253 = vmatmul.f32.gmra.mxu0 %v809
          %v1254 = vpop.f32.mrf.mxu0
          %v1255 = vadd.f32 0.0, %v1254
          %1256 = vmatmul.f32.gmra.mxu0 %v813
          %v1257 = vpop.f32.mrf.mxu0
          %v1258 = vadd.f32 0.0, %v1257
          %1259 = vmatmul.f32.gmra.mxu0 %v817
          %v1260 = vpop.f32.mrf.mxu0
          %v1261 = vadd.f32 0.0, %v1260
          %1262 = vmatmul.f32.gmra.mxu0 %v821
          %v1263 = vpop.f32.mrf.mxu0
          %v1264 = vadd.f32 0.0, %v1263
          %1265 = vmatmul.f32.gmra.mxu0 %v825
          %v1266 = vpop.f32.mrf.mxu0
          %v1267 = vadd.f32 0.0, %v1266
          %1268 = vmatmul.f32.gmra.mxu0 %v829
          %v1269 = vpop.f32.mrf.mxu0
          %v1270 = vadd.f32 0.0, %v1269
          %1271 = vmatmul.f32.gmra.mxu0 %v833
          %v1272 = vpop.f32.mrf.mxu0
          %v1273 = vadd.f32 0.0, %v1272
          %1274 = vmatmul.f32.gmra.mxu0 %v837
          %v1275 = vpop.f32.mrf.mxu0
          %v1276 = vadd.f32 0.0, %v1275
          %1277 = vmatmul.f32.gmra.mxu0 %v841
          %v1278 = vpop.f32.mrf.mxu0
          %v1279 = vadd.f32 0.0, %v1278
          %1280 = vmatmul.f32.gmra.mxu0 %v845
          %v1281 = vpop.f32.mrf.mxu0
          %v1282 = vadd.f32 0.0, %v1281
          %1283 = vmatmul.f32.gmra.mxu0 %v849
          %v1284 = vpop.f32.mrf.mxu0
          %v1285 = vadd.f32 0.0, %v1284
          %1286 = vmatmul.f32.gmra.mxu0 %v853
          %v1287 = vpop.f32.mrf.mxu0
          %v1288 = vadd.f32 0.0, %v1287
          %1289 = vmatmul.f32.gmra.mxu0 %v857
          %v1290 = vpop.f32.mrf.mxu0
          %v1291 = vadd.f32 0.0, %v1290
          %1292 = vmatmul.f32.gmra.mxu0 %v861
          %v1293 = vpop.f32.mrf.mxu0
          %v1294 = vadd.f32 0.0, %v1293
          %1295 = vmatmul.f32.gmra.mxu0 %v865
          %v1296 = vpop.f32.mrf.mxu0
          %v1297 = vadd.f32 0.0, %v1296
          %1298 = vmatmul.f32.gmra.mxu0 %v869
          %v1299 = vpop.f32.mrf.mxu0
          %v1300 = vadd.f32 0.0, %v1299
          %1301 = vmatmul.f32.gmra.mxu0 %v873
          %v1302 = vpop.f32.mrf.mxu0
          %v1303 = vadd.f32 0.0, %v1302
          %1304 = vmatmul.f32.gmra.mxu0 %v877
          %v1305 = vpop.f32.mrf.mxu0
          %v1306 = vadd.f32 0.0, %v1305
          %1307 = vmatmul.f32.gmra.mxu0 %v881
          %v1308 = vpop.f32.mrf.mxu0
          %v1309 = vadd.f32 0.0, %v1308
          %1310 = vmatmul.f32.gmra.mxu0 %v885
          %v1311 = vpop.f32.mrf.mxu0
          %v1312 = vadd.f32 0.0, %v1311
          %1313 = vmatmul.f32.gmra.mxu0 %v889
          %v1314 = vpop.f32.mrf.mxu0
          %v1315 = vadd.f32 0.0, %v1314
          %1316 = vmatmul.f32.gmra.mxu0 %v893
          %v1317 = vpop.f32.mrf.mxu0
          %v1318 = vadd.f32 0.0, %v1317
          %1319 = vmatmul.f32.gmra.mxu0 %v897
          %v1320 = vpop.f32.mrf.mxu0
          %v1321 = vadd.f32 0.0, %v1320
          %1322 = vmatmul.f32.gmra.mxu0 %v901
          %v1323 = vpop.f32.mrf.mxu0
          %v1324 = vadd.f32 0.0, %v1323
          %1325 = vmatmul.f32.gmra.mxu0 %v905
          %v1326 = vpop.f32.mrf.mxu0
          %v1327 = vadd.f32 0.0, %v1326
          %1328 = vmatmul.f32.gmra.mxu0 %v909
          %v1329 = vpop.f32.mrf.mxu0
          %v1330 = vadd.f32 0.0, %v1329
          %1331 = vmatmul.f32.gmra.mxu0 %v913
          %v1332 = vpop.f32.mrf.mxu0
          %v1333 = vadd.f32 0.0, %v1332
          %1334 = vmatmul.f32.gmra.mxu0 %v917
          %v1335 = vpop.f32.mrf.mxu0
          %v1336 = vadd.f32 0.0, %v1335
          %1337 = vmatmul.f32.gmra.mxu0 %v921
          %v1338 = vpop.f32.mrf.mxu0
          %v1339 = vadd.f32 0.0, %v1338
          %1340 = vmatmul.f32.gmra.mxu0 %v925
          %v1341 = vpop.f32.mrf.mxu0
          %v1342 = vadd.f32 0.0, %v1341
          %1343 = vmatmul.f32.gmra.mxu0 %v929
          %v1344 = vpop.f32.mrf.mxu0
          %v1345 = vadd.f32 0.0, %v1344
          %1346 = vdwg.mxu0
          %1347 = vmatpush.msra.mxu0 %v596
          %1348 = vmatpush.msra.mxu0 %v594
          %1349 = vmatpush.msra.mxu0 %v592
          %1350 = vmatpush.msra.mxu0 %v590
          %1351 = vmatpush.msra.mxu0 %v588
          %1352 = vmatpush.msra.mxu0 %v586
          %1353 = vmatpush.msra.mxu0 %v584
          %1354 = vmatpush.msra.mxu0 %v582
          %1355 = vmatpush.msra.mxu0 %v580
          %1356 = vmatpush.msra.mxu0 %v578
          %1357 = vmatpush.msra.mxu0 %v576
          %1358 = vmatpush.msra.mxu0 %v574
          %1359 = vmatpush.msra.mxu0 %v572
          %1360 = vmatpush.msra.mxu0 %v570
          %1361 = vmatpush.msra.mxu0 %v568
          %1362 = vmatpush.msra.mxu0 %v549
          %1363 = vmatmul.f32.gmra.mxu0 %v670
          %v1364 = vpop.f32.mrf.mxu0
          %v1365 = vadd.f32 %v1150, %v1364
          %1366 = vmatmul.f32.gmra.mxu0 %v674
          %v1367 = vpop.f32.mrf.mxu0
          %v1368 = vadd.f32 %v1153, %v1367
          %1369 = vmatmul.f32.gmra.mxu0 %v678
          %v1370 = vpop.f32.mrf.mxu0
          %v1371 = vadd.f32 %v1156, %v1370
          %1372 = vmatmul.f32.gmra.mxu0 %v682
          %v1373 = vpop.f32.mrf.mxu0
          %v1374 = vadd.f32 %v1159, %v1373
          %1375 = vmatmul.f32.gmra.mxu0 %v686
          %v1376 = vpop.f32.mrf.mxu0
          %v1377 = vadd.f32 %v1162, %v1376
          %1378 = vmatmul.f32.gmra.mxu0 %v690
          %v1379 = vpop.f32.mrf.mxu0
          %v1380 = vadd.f32 %v1165, %v1379
          %1381 = vmatmul.f32.gmra.mxu0 %v694
          %v1382 = vpop.f32.mrf.mxu0
          %v1383 = vadd.f32 %v1168, %v1382
          %1384 = vmatmul.f32.gmra.mxu0 %v698
          %v1385 = vpop.f32.mrf.mxu0
          %v1386 = vadd.f32 %v1171, %v1385
          %1387 = vmatmul.f32.gmra.mxu0 %v702
          %v1388 = vpop.f32.mrf.mxu0
          %v1389 = vadd.f32 %v1174, %v1388
          %1390 = vmatmul.f32.gmra.mxu0 %v706
          %v1391 = vpop.f32.mrf.mxu0
          %v1392 = vadd.f32 %v1177, %v1391
          %1393 = vmatmul.f32.gmra.mxu0 %v710
          %v1394 = vpop.f32.mrf.mxu0
          %v1395 = vadd.f32 %v1180, %v1394
          %1396 = vmatmul.f32.gmra.mxu0 %v714
          %v1397 = vpop.f32.mrf.mxu0
          %v1398 = vadd.f32 %v1183, %v1397
          %1399 = vmatmul.f32.gmra.mxu0 %v718
          %v1400 = vpop.f32.mrf.mxu0
          %v1401 = vadd.f32 %v1186, %v1400
          %1402 = vmatmul.f32.gmra.mxu0 %v722
          %v1403 = vpop.f32.mrf.mxu0
          %v1404 = vadd.f32 %v1189, %v1403
          %1405 = vmatmul.f32.gmra.mxu0 %v726
          %v1406 = vpop.f32.mrf.mxu0
          %v1407 = vadd.f32 %v1192, %v1406
          %1408 = vmatmul.f32.gmra.mxu0 %v730
          %v1409 = vpop.f32.mrf.mxu0
          %v1410 = vadd.f32 %v1195, %v1409
          %1411 = vmatmul.f32.gmra.mxu0 %v734
          %v1412 = vpop.f32.mrf.mxu0
          %v1413 = vadd.f32 %v1198, %v1412
          %1414 = vmatmul.f32.gmra.mxu0 %v738
          %v1415 = vpop.f32.mrf.mxu0
          %v1416 = vadd.f32 %v1201, %v1415
          %1417 = vmatmul.f32.gmra.mxu0 %v742
          %v1418 = vpop.f32.mrf.mxu0
          %v1419 = vadd.f32 %v1204, %v1418
          %1420 = vmatmul.f32.gmra.mxu0 %v746
          %v1421 = vpop.f32.mrf.mxu0
          %v1422 = vadd.f32 %v1207, %v1421
          %1423 = vmatmul.f32.gmra.mxu0 %v750
          %v1424 = vpop.f32.mrf.mxu0
          %v1425 = vadd.f32 %v1210, %v1424
          %1426 = vmatmul.f32.gmra.mxu0 %v754
          %v1427 = vpop.f32.mrf.mxu0
          %v1428 = vadd.f32 %v1213, %v1427
          %1429 = vmatmul.f32.gmra.mxu0 %v758
          %v1430 = vpop.f32.mrf.mxu0
          %v1431 = vadd.f32 %v1216, %v1430
          %1432 = vmatmul.f32.gmra.mxu0 %v762
          %v1433 = vpop.f32.mrf.mxu0
          %v1434 = vadd.f32 %v1219, %v1433
          %1435 = vmatmul.f32.gmra.mxu0 %v766
          %v1436 = vpop.f32.mrf.mxu0
          %v1437 = vadd.f32 %v1222, %v1436
          %1438 = vmatmul.f32.gmra.mxu0 %v770
          %v1439 = vpop.f32.mrf.mxu0
          %v1440 = vadd.f32 %v1225, %v1439
          %1441 = vmatmul.f32.gmra.mxu0 %v774
          %v1442 = vpop.f32.mrf.mxu0
          %v1443 = vadd.f32 %v1228, %v1442
          %1444 = vmatmul.f32.gmra.mxu0 %v778
          %v1445 = vpop.f32.mrf.mxu0
          %v1446 = vadd.f32 %v1231, %v1445
          %1447 = vmatmul.f32.gmra.mxu0 %v782
          %v1448 = vpop.f32.mrf.mxu0
          %v1449 = vadd.f32 %v1234, %v1448
          %1450 = vmatmul.f32.gmra.mxu0 %v786
          %v1451 = vpop.f32.mrf.mxu0
          %v1452 = vadd.f32 %v1237, %v1451
          %1453 = vmatmul.f32.gmra.mxu0 %v790
          %v1454 = vpop.f32.mrf.mxu0
          %v1455 = vadd.f32 %v1240, %v1454
          %1456 = vmatmul.f32.gmra.mxu0 %v794
          %v1457 = vpop.f32.mrf.mxu0
          %v1458 = vadd.f32 %v1243, %v1457
          %1459 = vmatmul.f32.gmra.mxu0 %v798
          %v1460 = vpop.f32.mrf.mxu0
          %v1461 = vadd.f32 %v1246, %v1460
          %1462 = vmatmul.f32.gmra.mxu0 %v802
          %v1463 = vpop.f32.mrf.mxu0
          %v1464 = vadd.f32 %v1249, %v1463
          %1465 = vmatmul.f32.gmra.mxu0 %v806
          %v1466 = vpop.f32.mrf.mxu0
          %v1467 = vadd.f32 %v1252, %v1466
          %1468 = vmatmul.f32.gmra.mxu0 %v810
          %v1469 = vpop.f32.mrf.mxu0
          %v1470 = vadd.f32 %v1255, %v1469
          %1471 = vmatmul.f32.gmra.mxu0 %v814
          %v1472 = vpop.f32.mrf.mxu0
          %v1473 = vadd.f32 %v1258, %v1472
          %1474 = vmatmul.f32.gmra.mxu0 %v818
          %v1475 = vpop.f32.mrf.mxu0
          %v1476 = vadd.f32 %v1261, %v1475
          %1477 = vmatmul.f32.gmra.mxu0 %v822
          %v1478 = vpop.f32.mrf.mxu0
          %v1479 = vadd.f32 %v1264, %v1478
          %1480 = vmatmul.f32.gmra.mxu0 %v826
          %v1481 = vpop.f32.mrf.mxu0
          %v1482 = vadd.f32 %v1267, %v1481
          %1483 = vmatmul.f32.gmra.mxu0 %v830
          %v1484 = vpop.f32.mrf.mxu0
          %v1485 = vadd.f32 %v1270, %v1484
          %1486 = vmatmul.f32.gmra.mxu0 %v834
          %v1487 = vpop.f32.mrf.mxu0
          %v1488 = vadd.f32 %v1273, %v1487
          %1489 = vmatmul.f32.gmra.mxu0 %v838
          %v1490 = vpop.f32.mrf.mxu0
          %v1491 = vadd.f32 %v1276, %v1490
          %1492 = vmatmul.f32.gmra.mxu0 %v842
          %v1493 = vpop.f32.mrf.mxu0
          %v1494 = vadd.f32 %v1279, %v1493
          %1495 = vmatmul.f32.gmra.mxu0 %v846
          %v1496 = vpop.f32.mrf.mxu0
          %v1497 = vadd.f32 %v1282, %v1496
          %1498 = vmatmul.f32.gmra.mxu0 %v850
          %v1499 = vpop.f32.mrf.mxu0
          %v1500 = vadd.f32 %v1285, %v1499
          %1501 = vmatmul.f32.gmra.mxu0 %v854
          %v1502 = vpop.f32.mrf.mxu0
          %v1503 = vadd.f32 %v1288, %v1502
          %1504 = vmatmul.f32.gmra.mxu0 %v858
          %v1505 = vpop.f32.mrf.mxu0
          %v1506 = vadd.f32 %v1291, %v1505
          %1507 = vmatmul.f32.gmra.mxu0 %v862
          %v1508 = vpop.f32.mrf.mxu0
          %v1509 = vadd.f32 %v1294, %v1508
          %1510 = vmatmul.f32.gmra.mxu0 %v866
          %v1511 = vpop.f32.mrf.mxu0
          %v1512 = vadd.f32 %v1297, %v1511
          %1513 = vmatmul.f32.gmra.mxu0 %v870
          %v1514 = vpop.f32.mrf.mxu0
          %v1515 = vadd.f32 %v1300, %v1514
          %1516 = vmatmul.f32.gmra.mxu0 %v874
          %v1517 = vpop.f32.mrf.mxu0
          %v1518 = vadd.f32 %v1303, %v1517
          %1519 = vmatmul.f32.gmra.mxu0 %v878
          %v1520 = vpop.f32.mrf.mxu0
          %v1521 = vadd.f32 %v1306, %v1520
          %1522 = vmatmul.f32.gmra.mxu0 %v882
          %v1523 = vpop.f32.mrf.mxu0
          %v1524 = vadd.f32 %v1309, %v1523
          %1525 = vmatmul.f32.gmra.mxu0 %v886
          %v1526 = vpop.f32.mrf.mxu0
          %v1527 = vadd.f32 %v1312, %v1526
          %1528 = vmatmul.f32.gmra.mxu0 %v890
          %v1529 = vpop.f32.mrf.mxu0
          %v1530 = vadd.f32 %v1315, %v1529
          %1531 = vmatmul.f32.gmra.mxu0 %v894
          %v1532 = vpop.f32.mrf.mxu0
          %v1533 = vadd.f32 %v1318, %v1532
          %1534 = vmatmul.f32.gmra.mxu0 %v898
          %v1535 = vpop.f32.mrf.mxu0
          %v1536 = vadd.f32 %v1321, %v1535
          %1537 = vmatmul.f32.gmra.mxu0 %v902
          %v1538 = vpop.f32.mrf.mxu0
          %v1539 = vadd.f32 %v1324, %v1538
          %1540 = vmatmul.f32.gmra.mxu0 %v906
          %v1541 = vpop.f32.mrf.mxu0
          %v1542 = vadd.f32 %v1327, %v1541
          %1543 = vmatmul.f32.gmra.mxu0 %v910
          %v1544 = vpop.f32.mrf.mxu0
          %v1545 = vadd.f32 %v1330, %v1544
          %1546 = vmatmul.f32.gmra.mxu0 %v914
          %v1547 = vpop.f32.mrf.mxu0
          %v1548 = vadd.f32 %v1333, %v1547
          %1549 = vmatmul.f32.gmra.mxu0 %v918
          %v1550 = vpop.f32.mrf.mxu0
          %v1551 = vadd.f32 %v1336, %v1550
          %1552 = vmatmul.f32.gmra.mxu0 %v922
          %v1553 = vpop.f32.mrf.mxu0
          %v1554 = vadd.f32 %v1339, %v1553
          %1555 = vmatmul.f32.gmra.mxu0 %v926
          %v1556 = vpop.f32.mrf.mxu0
          %v1557 = vadd.f32 %v1342, %v1556
          %1558 = vmatmul.f32.gmra.mxu0 %v930
          %v1559 = vpop.f32.mrf.mxu0
          %v1560 = vadd.f32 %v1345, %v1559
          %1561 = vdwg.mxu0
          %1562 = vmatpush.msra.mxu0 %v645
          %1563 = vmatpush.msra.mxu0 %v643
          %1564 = vmatpush.msra.mxu0 %v641
          %1565 = vmatpush.msra.mxu0 %v639
          %1566 = vmatpush.msra.mxu0 %v637
          %1567 = vmatpush.msra.mxu0 %v635
          %1568 = vmatpush.msra.mxu0 %v633
          %1569 = vmatpush.msra.mxu0 %v631
          %1570 = vmatpush.msra.mxu0 %v629
          %1571 = vmatpush.msra.mxu0 %v627
          %1572 = vmatpush.msra.mxu0 %v625
          %1573 = vmatpush.msra.mxu0 %v623
          %1574 = vmatpush.msra.mxu0 %v621
          %1575 = vmatpush.msra.mxu0 %v619
          %1576 = vmatpush.msra.mxu0 %v600
          %1577 = vmatpush.msra.mxu0 %v598
          %1578 = vmatmul.f32.gmra.mxu0 %v671
          %v1579 = vpop.f32.mrf.mxu0
          %v1580 = vadd.f32 %v1365, %v1579
          %1581 = vmatmul.f32.gmra.mxu0 %v675
          %v1582 = vpop.f32.mrf.mxu0
          %v1583 = vadd.f32 %v1368, %v1582
          %1584 = vmatmul.f32.gmra.mxu0 %v679
          %v1585 = vpop.f32.mrf.mxu0
          %v1586 = vadd.f32 %v1371, %v1585
          %1587 = vmatmul.f32.gmra.mxu0 %v683
          %v1588 = vpop.f32.mrf.mxu0
          %v1589 = vadd.f32 %v1374, %v1588
          %1590 = vmatmul.f32.gmra.mxu0 %v687
          %v1591 = vpop.f32.mrf.mxu0
          %v1592 = vadd.f32 %v1377, %v1591
          %1593 = vmatmul.f32.gmra.mxu0 %v691
          %v1594 = vpop.f32.mrf.mxu0
          %v1595 = vadd.f32 %v1380, %v1594
          %1596 = vmatmul.f32.gmra.mxu0 %v695
          %v1597 = vpop.f32.mrf.mxu0
          %v1598 = vadd.f32 %v1383, %v1597
          %1599 = vmatmul.f32.gmra.mxu0 %v699
          %v1600 = vpop.f32.mrf.mxu0
          %v1601 = vadd.f32 %v1386, %v1600
          %1602 = vmatmul.f32.gmra.mxu0 %v703
          %v1603 = vpop.f32.mrf.mxu0
          %v1604 = vadd.f32 %v1389, %v1603
          %1605 = vmatmul.f32.gmra.mxu0 %v707
          %v1606 = vpop.f32.mrf.mxu0
          %v1607 = vadd.f32 %v1392, %v1606
          %1608 = vmatmul.f32.gmra.mxu0 %v711
          %v1609 = vpop.f32.mrf.mxu0
          %v1610 = vadd.f32 %v1395, %v1609
          %1611 = vmatmul.f32.gmra.mxu0 %v715
          %v1612 = vpop.f32.mrf.mxu0
          %v1613 = vadd.f32 %v1398, %v1612
          %1614 = vmatmul.f32.gmra.mxu0 %v719
          %v1615 = vpop.f32.mrf.mxu0
          %v1616 = vadd.f32 %v1401, %v1615
          %1617 = vmatmul.f32.gmra.mxu0 %v723
          %v1618 = vpop.f32.mrf.mxu0
          %v1619 = vadd.f32 %v1404, %v1618
          %1620 = vmatmul.f32.gmra.mxu0 %v727
          %v1621 = vpop.f32.mrf.mxu0
          %v1622 = vadd.f32 %v1407, %v1621
          %1623 = vmatmul.f32.gmra.mxu0 %v731
          %v1624 = vpop.f32.mrf.mxu0
          %v1625 = vadd.f32 %v1410, %v1624
          %1626 = vmatmul.f32.gmra.mxu0 %v735
          %v1627 = vpop.f32.mrf.mxu0
          %v1628 = vadd.f32 %v1413, %v1627
          %1629 = vmatmul.f32.gmra.mxu0 %v739
          %v1630 = vpop.f32.mrf.mxu0
          %v1631 = vadd.f32 %v1416, %v1630
          %1632 = vmatmul.f32.gmra.mxu0 %v743
          %v1633 = vpop.f32.mrf.mxu0
          %v1634 = vadd.f32 %v1419, %v1633
          %1635 = vmatmul.f32.gmra.mxu0 %v747
          %v1636 = vpop.f32.mrf.mxu0
          %v1637 = vadd.f32 %v1422, %v1636
          %1638 = vmatmul.f32.gmra.mxu0 %v751
          %v1639 = vpop.f32.mrf.mxu0
          %v1640 = vadd.f32 %v1425, %v1639
          %1641 = vmatmul.f32.gmra.mxu0 %v755
          %v1642 = vpop.f32.mrf.mxu0
          %v1643 = vadd.f32 %v1428, %v1642
          %1644 = vmatmul.f32.gmra.mxu0 %v759
          %v1645 = vpop.f32.mrf.mxu0
          %v1646 = vadd.f32 %v1431, %v1645
          %1647 = vmatmul.f32.gmra.mxu0 %v763
          %v1648 = vpop.f32.mrf.mxu0
          %v1649 = vadd.f32 %v1434, %v1648
          %1650 = vmatmul.f32.gmra.mxu0 %v767
          %v1651 = vpop.f32.mrf.mxu0
          %v1652 = vadd.f32 %v1437, %v1651
          %1653 = vmatmul.f32.gmra.mxu0 %v771
          %v1654 = vpop.f32.mrf.mxu0
          %v1655 = vadd.f32 %v1440, %v1654
          %1656 = vmatmul.f32.gmra.mxu0 %v775
          %v1657 = vpop.f32.mrf.mxu0
          %v1658 = vadd.f32 %v1443, %v1657
          %1659 = vmatmul.f32.gmra.mxu0 %v779
          %v1660 = vpop.f32.mrf.mxu0
          %v1661 = vadd.f32 %v1446, %v1660
          %1662 = vmatmul.f32.gmra.mxu0 %v783
          %v1663 = vpop.f32.mrf.mxu0
          %v1664 = vadd.f32 %v1449, %v1663
          %1665 = vmatmul.f32.gmra.mxu0 %v787
          %v1666 = vpop.f32.mrf.mxu0
          %v1667 = vadd.f32 %v1452, %v1666
          %1668 = vmatmul.f32.gmra.mxu0 %v791
          %v1669 = vpop.f32.mrf.mxu0
          %v1670 = vadd.f32 %v1455, %v1669
          %1671 = vmatmul.f32.gmra.mxu0 %v795
          %v1672 = vpop.f32.mrf.mxu0
          %v1673 = vadd.f32 %v1458, %v1672
          %1674 = vmatmul.f32.gmra.mxu0 %v799
          %v1675 = vpop.f32.mrf.mxu0
          %v1676 = vadd.f32 %v1461, %v1675
          %1677 = vmatmul.f32.gmra.mxu0 %v803
          %v1678 = vpop.f32.mrf.mxu0
          %v1679 = vadd.f32 %v1464, %v1678
          %1680 = vmatmul.f32.gmra.mxu0 %v807
          %v1681 = vpop.f32.mrf.mxu0
          %v1682 = vadd.f32 %v1467, %v1681
          %1683 = vmatmul.f32.gmra.mxu0 %v811
          %v1684 = vpop.f32.mrf.mxu0
          %v1685 = vadd.f32 %v1470, %v1684
          %1686 = vmatmul.f32.gmra.mxu0 %v815
          %v1687 = vpop.f32.mrf.mxu0
          %v1688 = vadd.f32 %v1473, %v1687
          %1689 = vmatmul.f32.gmra.mxu0 %v819
          %v1690 = vpop.f32.mrf.mxu0
          %v1691 = vadd.f32 %v1476, %v1690
          %1692 = vmatmul.f32.gmra.mxu0 %v823
          %v1693 = vpop.f32.mrf.mxu0
          %v1694 = vadd.f32 %v1479, %v1693
          %1695 = vmatmul.f32.gmra.mxu0 %v827
          %v1696 = vpop.f32.mrf.mxu0
          %v1697 = vadd.f32 %v1482, %v1696
          %1698 = vmatmul.f32.gmra.mxu0 %v831
          %v1699 = vpop.f32.mrf.mxu0
          %v1700 = vadd.f32 %v1485, %v1699
          %1701 = vmatmul.f32.gmra.mxu0 %v835
          %v1702 = vpop.f32.mrf.mxu0
          %v1703 = vadd.f32 %v1488, %v1702
          %1704 = vmatmul.f32.gmra.mxu0 %v839
          %v1705 = vpop.f32.mrf.mxu0
          %v1706 = vadd.f32 %v1491, %v1705
          %1707 = vmatmul.f32.gmra.mxu0 %v843
          %v1708 = vpop.f32.mrf.mxu0
          %v1709 = vadd.f32 %v1494, %v1708
          %1710 = vmatmul.f32.gmra.mxu0 %v847
          %v1711 = vpop.f32.mrf.mxu0
          %v1712 = vadd.f32 %v1497, %v1711
          %1713 = vmatmul.f32.gmra.mxu0 %v851
          %v1714 = vpop.f32.mrf.mxu0
          %v1715 = vadd.f32 %v1500, %v1714
          %1716 = vmatmul.f32.gmra.mxu0 %v855
          %v1717 = vpop.f32.mrf.mxu0
          %v1718 = vadd.f32 %v1503, %v1717
          %1719 = vmatmul.f32.gmra.mxu0 %v859
          %v1720 = vpop.f32.mrf.mxu0
          %v1721 = vadd.f32 %v1506, %v1720
          %1722 = vmatmul.f32.gmra.mxu0 %v863
          %v1723 = vpop.f32.mrf.mxu0
          %v1724 = vadd.f32 %v1509, %v1723
          %1725 = vmatmul.f32.gmra.mxu0 %v867
          %v1726 = vpop.f32.mrf.mxu0
          %v1727 = vadd.f32 %v1512, %v1726
          %1728 = vmatmul.f32.gmra.mxu0 %v871
          %v1729 = vpop.f32.mrf.mxu0
          %v1730 = vadd.f32 %v1515, %v1729
          %1731 = vmatmul.f32.gmra.mxu0 %v875
          %v1732 = vpop.f32.mrf.mxu0
          %v1733 = vadd.f32 %v1518, %v1732
          %1734 = vmatmul.f32.gmra.mxu0 %v879
          %v1735 = vpop.f32.mrf.mxu0
          %v1736 = vadd.f32 %v1521, %v1735
          %1737 = vmatmul.f32.gmra.mxu0 %v883
          %v1738 = vpop.f32.mrf.mxu0
          %v1739 = vadd.f32 %v1524, %v1738
          %1740 = vmatmul.f32.gmra.mxu0 %v887
          %v1741 = vpop.f32.mrf.mxu0
          %v1742 = vadd.f32 %v1527, %v1741
          %1743 = vmatmul.f32.gmra.mxu0 %v891
          %v1744 = vpop.f32.mrf.mxu0
          %v1745 = vadd.f32 %v1530, %v1744
          %1746 = vmatmul.f32.gmra.mxu0 %v895
          %v1747 = vpop.f32.mrf.mxu0
          %v1748 = vadd.f32 %v1533, %v1747
          %1749 = vmatmul.f32.gmra.mxu0 %v899
          %v1750 = vpop.f32.mrf.mxu0
          %v1751 = vadd.f32 %v1536, %v1750
          %1752 = vmatmul.f32.gmra.mxu0 %v903
          %v1753 = vpop.f32.mrf.mxu0
          %v1754 = vadd.f32 %v1539, %v1753
          %1755 = vmatmul.f32.gmra.mxu0 %v907
          %v1756 = vpop.f32.mrf.mxu0
          %v1757 = vadd.f32 %v1542, %v1756
          %1758 = vmatmul.f32.gmra.mxu0 %v911
          %v1759 = vpop.f32.mrf.mxu0
          %v1760 = vadd.f32 %v1545, %v1759
          %1761 = vmatmul.f32.gmra.mxu0 %v915
          %v1762 = vpop.f32.mrf.mxu0
          %v1763 = vadd.f32 %v1548, %v1762
          %1764 = vmatmul.f32.gmra.mxu0 %v919
          %v1765 = vpop.f32.mrf.mxu0
          %v1766 = vadd.f32 %v1551, %v1765
          %1767 = vmatmul.f32.gmra.mxu0 %v923
          %v1768 = vpop.f32.mrf.mxu0
          %v1769 = vadd.f32 %v1554, %v1768
          %1770 = vmatmul.f32.gmra.mxu0 %v927
          %v1771 = vpop.f32.mrf.mxu0
          %v1772 = vadd.f32 %v1557, %v1771
          %1773 = vmatmul.f32.gmra.mxu0 %v931
          %v1774 = vpop.f32.mrf.mxu0
          %v1775 = vadd.f32 %v1560, %v1774
          %1776 = vdwg.mxu0
          %1777 = vmatpush.msra.mxu0 0.0
          %1778 = vmatpush.msra.mxu0 0.0
          %1779 = vmatpush.msra.mxu0 0.0
          %1780 = vmatpush.msra.mxu0 0.0
          %1781 = vmatpush.msra.mxu0 0.0
          %1782 = vmatpush.msra.mxu0 0.0
          %1783 = vmatpush.msra.mxu0 0.0
          %1784 = vmatpush.msra.mxu0 0.0
          %1785 = vmatpush.msra.mxu0 0.0
          %1786 = vmatpush.msra.mxu0 0.0
          %1787 = vmatpush.msra.mxu0 0.0
          %1788 = vmatpush.msra.mxu0 0.0
          %1789 = vmatpush.msra.mxu0 0.0
          %1790 = vmatpush.msra.mxu0 %v651
          %1791 = vmatpush.msra.mxu0 %v649
          %1792 = vmatpush.msra.mxu0 %v647
          %1793 = vmatmul.f32.gmra.mxu0 %v935
          %v1794 = vpop.f32.mrf.mxu0
          %v1795 = vadd.f32 %v1580, %v1794
          %1796 = vmatmul.f32.gmra.mxu0 %v938
          %v1797 = vpop.f32.mrf.mxu0
          %v1798 = vadd.f32 %v1583, %v1797
          %1799 = vmatmul.f32.gmra.mxu0 %v941
          %v1800 = vpop.f32.mrf.mxu0
          %v1801 = vadd.f32 %v1586, %v1800
          %1802 = vmatmul.f32.gmra.mxu0 %v944
          %v1803 = vpop.f32.mrf.mxu0
          %v1804 = vadd.f32 %v1589, %v1803
          %1805 = vmatmul.f32.gmra.mxu0 %v947
          %v1806 = vpop.f32.mrf.mxu0
          %v1807 = vadd.f32 %v1592, %v1806
          %1808 = vmatmul.f32.gmra.mxu0 %v950
          %v1809 = vpop.f32.mrf.mxu0
          %v1810 = vadd.f32 %v1595, %v1809
          %1811 = vmatmul.f32.gmra.mxu0 %v953
          %v1812 = vpop.f32.mrf.mxu0
          %v1813 = vadd.f32 %v1598, %v1812
          %1814 = vmatmul.f32.gmra.mxu0 %v956
          %v1815 = vpop.f32.mrf.mxu0
          %v1816 = vadd.f32 %v1601, %v1815
          %1817 = vmatmul.f32.gmra.mxu0 %v959
          %v1818 = vpop.f32.mrf.mxu0
          %v1819 = vadd.f32 %v1604, %v1818
          %1820 = vmatmul.f32.gmra.mxu0 %v962
          %v1821 = vpop.f32.mrf.mxu0
          %v1822 = vadd.f32 %v1607, %v1821
          %1823 = vmatmul.f32.gmra.mxu0 %v965
          %v1824 = vpop.f32.mrf.mxu0
          %v1825 = vadd.f32 %v1610, %v1824
          %1826 = vmatmul.f32.gmra.mxu0 %v968
          %v1827 = vpop.f32.mrf.mxu0
          %v1828 = vadd.f32 %v1613, %v1827
          %1829 = vmatmul.f32.gmra.mxu0 %v971
          %v1830 = vpop.f32.mrf.mxu0
          %v1831 = vadd.f32 %v1616, %v1830
          %1832 = vmatmul.f32.gmra.mxu0 %v974
          %v1833 = vpop.f32.mrf.mxu0
          %v1834 = vadd.f32 %v1619, %v1833
          %1835 = vmatmul.f32.gmra.mxu0 %v977
          %v1836 = vpop.f32.mrf.mxu0
          %v1837 = vadd.f32 %v1622, %v1836
          %1838 = vmatmul.f32.gmra.mxu0 %v980
          %v1839 = vpop.f32.mrf.mxu0
          %v1840 = vadd.f32 %v1625, %v1839
          %1841 = vmatmul.f32.gmra.mxu0 %v983
          %v1842 = vpop.f32.mrf.mxu0
          %v1843 = vadd.f32 %v1628, %v1842
          %1844 = vmatmul.f32.gmra.mxu0 %v986
          %v1845 = vpop.f32.mrf.mxu0
          %v1846 = vadd.f32 %v1631, %v1845
          %1847 = vmatmul.f32.gmra.mxu0 %v989
          %v1848 = vpop.f32.mrf.mxu0
          %v1849 = vadd.f32 %v1634, %v1848
          %1850 = vmatmul.f32.gmra.mxu0 %v992
          %v1851 = vpop.f32.mrf.mxu0
          %v1852 = vadd.f32 %v1637, %v1851
          %1853 = vmatmul.f32.gmra.mxu0 %v995
          %v1854 = vpop.f32.mrf.mxu0
          %v1855 = vadd.f32 %v1640, %v1854
          %1856 = vmatmul.f32.gmra.mxu0 %v998
          %v1857 = vpop.f32.mrf.mxu0
          %v1858 = vadd.f32 %v1643, %v1857
          %1859 = vmatmul.f32.gmra.mxu0 %v1001
          %v1860 = vpop.f32.mrf.mxu0
          %v1861 = vadd.f32 %v1646, %v1860
          %1862 = vmatmul.f32.gmra.mxu0 %v1004
          %v1863 = vpop.f32.mrf.mxu0
          %v1864 = vadd.f32 %v1649, %v1863
          %1865 = vmatmul.f32.gmra.mxu0 %v1007
          %v1866 = vpop.f32.mrf.mxu0
          %v1867 = vadd.f32 %v1652, %v1866
          %1868 = vmatmul.f32.gmra.mxu0 %v1010
          %v1869 = vpop.f32.mrf.mxu0
          %v1870 = vadd.f32 %v1655, %v1869
          %1871 = vmatmul.f32.gmra.mxu0 %v1013
          %v1872 = vpop.f32.mrf.mxu0
          %v1873 = vadd.f32 %v1658, %v1872
          %1874 = vmatmul.f32.gmra.mxu0 %v1016
          %v1875 = vpop.f32.mrf.mxu0
          %v1876 = vadd.f32 %v1661, %v1875
          %1877 = vmatmul.f32.gmra.mxu0 %v1019
          %v1878 = vpop.f32.mrf.mxu0
          %v1879 = vadd.f32 %v1664, %v1878
          %1880 = vmatmul.f32.gmra.mxu0 %v1022
          %v1881 = vpop.f32.mrf.mxu0
          %v1882 = vadd.f32 %v1667, %v1881
          %1883 = vmatmul.f32.gmra.mxu0 %v1025
          %v1884 = vpop.f32.mrf.mxu0
          %v1885 = vadd.f32 %v1670, %v1884
          %1886 = vmatmul.f32.gmra.mxu0 %v1028
          %v1887 = vpop.f32.mrf.mxu0
          %v1888 = vadd.f32 %v1673, %v1887
          %1889 = vmatmul.f32.gmra.mxu0 %v1031
          %v1890 = vpop.f32.mrf.mxu0
          %v1891 = vadd.f32 %v1676, %v1890
          %1892 = vmatmul.f32.gmra.mxu0 %v1034
          %v1893 = vpop.f32.mrf.mxu0
          %v1894 = vadd.f32 %v1679, %v1893
          %1895 = vmatmul.f32.gmra.mxu0 %v1037
          %v1896 = vpop.f32.mrf.mxu0
          %v1897 = vadd.f32 %v1682, %v1896
          %1898 = vmatmul.f32.gmra.mxu0 %v1040
          %v1899 = vpop.f32.mrf.mxu0
          %v1900 = vadd.f32 %v1685, %v1899
          %1901 = vmatmul.f32.gmra.mxu0 %v1043
          %v1902 = vpop.f32.mrf.mxu0
          %v1903 = vadd.f32 %v1688, %v1902
          %1904 = vmatmul.f32.gmra.mxu0 %v1046
          %v1905 = vpop.f32.mrf.mxu0
          %v1906 = vadd.f32 %v1691, %v1905
          %1907 = vmatmul.f32.gmra.mxu0 %v1049
          %v1908 = vpop.f32.mrf.mxu0
          %v1909 = vadd.f32 %v1694, %v1908
          %1910 = vmatmul.f32.gmra.mxu0 %v1052
          %v1911 = vpop.f32.mrf.mxu0
          %v1912 = vadd.f32 %v1697, %v1911
          %1913 = vmatmul.f32.gmra.mxu0 %v1055
          %v1914 = vpop.f32.mrf.mxu0
          %v1915 = vadd.f32 %v1700, %v1914
          %1916 = vmatmul.f32.gmra.mxu0 %v1058
          %v1917 = vpop.f32.mrf.mxu0
          %v1918 = vadd.f32 %v1703, %v1917
          %1919 = vmatmul.f32.gmra.mxu0 %v1061
          %v1920 = vpop.f32.mrf.mxu0
          %v1921 = vadd.f32 %v1706, %v1920
          %1922 = vmatmul.f32.gmra.mxu0 %v1064
          %v1923 = vpop.f32.mrf.mxu0
          %v1924 = vadd.f32 %v1709, %v1923
          %1925 = vmatmul.f32.gmra.mxu0 %v1067
          %v1926 = vpop.f32.mrf.mxu0
          %v1927 = vadd.f32 %v1712, %v1926
          %1928 = vmatmul.f32.gmra.mxu0 %v1070
          %v1929 = vpop.f32.mrf.mxu0
          %v1930 = vadd.f32 %v1715, %v1929
          %1931 = vmatmul.f32.gmra.mxu0 %v1073
          %v1932 = vpop.f32.mrf.mxu0
          %v1933 = vadd.f32 %v1718, %v1932
          %1934 = vmatmul.f32.gmra.mxu0 %v1076
          %v1935 = vpop.f32.mrf.mxu0
          %v1936 = vadd.f32 %v1721, %v1935
          %1937 = vmatmul.f32.gmra.mxu0 %v1079
          %v1938 = vpop.f32.mrf.mxu0
          %v1939 = vadd.f32 %v1724, %v1938
          %1940 = vmatmul.f32.gmra.mxu0 %v1082
          %v1941 = vpop.f32.mrf.mxu0
          %v1942 = vadd.f32 %v1727, %v1941
          %1943 = vmatmul.f32.gmra.mxu0 %v1085
          %v1944 = vpop.f32.mrf.mxu0
          %v1945 = vadd.f32 %v1730, %v1944
          %1946 = vmatmul.f32.gmra.mxu0 %v1088
          %v1947 = vpop.f32.mrf.mxu0
          %v1948 = vadd.f32 %v1733, %v1947
          %1949 = vmatmul.f32.gmra.mxu0 %v1091
          %v1950 = vpop.f32.mrf.mxu0
          %v1951 = vadd.f32 %v1736, %v1950
          %1952 = vmatmul.f32.gmra.mxu0 %v1094
          %v1953 = vpop.f32.mrf.mxu0
          %v1954 = vadd.f32 %v1739, %v1953
          %1955 = vmatmul.f32.gmra.mxu0 %v1097
          %v1956 = vpop.f32.mrf.mxu0
          %v1957 = vadd.f32 %v1742, %v1956
          %1958 = vmatmul.f32.gmra.mxu0 %v1100
          %v1959 = vpop.f32.mrf.mxu0
          %v1960 = vadd.f32 %v1745, %v1959
          %1961 = vmatmul.f32.gmra.mxu0 %v1103
          %v1962 = vpop.f32.mrf.mxu0
          %v1963 = vadd.f32 %v1748, %v1962
          %1964 = vmatmul.f32.gmra.mxu0 %v1106
          %v1965 = vpop.f32.mrf.mxu0
          %v1966 = vadd.f32 %v1751, %v1965
          %1967 = vmatmul.f32.gmra.mxu0 %v1109
          %v1968 = vpop.f32.mrf.mxu0
          %v1969 = vadd.f32 %v1754, %v1968
          %1970 = vmatmul.f32.gmra.mxu0 %v1112
          %v1971 = vpop.f32.mrf.mxu0
          %v1972 = vadd.f32 %v1757, %v1971
          %1973 = vmatmul.f32.gmra.mxu0 %v1115
          %v1974 = vpop.f32.mrf.mxu0
          %v1975 = vadd.f32 %v1760, %v1974
          %1976 = vmatmul.f32.gmra.mxu0 %v1118
          %v1977 = vpop.f32.mrf.mxu0
          %v1978 = vadd.f32 %v1763, %v1977
          %1979 = vmatmul.f32.gmra.mxu0 %v1121
          %v1980 = vpop.f32.mrf.mxu0
          %v1981 = vadd.f32 %v1766, %v1980
          %1982 = vmatmul.f32.gmra.mxu0 %v1124
          %v1983 = vpop.f32.mrf.mxu0
          %v1984 = vadd.f32 %v1769, %v1983
          %1985 = vmatmul.f32.gmra.mxu0 %v1127
          %v1986 = vpop.f32.mrf.mxu0
          %v1987 = vadd.f32 %v1772, %v1986
          %1988 = vmatmul.f32.gmra.mxu0 %v1130
          %v1989 = vpop.f32.mrf.mxu0
          %v1990 = vadd.f32 %v1775, %v1989
          %1991 = vdwg.mxu0
          %v1992 = vmax.f32 %v1795, %v1894
          %v1993 = vmax.f32 %v1798, %v1897
          %v1994 = vmax.f32 %v1801, %v1900
          %v1995 = vmax.f32 %v1804, %v1903
          %v1996 = vmax.f32 %v1807, %v1906
          %v1997 = vmax.f32 %v1810, %v1909
          %v1998 = vmax.f32 %v1813, %v1912
          %v1999 = vmax.f32 %v1816, %v1915
          %v2000 = vmax.f32 %v1819, %v1918
          %v2001 = vmax.f32 %v1822, %v1921
          %v2002 = vmax.f32 %v1825, %v1924
          %v2003 = vmax.f32 %v1828, %v1927
          %v2004 = vmax.f32 %v1831, %v1930
          %v2005 = vmax.f32 %v1834, %v1933
          %v2006 = vmax.f32 %v1837, %v1936
          %v2007 = vmax.f32 %v1840, %v1939
          %v2008 = vmax.f32 %v1843, %v1942
          %v2009 = vmax.f32 %v1846, %v1945
          %v2010 = vmax.f32 %v1849, %v1948
          %v2011 = vmax.f32 %v1852, %v1951
          %v2012 = vmax.f32 %v1855, %v1954
          %v2013 = vmax.f32 %v1858, %v1957
          %v2014 = vmax.f32 %v1861, %v1960
          %v2015 = vmax.f32 %v1864, %v1963
          %v2016 = vmax.f32 %v1867, %v1966
          %v2017 = vmax.f32 %v1870, %v1969
          %v2018 = vmax.f32 %v1873, %v1972
          %v2019 = vmax.f32 %v1876, %v1975
          %v2020 = vmax.f32 %v1879, %v1978
          %v2021 = vmax.f32 %v1882, %v1981
          %v2022 = vmax.f32 %v1885, %v1984
          %v2023 = vmax.f32 %v1888, %v1987
          %v2024 = vmax.f32 %v1891, %v1990
          %2058 = vrot.lane.b32.xlu0 %v1992, 127
          %v2059 = vpop.permute.xlu0 %2058
          %2060 = vrot.lane.b32.xlu0 %v1993, 127
          %v2061 = vpop.permute.xlu0 %2060
          %2062 = vrot.lane.b32.xlu0 %v1994, 127
          %v2063 = vpop.permute.xlu0 %2062
          %2064 = vrot.lane.b32.xlu0 %v1995, 127
          %v2065 = vpop.permute.xlu0 %2064
          %2066 = vrot.lane.b32.xlu0 %v1996, 127
          %v2067 = vpop.permute.xlu0 %2066
          %2068 = vrot.lane.b32.xlu0 %v1997, 127
          %v2069 = vpop.permute.xlu0 %2068
          %2070 = vrot.lane.b32.xlu0 %v1998, 127
          %v2071 = vpop.permute.xlu0 %2070
          %2072 = vrot.lane.b32.xlu0 %v1999, 127
          %v2073 = vpop.permute.xlu0 %2072
          %2074 = vrot.lane.b32.xlu0 %v2000, 127
          %v2075 = vpop.permute.xlu0 %2074
          %2076 = vrot.lane.b32.xlu0 %v2001, 127
          %v2077 = vpop.permute.xlu0 %2076
          %2078 = vrot.lane.b32.xlu0 %v2002, 127
          %v2079 = vpop.permute.xlu0 %2078
          %2080 = vrot.lane.b32.xlu0 %v2003, 127
          %v2081 = vpop.permute.xlu0 %2080
          %2082 = vrot.lane.b32.xlu0 %v2004, 127
          %v2083 = vpop.permute.xlu0 %2082
          %2084 = vrot.lane.b32.xlu0 %v2005, 127
          %v2085 = vpop.permute.xlu0 %2084
          %2086 = vrot.lane.b32.xlu0 %v2006, 127
          %v2087 = vpop.permute.xlu0 %2086
          %2088 = vrot.lane.b32.xlu0 %v2007, 127
          %v2089 = vpop.permute.xlu0 %2088
          %2090 = vrot.lane.b32.xlu0 %v2008, 127
          %v2091 = vpop.permute.xlu0 %2090
          %2092 = vrot.lane.b32.xlu0 %v2009, 127
          %v2093 = vpop.permute.xlu0 %2092
          %2094 = vrot.lane.b32.xlu0 %v2010, 127
          %v2095 = vpop.permute.xlu0 %2094
          %2096 = vrot.lane.b32.xlu0 %v2011, 127
          %v2097 = vpop.permute.xlu0 %2096
          %2098 = vrot.lane.b32.xlu0 %v2012, 127
          %v2099 = vpop.permute.xlu0 %2098
          %2100 = vrot.lane.b32.xlu0 %v2013, 127
          %v2101 = vpop.permute.xlu0 %2100
          %2102 = vrot.lane.b32.xlu0 %v2014, 127
          %v2103 = vpop.permute.xlu0 %2102
          %2104 = vrot.lane.b32.xlu0 %v2015, 127
          %v2105 = vpop.permute.xlu0 %2104
          %2106 = vrot.lane.b32.xlu0 %v2016, 127
          %v2107 = vpop.permute.xlu0 %2106
          %2108 = vrot.lane.b32.xlu0 %v2017, 127
          %v2109 = vpop.permute.xlu0 %2108
          %2110 = vrot.lane.b32.xlu0 %v2018, 127
          %v2111 = vpop.permute.xlu0 %2110
          %2112 = vrot.lane.b32.xlu0 %v2019, 127
          %v2113 = vpop.permute.xlu0 %2112
          %2114 = vrot.lane.b32.xlu0 %v2020, 127
          %v2115 = vpop.permute.xlu0 %2114
          %2116 = vrot.lane.b32.xlu0 %v2021, 127
          %v2117 = vpop.permute.xlu0 %2116
          %2118 = vrot.lane.b32.xlu0 %v2022, 127
          %v2119 = vpop.permute.xlu0 %2118
          %2120 = vrot.lane.b32.xlu0 %v2023, 127
          %v2121 = vpop.permute.xlu0 %2120
          %2122 = vrot.lane.b32.xlu0 %v2024, 127
          %v2123 = vpop.permute.xlu0 %2122
          %v2157 = vmax.f32 %v1992, %v2059
          %v2158 = vmax.f32 %v1993, %v2061
          %v2159 = vmax.f32 %v1994, %v2063
          %v2160 = vmax.f32 %v1995, %v2065
          %v2161 = vmax.f32 %v1996, %v2067
          %v2162 = vmax.f32 %v1997, %v2069
          %v2163 = vmax.f32 %v1998, %v2071
          %v2164 = vmax.f32 %v1999, %v2073
          %v2165 = vmax.f32 %v2000, %v2075
          %v2166 = vmax.f32 %v2001, %v2077
          %v2167 = vmax.f32 %v2002, %v2079
          %v2168 = vmax.f32 %v2003, %v2081
          %v2169 = vmax.f32 %v2004, %v2083
          %v2170 = vmax.f32 %v2005, %v2085
          %v2171 = vmax.f32 %v2006, %v2087
          %v2172 = vmax.f32 %v2007, %v2089
          %v2173 = vmax.f32 %v2008, %v2091
          %v2174 = vmax.f32 %v2009, %v2093
          %v2175 = vmax.f32 %v2010, %v2095
          %v2176 = vmax.f32 %v2011, %v2097
          %v2177 = vmax.f32 %v2012, %v2099
          %v2178 = vmax.f32 %v2013, %v2101
          %v2179 = vmax.f32 %v2014, %v2103
          %v2180 = vmax.f32 %v2015, %v2105
          %v2181 = vmax.f32 %v2016, %v2107
          %v2182 = vmax.f32 %v2017, %v2109
          %v2183 = vmax.f32 %v2018, %v2111
          %v2184 = vmax.f32 %v2019, %v2113
          %v2185 = vmax.f32 %v2020, %v2115
          %v2186 = vmax.f32 %v2021, %v2117
          %v2187 = vmax.f32 %v2022, %v2119
          %v2188 = vmax.f32 %v2023, %v2121
          %v2189 = vmax.f32 %v2024, %v2123
          %v2190 = vld [vmem:[%s3] sm:$0xff]
          %v2191 = vld [vmem:[%s3 + $0x8] sm:$0xff]
          %v2192 = vld [vmem:[%s3 + $0x10] sm:$0xff]
          %v2193 = vld [vmem:[%s3 + $0x18] sm:$0xff]
          %v2194 = vld [vmem:[%s3 + $0x20] sm:$0xff]
          %v2195 = vld [vmem:[%s3 + $0x28] sm:$0xff]
          %v2196 = vld [vmem:[%s3 + $0x30] sm:$0xff]
          %v2197 = vld [vmem:[%s3 + $0x38] sm:$0xff]
          %v2198 = vld [vmem:[%s3 + $0x40] sm:$0xff]
          %v2199 = vld [vmem:[%s3 + $0x48] sm:$0xff]
          %v2200 = vld [vmem:[%s3 + $0x50] sm:$0xff]
          %v2201 = vld [vmem:[%s3 + $0x58] sm:$0xff]
          %v2202 = vld [vmem:[%s3 + $0x60] sm:$0x1f]
          %v2203 = vld [vmem:[%s2] sm:$0xff]
          %v2204 = vld [vmem:[%s2 + $0x8] sm:$0xff]
          %v2205 = vld [vmem:[%s2 + $0x10] sm:$0xff]
          %v2206 = vld [vmem:[%s2 + $0x18] sm:$0xff]
          %v2207 = vld [vmem:[%s2 + $0x20] sm:$0xff]
          %v2208 = vld [vmem:[%s2 + $0x28] sm:$0xff]
          %v2209 = vld [vmem:[%s2 + $0x30] sm:$0xff]
          %v2210 = vld [vmem:[%s2 + $0x38] sm:$0xff]
          %v2211 = vld [vmem:[%s2 + $0x40] sm:$0xff]
          %v2212 = vld [vmem:[%s2 + $0x48] sm:$0xff]
          %v2213 = vld [vmem:[%s2 + $0x50] sm:$0xff]
          %v2214 = vld [vmem:[%s2 + $0x58] sm:$0xff]
          %v2215 = vld [vmem:[%s2 + $0x60] sm:$0xff]
          %v2216 = vld [vmem:[%s2 + $0x68] sm:$0xff]
          %v2217 = vld [vmem:[%s2 + $0x70] sm:$0xff]
          %v2218 = vld [vmem:[%s2 + $0x78] sm:$0xff]
          %v2219 = vld [vmem:[%s2 + $0x80] sm:$0xff]
          %v2220 = vld [vmem:[%s2 + $0x88] sm:$0xff]
          %v2221 = vld [vmem:[%s2 + $0x90] sm:$0xff]
          %v2222 = vld [vmem:[%s2 + $0x98] sm:$0xff]
          %v2223 = vld [vmem:[%s2 + $0xa0] sm:$0xff]
          %v2224 = vld [vmem:[%s2 + $0xa8] sm:$0xff]
          %v2225 = vld [vmem:[%s2 + $0xb0] sm:$0xff]
          %v2226 = vld [vmem:[%s2 + $0xb8] sm:$0xff]
          %v2227 = vld [vmem:[%s2 + $0xc0] sm:$0xff]
          %v2228 = vld [vmem:[%s2 + $0xc8] sm:$0xff]
          %v2229 = vld [vmem:[%s2 + $0xd0] sm:$0xff]
          %v2230 = vld [vmem:[%s2 + $0xd8] sm:$0xff]
          %v2231 = vld [vmem:[%s2 + $0xe0] sm:$0xff]
          %v2232 = vld [vmem:[%s2 + $0xe8] sm:$0xff]
          %v2233 = vld [vmem:[%s2 + $0xf0] sm:$0xff]
          %v2234 = vld [vmem:[%s2 + $0xf8] sm:$0xff]
          %v2235 = vld [vmem:[%s2 + $0x100] sm:$0xff]
          %2237 = vset.pattern.permute.xlu0 0
          %2238 = vperm.xlu0 %2237, %v2203
          %v2239 = vpop.permute.xlu0 %2238
          %2242 = vset.pattern.permute.xlu0 0
          %2243 = vperm.xlu0 %2242, %v2204
          %v2244 = vpop.permute.xlu0 %2243
          %2247 = vset.pattern.permute.xlu0 0
          %2248 = vperm.xlu0 %2247, %v2205
          %v2249 = vpop.permute.xlu0 %2248
          %2252 = vset.pattern.permute.xlu0 0
          %2253 = vperm.xlu0 %2252, %v2206
          %v2254 = vpop.permute.xlu0 %2253
          %2257 = vset.pattern.permute.xlu0 0
          %2258 = vperm.xlu0 %2257, %v2207
          %v2259 = vpop.permute.xlu0 %2258
          %2262 = vset.pattern.permute.xlu0 0
          %2263 = vperm.xlu0 %2262, %v2208
          %v2264 = vpop.permute.xlu0 %2263
          %2267 = vset.pattern.permute.xlu0 0
          %2268 = vperm.xlu0 %2267, %v2209
          %v2269 = vpop.permute.xlu0 %2268
          %2272 = vset.pattern.permute.xlu0 0
          %2273 = vperm.xlu0 %2272, %v2210
          %v2274 = vpop.permute.xlu0 %2273
          %2277 = vset.pattern.permute.xlu0 0
          %2278 = vperm.xlu0 %2277, %v2211
          %v2279 = vpop.permute.xlu0 %2278
          %2282 = vset.pattern.permute.xlu0 0
          %2283 = vperm.xlu0 %2282, %v2212
          %v2284 = vpop.permute.xlu0 %2283
          %2287 = vset.pattern.permute.xlu0 0
          %2288 = vperm.xlu0 %2287, %v2213
          %v2289 = vpop.permute.xlu0 %2288
          %2292 = vset.pattern.permute.xlu0 0
          %2293 = vperm.xlu0 %2292, %v2214
          %v2294 = vpop.permute.xlu0 %2293
          %2297 = vset.pattern.permute.xlu0 0
          %2298 = vperm.xlu0 %2297, %v2215
          %v2299 = vpop.permute.xlu0 %2298
          %2302 = vset.pattern.permute.xlu0 0
          %2303 = vperm.xlu0 %2302, %v2216
          %v2304 = vpop.permute.xlu0 %2303
          %2307 = vset.pattern.permute.xlu0 0
          %2308 = vperm.xlu0 %2307, %v2217
          %v2309 = vpop.permute.xlu0 %2308
          %2312 = vset.pattern.permute.xlu0 0
          %2313 = vperm.xlu0 %2312, %v2218
          %v2314 = vpop.permute.xlu0 %2313
          %2317 = vset.pattern.permute.xlu0 0
          %2318 = vperm.xlu0 %2317, %v2219
          %v2319 = vpop.permute.xlu0 %2318
          %2322 = vset.pattern.permute.xlu0 0
          %2323 = vperm.xlu0 %2322, %v2220
          %v2324 = vpop.permute.xlu0 %2323
          %2327 = vset.pattern.permute.xlu0 0
          %2328 = vperm.xlu0 %2327, %v2221
          %v2329 = vpop.permute.xlu0 %2328
          %2332 = vset.pattern.permute.xlu0 0
          %2333 = vperm.xlu0 %2332, %v2222
          %v2334 = vpop.permute.xlu0 %2333
          %2337 = vset.pattern.permute.xlu0 0
          %2338 = vperm.xlu0 %2337, %v2223
          %v2339 = vpop.permute.xlu0 %2338
          %2342 = vset.pattern.permute.xlu0 0
          %2343 = vperm.xlu0 %2342, %v2224
          %v2344 = vpop.permute.xlu0 %2343
          %2347 = vset.pattern.permute.xlu0 0
          %2348 = vperm.xlu0 %2347, %v2225
          %v2349 = vpop.permute.xlu0 %2348
          %2352 = vset.pattern.permute.xlu0 0
          %2353 = vperm.xlu0 %2352, %v2226
          %v2354 = vpop.permute.xlu0 %2353
          %2357 = vset.pattern.permute.xlu0 0
          %2358 = vperm.xlu0 %2357, %v2227
          %v2359 = vpop.permute.xlu0 %2358
          %2362 = vset.pattern.permute.xlu0 0
          %2363 = vperm.xlu0 %2362, %v2228
          %v2364 = vpop.permute.xlu0 %2363
          %2367 = vset.pattern.permute.xlu0 0
          %2368 = vperm.xlu0 %2367, %v2229
          %v2369 = vpop.permute.xlu0 %2368
          %2372 = vset.pattern.permute.xlu0 0
          %2373 = vperm.xlu0 %2372, %v2230
          %v2374 = vpop.permute.xlu0 %2373
          %2377 = vset.pattern.permute.xlu0 0
          %2378 = vperm.xlu0 %2377, %v2231
          %v2379 = vpop.permute.xlu0 %2378
          %2382 = vset.pattern.permute.xlu0 0
          %2383 = vperm.xlu0 %2382, %v2232
          %v2384 = vpop.permute.xlu0 %2383
          %2387 = vset.pattern.permute.xlu0 0
          %2388 = vperm.xlu0 %2387, %v2233
          %v2389 = vpop.permute.xlu0 %2388
          %2392 = vset.pattern.permute.xlu0 0
          %2393 = vperm.xlu0 %2392, %v2234
          %v2394 = vpop.permute.xlu0 %2393
          %2397 = vset.pattern.permute.xlu0 0
          %2398 = vperm.xlu0 %2397, %v2235
          %v2399 = vpop.permute.xlu0 %2398
          %vm2401 = vcmask 826368
          %v2403 = vsel %vm2401, %v2157, 0
          %v2406 = vsel %vm2401, %v2158, 0
          %v2409 = vsel %vm2401, %v2159, 0
          %v2412 = vsel %vm2401, %v2160, 0
          %v2415 = vsel %vm2401, %v2161, 0
          %v2418 = vsel %vm2401, %v2162, 0
          %v2421 = vsel %vm2401, %v2163, 0
          %v2424 = vsel %vm2401, %v2164, 0
          %v2427 = vsel %vm2401, %v2165, 0
          %v2430 = vsel %vm2401, %v2166, 0
          %v2433 = vsel %vm2401, %v2167, 0
          %v2436 = vsel %vm2401, %v2168, 0
          %v2439 = vsel %vm2401, %v2169, 0
          %v2442 = vsel %vm2401, %v2170, 0
          %v2445 = vsel %vm2401, %v2171, 0
          %v2448 = vsel %vm2401, %v2172, 0
          %v2451 = vsel %vm2401, %v2173, 0
          %v2454 = vsel %vm2401, %v2174, 0
          %v2457 = vsel %vm2401, %v2175, 0
          %v2460 = vsel %vm2401, %v2176, 0
          %v2463 = vsel %vm2401, %v2177, 0
          %v2466 = vsel %vm2401, %v2178, 0
          %v2469 = vsel %vm2401, %v2179, 0
          %v2472 = vsel %vm2401, %v2180, 0
          %v2475 = vsel %vm2401, %v2181, 0
          %v2478 = vsel %vm2401, %v2182, 0
          %v2481 = vsel %vm2401, %v2183, 0
          %v2484 = vsel %vm2401, %v2184, 0
          %v2487 = vsel %vm2401, %v2185, 0
          %v2490 = vsel %vm2401, %v2186, 0
          %v2493 = vsel %vm2401, %v2187, 0
          %v2496 = vsel %vm2401, %v2188, 0
          %v2499 = vsel %vm2401, %v2189, 0
          %vm2501 = vcmask 1044480
          %v2503 = vsel %vm2501, %v2202, 0
          %2505 = vmatpush.msra.mxu0 0.0
          %2506 = vmatpush.msra.mxu0 0.0
          %2507 = vmatpush.msra.mxu0 0.0
          %2508 = vmatpush.msra.mxu0 %v2503
          %2509 = vmatpush.msra.mxu0 %v2201
          %2510 = vmatpush.msra.mxu0 %v2200
          %2511 = vmatpush.msra.mxu0 %v2199
          %2512 = vmatpush.msra.mxu0 %v2198
          %2513 = vmatpush.msra.mxu0 %v2197
          %2514 = vmatpush.msra.mxu0 %v2196
          %2515 = vmatpush.msra.mxu0 %v2195
          %2516 = vmatpush.msra.mxu0 %v2194
          %2517 = vmatpush.msra.mxu0 %v2193
          %2518 = vmatpush.msra.mxu0 %v2192
          %2519 = vmatpush.msra.mxu0 %v2191
          %2520 = vmatpush.msra.mxu0 %v2190
          %2521 = vmatmul.f32.gmra.mxu0 %v2403
          %v2522 = vpop.f32.mrf.mxu0
          %v2523 = vadd.f32 %v2239, %v2522
          %2524 = vmatmul.f32.gmra.mxu0 %v2406
          %v2525 = vpop.f32.mrf.mxu0
          %v2526 = vadd.f32 %v2244, %v2525
          %2527 = vmatmul.f32.gmra.mxu0 %v2409
          %v2528 = vpop.f32.mrf.mxu0
          %v2529 = vadd.f32 %v2249, %v2528
          %2530 = vmatmul.f32.gmra.mxu0 %v2412
          %v2531 = vpop.f32.mrf.mxu0
          %v2532 = vadd.f32 %v2254, %v2531
          %2533 = vmatmul.f32.gmra.mxu0 %v2415
          %v2534 = vpop.f32.mrf.mxu0
          %v2535 = vadd.f32 %v2259, %v2534
          %2536 = vmatmul.f32.gmra.mxu0 %v2418
          %v2537 = vpop.f32.mrf.mxu0
          %v2538 = vadd.f32 %v2264, %v2537
          %2539 = vmatmul.f32.gmra.mxu0 %v2421
          %v2540 = vpop.f32.mrf.mxu0
          %v2541 = vadd.f32 %v2269, %v2540
          %2542 = vmatmul.f32.gmra.mxu0 %v2424
          %v2543 = vpop.f32.mrf.mxu0
          %v2544 = vadd.f32 %v2274, %v2543
          %2545 = vmatmul.f32.gmra.mxu0 %v2427
          %v2546 = vpop.f32.mrf.mxu0
          %v2547 = vadd.f32 %v2279, %v2546
          %2548 = vmatmul.f32.gmra.mxu0 %v2430
          %v2549 = vpop.f32.mrf.mxu0
          %v2550 = vadd.f32 %v2284, %v2549
          %2551 = vmatmul.f32.gmra.mxu0 %v2433
          %v2552 = vpop.f32.mrf.mxu0
          %v2553 = vadd.f32 %v2289, %v2552
          %2554 = vmatmul.f32.gmra.mxu0 %v2436
          %v2555 = vpop.f32.mrf.mxu0
          %v2556 = vadd.f32 %v2294, %v2555
          %2557 = vmatmul.f32.gmra.mxu0 %v2439
          %v2558 = vpop.f32.mrf.mxu0
          %v2559 = vadd.f32 %v2299, %v2558
          %2560 = vmatmul.f32.gmra.mxu0 %v2442
          %v2561 = vpop.f32.mrf.mxu0
          %v2562 = vadd.f32 %v2304, %v2561
          %2563 = vmatmul.f32.gmra.mxu0 %v2445
          %v2564 = vpop.f32.mrf.mxu0
          %v2565 = vadd.f32 %v2309, %v2564
          %2566 = vmatmul.f32.gmra.mxu0 %v2448
          %v2567 = vpop.f32.mrf.mxu0
          %v2568 = vadd.f32 %v2314, %v2567
          %2569 = vmatmul.f32.gmra.mxu0 %v2451
          %v2570 = vpop.f32.mrf.mxu0
          %v2571 = vadd.f32 %v2319, %v2570
          %2572 = vmatmul.f32.gmra.mxu0 %v2454
          %v2573 = vpop.f32.mrf.mxu0
          %v2574 = vadd.f32 %v2324, %v2573
          %2575 = vmatmul.f32.gmra.mxu0 %v2457
          %v2576 = vpop.f32.mrf.mxu0
          %v2577 = vadd.f32 %v2329, %v2576
          %2578 = vmatmul.f32.gmra.mxu0 %v2460
          %v2579 = vpop.f32.mrf.mxu0
          %v2580 = vadd.f32 %v2334, %v2579
          %2581 = vmatmul.f32.gmra.mxu0 %v2463
          %v2582 = vpop.f32.mrf.mxu0
          %v2583 = vadd.f32 %v2339, %v2582
          %2584 = vmatmul.f32.gmra.mxu0 %v2466
          %v2585 = vpop.f32.mrf.mxu0
          %v2586 = vadd.f32 %v2344, %v2585
          %2587 = vmatmul.f32.gmra.mxu0 %v2469
          %v2588 = vpop.f32.mrf.mxu0
          %v2589 = vadd.f32 %v2349, %v2588
          %2590 = vmatmul.f32.gmra.mxu0 %v2472
          %v2591 = vpop.f32.mrf.mxu0
          %v2592 = vadd.f32 %v2354, %v2591
          %2593 = vmatmul.f32.gmra.mxu0 %v2475
          %v2594 = vpop.f32.mrf.mxu0
          %v2595 = vadd.f32 %v2359, %v2594
          %2596 = vmatmul.f32.gmra.mxu0 %v2478
          %v2597 = vpop.f32.mrf.mxu0
          %v2598 = vadd.f32 %v2364, %v2597
          %2599 = vmatmul.f32.gmra.mxu0 %v2481
          %v2600 = vpop.f32.mrf.mxu0
          %v2601 = vadd.f32 %v2369, %v2600
          %2602 = vmatmul.f32.gmra.mxu0 %v2484
          %v2603 = vpop.f32.mrf.mxu0
          %v2604 = vadd.f32 %v2374, %v2603
          %2605 = vmatmul.f32.gmra.mxu0 %v2487
          %v2606 = vpop.f32.mrf.mxu0
          %v2607 = vadd.f32 %v2379, %v2606
          %2608 = vmatmul.f32.gmra.mxu0 %v2490
          %v2609 = vpop.f32.mrf.mxu0
          %v2610 = vadd.f32 %v2384, %v2609
          %2611 = vmatmul.f32.gmra.mxu0 %v2493
          %v2612 = vpop.f32.mrf.mxu0
          %v2613 = vadd.f32 %v2389, %v2612
          %2614 = vmatmul.f32.gmra.mxu0 %v2496
          %v2615 = vpop.f32.mrf.mxu0
          %v2616 = vadd.f32 %v2394, %v2615
          %2617 = vmatmul.f32.gmra.mxu0 %v2499
          %v2618 = vpop.f32.mrf.mxu0
          %v2619 = vadd.f32 %v2399, %v2618
          %2620 = vdwg.mxu0
          %v2621 = vmax.f32 %v2523, 0.0
          %v2622 = vmax.f32 %v2526, 0.0
          %v2623 = vmax.f32 %v2529, 0.0
          %v2624 = vmax.f32 %v2532, 0.0
          %v2625 = vmax.f32 %v2535, 0.0
          %v2626 = vmax.f32 %v2538, 0.0
          %v2627 = vmax.f32 %v2541, 0.0
          %v2628 = vmax.f32 %v2544, 0.0
          %v2629 = vmax.f32 %v2547, 0.0
          %v2630 = vmax.f32 %v2550, 0.0
          %v2631 = vmax.f32 %v2553, 0.0
          %v2632 = vmax.f32 %v2556, 0.0
          %v2633 = vmax.f32 %v2559, 0.0
          %v2634 = vmax.f32 %v2562, 0.0
          %v2635 = vmax.f32 %v2565, 0.0
          %v2636 = vmax.f32 %v2568, 0.0
          %v2637 = vmax.f32 %v2571, 0.0
          %v2638 = vmax.f32 %v2574, 0.0
          %v2639 = vmax.f32 %v2577, 0.0
          %v2640 = vmax.f32 %v2580, 0.0
          %v2641 = vmax.f32 %v2583, 0.0
          %v2642 = vmax.f32 %v2586, 0.0
          %v2643 = vmax.f32 %v2589, 0.0
          %v2644 = vmax.f32 %v2592, 0.0
          %v2645 = vmax.f32 %v2595, 0.0
          %v2646 = vmax.f32 %v2598, 0.0
          %v2647 = vmax.f32 %v2601, 0.0
          %v2648 = vmax.f32 %v2604, 0.0
          %v2649 = vmax.f32 %v2607, 0.0
          %v2650 = vmax.f32 %v2610, 0.0
          %v2651 = vmax.f32 %v2613, 0.0
          %v2652 = vmax.f32 %v2616, 0.0
          %v2653 = vmax.f32 %v2619, 0.0
          %2687 = vrot.lane.b32.xlu0 %v2621, 127
          %v2688 = vpop.permute.xlu0 %2687
          %2689 = vrot.lane.b32.xlu0 %v2622, 127
          %v2690 = vpop.permute.xlu0 %2689
          %2691 = vrot.lane.b32.xlu0 %v2623, 127
          %v2692 = vpop.permute.xlu0 %2691
          %2693 = vrot.lane.b32.xlu0 %v2624, 127
          %v2694 = vpop.permute.xlu0 %2693
          %2695 = vrot.lane.b32.xlu0 %v2625, 127
          %v2696 = vpop.permute.xlu0 %2695
          %2697 = vrot.lane.b32.xlu0 %v2626, 127
          %v2698 = vpop.permute.xlu0 %2697
          %2699 = vrot.lane.b32.xlu0 %v2627, 127
          %v2700 = vpop.permute.xlu0 %2699
          %2701 = vrot.lane.b32.xlu0 %v2628, 127
          %v2702 = vpop.permute.xlu0 %2701
          %2703 = vrot.lane.b32.xlu0 %v2629, 127
          %v2704 = vpop.permute.xlu0 %2703
          %2705 = vrot.lane.b32.xlu0 %v2630, 127
          %v2706 = vpop.permute.xlu0 %2705
          %2707 = vrot.lane.b32.xlu0 %v2631, 127
          %v2708 = vpop.permute.xlu0 %2707
          %2709 = vrot.lane.b32.xlu0 %v2632, 127
          %v2710 = vpop.permute.xlu0 %2709
          %2711 = vrot.lane.b32.xlu0 %v2633, 127
          %v2712 = vpop.permute.xlu0 %2711
          %2713 = vrot.lane.b32.xlu0 %v2634, 127
          %v2714 = vpop.permute.xlu0 %2713
          %2715 = vrot.lane.b32.xlu0 %v2635, 127
          %v2716 = vpop.permute.xlu0 %2715
          %2717 = vrot.lane.b32.xlu0 %v2636, 127
          %v2718 = vpop.permute.xlu0 %2717
          %2719 = vrot.lane.b32.xlu0 %v2637, 127
          %v2720 = vpop.permute.xlu0 %2719
          %2721 = vrot.lane.b32.xlu0 %v2638, 127
          %v2722 = vpop.permute.xlu0 %2721
          %2723 = vrot.lane.b32.xlu0 %v2639, 127
          %v2724 = vpop.permute.xlu0 %2723
          %2725 = vrot.lane.b32.xlu0 %v2640, 127
          %v2726 = vpop.permute.xlu0 %2725
          %2727 = vrot.lane.b32.xlu0 %v2641, 127
          %v2728 = vpop.permute.xlu0 %2727
          %2729 = vrot.lane.b32.xlu0 %v2642, 127
          %v2730 = vpop.permute.xlu0 %2729
          %2731 = vrot.lane.b32.xlu0 %v2643, 127
          %v2732 = vpop.permute.xlu0 %2731
          %2733 = vrot.lane.b32.xlu0 %v2644, 127
          %v2734 = vpop.permute.xlu0 %2733
          %2735 = vrot.lane.b32.xlu0 %v2645, 127
          %v2736 = vpop.permute.xlu0 %2735
          %2737 = vrot.lane.b32.xlu0 %v2646, 127
          %v2738 = vpop.permute.xlu0 %2737
          %2739 = vrot.lane.b32.xlu0 %v2647, 127
          %v2740 = vpop.permute.xlu0 %2739
          %2741 = vrot.lane.b32.xlu0 %v2648, 127
          %v2742 = vpop.permute.xlu0 %2741
          %2743 = vrot.lane.b32.xlu0 %v2649, 127
          %v2744 = vpop.permute.xlu0 %2743
          %2745 = vrot.lane.b32.xlu0 %v2650, 127
          %v2746 = vpop.permute.xlu0 %2745
          %2747 = vrot.lane.b32.xlu0 %v2651, 127
          %v2748 = vpop.permute.xlu0 %2747
          %2749 = vrot.lane.b32.xlu0 %v2652, 127
          %v2750 = vpop.permute.xlu0 %2749
          %2751 = vrot.lane.b32.xlu0 %v2653, 127
          %v2752 = vpop.permute.xlu0 %2751
          %2786 = vrot.lane.b32.xlu0 %v2621, 126
          %v2787 = vpop.permute.xlu0 %2786
          %2788 = vrot.lane.b32.xlu0 %v2622, 126
          %v2789 = vpop.permute.xlu0 %2788
          %2790 = vrot.lane.b32.xlu0 %v2623, 126
          %v2791 = vpop.permute.xlu0 %2790
          %2792 = vrot.lane.b32.xlu0 %v2624, 126
          %v2793 = vpop.permute.xlu0 %2792
          %2794 = vrot.lane.b32.xlu0 %v2625, 126
          %v2795 = vpop.permute.xlu0 %2794
          %2796 = vrot.lane.b32.xlu0 %v2626, 126
          %v2797 = vpop.permute.xlu0 %2796
          %2798 = vrot.lane.b32.xlu0 %v2627, 126
          %v2799 = vpop.permute.xlu0 %2798
          %2800 = vrot.lane.b32.xlu0 %v2628, 126
          %v2801 = vpop.permute.xlu0 %2800
          %2802 = vrot.lane.b32.xlu0 %v2629, 126
          %v2803 = vpop.permute.xlu0 %2802
          %2804 = vrot.lane.b32.xlu0 %v2630, 126
          %v2805 = vpop.permute.xlu0 %2804
          %2806 = vrot.lane.b32.xlu0 %v2631, 126
          %v2807 = vpop.permute.xlu0 %2806
          %2808 = vrot.lane.b32.xlu0 %v2632, 126
          %v2809 = vpop.permute.xlu0 %2808
          %2810 = vrot.lane.b32.xlu0 %v2633, 126
          %v2811 = vpop.permute.xlu0 %2810
          %2812 = vrot.lane.b32.xlu0 %v2634, 126
          %v2813 = vpop.permute.xlu0 %2812
          %2814 = vrot.lane.b32.xlu0 %v2635, 126
          %v2815 = vpop.permute.xlu0 %2814
          %2816 = vrot.lane.b32.xlu0 %v2636, 126
          %v2817 = vpop.permute.xlu0 %2816
          %2818 = vrot.lane.b32.xlu0 %v2637, 126
          %v2819 = vpop.permute.xlu0 %2818
          %2820 = vrot.lane.b32.xlu0 %v2638, 126
          %v2821 = vpop.permute.xlu0 %2820
          %2822 = vrot.lane.b32.xlu0 %v2639, 126
          %v2823 = vpop.permute.xlu0 %2822
          %2824 = vrot.lane.b32.xlu0 %v2640, 126
          %v2825 = vpop.permute.xlu0 %2824
          %2826 = vrot.lane.b32.xlu0 %v2641, 126
          %v2827 = vpop.permute.xlu0 %2826
          %2828 = vrot.lane.b32.xlu0 %v2642, 126
          %v2829 = vpop.permute.xlu0 %2828
          %2830 = vrot.lane.b32.xlu0 %v2643, 126
          %v2831 = vpop.permute.xlu0 %2830
          %2832 = vrot.lane.b32.xlu0 %v2644, 126
          %v2833 = vpop.permute.xlu0 %2832
          %2834 = vrot.lane.b32.xlu0 %v2645, 126
          %v2835 = vpop.permute.xlu0 %2834
          %2836 = vrot.lane.b32.xlu0 %v2646, 126
          %v2837 = vpop.permute.xlu0 %2836
          %2838 = vrot.lane.b32.xlu0 %v2647, 126
          %v2839 = vpop.permute.xlu0 %2838
          %2840 = vrot.lane.b32.xlu0 %v2648, 126
          %v2841 = vpop.permute.xlu0 %2840
          %2842 = vrot.lane.b32.xlu0 %v2649, 126
          %v2843 = vpop.permute.xlu0 %2842
          %2844 = vrot.lane.b32.xlu0 %v2650, 126
          %v2845 = vpop.permute.xlu0 %2844
          %2846 = vrot.lane.b32.xlu0 %v2651, 126
          %v2847 = vpop.permute.xlu0 %2846
          %2848 = vrot.lane.b32.xlu0 %v2652, 126
          %v2849 = vpop.permute.xlu0 %2848
          %2850 = vrot.lane.b32.xlu0 %v2653, 126
          %v2851 = vpop.permute.xlu0 %2850
          %v2885 = vld [vmem:[%s4] sm:$0xff]
          %v2886 = vld [vmem:[%s4 + $0x8] sm:$0xff]
          %v2887 = vld [vmem:[%s4 + $0x10] sm:$0xff]
          %v2888 = vld [vmem:[%s4 + $0x18] sm:$0xff]
          %v2889 = vld [vmem:[%s4 + $0x20] sm:$0xff]
          %v2890 = vld [vmem:[%s4 + $0x28] sm:$0xff]
          %v2891 = vld [vmem:[%s4 + $0x30] sm:$0xff]
          %v2892 = vld [vmem:[%s4 + $0x38] sm:$0xff]
          %v2893 = vld [vmem:[%s4 + $0x40] sm:$0xff]
          %v2894 = vld [vmem:[%s4 + $0x48] sm:$0xff]
          %v2895 = vld [vmem:[%s4 + $0x50] sm:$0xff]
          %v2896 = vld [vmem:[%s4 + $0x58] sm:$0xff]
          %v2897 = vld [vmem:[%s4 + $0x60] sm:$0xff]
          %v2898 = vld [vmem:[%s4 + $0x68] sm:$0xff]
          %v2899 = vld [vmem:[%s4 + $0x70] sm:$0xff]
          %v2900 = vld [vmem:[%s4 + $0x78] sm:$0xff]
          %v2901 = vld [vmem:[%s4 + $0x80] sm:$0xff]
          %v2902 = vld [vmem:[%s4 + $0x88] sm:$0xff]
          %v2903 = vld [vmem:[%s4 + $0x90] sm:$0xff]
          %v2904 = vld [vmem:[%s4 + $0x98] sm:$0xff]
          %v2905 = vld [vmem:[%s4 + $0xa0] sm:$0xff]
          %v2906 = vld [vmem:[%s4 + $0xa8] sm:$0xff]
          %v2907 = vld [vmem:[%s4 + $0xb0] sm:$0xff]
          %v2908 = vld [vmem:[%s4 + $0xb8] sm:$0xff]
          %v2909 = vld [vmem:[%s4 + $0xc0] sm:$0xff]
          %v2910 = vld [vmem:[%s4 + $0xc8] sm:$0xff]
          %v2911 = vld [vmem:[%s4 + $0xd0] sm:$0xff]
          %v2912 = vld [vmem:[%s4 + $0xd8] sm:$0xff]
          %v2913 = vld [vmem:[%s4 + $0xe0] sm:$0xff]
          %v2914 = vld [vmem:[%s4 + $0xe8] sm:$0xff]
          %v2915 = vld [vmem:[%s4 + $0xf0] sm:$0xff]
          %v2916 = vld [vmem:[%s4 + $0xf8] sm:$0xff]
          %v2917 = vld [vmem:[%s4 + $0x100] sm:$0xff]
          %v2918 = vld [vmem:[%s4 + $0x108] sm:$0xff]
          %v2919 = vld [vmem:[%s4 + $0x110] sm:$0xff]
          %v2920 = vld [vmem:[%s4 + $0x118] sm:$0xff]
          %v2921 = vld [vmem:[%s4 + $0x120] sm:$0xff]
          %v2922 = vld [vmem:[%s4 + $0x128] sm:$0xff]
          %v2923 = vld [vmem:[%s4 + $0x130] sm:$0xff]
          %v2924 = vld [vmem:[%s4 + $0x138] sm:$0xff]
          %v2925 = vld [vmem:[%s4 + $0x140] sm:$0xff]
          %v2926 = vld [vmem:[%s4 + $0x148] sm:$0xff]
          %v2927 = vld [vmem:[%s4 + $0x150] sm:$0xff]
          %v2928 = vld [vmem:[%s4 + $0x158] sm:$0xff]
          %v2929 = vld [vmem:[%s4 + $0x160] sm:$0xff]
          %v2930 = vld [vmem:[%s4 + $0x168] sm:$0xff]
          %v2931 = vld [vmem:[%s4 + $0x170] sm:$0xff]
          %v2932 = vld [vmem:[%s4 + $0x178] sm:$0xff]
          %v2933 = vld [vmem:[%s4 + $0x180] sm:$0xff]
          %v2934 = vld [vmem:[%s4 + $0x188] sm:$0xff]
          %v2935 = vld [vmem:[%s4 + $0x190] sm:$0xff]
          %v2936 = vld [vmem:[%s4 + $0x198] sm:$0xff]
          %v2937 = vld [vmem:[%s4 + $0x1a0] sm:$0xff]
          %v2938 = vld [vmem:[%s4 + $0x1a8] sm:$0xff]
          %v2939 = vld [vmem:[%s4 + $0x1b0] sm:$0xff]
          %v2940 = vld [vmem:[%s4 + $0x1b8] sm:$0xff]
          %v2941 = vld [vmem:[%s4 + $0x1c0] sm:$0xff]
          %v2942 = vld [vmem:[%s4 + $0x1c8] sm:$0xff]
          %v2943 = vld [vmem:[%s4 + $0x1d0] sm:$0xff]
          %v2944 = vld [vmem:[%s4 + $0x1d8] sm:$0xff]
          %v2945 = vld [vmem:[%s4 + $0x1e0] sm:$0xff]
          %v2946 = vld [vmem:[%s4 + $0x1e8] sm:$0xff]
          %v2947 = vld [vmem:[%s4 + $0x1f0] sm:$0xff]
          %v2948 = vld [vmem:[%s4 + $0x1f8] sm:$0xff]
          %v2949 = vld [vmem:[%s4 + $0x200] sm:$0xff]
          %v2950 = vld [vmem:[%s4 + $0x208] sm:$0xff]
          %v2951 = vld [vmem:[%s4 + $0x210] sm:$0xff]
          %v2952 = vld [vmem:[%s4 + $0x218] sm:$0xff]
          %v2953 = vld [vmem:[%s4 + $0x220] sm:$0xff]
          %v2954 = vld [vmem:[%s4 + $0x228] sm:$0xff]
          %v2955 = vld [vmem:[%s4 + $0x230] sm:$0xff]
          %v2956 = vld [vmem:[%s4 + $0x238] sm:$0xff]
          %v2957 = vld [vmem:[%s4 + $0x240] sm:$0xff]
          %v2958 = vld [vmem:[%s4 + $0x248] sm:$0xff]
          %v2959 = vld [vmem:[%s4 + $0x250] sm:$0xff]
          %v2960 = vld [vmem:[%s4 + $0x258] sm:$0xff]
          %v2961 = vld [vmem:[%s4 + $0x260] sm:$0xff]
          %v2962 = vld [vmem:[%s4 + $0x268] sm:$0xff]
          %v2963 = vld [vmem:[%s4 + $0x270] sm:$0xff]
          %v2964 = vld [vmem:[%s4 + $0x278] sm:$0xff]
          %v2965 = vld [vmem:[%s4 + $0x280] sm:$0xff]
          %v2966 = vld [vmem:[%s4 + $0x288] sm:$0xff]
          %v2967 = vld [vmem:[%s4 + $0x290] sm:$0xff]
          %v2968 = vld [vmem:[%s4 + $0x298] sm:$0xff]
          %v2969 = vld [vmem:[%s4 + $0x2a0] sm:$0xff]
          %v2970 = vld [vmem:[%s4 + $0x2a8] sm:$0xff]
          %v2971 = vld [vmem:[%s4 + $0x2b0] sm:$0xff]
          %v2972 = vld [vmem:[%s4 + $0x2b8] sm:$0xff]
          %v2973 = vld [vmem:[%s4 + $0x2c0] sm:$0xff]
          %v2974 = vld [vmem:[%s4 + $0x2c8] sm:$0xff]
          %v2975 = vld [vmem:[%s4 + $0x2d0] sm:$0xff]
          %v2976 = vld [vmem:[%s4 + $0x2d8] sm:$0xff]
          %v2977 = vld [vmem:[%s4 + $0x2e0] sm:$0xff]
          %v2978 = vld [vmem:[%s4 + $0x2e8] sm:$0xff]
          %v2979 = vld [vmem:[%s4 + $0x2f0] sm:$0xff]
          %v2980 = vld [vmem:[%s4 + $0x2f8] sm:$0xff]
          %v2981 = vld [vmem:[%s4 + $0x300] sm:$0xff]
          %v2982 = vld [vmem:[%s4 + $0x308] sm:$0xff]
          %v2983 = vld [vmem:[%s4 + $0x310] sm:$0xff]
          %v2984 = vld [vmem:[%s4 + $0x318] sm:$0xff]
          %v2985 = vld [vmem:[%s4 + $0x320] sm:$0xff]
          %v2986 = vld [vmem:[%s4 + $0x328] sm:$0xff]
          %v2987 = vld [vmem:[%s4 + $0x330] sm:$0xff]
          %v2988 = vld [vmem:[%s4 + $0x338] sm:$0xff]
          %v2989 = vld [vmem:[%s4 + $0x340] sm:$0xff]
          %v2990 = vld [vmem:[%s4 + $0x348] sm:$0xff]
          %v2991 = vld [vmem:[%s4 + $0x350] sm:$0xff]
          %v2992 = vld [vmem:[%s4 + $0x358] sm:$0xff]
          %v2993 = vld [vmem:[%s4 + $0x360] sm:$0xff]
          %v2994 = vld [vmem:[%s4 + $0x368] sm:$0xff]
          %v2995 = vld [vmem:[%s4 + $0x370] sm:$0xff]
          %v2996 = vld [vmem:[%s4 + $0x378] sm:$0xff]
          %v2997 = vld [vmem:[%s4 + $0x380] sm:$0xff]
          %v2998 = vld [vmem:[%s4 + $0x388] sm:$0xff]
          %v2999 = vld [vmem:[%s4 + $0x390] sm:$0xff]
          %v3000 = vld [vmem:[%s4 + $0x398] sm:$0xff]
          %v3001 = vld [vmem:[%s4 + $0x3a0] sm:$0xff]
          %v3002 = vld [vmem:[%s4 + $0x3a8] sm:$0xff]
          %v3003 = vld [vmem:[%s4 + $0x3b0] sm:$0xff]
          %v3004 = vld [vmem:[%s4 + $0x3b8] sm:$0xff]
          %v3005 = vld [vmem:[%s4 + $0x3c0] sm:$0xff]
          %v3006 = vld [vmem:[%s4 + $0x3c8] sm:$0xff]
          %v3007 = vld [vmem:[%s4 + $0x3d0] sm:$0xff]
          %v3008 = vld [vmem:[%s4 + $0x3d8] sm:$0xff]
          %v3009 = vld [vmem:[%s4 + $0x3e0] sm:$0xff]
          %v3010 = vld [vmem:[%s4 + $0x3e8] sm:$0xff]
          %v3011 = vld [vmem:[%s4 + $0x3f0] sm:$0xff]
          %v3012 = vld [vmem:[%s4 + $0x3f8] sm:$0xff]
          %v3013 = vld [vmem:[%s4 + $0x400] sm:$0xff]
          %v3014 = vld [vmem:[%s4 + $0x408] sm:$0xff]
          %v3015 = vld [vmem:[%s4 + $0x410] sm:$0xff]
          %v3016 = vld [vmem:[%s4 + $0x418] sm:$0xff]
          %v3017 = vld [vmem:[%s4 + $0x420] sm:$0xff]
          %v3018 = vld [vmem:[%s4 + $0x428] sm:$0xff]
          %v3019 = vld [vmem:[%s4 + $0x430] sm:$0xff]
          %v3020 = vld [vmem:[%s4 + $0x438] sm:$0xff]
          %v3021 = vld [vmem:[%s4 + $0x440] sm:$0xff]
          %v3022 = vld [vmem:[%s4 + $0x448] sm:$0xff]
          %v3023 = vld [vmem:[%s4 + $0x450] sm:$0xff]
          %v3024 = vld [vmem:[%s4 + $0x458] sm:$0xff]
          %v3025 = vld [vmem:[%s4 + $0x460] sm:$0xff]
          %v3026 = vld [vmem:[%s4 + $0x468] sm:$0xff]
          %v3027 = vld [vmem:[%s4 + $0x470] sm:$0xff]
          %v3028 = vld [vmem:[%s4 + $0x478] sm:$0xff]
          %v3029 = vld [vmem:[%s4 + $0x480] sm:$0xff]
          %v3030 = vld [vmem:[%s4 + $0x488] sm:$0xff]
          %v3031 = vld [vmem:[%s4 + $0x490] sm:$0xff]
          %v3032 = vld [vmem:[%s4 + $0x498] sm:$0xff]
          %v3033 = vld [vmem:[%s4 + $0x4a0] sm:$0xff]
          %v3034 = vld [vmem:[%s4 + $0x4a8] sm:$0xff]
          %v3035 = vld [vmem:[%s4 + $0x4b0] sm:$0xff]
          %v3036 = vld [vmem:[%s4 + $0x4b8] sm:$0xff]
          %v3037 = vld [vmem:[%s4 + $0x4c0] sm:$0xff]
          %v3038 = vld [vmem:[%s4 + $0x4c8] sm:$0xff]
          %v3039 = vld [vmem:[%s4 + $0x4d0] sm:$0xff]
          %v3040 = vld [vmem:[%s4 + $0x4d8] sm:$0xff]
          %v3041 = vld [vmem:[%s4 + $0x4e0] sm:$0xff]
          %v3042 = vld [vmem:[%s4 + $0x4e8] sm:$0xff]
          %v3043 = vld [vmem:[%s4 + $0x4f0] sm:$0xff]
          %v3044 = vld [vmem:[%s4 + $0x4f8] sm:$0xff]
          %v3045 = vld [vmem:[%s4 + $0x500] sm:$0xff]
          %v3046 = vld [vmem:[%s4 + $0x508] sm:$0xff]
          %v3047 = vld [vmem:[%s4 + $0x510] sm:$0xff]
          %v3048 = vld [vmem:[%s4 + $0x518] sm:$0xff]
          %v3049 = vld [vmem:[%s4 + $0x520] sm:$0xff]
          %v3050 = vld [vmem:[%s4 + $0x528] sm:$0xff]
          %v3051 = vld [vmem:[%s4 + $0x530] sm:$0xff]
          %v3052 = vld [vmem:[%s4 + $0x538] sm:$0xff]
          %v3053 = vld [vmem:[%s4 + $0x540] sm:$0xff]
          %v3054 = vld [vmem:[%s4 + $0x548] sm:$0xff]
          %v3055 = vld [vmem:[%s4 + $0x550] sm:$0xff]
          %v3056 = vld [vmem:[%s4 + $0x558] sm:$0xff]
          %v3057 = vld [vmem:[%s4 + $0x560] sm:$0xff]
          %v3058 = vld [vmem:[%s4 + $0x568] sm:$0xff]
          %v3059 = vld [vmem:[%s4 + $0x570] sm:$0xff]
          %v3060 = vld [vmem:[%s4 + $0x578] sm:$0xff]
          %v3061 = vld [vmem:[%s4 + $0x580] sm:$0xff]
          %v3062 = vld [vmem:[%s4 + $0x588] sm:$0xff]
          %v3063 = vld [vmem:[%s4 + $0x590] sm:$0xff]
          %v3064 = vld [vmem:[%s4 + $0x598] sm:$0xff]
          %v3065 = vld [vmem:[%s4 + $0x5a0] sm:$0xff]
          %v3066 = vld [vmem:[%s4 + $0x5a8] sm:$0xff]
          %v3067 = vld [vmem:[%s4 + $0x5b0] sm:$0xff]
          %v3068 = vld [vmem:[%s4 + $0x5b8] sm:$0xff]
          %v3069 = vld [vmem:[%s4 + $0x5c0] sm:$0xff]
          %v3070 = vld [vmem:[%s4 + $0x5c8] sm:$0xff]
          %v3071 = vld [vmem:[%s4 + $0x5d0] sm:$0xff]
          %v3072 = vld [vmem:[%s4 + $0x5d8] sm:$0xff]
          %v3073 = vld [vmem:[%s4 + $0x5e0] sm:$0xff]
          %v3074 = vld [vmem:[%s4 + $0x5e8] sm:$0xff]
          %v3075 = vld [vmem:[%s4 + $0x5f0] sm:$0xff]
          %v3076 = vld [vmem:[%s4 + $0x5f8] sm:$0xff]
          %v3077 = vld [vmem:[%s4 + $0x600] sm:$0xff]
          %v3078 = vld [vmem:[%s4 + $0x608] sm:$0xff]
          %v3079 = vld [vmem:[%s4 + $0x610] sm:$0xff]
          %v3080 = vld [vmem:[%s4 + $0x618] sm:$0xff]
          %v3081 = vld [vmem:[%s4 + $0x620] sm:$0xff]
          %v3082 = vld [vmem:[%s4 + $0x628] sm:$0xff]
          %v3083 = vld [vmem:[%s4 + $0x630] sm:$0xff]
          %v3084 = vld [vmem:[%s4 + $0x638] sm:$0xff]
          %v3085 = vld [vmem:[%s4 + $0x640] sm:$0xff]
          %v3086 = vld [vmem:[%s4 + $0x648] sm:$0xff]
          %v3087 = vld [vmem:[%s4 + $0x650] sm:$0xff]
          %v3088 = vld [vmem:[%s4 + $0x658] sm:$0xff]
          %v3089 = vld [vmem:[%s4 + $0x660] sm:$0xff]
          %v3090 = vld [vmem:[%s4 + $0x668] sm:$0xff]
          %v3091 = vld [vmem:[%s4 + $0x670] sm:$0xff]
          %v3092 = vld [vmem:[%s4 + $0x678] sm:$0xff]
          %v3093 = vld [vmem:[%s4 + $0x680] sm:$0xff]
          %v3094 = vld [vmem:[%s4 + $0x688] sm:$0xff]
          %v3095 = vld [vmem:[%s4 + $0x690] sm:$0xff]
          %v3096 = vld [vmem:[%s4 + $0x698] sm:$0xff]
          %v3097 = vld [vmem:[%s4 + $0x6a0] sm:$0xff]
          %v3098 = vld [vmem:[%s4 + $0x6a8] sm:$0xff]
          %v3099 = vld [vmem:[%s4 + $0x6b0] sm:$0xff]
          %v3100 = vld [vmem:[%s4 + $0x6b8] sm:$0xff]
          %v3101 = vld [vmem:[%s4 + $0x6c0] sm:$0xff]
          %v3102 = vld [vmem:[%s4 + $0x6c8] sm:$0xff]
          %v3103 = vld [vmem:[%s4 + $0x6d0] sm:$0xff]
          %v3104 = vld [vmem:[%s4 + $0x6d8] sm:$0xff]
          %v3105 = vld [vmem:[%s4 + $0x6e0] sm:$0xff]
          %v3106 = vld [vmem:[%s4 + $0x6e8] sm:$0xff]
          %v3107 = vld [vmem:[%s4 + $0x6f0] sm:$0xff]
          %v3108 = vld [vmem:[%s4 + $0x6f8] sm:$0xff]
          %v3109 = vld [vmem:[%s4 + $0x700] sm:$0xff]
          %v3110 = vld [vmem:[%s4 + $0x708] sm:$0xff]
          %v3111 = vld [vmem:[%s4 + $0x710] sm:$0xff]
          %v3112 = vld [vmem:[%s4 + $0x718] sm:$0xff]
          %v3113 = vld [vmem:[%s4 + $0x720] sm:$0xff]
          %v3114 = vld [vmem:[%s4 + $0x728] sm:$0xff]
          %v3115 = vld [vmem:[%s4 + $0x730] sm:$0xff]
          %v3116 = vld [vmem:[%s4 + $0x738] sm:$0xff]
          %v3117 = vld [vmem:[%s4 + $0x740] sm:$0xff]
          %v3118 = vld [vmem:[%s4 + $0x748] sm:$0xff]
          %v3119 = vld [vmem:[%s4 + $0x750] sm:$0xff]
          %v3120 = vld [vmem:[%s4 + $0x758] sm:$0xff]
          %v3121 = vld [vmem:[%s4 + $0x760] sm:$0xff]
          %v3122 = vld [vmem:[%s4 + $0x768] sm:$0xff]
          %v3123 = vld [vmem:[%s4 + $0x770] sm:$0xff]
          %v3124 = vld [vmem:[%s4 + $0x778] sm:$0xff]
          %v3125 = vld [vmem:[%s4 + $0x780] sm:$0xff]
          %v3126 = vld [vmem:[%s4 + $0x788] sm:$0xff]
          %v3127 = vld [vmem:[%s4 + $0x790] sm:$0xff]
          %v3128 = vld [vmem:[%s4 + $0x798] sm:$0xff]
          %v3129 = vld [vmem:[%s4 + $0x7a0] sm:$0xff]
          %v3130 = vld [vmem:[%s4 + $0x7a8] sm:$0xff]
          %v3131 = vld [vmem:[%s4 + $0x7b0] sm:$0xff]
          %v3132 = vld [vmem:[%s4 + $0x7b8] sm:$0xff]
          %v3133 = vld [vmem:[%s4 + $0x7c0] sm:$0xff]
          %v3134 = vld [vmem:[%s4 + $0x7c8] sm:$0xff]
          %v3135 = vld [vmem:[%s4 + $0x7d0] sm:$0xff]
          %v3136 = vld [vmem:[%s4 + $0x7d8] sm:$0xff]
          %v3137 = vld [vmem:[%s4 + $0x7e0] sm:$0xff]
          %v3138 = vld [vmem:[%s4 + $0x7e8] sm:$0xff]
          %v3139 = vld [vmem:[%s4 + $0x7f0] sm:$0xff]
          %v3140 = vld [vmem:[%s4 + $0x7f8] sm:$0xff]
          %v3141 = vld [vmem:[%s4 + $0x800] sm:$0xff]
          %v3142 = vld [vmem:[%s4 + $0x808] sm:$0xff]
          %v3143 = vld [vmem:[%s4 + $0x810] sm:$0xff]
          %v3144 = vld [vmem:[%s4 + $0x818] sm:$0xff]
          %v3145 = vld [vmem:[%s4 + $0x820] sm:$0xff]
          %v3146 = vld [vmem:[%s4 + $0x828] sm:$0xff]
          %v3147 = vld [vmem:[%s4 + $0x830] sm:$0xff]
          %v3148 = vld [vmem:[%s4 + $0x838] sm:$0xff]
          %v3149 = vld [vmem:[%s4 + $0x840] sm:$0xff]
          %v3150 = vld [vmem:[%s4 + $0x848] sm:$0xff]
          %v3151 = vld [vmem:[%s4 + $0x850] sm:$0xff]
          %v3152 = vld [vmem:[%s4 + $0x858] sm:$0xff]
          %v3153 = vld [vmem:[%s4 + $0x860] sm:$0xff]
          %v3154 = vld [vmem:[%s4 + $0x868] sm:$0xff]
          %v3155 = vld [vmem:[%s4 + $0x870] sm:$0xff]
          %v3156 = vld [vmem:[%s4 + $0x878] sm:$0xff]
          %v3157 = vld [vmem:[%s4 + $0x880] sm:$0xff]
          %v3158 = vld [vmem:[%s4 + $0x888] sm:$0xff]
          %v3159 = vld [vmem:[%s4 + $0x890] sm:$0xff]
          %v3160 = vld [vmem:[%s4 + $0x898] sm:$0xff]
          %v3161 = vld [vmem:[%s4 + $0x8a0] sm:$0xff]
          %v3162 = vld [vmem:[%s4 + $0x8a8] sm:$0xff]
          %v3163 = vld [vmem:[%s4 + $0x8b0] sm:$0xff]
          %v3164 = vld [vmem:[%s4 + $0x8b8] sm:$0xff]
          %v3165 = vld [vmem:[%s4 + $0x8c0] sm:$0xff]
          %v3166 = vld [vmem:[%s4 + $0x8c8] sm:$0xff]
          %v3167 = vld [vmem:[%s4 + $0x8d0] sm:$0xff]
          %v3168 = vld [vmem:[%s4 + $0x8d8] sm:$0xff]
          %v3169 = vld [vmem:[%s4 + $0x8e0] sm:$0xff]
          %v3170 = vld [vmem:[%s4 + $0x8e8] sm:$0xff]
          %v3171 = vld [vmem:[%s4 + $0x8f0] sm:$0xff]
          %v3172 = vld [vmem:[%s4 + $0x8f8] sm:$0xff]
          %v3173 = vld [vmem:[%s4 + $0x900] sm:$0xff]
          %v3174 = vld [vmem:[%s4 + $0x908] sm:$0xff]
          %v3175 = vld [vmem:[%s4 + $0x910] sm:$0xff]
          %v3176 = vld [vmem:[%s4 + $0x918] sm:$0xff]
          %v3177 = vld [vmem:[%s4 + $0x920] sm:$0xff]
          %v3178 = vld [vmem:[%s4 + $0x928] sm:$0xff]
          %v3179 = vld [vmem:[%s4 + $0x930] sm:$0xff]
          %v3180 = vld [vmem:[%s4 + $0x938] sm:$0xff]
          %v3181 = vld [vmem:[%s4 + $0x940] sm:$0xff]
          %v3182 = vld [vmem:[%s4 + $0x948] sm:$0xff]
          %v3183 = vld [vmem:[%s4 + $0x950] sm:$0xff]
          %v3184 = vld [vmem:[%s4 + $0x958] sm:$0xff]
          %v3185 = vld [vmem:[%s4 + $0x960] sm:$0xff]
          %v3186 = vld [vmem:[%s4 + $0x968] sm:$0xff]
          %v3187 = vld [vmem:[%s4 + $0x970] sm:$0xff]
          %v3188 = vld [vmem:[%s4 + $0x978] sm:$0xff]
          %v3189 = vld [vmem:[%s4 + $0x980] sm:$0xff]
          %v3190 = vld [vmem:[%s4 + $0x988] sm:$0xff]
          %v3191 = vld [vmem:[%s4 + $0x990] sm:$0xff]
          %v3192 = vld [vmem:[%s4 + $0x998] sm:$0xff]
          %v3193 = vld [vmem:[%s4 + $0x9a0] sm:$0xff]
          %v3194 = vld [vmem:[%s4 + $0x9a8] sm:$0xff]
          %v3195 = vld [vmem:[%s4 + $0x9b0] sm:$0xff]
          %v3196 = vld [vmem:[%s4 + $0x9b8] sm:$0xff]
          %v3197 = vld [vmem:[%s4 + $0x9c0] sm:$0xff]
          %v3198 = vld [vmem:[%s4 + $0x9c8] sm:$0xff]
          %v3199 = vld [vmem:[%s4 + $0x9d0] sm:$0xff]
          %v3200 = vld [vmem:[%s4 + $0x9d8] sm:$0xff]
          %v3201 = vld [vmem:[%s4 + $0x9e0] sm:$0xff]
          %v3202 = vld [vmem:[%s4 + $0x9e8] sm:$0xff]
          %v3203 = vld [vmem:[%s4 + $0x9f0] sm:$0xff]
          %v3204 = vld [vmem:[%s4 + $0x9f8] sm:$0xff]
          %v3205 = vld [vmem:[%s4 + $0xa00] sm:$0xff]
          %v3206 = vld [vmem:[%s4 + $0xa08] sm:$0xff]
          %v3207 = vld [vmem:[%s4 + $0xa10] sm:$0xff]
          %v3208 = vld [vmem:[%s4 + $0xa18] sm:$0xff]
          %v3209 = vld [vmem:[%s4 + $0xa20] sm:$0xff]
          %v3210 = vld [vmem:[%s4 + $0xa28] sm:$0xff]
          %v3211 = vld [vmem:[%s4 + $0xa30] sm:$0xff]
          %v3212 = vld [vmem:[%s4 + $0xa38] sm:$0xff]
          %v3213 = vld [vmem:[%s4 + $0xa40] sm:$0xff]
          %v3214 = vld [vmem:[%s4 + $0xa48] sm:$0xff]
          %v3215 = vld [vmem:[%s4 + $0xa50] sm:$0xff]
          %v3216 = vld [vmem:[%s4 + $0xa58] sm:$0xff]
          %v3217 = vld [vmem:[%s4 + $0xa60] sm:$0xff]
          %v3218 = vld [vmem:[%s4 + $0xa68] sm:$0xff]
          %v3219 = vld [vmem:[%s4 + $0xa70] sm:$0xff]
          %v3220 = vld [vmem:[%s4 + $0xa78] sm:$0xff]
          %v3221 = vld [vmem:[%s4 + $0xa80] sm:$0xff]
          %v3222 = vld [vmem:[%s4 + $0xa88] sm:$0xff]
          %v3223 = vld [vmem:[%s4 + $0xa90] sm:$0xff]
          %v3224 = vld [vmem:[%s4 + $0xa98] sm:$0xff]
          %v3225 = vld [vmem:[%s4 + $0xaa0] sm:$0xff]
          %v3226 = vld [vmem:[%s4 + $0xaa8] sm:$0xff]
          %v3227 = vld [vmem:[%s4 + $0xab0] sm:$0xff]
          %v3228 = vld [vmem:[%s4 + $0xab8] sm:$0xff]
          %v3229 = vld [vmem:[%s4 + $0xac0] sm:$0xff]
          %v3230 = vld [vmem:[%s4 + $0xac8] sm:$0xff]
          %v3231 = vld [vmem:[%s4 + $0xad0] sm:$0xff]
          %v3232 = vld [vmem:[%s4 + $0xad8] sm:$0xff]
          %v3233 = vld [vmem:[%s4 + $0xae0] sm:$0xff]
          %v3234 = vld [vmem:[%s4 + $0xae8] sm:$0xff]
          %v3235 = vld [vmem:[%s4 + $0xaf0] sm:$0xff]
          %v3236 = vld [vmem:[%s4 + $0xaf8] sm:$0xff]
          %v3237 = vld [vmem:[%s4 + $0xb00] sm:$0xff]
          %v3238 = vld [vmem:[%s4 + $0xb08] sm:$0xff]
          %v3239 = vld [vmem:[%s4 + $0xb10] sm:$0xff]
          %v3240 = vld [vmem:[%s4 + $0xb18] sm:$0xff]
          %v3241 = vld [vmem:[%s4 + $0xb20] sm:$0xff]
          %v3242 = vld [vmem:[%s4 + $0xb28] sm:$0xff]
          %v3243 = vld [vmem:[%s4 + $0xb30] sm:$0xff]
          %v3244 = vld [vmem:[%s4 + $0xb38] sm:$0xff]
          %v3245 = vld [vmem:[%s4 + $0xb40] sm:$0xff]
          %v3246 = vld [vmem:[%s4 + $0xb48] sm:$0xff]
          %v3247 = vld [vmem:[%s4 + $0xb50] sm:$0xff]
          %v3248 = vld [vmem:[%s4 + $0xb58] sm:$0xff]
          %v3249 = vld [vmem:[%s4 + $0xb60] sm:$0xff]
          %v3250 = vld [vmem:[%s4 + $0xb68] sm:$0xff]
          %v3251 = vld [vmem:[%s4 + $0xb70] sm:$0xff]
          %v3252 = vld [vmem:[%s4 + $0xb78] sm:$0xff]
          %v3253 = vld [vmem:[%s4 + $0xb80] sm:$0xff]
          %v3254 = vld [vmem:[%s4 + $0xb88] sm:$0xff]
          %v3255 = vld [vmem:[%s4 + $0xb90] sm:$0xff]
          %v3256 = vld [vmem:[%s4 + $0xb98] sm:$0xff]
          %v3257 = vld [vmem:[%s4 + $0xba0] sm:$0xff]
          %v3258 = vld [vmem:[%s4 + $0xba8] sm:$0xff]
          %v3259 = vld [vmem:[%s4 + $0xbb0] sm:$0xff]
          %v3260 = vld [vmem:[%s4 + $0xbb8] sm:$0xff]
          %v3261 = vld [vmem:[%s4 + $0xbc0] sm:$0xff]
          %v3262 = vld [vmem:[%s4 + $0xbc8] sm:$0xff]
          %v3263 = vld [vmem:[%s4 + $0xbd0] sm:$0xff]
          %v3264 = vld [vmem:[%s4 + $0xbd8] sm:$0xff]
          %v3265 = vld [vmem:[%s4 + $0xbe0] sm:$0xff]
          %v3266 = vld [vmem:[%s4 + $0xbe8] sm:$0xff]
          %v3267 = vld [vmem:[%s4 + $0xbf0] sm:$0xff]
          %v3268 = vld [vmem:[%s4 + $0xbf8] sm:$0xff]
          %v3269 = vld [vmem:[%s4 + $0xc00] sm:$0xff]
          %v3270 = vld [vmem:[%s4 + $0xc08] sm:$0xff]
          %v3271 = vld [vmem:[%s4 + $0xc10] sm:$0xff]
          %v3272 = vld [vmem:[%s4 + $0xc18] sm:$0xff]
          %v3273 = vld [vmem:[%s4 + $0xc20] sm:$0xff]
          %v3274 = vld [vmem:[%s4 + $0xc28] sm:$0xff]
          %v3275 = vld [vmem:[%s4 + $0xc30] sm:$0xff]
          %v3276 = vld [vmem:[%s4 + $0xc38] sm:$0xff]
          %v3277 = vld [vmem:[%s4 + $0xc40] sm:$0xff]
          %v3278 = vld [vmem:[%s4 + $0xc48] sm:$0xff]
          %v3279 = vld [vmem:[%s4 + $0xc50] sm:$0xff]
          %v3280 = vld [vmem:[%s4 + $0xc58] sm:$0xff]
          %v3281 = vld [vmem:[%s4 + $0xc60] sm:$0xff]
          %v3282 = vld [vmem:[%s4 + $0xc68] sm:$0xff]
          %v3283 = vld [vmem:[%s4 + $0xc70] sm:$0xff]
          %v3284 = vld [vmem:[%s4 + $0xc78] sm:$0xff]
          %v3285 = vld [vmem:[%s4 + $0xc80] sm:$0xff]
          %v3286 = vld [vmem:[%s4 + $0xc88] sm:$0xff]
          %v3287 = vld [vmem:[%s4 + $0xc90] sm:$0xff]
          %v3288 = vld [vmem:[%s4 + $0xc98] sm:$0xff]
          %v3289 = vld [vmem:[%s4 + $0xca0] sm:$0xff]
          %v3290 = vld [vmem:[%s4 + $0xca8] sm:$0xff]
          %v3291 = vld [vmem:[%s4 + $0xcb0] sm:$0xff]
          %v3292 = vld [vmem:[%s4 + $0xcb8] sm:$0xff]
          %v3293 = vld [vmem:[%s4 + $0xcc0] sm:$0xff]
          %v3294 = vld [vmem:[%s4 + $0xcc8] sm:$0xff]
          %v3295 = vld [vmem:[%s4 + $0xcd0] sm:$0xff]
          %v3296 = vld [vmem:[%s4 + $0xcd8] sm:$0xff]
          %v3297 = vld [vmem:[%s4 + $0xce0] sm:$0xff]
          %v3298 = vld [vmem:[%s4 + $0xce8] sm:$0xff]
          %v3299 = vld [vmem:[%s4 + $0xcf0] sm:$0xff]
          %v3300 = vld [vmem:[%s4 + $0xcf8] sm:$0xff]
          %v3301 = vld [vmem:[%s4 + $0xd00] sm:$0xff]
          %v3302 = vld [vmem:[%s4 + $0xd08] sm:$0xff]
          %v3303 = vld [vmem:[%s4 + $0xd10] sm:$0xff]
          %v3304 = vld [vmem:[%s4 + $0xd18] sm:$0xff]
          %v3306 = vsel %vm933, %v2891, 0
          %v3309 = vsel %vm933, %v2898, 0
          %v3312 = vsel %vm933, %v2905, 0
          %v3315 = vsel %vm933, %v2912, 0
          %v3318 = vsel %vm933, %v2919, 0
          %v3321 = vsel %vm933, %v2926, 0
          %v3324 = vsel %vm933, %v2933, 0
          %v3327 = vsel %vm933, %v2940, 0
          %v3330 = vsel %vm933, %v2947, 0
          %v3333 = vsel %vm933, %v2954, 0
          %v3336 = vsel %vm933, %v2961, 0
          %v3339 = vsel %vm933, %v2968, 0
          %v3342 = vsel %vm933, %v2975, 0
          %v3345 = vsel %vm933, %v2982, 0
          %v3348 = vsel %vm933, %v2989, 0
          %v3351 = vsel %vm933, %v2996, 0
          %v3354 = vsel %vm933, %v3003, 0
          %v3357 = vsel %vm933, %v3010, 0
          %v3360 = vsel %vm933, %v3017, 0
          %v3363 = vsel %vm933, %v3024, 0
          %v3366 = vsel %vm933, %v3031, 0
          %v3369 = vsel %vm933, %v3038, 0
          %v3372 = vsel %vm933, %v3045, 0
          %v3375 = vsel %vm933, %v3052, 0
          %v3378 = vsel %vm933, %v3059, 0
          %v3381 = vsel %vm933, %v3066, 0
          %v3384 = vsel %vm933, %v3073, 0
          %v3387 = vsel %vm933, %v3080, 0
          %v3390 = vsel %vm933, %v3087, 0
          %v3393 = vsel %vm933, %v3094, 0
          %v3396 = vsel %vm933, %v3101, 0
          %v3399 = vsel %vm933, %v3108, 0
          %v3402 = vsel %vm933, %v3115, 0
          %v3405 = vsel %vm933, %v3122, 0
          %v3408 = vsel %vm933, %v3129, 0
          %v3411 = vsel %vm933, %v3136, 0
          %v3414 = vsel %vm933, %v3143, 0
          %v3417 = vsel %vm933, %v3150, 0
          %v3420 = vsel %vm933, %v3157, 0
          %v3423 = vsel %vm933, %v3164, 0
          %v3426 = vsel %vm933, %v3171, 0
          %v3429 = vsel %vm933, %v3178, 0
          %v3432 = vsel %vm933, %v3185, 0
          %v3435 = vsel %vm933, %v3192, 0
          %v3438 = vsel %vm933, %v3199, 0
          %v3441 = vsel %vm933, %v3206, 0
          %v3444 = vsel %vm933, %v3213, 0
          %v3447 = vsel %vm933, %v3220, 0
          %v3450 = vsel %vm933, %v3227, 0
          %v3453 = vsel %vm933, %v3234, 0
          %v3456 = vsel %vm933, %v3241, 0
          %v3459 = vsel %vm933, %v3248, 0
          %v3462 = vsel %vm933, %v3255, 0
          %v3465 = vsel %vm933, %v3262, 0
          %v3468 = vsel %vm933, %v3269, 0
          %v3471 = vsel %vm933, %v3276, 0
          %v3474 = vsel %vm933, %v3283, 0
          %v3477 = vsel %vm933, %v3290, 0
          %v3480 = vsel %vm933, %v3297, 0
          %v3483 = vsel %vm933, %v3304, 0
          %3485 = vmatpush.msra.mxu0 %v2636
          %3486 = vmatpush.msra.mxu0 %v2635
          %3487 = vmatpush.msra.mxu0 %v2634
          %3488 = vmatpush.msra.mxu0 %v2633
          %3489 = vmatpush.msra.mxu0 %v2632
          %3490 = vmatpush.msra.mxu0 %v2631
          %3491 = vmatpush.msra.mxu0 %v2630
          %3492 = vmatpush.msra.mxu0 %v2629
          %3493 = vmatpush.msra.mxu0 %v2628
          %3494 = vmatpush.msra.mxu0 %v2627
          %3495 = vmatpush.msra.mxu0 %v2626
          %3496 = vmatpush.msra.mxu0 %v2625
          %3497 = vmatpush.msra.mxu0 %v2624
          %3498 = vmatpush.msra.mxu0 %v2623
          %3499 = vmatpush.msra.mxu0 %v2622
          %3500 = vmatpush.msra.mxu0 %v2621
          %3501 = vmatmul.f32.gmra.mxu0 %v2885
          %v3502 = vpop.f32.mrf.mxu0
          %v3503 = vadd.f32 0.0, %v3502
          %3504 = vmatmul.f32.gmra.mxu0 %v2892
          %v3505 = vpop.f32.mrf.mxu0
          %v3506 = vadd.f32 0.0, %v3505
          %3507 = vmatmul.f32.gmra.mxu0 %v2899
          %v3508 = vpop.f32.mrf.mxu0
          %v3509 = vadd.f32 0.0, %v3508
          %3510 = vmatmul.f32.gmra.mxu0 %v2906
          %v3511 = vpop.f32.mrf.mxu0
          %v3512 = vadd.f32 0.0, %v3511
          %3513 = vmatmul.f32.gmra.mxu0 %v2913
          %v3514 = vpop.f32.mrf.mxu0
          %v3515 = vadd.f32 0.0, %v3514
          %3516 = vmatmul.f32.gmra.mxu0 %v2920
          %v3517 = vpop.f32.mrf.mxu0
          %v3518 = vadd.f32 0.0, %v3517
          %3519 = vmatmul.f32.gmra.mxu0 %v2927
          %v3520 = vpop.f32.mrf.mxu0
          %v3521 = vadd.f32 0.0, %v3520
          %3522 = vmatmul.f32.gmra.mxu0 %v2934
          %v3523 = vpop.f32.mrf.mxu0
          %v3524 = vadd.f32 0.0, %v3523
          %3525 = vmatmul.f32.gmra.mxu0 %v2941
          %v3526 = vpop.f32.mrf.mxu0
          %v3527 = vadd.f32 0.0, %v3526
          %3528 = vmatmul.f32.gmra.mxu0 %v2948
          %v3529 = vpop.f32.mrf.mxu0
          %v3530 = vadd.f32 0.0, %v3529
          %3531 = vmatmul.f32.gmra.mxu0 %v2955
          %v3532 = vpop.f32.mrf.mxu0
          %v3533 = vadd.f32 0.0, %v3532
          %3534 = vmatmul.f32.gmra.mxu0 %v2962
          %v3535 = vpop.f32.mrf.mxu0
          %v3536 = vadd.f32 0.0, %v3535
          %3537 = vmatmul.f32.gmra.mxu0 %v2969
          %v3538 = vpop.f32.mrf.mxu0
          %v3539 = vadd.f32 0.0, %v3538
          %3540 = vmatmul.f32.gmra.mxu0 %v2976
          %v3541 = vpop.f32.mrf.mxu0
          %v3542 = vadd.f32 0.0, %v3541
          %3543 = vmatmul.f32.gmra.mxu0 %v2983
          %v3544 = vpop.f32.mrf.mxu0
          %v3545 = vadd.f32 0.0, %v3544
          %3546 = vmatmul.f32.gmra.mxu0 %v2990
          %v3547 = vpop.f32.mrf.mxu0
          %v3548 = vadd.f32 0.0, %v3547
          %3549 = vmatmul.f32.gmra.mxu0 %v2997
          %v3550 = vpop.f32.mrf.mxu0
          %v3551 = vadd.f32 0.0, %v3550
          %3552 = vmatmul.f32.gmra.mxu0 %v3004
          %v3553 = vpop.f32.mrf.mxu0
          %v3554 = vadd.f32 0.0, %v3553
          %3555 = vmatmul.f32.gmra.mxu0 %v3011
          %v3556 = vpop.f32.mrf.mxu0
          %v3557 = vadd.f32 0.0, %v3556
          %3558 = vmatmul.f32.gmra.mxu0 %v3018
          %v3559 = vpop.f32.mrf.mxu0
          %v3560 = vadd.f32 0.0, %v3559
          %3561 = vmatmul.f32.gmra.mxu0 %v3025
          %v3562 = vpop.f32.mrf.mxu0
          %v3563 = vadd.f32 0.0, %v3562
          %3564 = vmatmul.f32.gmra.mxu0 %v3032
          %v3565 = vpop.f32.mrf.mxu0
          %v3566 = vadd.f32 0.0, %v3565
          %3567 = vmatmul.f32.gmra.mxu0 %v3039
          %v3568 = vpop.f32.mrf.mxu0
          %v3569 = vadd.f32 0.0, %v3568
          %3570 = vmatmul.f32.gmra.mxu0 %v3046
          %v3571 = vpop.f32.mrf.mxu0
          %v3572 = vadd.f32 0.0, %v3571
          %3573 = vmatmul.f32.gmra.mxu0 %v3053
          %v3574 = vpop.f32.mrf.mxu0
          %v3575 = vadd.f32 0.0, %v3574
          %3576 = vmatmul.f32.gmra.mxu0 %v3060
          %v3577 = vpop.f32.mrf.mxu0
          %v3578 = vadd.f32 0.0, %v3577
          %3579 = vmatmul.f32.gmra.mxu0 %v3067
          %v3580 = vpop.f32.mrf.mxu0
          %v3581 = vadd.f32 0.0, %v3580
          %3582 = vmatmul.f32.gmra.mxu0 %v3074
          %v3583 = vpop.f32.mrf.mxu0
          %v3584 = vadd.f32 0.0, %v3583
          %3585 = vmatmul.f32.gmra.mxu0 %v3081
          %v3586 = vpop.f32.mrf.mxu0
          %v3587 = vadd.f32 0.0, %v3586
          %3588 = vmatmul.f32.gmra.mxu0 %v3088
          %v3589 = vpop.f32.mrf.mxu0
          %v3590 = vadd.f32 0.0, %v3589
          %3591 = vmatmul.f32.gmra.mxu0 %v3095
          %v3592 = vpop.f32.mrf.mxu0
          %v3593 = vadd.f32 0.0, %v3592
          %3594 = vmatmul.f32.gmra.mxu0 %v3102
          %v3595 = vpop.f32.mrf.mxu0
          %v3596 = vadd.f32 0.0, %v3595
          %3597 = vmatmul.f32.gmra.mxu0 %v3109
          %v3598 = vpop.f32.mrf.mxu0
          %v3599 = vadd.f32 0.0, %v3598
          %3600 = vmatmul.f32.gmra.mxu0 %v3116
          %v3601 = vpop.f32.mrf.mxu0
          %v3602 = vadd.f32 0.0, %v3601
          %3603 = vmatmul.f32.gmra.mxu0 %v3123
          %v3604 = vpop.f32.mrf.mxu0
          %v3605 = vadd.f32 0.0, %v3604
          %3606 = vmatmul.f32.gmra.mxu0 %v3130
          %v3607 = vpop.f32.mrf.mxu0
          %v3608 = vadd.f32 0.0, %v3607
          %3609 = vmatmul.f32.gmra.mxu0 %v3137
          %v3610 = vpop.f32.mrf.mxu0
          %v3611 = vadd.f32 0.0, %v3610
          %3612 = vmatmul.f32.gmra.mxu0 %v3144
          %v3613 = vpop.f32.mrf.mxu0
          %v3614 = vadd.f32 0.0, %v3613
          %3615 = vmatmul.f32.gmra.mxu0 %v3151
          %v3616 = vpop.f32.mrf.mxu0
          %v3617 = vadd.f32 0.0, %v3616
          %3618 = vmatmul.f32.gmra.mxu0 %v3158
          %v3619 = vpop.f32.mrf.mxu0
          %v3620 = vadd.f32 0.0, %v3619
          %3621 = vmatmul.f32.gmra.mxu0 %v3165
          %v3622 = vpop.f32.mrf.mxu0
          %v3623 = vadd.f32 0.0, %v3622
          %3624 = vmatmul.f32.gmra.mxu0 %v3172
          %v3625 = vpop.f32.mrf.mxu0
          %v3626 = vadd.f32 0.0, %v3625
          %3627 = vmatmul.f32.gmra.mxu0 %v3179
          %v3628 = vpop.f32.mrf.mxu0
          %v3629 = vadd.f32 0.0, %v3628
          %3630 = vmatmul.f32.gmra.mxu0 %v3186
          %v3631 = vpop.f32.mrf.mxu0
          %v3632 = vadd.f32 0.0, %v3631
          %3633 = vmatmul.f32.gmra.mxu0 %v3193
          %v3634 = vpop.f32.mrf.mxu0
          %v3635 = vadd.f32 0.0, %v3634
          %3636 = vmatmul.f32.gmra.mxu0 %v3200
          %v3637 = vpop.f32.mrf.mxu0
          %v3638 = vadd.f32 0.0, %v3637
          %3639 = vmatmul.f32.gmra.mxu0 %v3207
          %v3640 = vpop.f32.mrf.mxu0
          %v3641 = vadd.f32 0.0, %v3640
          %3642 = vmatmul.f32.gmra.mxu0 %v3214
          %v3643 = vpop.f32.mrf.mxu0
          %v3644 = vadd.f32 0.0, %v3643
          %3645 = vmatmul.f32.gmra.mxu0 %v3221
          %v3646 = vpop.f32.mrf.mxu0
          %v3647 = vadd.f32 0.0, %v3646
          %3648 = vmatmul.f32.gmra.mxu0 %v3228
          %v3649 = vpop.f32.mrf.mxu0
          %v3650 = vadd.f32 0.0, %v3649
          %3651 = vmatmul.f32.gmra.mxu0 %v3235
          %v3652 = vpop.f32.mrf.mxu0
          %v3653 = vadd.f32 0.0, %v3652
          %3654 = vmatmul.f32.gmra.mxu0 %v3242
          %v3655 = vpop.f32.mrf.mxu0
          %v3656 = vadd.f32 0.0, %v3655
          %3657 = vmatmul.f32.gmra.mxu0 %v3249
          %v3658 = vpop.f32.mrf.mxu0
          %v3659 = vadd.f32 0.0, %v3658
          %3660 = vmatmul.f32.gmra.mxu0 %v3256
          %v3661 = vpop.f32.mrf.mxu0
          %v3662 = vadd.f32 0.0, %v3661
          %3663 = vmatmul.f32.gmra.mxu0 %v3263
          %v3664 = vpop.f32.mrf.mxu0
          %v3665 = vadd.f32 0.0, %v3664
          %3666 = vmatmul.f32.gmra.mxu0 %v3270
          %v3667 = vpop.f32.mrf.mxu0
          %v3668 = vadd.f32 0.0, %v3667
          %3669 = vmatmul.f32.gmra.mxu0 %v3277
          %v3670 = vpop.f32.mrf.mxu0
          %v3671 = vadd.f32 0.0, %v3670
          %3672 = vmatmul.f32.gmra.mxu0 %v3284
          %v3673 = vpop.f32.mrf.mxu0
          %v3674 = vadd.f32 0.0, %v3673
          %3675 = vmatmul.f32.gmra.mxu0 %v3291
          %v3676 = vpop.f32.mrf.mxu0
          %v3677 = vadd.f32 0.0, %v3676
          %3678 = vmatmul.f32.gmra.mxu0 %v3298
          %v3679 = vpop.f32.mrf.mxu0
          %v3680 = vadd.f32 0.0, %v3679
          %3681 = vdwg.mxu0
          %3682 = vmatpush.msra.mxu0 %v2652
          %3683 = vmatpush.msra.mxu0 %v2651
          %3684 = vmatpush.msra.mxu0 %v2650
          %3685 = vmatpush.msra.mxu0 %v2649
          %3686 = vmatpush.msra.mxu0 %v2648
          %3687 = vmatpush.msra.mxu0 %v2647
          %3688 = vmatpush.msra.mxu0 %v2646
          %3689 = vmatpush.msra.mxu0 %v2645
          %3690 = vmatpush.msra.mxu0 %v2644
          %3691 = vmatpush.msra.mxu0 %v2643
          %3692 = vmatpush.msra.mxu0 %v2642
          %3693 = vmatpush.msra.mxu0 %v2641
          %3694 = vmatpush.msra.mxu0 %v2640
          %3695 = vmatpush.msra.mxu0 %v2639
          %3696 = vmatpush.msra.mxu0 %v2638
          %3697 = vmatpush.msra.mxu0 %v2637
          %3698 = vmatmul.f32.gmra.mxu0 %v2886
          %v3699 = vpop.f32.mrf.mxu0
          %v3700 = vadd.f32 %v3503, %v3699
          %3701 = vmatmul.f32.gmra.mxu0 %v2893
          %v3702 = vpop.f32.mrf.mxu0
          %v3703 = vadd.f32 %v3506, %v3702
          %3704 = vmatmul.f32.gmra.mxu0 %v2900
          %v3705 = vpop.f32.mrf.mxu0
          %v3706 = vadd.f32 %v3509, %v3705
          %3707 = vmatmul.f32.gmra.mxu0 %v2907
          %v3708 = vpop.f32.mrf.mxu0
          %v3709 = vadd.f32 %v3512, %v3708
          %3710 = vmatmul.f32.gmra.mxu0 %v2914
          %v3711 = vpop.f32.mrf.mxu0
          %v3712 = vadd.f32 %v3515, %v3711
          %3713 = vmatmul.f32.gmra.mxu0 %v2921
          %v3714 = vpop.f32.mrf.mxu0
          %v3715 = vadd.f32 %v3518, %v3714
          %3716 = vmatmul.f32.gmra.mxu0 %v2928
          %v3717 = vpop.f32.mrf.mxu0
          %v3718 = vadd.f32 %v3521, %v3717
          %3719 = vmatmul.f32.gmra.mxu0 %v2935
          %v3720 = vpop.f32.mrf.mxu0
          %v3721 = vadd.f32 %v3524, %v3720
          %3722 = vmatmul.f32.gmra.mxu0 %v2942
          %v3723 = vpop.f32.mrf.mxu0
          %v3724 = vadd.f32 %v3527, %v3723
          %3725 = vmatmul.f32.gmra.mxu0 %v2949
          %v3726 = vpop.f32.mrf.mxu0
          %v3727 = vadd.f32 %v3530, %v3726
          %3728 = vmatmul.f32.gmra.mxu0 %v2956
          %v3729 = vpop.f32.mrf.mxu0
          %v3730 = vadd.f32 %v3533, %v3729
          %3731 = vmatmul.f32.gmra.mxu0 %v2963
          %v3732 = vpop.f32.mrf.mxu0
          %v3733 = vadd.f32 %v3536, %v3732
          %3734 = vmatmul.f32.gmra.mxu0 %v2970
          %v3735 = vpop.f32.mrf.mxu0
          %v3736 = vadd.f32 %v3539, %v3735
          %3737 = vmatmul.f32.gmra.mxu0 %v2977
          %v3738 = vpop.f32.mrf.mxu0
          %v3739 = vadd.f32 %v3542, %v3738
          %3740 = vmatmul.f32.gmra.mxu0 %v2984
          %v3741 = vpop.f32.mrf.mxu0
          %v3742 = vadd.f32 %v3545, %v3741
          %3743 = vmatmul.f32.gmra.mxu0 %v2991
          %v3744 = vpop.f32.mrf.mxu0
          %v3745 = vadd.f32 %v3548, %v3744
          %3746 = vmatmul.f32.gmra.mxu0 %v2998
          %v3747 = vpop.f32.mrf.mxu0
          %v3748 = vadd.f32 %v3551, %v3747
          %3749 = vmatmul.f32.gmra.mxu0 %v3005
          %v3750 = vpop.f32.mrf.mxu0
          %v3751 = vadd.f32 %v3554, %v3750
          %3752 = vmatmul.f32.gmra.mxu0 %v3012
          %v3753 = vpop.f32.mrf.mxu0
          %v3754 = vadd.f32 %v3557, %v3753
          %3755 = vmatmul.f32.gmra.mxu0 %v3019
          %v3756 = vpop.f32.mrf.mxu0
          %v3757 = vadd.f32 %v3560, %v3756
          %3758 = vmatmul.f32.gmra.mxu0 %v3026
          %v3759 = vpop.f32.mrf.mxu0
          %v3760 = vadd.f32 %v3563, %v3759
          %3761 = vmatmul.f32.gmra.mxu0 %v3033
          %v3762 = vpop.f32.mrf.mxu0
          %v3763 = vadd.f32 %v3566, %v3762
          %3764 = vmatmul.f32.gmra.mxu0 %v3040
          %v3765 = vpop.f32.mrf.mxu0
          %v3766 = vadd.f32 %v3569, %v3765
          %3767 = vmatmul.f32.gmra.mxu0 %v3047
          %v3768 = vpop.f32.mrf.mxu0
          %v3769 = vadd.f32 %v3572, %v3768
          %3770 = vmatmul.f32.gmra.mxu0 %v3054
          %v3771 = vpop.f32.mrf.mxu0
          %v3772 = vadd.f32 %v3575, %v3771
          %3773 = vmatmul.f32.gmra.mxu0 %v3061
          %v3774 = vpop.f32.mrf.mxu0
          %v3775 = vadd.f32 %v3578, %v3774
          %3776 = vmatmul.f32.gmra.mxu0 %v3068
          %v3777 = vpop.f32.mrf.mxu0
          %v3778 = vadd.f32 %v3581, %v3777
          %3779 = vmatmul.f32.gmra.mxu0 %v3075
          %v3780 = vpop.f32.mrf.mxu0
          %v3781 = vadd.f32 %v3584, %v3780
          %3782 = vmatmul.f32.gmra.mxu0 %v3082
          %v3783 = vpop.f32.mrf.mxu0
          %v3784 = vadd.f32 %v3587, %v3783
          %3785 = vmatmul.f32.gmra.mxu0 %v3089
          %v3786 = vpop.f32.mrf.mxu0
          %v3787 = vadd.f32 %v3590, %v3786
          %3788 = vmatmul.f32.gmra.mxu0 %v3096
          %v3789 = vpop.f32.mrf.mxu0
          %v3790 = vadd.f32 %v3593, %v3789
          %3791 = vmatmul.f32.gmra.mxu0 %v3103
          %v3792 = vpop.f32.mrf.mxu0
          %v3793 = vadd.f32 %v3596, %v3792
          %3794 = vmatmul.f32.gmra.mxu0 %v3110
          %v3795 = vpop.f32.mrf.mxu0
          %v3796 = vadd.f32 %v3599, %v3795
          %3797 = vmatmul.f32.gmra.mxu0 %v3117
          %v3798 = vpop.f32.mrf.mxu0
          %v3799 = vadd.f32 %v3602, %v3798
          %3800 = vmatmul.f32.gmra.mxu0 %v3124
          %v3801 = vpop.f32.mrf.mxu0
          %v3802 = vadd.f32 %v3605, %v3801
          %3803 = vmatmul.f32.gmra.mxu0 %v3131
          %v3804 = vpop.f32.mrf.mxu0
          %v3805 = vadd.f32 %v3608, %v3804
          %3806 = vmatmul.f32.gmra.mxu0 %v3138
          %v3807 = vpop.f32.mrf.mxu0
          %v3808 = vadd.f32 %v3611, %v3807
          %3809 = vmatmul.f32.gmra.mxu0 %v3145
          %v3810 = vpop.f32.mrf.mxu0
          %v3811 = vadd.f32 %v3614, %v3810
          %3812 = vmatmul.f32.gmra.mxu0 %v3152
          %v3813 = vpop.f32.mrf.mxu0
          %v3814 = vadd.f32 %v3617, %v3813
          %3815 = vmatmul.f32.gmra.mxu0 %v3159
          %v3816 = vpop.f32.mrf.mxu0
          %v3817 = vadd.f32 %v3620, %v3816
          %3818 = vmatmul.f32.gmra.mxu0 %v3166
          %v3819 = vpop.f32.mrf.mxu0
          %v3820 = vadd.f32 %v3623, %v3819
          %3821 = vmatmul.f32.gmra.mxu0 %v3173
          %v3822 = vpop.f32.mrf.mxu0
          %v3823 = vadd.f32 %v3626, %v3822
          %3824 = vmatmul.f32.gmra.mxu0 %v3180
          %v3825 = vpop.f32.mrf.mxu0
          %v3826 = vadd.f32 %v3629, %v3825
          %3827 = vmatmul.f32.gmra.mxu0 %v3187
          %v3828 = vpop.f32.mrf.mxu0
          %v3829 = vadd.f32 %v3632, %v3828
          %3830 = vmatmul.f32.gmra.mxu0 %v3194
          %v3831 = vpop.f32.mrf.mxu0
          %v3832 = vadd.f32 %v3635, %v3831
          %3833 = vmatmul.f32.gmra.mxu0 %v3201
          %v3834 = vpop.f32.mrf.mxu0
          %v3835 = vadd.f32 %v3638, %v3834
          %3836 = vmatmul.f32.gmra.mxu0 %v3208
          %v3837 = vpop.f32.mrf.mxu0
          %v3838 = vadd.f32 %v3641, %v3837
          %3839 = vmatmul.f32.gmra.mxu0 %v3215
          %v3840 = vpop.f32.mrf.mxu0
          %v3841 = vadd.f32 %v3644, %v3840
          %3842 = vmatmul.f32.gmra.mxu0 %v3222
          %v3843 = vpop.f32.mrf.mxu0
          %v3844 = vadd.f32 %v3647, %v3843
          %3845 = vmatmul.f32.gmra.mxu0 %v3229
          %v3846 = vpop.f32.mrf.mxu0
          %v3847 = vadd.f32 %v3650, %v3846
          %3848 = vmatmul.f32.gmra.mxu0 %v3236
          %v3849 = vpop.f32.mrf.mxu0
          %v3850 = vadd.f32 %v3653, %v3849
          %3851 = vmatmul.f32.gmra.mxu0 %v3243
          %v3852 = vpop.f32.mrf.mxu0
          %v3853 = vadd.f32 %v3656, %v3852
          %3854 = vmatmul.f32.gmra.mxu0 %v3250
          %v3855 = vpop.f32.mrf.mxu0
          %v3856 = vadd.f32 %v3659, %v3855
          %3857 = vmatmul.f32.gmra.mxu0 %v3257
          %v3858 = vpop.f32.mrf.mxu0
          %v3859 = vadd.f32 %v3662, %v3858
          %3860 = vmatmul.f32.gmra.mxu0 %v3264
          %v3861 = vpop.f32.mrf.mxu0
          %v3862 = vadd.f32 %v3665, %v3861
          %3863 = vmatmul.f32.gmra.mxu0 %v3271
          %v3864 = vpop.f32.mrf.mxu0
          %v3865 = vadd.f32 %v3668, %v3864
          %3866 = vmatmul.f32.gmra.mxu0 %v3278
          %v3867 = vpop.f32.mrf.mxu0
          %v3868 = vadd.f32 %v3671, %v3867
          %3869 = vmatmul.f32.gmra.mxu0 %v3285
          %v3870 = vpop.f32.mrf.mxu0
          %v3871 = vadd.f32 %v3674, %v3870
          %3872 = vmatmul.f32.gmra.mxu0 %v3292
          %v3873 = vpop.f32.mrf.mxu0
          %v3874 = vadd.f32 %v3677, %v3873
          %3875 = vmatmul.f32.gmra.mxu0 %v3299
          %v3876 = vpop.f32.mrf.mxu0
          %v3877 = vadd.f32 %v3680, %v3876
          %3878 = vdwg.mxu0
          %3879 = vmatpush.msra.mxu0 %v2716
          %3880 = vmatpush.msra.mxu0 %v2714
          %3881 = vmatpush.msra.mxu0 %v2712
          %3882 = vmatpush.msra.mxu0 %v2710
          %3883 = vmatpush.msra.mxu0 %v2708
          %3884 = vmatpush.msra.mxu0 %v2706
          %3885 = vmatpush.msra.mxu0 %v2704
          %3886 = vmatpush.msra.mxu0 %v2702
          %3887 = vmatpush.msra.mxu0 %v2700
          %3888 = vmatpush.msra.mxu0 %v2698
          %3889 = vmatpush.msra.mxu0 %v2696
          %3890 = vmatpush.msra.mxu0 %v2694
          %3891 = vmatpush.msra.mxu0 %v2692
          %3892 = vmatpush.msra.mxu0 %v2690
          %3893 = vmatpush.msra.mxu0 %v2688
          %3894 = vmatpush.msra.mxu0 %v2653
          %3895 = vmatmul.f32.gmra.mxu0 %v2887
          %v3896 = vpop.f32.mrf.mxu0
          %v3897 = vadd.f32 %v3700, %v3896
          %3898 = vmatmul.f32.gmra.mxu0 %v2894
          %v3899 = vpop.f32.mrf.mxu0
          %v3900 = vadd.f32 %v3703, %v3899
          %3901 = vmatmul.f32.gmra.mxu0 %v2901
          %v3902 = vpop.f32.mrf.mxu0
          %v3903 = vadd.f32 %v3706, %v3902
          %3904 = vmatmul.f32.gmra.mxu0 %v2908
          %v3905 = vpop.f32.mrf.mxu0
          %v3906 = vadd.f32 %v3709, %v3905
          %3907 = vmatmul.f32.gmra.mxu0 %v2915
          %v3908 = vpop.f32.mrf.mxu0
          %v3909 = vadd.f32 %v3712, %v3908
          %3910 = vmatmul.f32.gmra.mxu0 %v2922
          %v3911 = vpop.f32.mrf.mxu0
          %v3912 = vadd.f32 %v3715, %v3911
          %3913 = vmatmul.f32.gmra.mxu0 %v2929
          %v3914 = vpop.f32.mrf.mxu0
          %v3915 = vadd.f32 %v3718, %v3914
          %3916 = vmatmul.f32.gmra.mxu0 %v2936
          %v3917 = vpop.f32.mrf.mxu0
          %v3918 = vadd.f32 %v3721, %v3917
          %3919 = vmatmul.f32.gmra.mxu0 %v2943
          %v3920 = vpop.f32.mrf.mxu0
          %v3921 = vadd.f32 %v3724, %v3920
          %3922 = vmatmul.f32.gmra.mxu0 %v2950
          %v3923 = vpop.f32.mrf.mxu0
          %v3924 = vadd.f32 %v3727, %v3923
          %3925 = vmatmul.f32.gmra.mxu0 %v2957
          %v3926 = vpop.f32.mrf.mxu0
          %v3927 = vadd.f32 %v3730, %v3926
          %3928 = vmatmul.f32.gmra.mxu0 %v2964
          %v3929 = vpop.f32.mrf.mxu0
          %v3930 = vadd.f32 %v3733, %v3929
          %3931 = vmatmul.f32.gmra.mxu0 %v2971
          %v3932 = vpop.f32.mrf.mxu0
          %v3933 = vadd.f32 %v3736, %v3932
          %3934 = vmatmul.f32.gmra.mxu0 %v2978
          %v3935 = vpop.f32.mrf.mxu0
          %v3936 = vadd.f32 %v3739, %v3935
          %3937 = vmatmul.f32.gmra.mxu0 %v2985
          %v3938 = vpop.f32.mrf.mxu0
          %v3939 = vadd.f32 %v3742, %v3938
          %3940 = vmatmul.f32.gmra.mxu0 %v2992
          %v3941 = vpop.f32.mrf.mxu0
          %v3942 = vadd.f32 %v3745, %v3941
          %3943 = vmatmul.f32.gmra.mxu0 %v2999
          %v3944 = vpop.f32.mrf.mxu0
          %v3945 = vadd.f32 %v3748, %v3944
          %3946 = vmatmul.f32.gmra.mxu0 %v3006
          %v3947 = vpop.f32.mrf.mxu0
          %v3948 = vadd.f32 %v3751, %v3947
          %3949 = vmatmul.f32.gmra.mxu0 %v3013
          %v3950 = vpop.f32.mrf.mxu0
          %v3951 = vadd.f32 %v3754, %v3950
          %3952 = vmatmul.f32.gmra.mxu0 %v3020
          %v3953 = vpop.f32.mrf.mxu0
          %v3954 = vadd.f32 %v3757, %v3953
          %3955 = vmatmul.f32.gmra.mxu0 %v3027
          %v3956 = vpop.f32.mrf.mxu0
          %v3957 = vadd.f32 %v3760, %v3956
          %3958 = vmatmul.f32.gmra.mxu0 %v3034
          %v3959 = vpop.f32.mrf.mxu0
          %v3960 = vadd.f32 %v3763, %v3959
          %3961 = vmatmul.f32.gmra.mxu0 %v3041
          %v3962 = vpop.f32.mrf.mxu0
          %v3963 = vadd.f32 %v3766, %v3962
          %3964 = vmatmul.f32.gmra.mxu0 %v3048
          %v3965 = vpop.f32.mrf.mxu0
          %v3966 = vadd.f32 %v3769, %v3965
          %3967 = vmatmul.f32.gmra.mxu0 %v3055
          %v3968 = vpop.f32.mrf.mxu0
          %v3969 = vadd.f32 %v3772, %v3968
          %3970 = vmatmul.f32.gmra.mxu0 %v3062
          %v3971 = vpop.f32.mrf.mxu0
          %v3972 = vadd.f32 %v3775, %v3971
          %3973 = vmatmul.f32.gmra.mxu0 %v3069
          %v3974 = vpop.f32.mrf.mxu0
          %v3975 = vadd.f32 %v3778, %v3974
          %3976 = vmatmul.f32.gmra.mxu0 %v3076
          %v3977 = vpop.f32.mrf.mxu0
          %v3978 = vadd.f32 %v3781, %v3977
          %3979 = vmatmul.f32.gmra.mxu0 %v3083
          %v3980 = vpop.f32.mrf.mxu0
          %v3981 = vadd.f32 %v3784, %v3980
          %3982 = vmatmul.f32.gmra.mxu0 %v3090
          %v3983 = vpop.f32.mrf.mxu0
          %v3984 = vadd.f32 %v3787, %v3983
          %3985 = vmatmul.f32.gmra.mxu0 %v3097
          %v3986 = vpop.f32.mrf.mxu0
          %v3987 = vadd.f32 %v3790, %v3986
          %3988 = vmatmul.f32.gmra.mxu0 %v3104
          %v3989 = vpop.f32.mrf.mxu0
          %v3990 = vadd.f32 %v3793, %v3989
          %3991 = vmatmul.f32.gmra.mxu0 %v3111
          %v3992 = vpop.f32.mrf.mxu0
          %v3993 = vadd.f32 %v3796, %v3992
          %3994 = vmatmul.f32.gmra.mxu0 %v3118
          %v3995 = vpop.f32.mrf.mxu0
          %v3996 = vadd.f32 %v3799, %v3995
          %3997 = vmatmul.f32.gmra.mxu0 %v3125
          %v3998 = vpop.f32.mrf.mxu0
          %v3999 = vadd.f32 %v3802, %v3998
          %4000 = vmatmul.f32.gmra.mxu0 %v3132
          %v4001 = vpop.f32.mrf.mxu0
          %v4002 = vadd.f32 %v3805, %v4001
          %4003 = vmatmul.f32.gmra.mxu0 %v3139
          %v4004 = vpop.f32.mrf.mxu0
          %v4005 = vadd.f32 %v3808, %v4004
          %4006 = vmatmul.f32.gmra.mxu0 %v3146
          %v4007 = vpop.f32.mrf.mxu0
          %v4008 = vadd.f32 %v3811, %v4007
          %4009 = vmatmul.f32.gmra.mxu0 %v3153
          %v4010 = vpop.f32.mrf.mxu0
          %v4011 = vadd.f32 %v3814, %v4010
          %4012 = vmatmul.f32.gmra.mxu0 %v3160
          %v4013 = vpop.f32.mrf.mxu0
          %v4014 = vadd.f32 %v3817, %v4013
          %4015 = vmatmul.f32.gmra.mxu0 %v3167
          %v4016 = vpop.f32.mrf.mxu0
          %v4017 = vadd.f32 %v3820, %v4016
          %4018 = vmatmul.f32.gmra.mxu0 %v3174
          %v4019 = vpop.f32.mrf.mxu0
          %v4020 = vadd.f32 %v3823, %v4019
          %4021 = vmatmul.f32.gmra.mxu0 %v3181
          %v4022 = vpop.f32.mrf.mxu0
          %v4023 = vadd.f32 %v3826, %v4022
          %4024 = vmatmul.f32.gmra.mxu0 %v3188
          %v4025 = vpop.f32.mrf.mxu0
          %v4026 = vadd.f32 %v3829, %v4025
          %4027 = vmatmul.f32.gmra.mxu0 %v3195
          %v4028 = vpop.f32.mrf.mxu0
          %v4029 = vadd.f32 %v3832, %v4028
          %4030 = vmatmul.f32.gmra.mxu0 %v3202
          %v4031 = vpop.f32.mrf.mxu0
          %v4032 = vadd.f32 %v3835, %v4031
          %4033 = vmatmul.f32.gmra.mxu0 %v3209
          %v4034 = vpop.f32.mrf.mxu0
          %v4035 = vadd.f32 %v3838, %v4034
          %4036 = vmatmul.f32.gmra.mxu0 %v3216
          %v4037 = vpop.f32.mrf.mxu0
          %v4038 = vadd.f32 %v3841, %v4037
          %4039 = vmatmul.f32.gmra.mxu0 %v3223
          %v4040 = vpop.f32.mrf.mxu0
          %v4041 = vadd.f32 %v3844, %v4040
          %4042 = vmatmul.f32.gmra.mxu0 %v3230
          %v4043 = vpop.f32.mrf.mxu0
          %v4044 = vadd.f32 %v3847, %v4043
          %4045 = vmatmul.f32.gmra.mxu0 %v3237
          %v4046 = vpop.f32.mrf.mxu0
          %v4047 = vadd.f32 %v3850, %v4046
          %4048 = vmatmul.f32.gmra.mxu0 %v3244
          %v4049 = vpop.f32.mrf.mxu0
          %v4050 = vadd.f32 %v3853, %v4049
          %4051 = vmatmul.f32.gmra.mxu0 %v3251
          %v4052 = vpop.f32.mrf.mxu0
          %v4053 = vadd.f32 %v3856, %v4052
          %4054 = vmatmul.f32.gmra.mxu0 %v3258
          %v4055 = vpop.f32.mrf.mxu0
          %v4056 = vadd.f32 %v3859, %v4055
          %4057 = vmatmul.f32.gmra.mxu0 %v3265
          %v4058 = vpop.f32.mrf.mxu0
          %v4059 = vadd.f32 %v3862, %v4058
          %4060 = vmatmul.f32.gmra.mxu0 %v3272
          %v4061 = vpop.f32.mrf.mxu0
          %v4062 = vadd.f32 %v3865, %v4061
          %4063 = vmatmul.f32.gmra.mxu0 %v3279
          %v4064 = vpop.f32.mrf.mxu0
          %v4065 = vadd.f32 %v3868, %v4064
          %4066 = vmatmul.f32.gmra.mxu0 %v3286
          %v4067 = vpop.f32.mrf.mxu0
          %v4068 = vadd.f32 %v3871, %v4067
          %4069 = vmatmul.f32.gmra.mxu0 %v3293
          %v4070 = vpop.f32.mrf.mxu0
          %v4071 = vadd.f32 %v3874, %v4070
          %4072 = vmatmul.f32.gmra.mxu0 %v3300
          %v4073 = vpop.f32.mrf.mxu0
          %v4074 = vadd.f32 %v3877, %v4073
          %4075 = vdwg.mxu0
          %4076 = vmatpush.msra.mxu0 %v2748
          %4077 = vmatpush.msra.mxu0 %v2746
          %4078 = vmatpush.msra.mxu0 %v2744
          %4079 = vmatpush.msra.mxu0 %v2742
          %4080 = vmatpush.msra.mxu0 %v2740
          %4081 = vmatpush.msra.mxu0 %v2738
          %4082 = vmatpush.msra.mxu0 %v2736
          %4083 = vmatpush.msra.mxu0 %v2734
          %4084 = vmatpush.msra.mxu0 %v2732
          %4085 = vmatpush.msra.mxu0 %v2730
          %4086 = vmatpush.msra.mxu0 %v2728
          %4087 = vmatpush.msra.mxu0 %v2726
          %4088 = vmatpush.msra.mxu0 %v2724
          %4089 = vmatpush.msra.mxu0 %v2722
          %4090 = vmatpush.msra.mxu0 %v2720
          %4091 = vmatpush.msra.mxu0 %v2718
          %4092 = vmatmul.f32.gmra.mxu0 %v2888
          %v4093 = vpop.f32.mrf.mxu0
          %v4094 = vadd.f32 %v3897, %v4093
          %4095 = vmatmul.f32.gmra.mxu0 %v2895
          %v4096 = vpop.f32.mrf.mxu0
          %v4097 = vadd.f32 %v3900, %v4096
          %4098 = vmatmul.f32.gmra.mxu0 %v2902
          %v4099 = vpop.f32.mrf.mxu0
          %v4100 = vadd.f32 %v3903, %v4099
          %4101 = vmatmul.f32.gmra.mxu0 %v2909
          %v4102 = vpop.f32.mrf.mxu0
          %v4103 = vadd.f32 %v3906, %v4102
          %4104 = vmatmul.f32.gmra.mxu0 %v2916
          %v4105 = vpop.f32.mrf.mxu0
          %v4106 = vadd.f32 %v3909, %v4105
          %4107 = vmatmul.f32.gmra.mxu0 %v2923
          %v4108 = vpop.f32.mrf.mxu0
          %v4109 = vadd.f32 %v3912, %v4108
          %4110 = vmatmul.f32.gmra.mxu0 %v2930
          %v4111 = vpop.f32.mrf.mxu0
          %v4112 = vadd.f32 %v3915, %v4111
          %4113 = vmatmul.f32.gmra.mxu0 %v2937
          %v4114 = vpop.f32.mrf.mxu0
          %v4115 = vadd.f32 %v3918, %v4114
          %4116 = vmatmul.f32.gmra.mxu0 %v2944
          %v4117 = vpop.f32.mrf.mxu0
          %v4118 = vadd.f32 %v3921, %v4117
          %4119 = vmatmul.f32.gmra.mxu0 %v2951
          %v4120 = vpop.f32.mrf.mxu0
          %v4121 = vadd.f32 %v3924, %v4120
          %4122 = vmatmul.f32.gmra.mxu0 %v2958
          %v4123 = vpop.f32.mrf.mxu0
          %v4124 = vadd.f32 %v3927, %v4123
          %4125 = vmatmul.f32.gmra.mxu0 %v2965
          %v4126 = vpop.f32.mrf.mxu0
          %v4127 = vadd.f32 %v3930, %v4126
          %4128 = vmatmul.f32.gmra.mxu0 %v2972
          %v4129 = vpop.f32.mrf.mxu0
          %v4130 = vadd.f32 %v3933, %v4129
          %4131 = vmatmul.f32.gmra.mxu0 %v2979
          %v4132 = vpop.f32.mrf.mxu0
          %v4133 = vadd.f32 %v3936, %v4132
          %4134 = vmatmul.f32.gmra.mxu0 %v2986
          %v4135 = vpop.f32.mrf.mxu0
          %v4136 = vadd.f32 %v3939, %v4135
          %4137 = vmatmul.f32.gmra.mxu0 %v2993
          %v4138 = vpop.f32.mrf.mxu0
          %v4139 = vadd.f32 %v3942, %v4138
          %4140 = vmatmul.f32.gmra.mxu0 %v3000
          %v4141 = vpop.f32.mrf.mxu0
          %v4142 = vadd.f32 %v3945, %v4141
          %4143 = vmatmul.f32.gmra.mxu0 %v3007
          %v4144 = vpop.f32.mrf.mxu0
          %v4145 = vadd.f32 %v3948, %v4144
          %4146 = vmatmul.f32.gmra.mxu0 %v3014
          %v4147 = vpop.f32.mrf.mxu0
          %v4148 = vadd.f32 %v3951, %v4147
          %4149 = vmatmul.f32.gmra.mxu0 %v3021
          %v4150 = vpop.f32.mrf.mxu0
          %v4151 = vadd.f32 %v3954, %v4150
          %4152 = vmatmul.f32.gmra.mxu0 %v3028
          %v4153 = vpop.f32.mrf.mxu0
          %v4154 = vadd.f32 %v3957, %v4153
          %4155 = vmatmul.f32.gmra.mxu0 %v3035
          %v4156 = vpop.f32.mrf.mxu0
          %v4157 = vadd.f32 %v3960, %v4156
          %4158 = vmatmul.f32.gmra.mxu0 %v3042
          %v4159 = vpop.f32.mrf.mxu0
          %v4160 = vadd.f32 %v3963, %v4159
          %4161 = vmatmul.f32.gmra.mxu0 %v3049
          %v4162 = vpop.f32.mrf.mxu0
          %v4163 = vadd.f32 %v3966, %v4162
          %4164 = vmatmul.f32.gmra.mxu0 %v3056
          %v4165 = vpop.f32.mrf.mxu0
          %v4166 = vadd.f32 %v3969, %v4165
          %4167 = vmatmul.f32.gmra.mxu0 %v3063
          %v4168 = vpop.f32.mrf.mxu0
          %v4169 = vadd.f32 %v3972, %v4168
          %4170 = vmatmul.f32.gmra.mxu0 %v3070
          %v4171 = vpop.f32.mrf.mxu0
          %v4172 = vadd.f32 %v3975, %v4171
          %4173 = vmatmul.f32.gmra.mxu0 %v3077
          %v4174 = vpop.f32.mrf.mxu0
          %v4175 = vadd.f32 %v3978, %v4174
          %4176 = vmatmul.f32.gmra.mxu0 %v3084
          %v4177 = vpop.f32.mrf.mxu0
          %v4178 = vadd.f32 %v3981, %v4177
          %4179 = vmatmul.f32.gmra.mxu0 %v3091
          %v4180 = vpop.f32.mrf.mxu0
          %v4181 = vadd.f32 %v3984, %v4180
          %4182 = vmatmul.f32.gmra.mxu0 %v3098
          %v4183 = vpop.f32.mrf.mxu0
          %v4184 = vadd.f32 %v3987, %v4183
          %4185 = vmatmul.f32.gmra.mxu0 %v3105
          %v4186 = vpop.f32.mrf.mxu0
          %v4187 = vadd.f32 %v3990, %v4186
          %4188 = vmatmul.f32.gmra.mxu0 %v3112
          %v4189 = vpop.f32.mrf.mxu0
          %v4190 = vadd.f32 %v3993, %v4189
          %4191 = vmatmul.f32.gmra.mxu0 %v3119
          %v4192 = vpop.f32.mrf.mxu0
          %v4193 = vadd.f32 %v3996, %v4192
          %4194 = vmatmul.f32.gmra.mxu0 %v3126
          %v4195 = vpop.f32.mrf.mxu0
          %v4196 = vadd.f32 %v3999, %v4195
          %4197 = vmatmul.f32.gmra.mxu0 %v3133
          %v4198 = vpop.f32.mrf.mxu0
          %v4199 = vadd.f32 %v4002, %v4198
          %4200 = vmatmul.f32.gmra.mxu0 %v3140
          %v4201 = vpop.f32.mrf.mxu0
          %v4202 = vadd.f32 %v4005, %v4201
          %4203 = vmatmul.f32.gmra.mxu0 %v3147
          %v4204 = vpop.f32.mrf.mxu0
          %v4205 = vadd.f32 %v4008, %v4204
          %4206 = vmatmul.f32.gmra.mxu0 %v3154
          %v4207 = vpop.f32.mrf.mxu0
          %v4208 = vadd.f32 %v4011, %v4207
          %4209 = vmatmul.f32.gmra.mxu0 %v3161
          %v4210 = vpop.f32.mrf.mxu0
          %v4211 = vadd.f32 %v4014, %v4210
          %4212 = vmatmul.f32.gmra.mxu0 %v3168
          %v4213 = vpop.f32.mrf.mxu0
          %v4214 = vadd.f32 %v4017, %v4213
          %4215 = vmatmul.f32.gmra.mxu0 %v3175
          %v4216 = vpop.f32.mrf.mxu0
          %v4217 = vadd.f32 %v4020, %v4216
          %4218 = vmatmul.f32.gmra.mxu0 %v3182
          %v4219 = vpop.f32.mrf.mxu0
          %v4220 = vadd.f32 %v4023, %v4219
          %4221 = vmatmul.f32.gmra.mxu0 %v3189
          %v4222 = vpop.f32.mrf.mxu0
          %v4223 = vadd.f32 %v4026, %v4222
          %4224 = vmatmul.f32.gmra.mxu0 %v3196
          %v4225 = vpop.f32.mrf.mxu0
          %v4226 = vadd.f32 %v4029, %v4225
          %4227 = vmatmul.f32.gmra.mxu0 %v3203
          %v4228 = vpop.f32.mrf.mxu0
          %v4229 = vadd.f32 %v4032, %v4228
          %4230 = vmatmul.f32.gmra.mxu0 %v3210
          %v4231 = vpop.f32.mrf.mxu0
          %v4232 = vadd.f32 %v4035, %v4231
          %4233 = vmatmul.f32.gmra.mxu0 %v3217
          %v4234 = vpop.f32.mrf.mxu0
          %v4235 = vadd.f32 %v4038, %v4234
          %4236 = vmatmul.f32.gmra.mxu0 %v3224
          %v4237 = vpop.f32.mrf.mxu0
          %v4238 = vadd.f32 %v4041, %v4237
          %4239 = vmatmul.f32.gmra.mxu0 %v3231
          %v4240 = vpop.f32.mrf.mxu0
          %v4241 = vadd.f32 %v4044, %v4240
          %4242 = vmatmul.f32.gmra.mxu0 %v3238
          %v4243 = vpop.f32.mrf.mxu0
          %v4244 = vadd.f32 %v4047, %v4243
          %4245 = vmatmul.f32.gmra.mxu0 %v3245
          %v4246 = vpop.f32.mrf.mxu0
          %v4247 = vadd.f32 %v4050, %v4246
          %4248 = vmatmul.f32.gmra.mxu0 %v3252
          %v4249 = vpop.f32.mrf.mxu0
          %v4250 = vadd.f32 %v4053, %v4249
          %4251 = vmatmul.f32.gmra.mxu0 %v3259
          %v4252 = vpop.f32.mrf.mxu0
          %v4253 = vadd.f32 %v4056, %v4252
          %4254 = vmatmul.f32.gmra.mxu0 %v3266
          %v4255 = vpop.f32.mrf.mxu0
          %v4256 = vadd.f32 %v4059, %v4255
          %4257 = vmatmul.f32.gmra.mxu0 %v3273
          %v4258 = vpop.f32.mrf.mxu0
          %v4259 = vadd.f32 %v4062, %v4258
          %4260 = vmatmul.f32.gmra.mxu0 %v3280
          %v4261 = vpop.f32.mrf.mxu0
          %v4262 = vadd.f32 %v4065, %v4261
          %4263 = vmatmul.f32.gmra.mxu0 %v3287
          %v4264 = vpop.f32.mrf.mxu0
          %v4265 = vadd.f32 %v4068, %v4264
          %4266 = vmatmul.f32.gmra.mxu0 %v3294
          %v4267 = vpop.f32.mrf.mxu0
          %v4268 = vadd.f32 %v4071, %v4267
          %4269 = vmatmul.f32.gmra.mxu0 %v3301
          %v4270 = vpop.f32.mrf.mxu0
          %v4271 = vadd.f32 %v4074, %v4270
          %4272 = vdwg.mxu0
          %4273 = vmatpush.msra.mxu0 %v2813
          %4274 = vmatpush.msra.mxu0 %v2811
          %4275 = vmatpush.msra.mxu0 %v2809
          %4276 = vmatpush.msra.mxu0 %v2807
          %4277 = vmatpush.msra.mxu0 %v2805
          %4278 = vmatpush.msra.mxu0 %v2803
          %4279 = vmatpush.msra.mxu0 %v2801
          %4280 = vmatpush.msra.mxu0 %v2799
          %4281 = vmatpush.msra.mxu0 %v2797
          %4282 = vmatpush.msra.mxu0 %v2795
          %4283 = vmatpush.msra.mxu0 %v2793
          %4284 = vmatpush.msra.mxu0 %v2791
          %4285 = vmatpush.msra.mxu0 %v2789
          %4286 = vmatpush.msra.mxu0 %v2787
          %4287 = vmatpush.msra.mxu0 %v2752
          %4288 = vmatpush.msra.mxu0 %v2750
          %4289 = vmatmul.f32.gmra.mxu0 %v2889
          %v4290 = vpop.f32.mrf.mxu0
          %v4291 = vadd.f32 %v4094, %v4290
          %4292 = vmatmul.f32.gmra.mxu0 %v2896
          %v4293 = vpop.f32.mrf.mxu0
          %v4294 = vadd.f32 %v4097, %v4293
          %4295 = vmatmul.f32.gmra.mxu0 %v2903
          %v4296 = vpop.f32.mrf.mxu0
          %v4297 = vadd.f32 %v4100, %v4296
          %4298 = vmatmul.f32.gmra.mxu0 %v2910
          %v4299 = vpop.f32.mrf.mxu0
          %v4300 = vadd.f32 %v4103, %v4299
          %4301 = vmatmul.f32.gmra.mxu0 %v2917
          %v4302 = vpop.f32.mrf.mxu0
          %v4303 = vadd.f32 %v4106, %v4302
          %4304 = vmatmul.f32.gmra.mxu0 %v2924
          %v4305 = vpop.f32.mrf.mxu0
          %v4306 = vadd.f32 %v4109, %v4305
          %4307 = vmatmul.f32.gmra.mxu0 %v2931
          %v4308 = vpop.f32.mrf.mxu0
          %v4309 = vadd.f32 %v4112, %v4308
          %4310 = vmatmul.f32.gmra.mxu0 %v2938
          %v4311 = vpop.f32.mrf.mxu0
          %v4312 = vadd.f32 %v4115, %v4311
          %4313 = vmatmul.f32.gmra.mxu0 %v2945
          %v4314 = vpop.f32.mrf.mxu0
          %v4315 = vadd.f32 %v4118, %v4314
          %4316 = vmatmul.f32.gmra.mxu0 %v2952
          %v4317 = vpop.f32.mrf.mxu0
          %v4318 = vadd.f32 %v4121, %v4317
          %4319 = vmatmul.f32.gmra.mxu0 %v2959
          %v4320 = vpop.f32.mrf.mxu0
          %v4321 = vadd.f32 %v4124, %v4320
          %4322 = vmatmul.f32.gmra.mxu0 %v2966
          %v4323 = vpop.f32.mrf.mxu0
          %v4324 = vadd.f32 %v4127, %v4323
          %4325 = vmatmul.f32.gmra.mxu0 %v2973
          %v4326 = vpop.f32.mrf.mxu0
          %v4327 = vadd.f32 %v4130, %v4326
          %4328 = vmatmul.f32.gmra.mxu0 %v2980
          %v4329 = vpop.f32.mrf.mxu0
          %v4330 = vadd.f32 %v4133, %v4329
          %4331 = vmatmul.f32.gmra.mxu0 %v2987
          %v4332 = vpop.f32.mrf.mxu0
          %v4333 = vadd.f32 %v4136, %v4332
          %4334 = vmatmul.f32.gmra.mxu0 %v2994
          %v4335 = vpop.f32.mrf.mxu0
          %v4336 = vadd.f32 %v4139, %v4335
          %4337 = vmatmul.f32.gmra.mxu0 %v3001
          %v4338 = vpop.f32.mrf.mxu0
          %v4339 = vadd.f32 %v4142, %v4338
          %4340 = vmatmul.f32.gmra.mxu0 %v3008
          %v4341 = vpop.f32.mrf.mxu0
          %v4342 = vadd.f32 %v4145, %v4341
          %4343 = vmatmul.f32.gmra.mxu0 %v3015
          %v4344 = vpop.f32.mrf.mxu0
          %v4345 = vadd.f32 %v4148, %v4344
          %4346 = vmatmul.f32.gmra.mxu0 %v3022
          %v4347 = vpop.f32.mrf.mxu0
          %v4348 = vadd.f32 %v4151, %v4347
          %4349 = vmatmul.f32.gmra.mxu0 %v3029
          %v4350 = vpop.f32.mrf.mxu0
          %v4351 = vadd.f32 %v4154, %v4350
          %4352 = vmatmul.f32.gmra.mxu0 %v3036
          %v4353 = vpop.f32.mrf.mxu0
          %v4354 = vadd.f32 %v4157, %v4353
          %4355 = vmatmul.f32.gmra.mxu0 %v3043
          %v4356 = vpop.f32.mrf.mxu0
          %v4357 = vadd.f32 %v4160, %v4356
          %4358 = vmatmul.f32.gmra.mxu0 %v3050
          %v4359 = vpop.f32.mrf.mxu0
          %v4360 = vadd.f32 %v4163, %v4359
          %4361 = vmatmul.f32.gmra.mxu0 %v3057
          %v4362 = vpop.f32.mrf.mxu0
          %v4363 = vadd.f32 %v4166, %v4362
          %4364 = vmatmul.f32.gmra.mxu0 %v3064
          %v4365 = vpop.f32.mrf.mxu0
          %v4366 = vadd.f32 %v4169, %v4365
          %4367 = vmatmul.f32.gmra.mxu0 %v3071
          %v4368 = vpop.f32.mrf.mxu0
          %v4369 = vadd.f32 %v4172, %v4368
          %4370 = vmatmul.f32.gmra.mxu0 %v3078
          %v4371 = vpop.f32.mrf.mxu0
          %v4372 = vadd.f32 %v4175, %v4371
          %4373 = vmatmul.f32.gmra.mxu0 %v3085
          %v4374 = vpop.f32.mrf.mxu0
          %v4375 = vadd.f32 %v4178, %v4374
          %4376 = vmatmul.f32.gmra.mxu0 %v3092
          %v4377 = vpop.f32.mrf.mxu0
          %v4378 = vadd.f32 %v4181, %v4377
          %4379 = vmatmul.f32.gmra.mxu0 %v3099
          %v4380 = vpop.f32.mrf.mxu0
          %v4381 = vadd.f32 %v4184, %v4380
          %4382 = vmatmul.f32.gmra.mxu0 %v3106
          %v4383 = vpop.f32.mrf.mxu0
          %v4384 = vadd.f32 %v4187, %v4383
          %4385 = vmatmul.f32.gmra.mxu0 %v3113
          %v4386 = vpop.f32.mrf.mxu0
          %v4387 = vadd.f32 %v4190, %v4386
          %4388 = vmatmul.f32.gmra.mxu0 %v3120
          %v4389 = vpop.f32.mrf.mxu0
          %v4390 = vadd.f32 %v4193, %v4389
          %4391 = vmatmul.f32.gmra.mxu0 %v3127
          %v4392 = vpop.f32.mrf.mxu0
          %v4393 = vadd.f32 %v4196, %v4392
          %4394 = vmatmul.f32.gmra.mxu0 %v3134
          %v4395 = vpop.f32.mrf.mxu0
          %v4396 = vadd.f32 %v4199, %v4395
          %4397 = vmatmul.f32.gmra.mxu0 %v3141
          %v4398 = vpop.f32.mrf.mxu0
          %v4399 = vadd.f32 %v4202, %v4398
          %4400 = vmatmul.f32.gmra.mxu0 %v3148
          %v4401 = vpop.f32.mrf.mxu0
          %v4402 = vadd.f32 %v4205, %v4401
          %4403 = vmatmul.f32.gmra.mxu0 %v3155
          %v4404 = vpop.f32.mrf.mxu0
          %v4405 = vadd.f32 %v4208, %v4404
          %4406 = vmatmul.f32.gmra.mxu0 %v3162
          %v4407 = vpop.f32.mrf.mxu0
          %v4408 = vadd.f32 %v4211, %v4407
          %4409 = vmatmul.f32.gmra.mxu0 %v3169
          %v4410 = vpop.f32.mrf.mxu0
          %v4411 = vadd.f32 %v4214, %v4410
          %4412 = vmatmul.f32.gmra.mxu0 %v3176
          %v4413 = vpop.f32.mrf.mxu0
          %v4414 = vadd.f32 %v4217, %v4413
          %4415 = vmatmul.f32.gmra.mxu0 %v3183
          %v4416 = vpop.f32.mrf.mxu0
          %v4417 = vadd.f32 %v4220, %v4416
          %4418 = vmatmul.f32.gmra.mxu0 %v3190
          %v4419 = vpop.f32.mrf.mxu0
          %v4420 = vadd.f32 %v4223, %v4419
          %4421 = vmatmul.f32.gmra.mxu0 %v3197
          %v4422 = vpop.f32.mrf.mxu0
          %v4423 = vadd.f32 %v4226, %v4422
          %4424 = vmatmul.f32.gmra.mxu0 %v3204
          %v4425 = vpop.f32.mrf.mxu0
          %v4426 = vadd.f32 %v4229, %v4425
          %4427 = vmatmul.f32.gmra.mxu0 %v3211
          %v4428 = vpop.f32.mrf.mxu0
          %v4429 = vadd.f32 %v4232, %v4428
          %4430 = vmatmul.f32.gmra.mxu0 %v3218
          %v4431 = vpop.f32.mrf.mxu0
          %v4432 = vadd.f32 %v4235, %v4431
          %4433 = vmatmul.f32.gmra.mxu0 %v3225
          %v4434 = vpop.f32.mrf.mxu0
          %v4435 = vadd.f32 %v4238, %v4434
          %4436 = vmatmul.f32.gmra.mxu0 %v3232
          %v4437 = vpop.f32.mrf.mxu0
          %v4438 = vadd.f32 %v4241, %v4437
          %4439 = vmatmul.f32.gmra.mxu0 %v3239
          %v4440 = vpop.f32.mrf.mxu0
          %v4441 = vadd.f32 %v4244, %v4440
          %4442 = vmatmul.f32.gmra.mxu0 %v3246
          %v4443 = vpop.f32.mrf.mxu0
          %v4444 = vadd.f32 %v4247, %v4443
          %4445 = vmatmul.f32.gmra.mxu0 %v3253
          %v4446 = vpop.f32.mrf.mxu0
          %v4447 = vadd.f32 %v4250, %v4446
          %4448 = vmatmul.f32.gmra.mxu0 %v3260
          %v4449 = vpop.f32.mrf.mxu0
          %v4450 = vadd.f32 %v4253, %v4449
          %4451 = vmatmul.f32.gmra.mxu0 %v3267
          %v4452 = vpop.f32.mrf.mxu0
          %v4453 = vadd.f32 %v4256, %v4452
          %4454 = vmatmul.f32.gmra.mxu0 %v3274
          %v4455 = vpop.f32.mrf.mxu0
          %v4456 = vadd.f32 %v4259, %v4455
          %4457 = vmatmul.f32.gmra.mxu0 %v3281
          %v4458 = vpop.f32.mrf.mxu0
          %v4459 = vadd.f32 %v4262, %v4458
          %4460 = vmatmul.f32.gmra.mxu0 %v3288
          %v4461 = vpop.f32.mrf.mxu0
          %v4462 = vadd.f32 %v4265, %v4461
          %4463 = vmatmul.f32.gmra.mxu0 %v3295
          %v4464 = vpop.f32.mrf.mxu0
          %v4465 = vadd.f32 %v4268, %v4464
          %4466 = vmatmul.f32.gmra.mxu0 %v3302
          %v4467 = vpop.f32.mrf.mxu0
          %v4468 = vadd.f32 %v4271, %v4467
          %4469 = vdwg.mxu0
          %4470 = vmatpush.msra.mxu0 %v2845
          %4471 = vmatpush.msra.mxu0 %v2843
          %4472 = vmatpush.msra.mxu0 %v2841
          %4473 = vmatpush.msra.mxu0 %v2839
          %4474 = vmatpush.msra.mxu0 %v2837
          %4475 = vmatpush.msra.mxu0 %v2835
          %4476 = vmatpush.msra.mxu0 %v2833
          %4477 = vmatpush.msra.mxu0 %v2831
          %4478 = vmatpush.msra.mxu0 %v2829
          %4479 = vmatpush.msra.mxu0 %v2827
          %4480 = vmatpush.msra.mxu0 %v2825
          %4481 = vmatpush.msra.mxu0 %v2823
          %4482 = vmatpush.msra.mxu0 %v2821
          %4483 = vmatpush.msra.mxu0 %v2819
          %4484 = vmatpush.msra.mxu0 %v2817
          %4485 = vmatpush.msra.mxu0 %v2815
          %4486 = vmatmul.f32.gmra.mxu0 %v2890
          %v4487 = vpop.f32.mrf.mxu0
          %v4488 = vadd.f32 %v4291, %v4487
          %4489 = vmatmul.f32.gmra.mxu0 %v2897
          %v4490 = vpop.f32.mrf.mxu0
          %v4491 = vadd.f32 %v4294, %v4490
          %4492 = vmatmul.f32.gmra.mxu0 %v2904
          %v4493 = vpop.f32.mrf.mxu0
          %v4494 = vadd.f32 %v4297, %v4493
          %4495 = vmatmul.f32.gmra.mxu0 %v2911
          %v4496 = vpop.f32.mrf.mxu0
          %v4497 = vadd.f32 %v4300, %v4496
          %4498 = vmatmul.f32.gmra.mxu0 %v2918
          %v4499 = vpop.f32.mrf.mxu0
          %v4500 = vadd.f32 %v4303, %v4499
          %4501 = vmatmul.f32.gmra.mxu0 %v2925
          %v4502 = vpop.f32.mrf.mxu0
          %v4503 = vadd.f32 %v4306, %v4502
          %4504 = vmatmul.f32.gmra.mxu0 %v2932
          %v4505 = vpop.f32.mrf.mxu0
          %v4506 = vadd.f32 %v4309, %v4505
          %4507 = vmatmul.f32.gmra.mxu0 %v2939
          %v4508 = vpop.f32.mrf.mxu0
          %v4509 = vadd.f32 %v4312, %v4508
          %4510 = vmatmul.f32.gmra.mxu0 %v2946
          %v4511 = vpop.f32.mrf.mxu0
          %v4512 = vadd.f32 %v4315, %v4511
          %4513 = vmatmul.f32.gmra.mxu0 %v2953
          %v4514 = vpop.f32.mrf.mxu0
          %v4515 = vadd.f32 %v4318, %v4514
          %4516 = vmatmul.f32.gmra.mxu0 %v2960
          %v4517 = vpop.f32.mrf.mxu0
          %v4518 = vadd.f32 %v4321, %v4517
          %4519 = vmatmul.f32.gmra.mxu0 %v2967
          %v4520 = vpop.f32.mrf.mxu0
          %v4521 = vadd.f32 %v4324, %v4520
          %4522 = vmatmul.f32.gmra.mxu0 %v2974
          %v4523 = vpop.f32.mrf.mxu0
          %v4524 = vadd.f32 %v4327, %v4523
          %4525 = vmatmul.f32.gmra.mxu0 %v2981
          %v4526 = vpop.f32.mrf.mxu0
          %v4527 = vadd.f32 %v4330, %v4526
          %4528 = vmatmul.f32.gmra.mxu0 %v2988
          %v4529 = vpop.f32.mrf.mxu0
          %v4530 = vadd.f32 %v4333, %v4529
          %4531 = vmatmul.f32.gmra.mxu0 %v2995
          %v4532 = vpop.f32.mrf.mxu0
          %v4533 = vadd.f32 %v4336, %v4532
          %4534 = vmatmul.f32.gmra.mxu0 %v3002
          %v4535 = vpop.f32.mrf.mxu0
          %v4536 = vadd.f32 %v4339, %v4535
          %4537 = vmatmul.f32.gmra.mxu0 %v3009
          %v4538 = vpop.f32.mrf.mxu0
          %v4539 = vadd.f32 %v4342, %v4538
          %4540 = vmatmul.f32.gmra.mxu0 %v3016
          %v4541 = vpop.f32.mrf.mxu0
          %v4542 = vadd.f32 %v4345, %v4541
          %4543 = vmatmul.f32.gmra.mxu0 %v3023
          %v4544 = vpop.f32.mrf.mxu0
          %v4545 = vadd.f32 %v4348, %v4544
          %4546 = vmatmul.f32.gmra.mxu0 %v3030
          %v4547 = vpop.f32.mrf.mxu0
          %v4548 = vadd.f32 %v4351, %v4547
          %4549 = vmatmul.f32.gmra.mxu0 %v3037
          %v4550 = vpop.f32.mrf.mxu0
          %v4551 = vadd.f32 %v4354, %v4550
          %4552 = vmatmul.f32.gmra.mxu0 %v3044
          %v4553 = vpop.f32.mrf.mxu0
          %v4554 = vadd.f32 %v4357, %v4553
          %4555 = vmatmul.f32.gmra.mxu0 %v3051
          %v4556 = vpop.f32.mrf.mxu0
          %v4557 = vadd.f32 %v4360, %v4556
          %4558 = vmatmul.f32.gmra.mxu0 %v3058
          %v4559 = vpop.f32.mrf.mxu0
          %v4560 = vadd.f32 %v4363, %v4559
          %4561 = vmatmul.f32.gmra.mxu0 %v3065
          %v4562 = vpop.f32.mrf.mxu0
          %v4563 = vadd.f32 %v4366, %v4562
          %4564 = vmatmul.f32.gmra.mxu0 %v3072
          %v4565 = vpop.f32.mrf.mxu0
          %v4566 = vadd.f32 %v4369, %v4565
          %4567 = vmatmul.f32.gmra.mxu0 %v3079
          %v4568 = vpop.f32.mrf.mxu0
          %v4569 = vadd.f32 %v4372, %v4568
          %4570 = vmatmul.f32.gmra.mxu0 %v3086
          %v4571 = vpop.f32.mrf.mxu0
          %v4572 = vadd.f32 %v4375, %v4571
          %4573 = vmatmul.f32.gmra.mxu0 %v3093
          %v4574 = vpop.f32.mrf.mxu0
          %v4575 = vadd.f32 %v4378, %v4574
          %4576 = vmatmul.f32.gmra.mxu0 %v3100
          %v4577 = vpop.f32.mrf.mxu0
          %v4578 = vadd.f32 %v4381, %v4577
          %4579 = vmatmul.f32.gmra.mxu0 %v3107
          %v4580 = vpop.f32.mrf.mxu0
          %v4581 = vadd.f32 %v4384, %v4580
          %4582 = vmatmul.f32.gmra.mxu0 %v3114
          %v4583 = vpop.f32.mrf.mxu0
          %v4584 = vadd.f32 %v4387, %v4583
          %4585 = vmatmul.f32.gmra.mxu0 %v3121
          %v4586 = vpop.f32.mrf.mxu0
          %v4587 = vadd.f32 %v4390, %v4586
          %4588 = vmatmul.f32.gmra.mxu0 %v3128
          %v4589 = vpop.f32.mrf.mxu0
          %v4590 = vadd.f32 %v4393, %v4589
          %4591 = vmatmul.f32.gmra.mxu0 %v3135
          %v4592 = vpop.f32.mrf.mxu0
          %v4593 = vadd.f32 %v4396, %v4592
          %4594 = vmatmul.f32.gmra.mxu0 %v3142
          %v4595 = vpop.f32.mrf.mxu0
          %v4596 = vadd.f32 %v4399, %v4595
          %4597 = vmatmul.f32.gmra.mxu0 %v3149
          %v4598 = vpop.f32.mrf.mxu0
          %v4599 = vadd.f32 %v4402, %v4598
          %4600 = vmatmul.f32.gmra.mxu0 %v3156
          %v4601 = vpop.f32.mrf.mxu0
          %v4602 = vadd.f32 %v4405, %v4601
          %4603 = vmatmul.f32.gmra.mxu0 %v3163
          %v4604 = vpop.f32.mrf.mxu0
          %v4605 = vadd.f32 %v4408, %v4604
          %4606 = vmatmul.f32.gmra.mxu0 %v3170
          %v4607 = vpop.f32.mrf.mxu0
          %v4608 = vadd.f32 %v4411, %v4607
          %4609 = vmatmul.f32.gmra.mxu0 %v3177
          %v4610 = vpop.f32.mrf.mxu0
          %v4611 = vadd.f32 %v4414, %v4610
          %4612 = vmatmul.f32.gmra.mxu0 %v3184
          %v4613 = vpop.f32.mrf.mxu0
          %v4614 = vadd.f32 %v4417, %v4613
          %4615 = vmatmul.f32.gmra.mxu0 %v3191
          %v4616 = vpop.f32.mrf.mxu0
          %v4617 = vadd.f32 %v4420, %v4616
          %4618 = vmatmul.f32.gmra.mxu0 %v3198
          %v4619 = vpop.f32.mrf.mxu0
          %v4620 = vadd.f32 %v4423, %v4619
          %4621 = vmatmul.f32.gmra.mxu0 %v3205
          %v4622 = vpop.f32.mrf.mxu0
          %v4623 = vadd.f32 %v4426, %v4622
          %4624 = vmatmul.f32.gmra.mxu0 %v3212
          %v4625 = vpop.f32.mrf.mxu0
          %v4626 = vadd.f32 %v4429, %v4625
          %4627 = vmatmul.f32.gmra.mxu0 %v3219
          %v4628 = vpop.f32.mrf.mxu0
          %v4629 = vadd.f32 %v4432, %v4628
          %4630 = vmatmul.f32.gmra.mxu0 %v3226
          %v4631 = vpop.f32.mrf.mxu0
          %v4632 = vadd.f32 %v4435, %v4631
          %4633 = vmatmul.f32.gmra.mxu0 %v3233
          %v4634 = vpop.f32.mrf.mxu0
          %v4635 = vadd.f32 %v4438, %v4634
          %4636 = vmatmul.f32.gmra.mxu0 %v3240
          %v4637 = vpop.f32.mrf.mxu0
          %v4638 = vadd.f32 %v4441, %v4637
          %4639 = vmatmul.f32.gmra.mxu0 %v3247
          %v4640 = vpop.f32.mrf.mxu0
          %v4641 = vadd.f32 %v4444, %v4640
          %4642 = vmatmul.f32.gmra.mxu0 %v3254
          %v4643 = vpop.f32.mrf.mxu0
          %v4644 = vadd.f32 %v4447, %v4643
          %4645 = vmatmul.f32.gmra.mxu0 %v3261
          %v4646 = vpop.f32.mrf.mxu0
          %v4647 = vadd.f32 %v4450, %v4646
          %4648 = vmatmul.f32.gmra.mxu0 %v3268
          %v4649 = vpop.f32.mrf.mxu0
          %v4650 = vadd.f32 %v4453, %v4649
          %4651 = vmatmul.f32.gmra.mxu0 %v3275
          %v4652 = vpop.f32.mrf.mxu0
          %v4653 = vadd.f32 %v4456, %v4652
          %4654 = vmatmul.f32.gmra.mxu0 %v3282
          %v4655 = vpop.f32.mrf.mxu0
          %v4656 = vadd.f32 %v4459, %v4655
          %4657 = vmatmul.f32.gmra.mxu0 %v3289
          %v4658 = vpop.f32.mrf.mxu0
          %v4659 = vadd.f32 %v4462, %v4658
          %4660 = vmatmul.f32.gmra.mxu0 %v3296
          %v4661 = vpop.f32.mrf.mxu0
          %v4662 = vadd.f32 %v4465, %v4661
          %4663 = vmatmul.f32.gmra.mxu0 %v3303
          %v4664 = vpop.f32.mrf.mxu0
          %v4665 = vadd.f32 %v4468, %v4664
          %4666 = vdwg.mxu0
          %4667 = vmatpush.msra.mxu0 0.0
          %4668 = vmatpush.msra.mxu0 0.0
          %4669 = vmatpush.msra.mxu0 0.0
          %4670 = vmatpush.msra.mxu0 0.0
          %4671 = vmatpush.msra.mxu0 0.0
          %4672 = vmatpush.msra.mxu0 0.0
          %4673 = vmatpush.msra.mxu0 0.0
          %4674 = vmatpush.msra.mxu0 0.0
          %4675 = vmatpush.msra.mxu0 0.0
          %4676 = vmatpush.msra.mxu0 0.0
          %4677 = vmatpush.msra.mxu0 0.0
          %4678 = vmatpush.msra.mxu0 0.0
          %4679 = vmatpush.msra.mxu0 0.0
          %4680 = vmatpush.msra.mxu0 %v2851
          %4681 = vmatpush.msra.mxu0 %v2849
          %4682 = vmatpush.msra.mxu0 %v2847
          %4683 = vmatmul.f32.gmra.mxu0 %v3306
          %v4684 = vpop.f32.mrf.mxu0
          %v4685 = vadd.f32 %v4488, %v4684
          %4686 = vmatmul.f32.gmra.mxu0 %v3309
          %v4687 = vpop.f32.mrf.mxu0
          %v4688 = vadd.f32 %v4491, %v4687
          %4689 = vmatmul.f32.gmra.mxu0 %v3312
          %v4690 = vpop.f32.mrf.mxu0
          %v4691 = vadd.f32 %v4494, %v4690
          %4692 = vmatmul.f32.gmra.mxu0 %v3315
          %v4693 = vpop.f32.mrf.mxu0
          %v4694 = vadd.f32 %v4497, %v4693
          %4695 = vmatmul.f32.gmra.mxu0 %v3318
          %v4696 = vpop.f32.mrf.mxu0
          %v4697 = vadd.f32 %v4500, %v4696
          %4698 = vmatmul.f32.gmra.mxu0 %v3321
          %v4699 = vpop.f32.mrf.mxu0
          %v4700 = vadd.f32 %v4503, %v4699
          %4701 = vmatmul.f32.gmra.mxu0 %v3324
          %v4702 = vpop.f32.mrf.mxu0
          %v4703 = vadd.f32 %v4506, %v4702
          %4704 = vmatmul.f32.gmra.mxu0 %v3327
          %v4705 = vpop.f32.mrf.mxu0
          %v4706 = vadd.f32 %v4509, %v4705
          %4707 = vmatmul.f32.gmra.mxu0 %v3330
          %v4708 = vpop.f32.mrf.mxu0
          %v4709 = vadd.f32 %v4512, %v4708
          %4710 = vmatmul.f32.gmra.mxu0 %v3333
          %v4711 = vpop.f32.mrf.mxu0
          %v4712 = vadd.f32 %v4515, %v4711
          %4713 = vmatmul.f32.gmra.mxu0 %v3336
          %v4714 = vpop.f32.mrf.mxu0
          %v4715 = vadd.f32 %v4518, %v4714
          %4716 = vmatmul.f32.gmra.mxu0 %v3339
          %v4717 = vpop.f32.mrf.mxu0
          %v4718 = vadd.f32 %v4521, %v4717
          %4719 = vmatmul.f32.gmra.mxu0 %v3342
          %v4720 = vpop.f32.mrf.mxu0
          %v4721 = vadd.f32 %v4524, %v4720
          %4722 = vmatmul.f32.gmra.mxu0 %v3345
          %v4723 = vpop.f32.mrf.mxu0
          %v4724 = vadd.f32 %v4527, %v4723
          %4725 = vmatmul.f32.gmra.mxu0 %v3348
          %v4726 = vpop.f32.mrf.mxu0
          %v4727 = vadd.f32 %v4530, %v4726
          %4728 = vmatmul.f32.gmra.mxu0 %v3351
          %v4729 = vpop.f32.mrf.mxu0
          %v4730 = vadd.f32 %v4533, %v4729
          %4731 = vmatmul.f32.gmra.mxu0 %v3354
          %v4732 = vpop.f32.mrf.mxu0
          %v4733 = vadd.f32 %v4536, %v4732
          %4734 = vmatmul.f32.gmra.mxu0 %v3357
          %v4735 = vpop.f32.mrf.mxu0
          %v4736 = vadd.f32 %v4539, %v4735
          %4737 = vmatmul.f32.gmra.mxu0 %v3360
          %v4738 = vpop.f32.mrf.mxu0
          %v4739 = vadd.f32 %v4542, %v4738
          %4740 = vmatmul.f32.gmra.mxu0 %v3363
          %v4741 = vpop.f32.mrf.mxu0
          %v4742 = vadd.f32 %v4545, %v4741
          %4743 = vmatmul.f32.gmra.mxu0 %v3366
          %v4744 = vpop.f32.mrf.mxu0
          %v4745 = vadd.f32 %v4548, %v4744
          %4746 = vmatmul.f32.gmra.mxu0 %v3369
          %v4747 = vpop.f32.mrf.mxu0
          %v4748 = vadd.f32 %v4551, %v4747
          %4749 = vmatmul.f32.gmra.mxu0 %v3372
          %v4750 = vpop.f32.mrf.mxu0
          %v4751 = vadd.f32 %v4554, %v4750
          %4752 = vmatmul.f32.gmra.mxu0 %v3375
          %v4753 = vpop.f32.mrf.mxu0
          %v4754 = vadd.f32 %v4557, %v4753
          %4755 = vmatmul.f32.gmra.mxu0 %v3378
          %v4756 = vpop.f32.mrf.mxu0
          %v4757 = vadd.f32 %v4560, %v4756
          %4758 = vmatmul.f32.gmra.mxu0 %v3381
          %v4759 = vpop.f32.mrf.mxu0
          %v4760 = vadd.f32 %v4563, %v4759
          %4761 = vmatmul.f32.gmra.mxu0 %v3384
          %v4762 = vpop.f32.mrf.mxu0
          %v4763 = vadd.f32 %v4566, %v4762
          %4764 = vmatmul.f32.gmra.mxu0 %v3387
          %v4765 = vpop.f32.mrf.mxu0
          %v4766 = vadd.f32 %v4569, %v4765
          %4767 = vmatmul.f32.gmra.mxu0 %v3390
          %v4768 = vpop.f32.mrf.mxu0
          %v4769 = vadd.f32 %v4572, %v4768
          %4770 = vmatmul.f32.gmra.mxu0 %v3393
          %v4771 = vpop.f32.mrf.mxu0
          %v4772 = vadd.f32 %v4575, %v4771
          %4773 = vmatmul.f32.gmra.mxu0 %v3396
          %v4774 = vpop.f32.mrf.mxu0
          %v4775 = vadd.f32 %v4578, %v4774
          %4776 = vmatmul.f32.gmra.mxu0 %v3399
          %v4777 = vpop.f32.mrf.mxu0
          %v4778 = vadd.f32 %v4581, %v4777
          %4779 = vmatmul.f32.gmra.mxu0 %v3402
          %v4780 = vpop.f32.mrf.mxu0
          %v4781 = vadd.f32 %v4584, %v4780
          %4782 = vmatmul.f32.gmra.mxu0 %v3405
          %v4783 = vpop.f32.mrf.mxu0
          %v4784 = vadd.f32 %v4587, %v4783
          %4785 = vmatmul.f32.gmra.mxu0 %v3408
          %v4786 = vpop.f32.mrf.mxu0
          %v4787 = vadd.f32 %v4590, %v4786
          %4788 = vmatmul.f32.gmra.mxu0 %v3411
          %v4789 = vpop.f32.mrf.mxu0
          %v4790 = vadd.f32 %v4593, %v4789
          %4791 = vmatmul.f32.gmra.mxu0 %v3414
          %v4792 = vpop.f32.mrf.mxu0
          %v4793 = vadd.f32 %v4596, %v4792
          %4794 = vmatmul.f32.gmra.mxu0 %v3417
          %v4795 = vpop.f32.mrf.mxu0
          %v4796 = vadd.f32 %v4599, %v4795
          %4797 = vmatmul.f32.gmra.mxu0 %v3420
          %v4798 = vpop.f32.mrf.mxu0
          %v4799 = vadd.f32 %v4602, %v4798
          %4800 = vmatmul.f32.gmra.mxu0 %v3423
          %v4801 = vpop.f32.mrf.mxu0
          %v4802 = vadd.f32 %v4605, %v4801
          %4803 = vmatmul.f32.gmra.mxu0 %v3426
          %v4804 = vpop.f32.mrf.mxu0
          %v4805 = vadd.f32 %v4608, %v4804
          %4806 = vmatmul.f32.gmra.mxu0 %v3429
          %v4807 = vpop.f32.mrf.mxu0
          %v4808 = vadd.f32 %v4611, %v4807
          %4809 = vmatmul.f32.gmra.mxu0 %v3432
          %v4810 = vpop.f32.mrf.mxu0
          %v4811 = vadd.f32 %v4614, %v4810
          %4812 = vmatmul.f32.gmra.mxu0 %v3435
          %v4813 = vpop.f32.mrf.mxu0
          %v4814 = vadd.f32 %v4617, %v4813
          %4815 = vmatmul.f32.gmra.mxu0 %v3438
          %v4816 = vpop.f32.mrf.mxu0
          %v4817 = vadd.f32 %v4620, %v4816
          %4818 = vmatmul.f32.gmra.mxu0 %v3441
          %v4819 = vpop.f32.mrf.mxu0
          %v4820 = vadd.f32 %v4623, %v4819
          %4821 = vmatmul.f32.gmra.mxu0 %v3444
          %v4822 = vpop.f32.mrf.mxu0
          %v4823 = vadd.f32 %v4626, %v4822
          %4824 = vmatmul.f32.gmra.mxu0 %v3447
          %v4825 = vpop.f32.mrf.mxu0
          %v4826 = vadd.f32 %v4629, %v4825
          %4827 = vmatmul.f32.gmra.mxu0 %v3450
          %v4828 = vpop.f32.mrf.mxu0
          %v4829 = vadd.f32 %v4632, %v4828
          %4830 = vmatmul.f32.gmra.mxu0 %v3453
          %v4831 = vpop.f32.mrf.mxu0
          %v4832 = vadd.f32 %v4635, %v4831
          %4833 = vmatmul.f32.gmra.mxu0 %v3456
          %v4834 = vpop.f32.mrf.mxu0
          %v4835 = vadd.f32 %v4638, %v4834
          %4836 = vmatmul.f32.gmra.mxu0 %v3459
          %v4837 = vpop.f32.mrf.mxu0
          %v4838 = vadd.f32 %v4641, %v4837
          %4839 = vmatmul.f32.gmra.mxu0 %v3462
          %v4840 = vpop.f32.mrf.mxu0
          %v4841 = vadd.f32 %v4644, %v4840
          %4842 = vmatmul.f32.gmra.mxu0 %v3465
          %v4843 = vpop.f32.mrf.mxu0
          %v4844 = vadd.f32 %v4647, %v4843
          %4845 = vmatmul.f32.gmra.mxu0 %v3468
          %v4846 = vpop.f32.mrf.mxu0
          %v4847 = vadd.f32 %v4650, %v4846
          %4848 = vmatmul.f32.gmra.mxu0 %v3471
          %v4849 = vpop.f32.mrf.mxu0
          %v4850 = vadd.f32 %v4653, %v4849
          %4851 = vmatmul.f32.gmra.mxu0 %v3474
          %v4852 = vpop.f32.mrf.mxu0
          %v4853 = vadd.f32 %v4656, %v4852
          %4854 = vmatmul.f32.gmra.mxu0 %v3477
          %v4855 = vpop.f32.mrf.mxu0
          %v4856 = vadd.f32 %v4659, %v4855
          %4857 = vmatmul.f32.gmra.mxu0 %v3480
          %v4858 = vpop.f32.mrf.mxu0
          %v4859 = vadd.f32 %v4662, %v4858
          %4860 = vmatmul.f32.gmra.mxu0 %v3483
          %v4861 = vpop.f32.mrf.mxu0
          %v4862 = vadd.f32 %v4665, %v4861
          %4863 = vdwg.mxu0
          %v4864 = vmax.f32 %v4685, %v4775
          %v4865 = vmax.f32 %v4688, %v4778
          %v4866 = vmax.f32 %v4691, %v4781
          %v4867 = vmax.f32 %v4694, %v4784
          %v4868 = vmax.f32 %v4697, %v4787
          %v4869 = vmax.f32 %v4700, %v4790
          %v4870 = vmax.f32 %v4703, %v4793
          %v4871 = vmax.f32 %v4706, %v4796
          %v4872 = vmax.f32 %v4709, %v4799
          %v4873 = vmax.f32 %v4712, %v4802
          %v4874 = vmax.f32 %v4715, %v4805
          %v4875 = vmax.f32 %v4718, %v4808
          %v4876 = vmax.f32 %v4721, %v4811
          %v4877 = vmax.f32 %v4724, %v4814
          %v4878 = vmax.f32 %v4727, %v4817
          %v4879 = vmax.f32 %v4730, %v4820
          %v4880 = vmax.f32 %v4733, %v4823
          %v4881 = vmax.f32 %v4736, %v4826
          %v4882 = vmax.f32 %v4739, %v4829
          %v4883 = vmax.f32 %v4742, %v4832
          %v4884 = vmax.f32 %v4745, %v4835
          %v4885 = vmax.f32 %v4748, %v4838
          %v4886 = vmax.f32 %v4751, %v4841
          %v4887 = vmax.f32 %v4754, %v4844
          %v4888 = vmax.f32 %v4757, %v4847
          %v4889 = vmax.f32 %v4760, %v4850
          %v4890 = vmax.f32 %v4763, %v4853
          %v4891 = vmax.f32 %v4766, %v4856
          %v4892 = vmax.f32 %v4769, %v4859
          %v4893 = vmax.f32 %v4772, %v4862
          %4924 = vrot.lane.b32.xlu0 %v4864, 127
          %v4925 = vpop.permute.xlu0 %4924
          %4926 = vrot.lane.b32.xlu0 %v4865, 127
          %v4927 = vpop.permute.xlu0 %4926
          %4928 = vrot.lane.b32.xlu0 %v4866, 127
          %v4929 = vpop.permute.xlu0 %4928
          %4930 = vrot.lane.b32.xlu0 %v4867, 127
          %v4931 = vpop.permute.xlu0 %4930
          %4932 = vrot.lane.b32.xlu0 %v4868, 127
          %v4933 = vpop.permute.xlu0 %4932
          %4934 = vrot.lane.b32.xlu0 %v4869, 127
          %v4935 = vpop.permute.xlu0 %4934
          %4936 = vrot.lane.b32.xlu0 %v4870, 127
          %v4937 = vpop.permute.xlu0 %4936
          %4938 = vrot.lane.b32.xlu0 %v4871, 127
          %v4939 = vpop.permute.xlu0 %4938
          %4940 = vrot.lane.b32.xlu0 %v4872, 127
          %v4941 = vpop.permute.xlu0 %4940
          %4942 = vrot.lane.b32.xlu0 %v4873, 127
          %v4943 = vpop.permute.xlu0 %4942
          %4944 = vrot.lane.b32.xlu0 %v4874, 127
          %v4945 = vpop.permute.xlu0 %4944
          %4946 = vrot.lane.b32.xlu0 %v4875, 127
          %v4947 = vpop.permute.xlu0 %4946
          %4948 = vrot.lane.b32.xlu0 %v4876, 127
          %v4949 = vpop.permute.xlu0 %4948
          %4950 = vrot.lane.b32.xlu0 %v4877, 127
          %v4951 = vpop.permute.xlu0 %4950
          %4952 = vrot.lane.b32.xlu0 %v4878, 127
          %v4953 = vpop.permute.xlu0 %4952
          %4954 = vrot.lane.b32.xlu0 %v4879, 127
          %v4955 = vpop.permute.xlu0 %4954
          %4956 = vrot.lane.b32.xlu0 %v4880, 127
          %v4957 = vpop.permute.xlu0 %4956
          %4958 = vrot.lane.b32.xlu0 %v4881, 127
          %v4959 = vpop.permute.xlu0 %4958
          %4960 = vrot.lane.b32.xlu0 %v4882, 127
          %v4961 = vpop.permute.xlu0 %4960
          %4962 = vrot.lane.b32.xlu0 %v4883, 127
          %v4963 = vpop.permute.xlu0 %4962
          %4964 = vrot.lane.b32.xlu0 %v4884, 127
          %v4965 = vpop.permute.xlu0 %4964
          %4966 = vrot.lane.b32.xlu0 %v4885, 127
          %v4967 = vpop.permute.xlu0 %4966
          %4968 = vrot.lane.b32.xlu0 %v4886, 127
          %v4969 = vpop.permute.xlu0 %4968
          %4970 = vrot.lane.b32.xlu0 %v4887, 127
          %v4971 = vpop.permute.xlu0 %4970
          %4972 = vrot.lane.b32.xlu0 %v4888, 127
          %v4973 = vpop.permute.xlu0 %4972
          %4974 = vrot.lane.b32.xlu0 %v4889, 127
          %v4975 = vpop.permute.xlu0 %4974
          %4976 = vrot.lane.b32.xlu0 %v4890, 127
          %v4977 = vpop.permute.xlu0 %4976
          %4978 = vrot.lane.b32.xlu0 %v4891, 127
          %v4979 = vpop.permute.xlu0 %4978
          %4980 = vrot.lane.b32.xlu0 %v4892, 127
          %v4981 = vpop.permute.xlu0 %4980
          %4982 = vrot.lane.b32.xlu0 %v4893, 127
          %v4983 = vpop.permute.xlu0 %4982
          %v5014 = vmax.f32 %v4864, %v4925
          %v5015 = vmax.f32 %v4865, %v4927
          %v5016 = vmax.f32 %v4866, %v4929
          %v5017 = vmax.f32 %v4867, %v4931
          %v5018 = vmax.f32 %v4868, %v4933
          %v5019 = vmax.f32 %v4869, %v4935
          %v5020 = vmax.f32 %v4870, %v4937
          %v5021 = vmax.f32 %v4871, %v4939
          %v5022 = vmax.f32 %v4872, %v4941
          %v5023 = vmax.f32 %v4873, %v4943
          %v5024 = vmax.f32 %v4874, %v4945
          %v5025 = vmax.f32 %v4875, %v4947
          %v5026 = vmax.f32 %v4876, %v4949
          %v5027 = vmax.f32 %v4877, %v4951
          %v5028 = vmax.f32 %v4878, %v4953
          %v5029 = vmax.f32 %v4879, %v4955
          %v5030 = vmax.f32 %v4880, %v4957
          %v5031 = vmax.f32 %v4881, %v4959
          %v5032 = vmax.f32 %v4882, %v4961
          %v5033 = vmax.f32 %v4883, %v4963
          %v5034 = vmax.f32 %v4884, %v4965
          %v5035 = vmax.f32 %v4885, %v4967
          %v5036 = vmax.f32 %v4886, %v4969
          %v5037 = vmax.f32 %v4887, %v4971
          %v5038 = vmax.f32 %v4888, %v4973
          %v5039 = vmax.f32 %v4889, %v4975
          %v5040 = vmax.f32 %v4890, %v4977
          %v5041 = vmax.f32 %v4891, %v4979
          %v5042 = vmax.f32 %v4892, %v4981
          %v5043 = vmax.f32 %v4893, %v4983
          %v5044 = vld [vmem:[%s6] sm:$0xff]
          %v5045 = vld [vmem:[%s6 + $0x8] sm:$0xff]
          %v5046 = vld [vmem:[%s6 + $0x10] sm:$0xff]
          %v5047 = vld [vmem:[%s6 + $0x18] sm:$0xff]
          %v5048 = vld [vmem:[%s6 + $0x20] sm:$0xff]
          %v5049 = vld [vmem:[%s6 + $0x28] sm:$0xff]
          %v5050 = vld [vmem:[%s5] sm:$0xff]
          %v5051 = vld [vmem:[%s5 + $0x8] sm:$0xff]
          %v5052 = vld [vmem:[%s5 + $0x10] sm:$0xff]
          %v5053 = vld [vmem:[%s5 + $0x18] sm:$0xff]
          %v5054 = vld [vmem:[%s5 + $0x20] sm:$0xff]
          %v5055 = vld [vmem:[%s5 + $0x28] sm:$0xff]
          %v5056 = vld [vmem:[%s5 + $0x30] sm:$0xff]
          %v5057 = vld [vmem:[%s5 + $0x38] sm:$0xff]
          %v5058 = vld [vmem:[%s5 + $0x40] sm:$0xff]
          %v5059 = vld [vmem:[%s5 + $0x48] sm:$0xff]
          %v5060 = vld [vmem:[%s5 + $0x50] sm:$0xff]
          %v5061 = vld [vmem:[%s5 + $0x58] sm:$0xff]
          %v5062 = vld [vmem:[%s5 + $0x60] sm:$0xff]
          %v5063 = vld [vmem:[%s5 + $0x68] sm:$0xff]
          %v5064 = vld [vmem:[%s5 + $0x70] sm:$0xff]
          %v5065 = vld [vmem:[%s5 + $0x78] sm:$0xff]
          %v5066 = vld [vmem:[%s5 + $0x80] sm:$0xff]
          %v5067 = vld [vmem:[%s5 + $0x88] sm:$0xff]
          %v5068 = vld [vmem:[%s5 + $0x90] sm:$0xff]
          %v5069 = vld [vmem:[%s5 + $0x98] sm:$0xff]
          %v5070 = vld [vmem:[%s5 + $0xa0] sm:$0xff]
          %v5071 = vld [vmem:[%s5 + $0xa8] sm:$0xff]
          %v5072 = vld [vmem:[%s5 + $0xb0] sm:$0xff]
          %v5073 = vld [vmem:[%s5 + $0xb8] sm:$0xff]
          %v5074 = vld [vmem:[%s5 + $0xc0] sm:$0xff]
          %v5075 = vld [vmem:[%s5 + $0xc8] sm:$0xff]
          %v5076 = vld [vmem:[%s5 + $0xd0] sm:$0xff]
          %v5077 = vld [vmem:[%s5 + $0xd8] sm:$0xff]
          %v5078 = vld [vmem:[%s5 + $0xe0] sm:$0xff]
          %v5079 = vld [vmem:[%s5 + $0xe8] sm:$0xff]
          %5081 = vset.pattern.permute.xlu0 0
          %5082 = vperm.xlu0 %5081, %v5050
          %v5083 = vpop.permute.xlu0 %5082
          %5086 = vset.pattern.permute.xlu0 0
          %5087 = vperm.xlu0 %5086, %v5051
          %v5088 = vpop.permute.xlu0 %5087
          %5091 = vset.pattern.permute.xlu0 0
          %5092 = vperm.xlu0 %5091, %v5052
          %v5093 = vpop.permute.xlu0 %5092
          %5096 = vset.pattern.permute.xlu0 0
          %5097 = vperm.xlu0 %5096, %v5053
          %v5098 = vpop.permute.xlu0 %5097
          %5101 = vset.pattern.permute.xlu0 0
          %5102 = vperm.xlu0 %5101, %v5054
          %v5103 = vpop.permute.xlu0 %5102
          %5106 = vset.pattern.permute.xlu0 0
          %5107 = vperm.xlu0 %5106, %v5055
          %v5108 = vpop.permute.xlu0 %5107
          %5111 = vset.pattern.permute.xlu0 0
          %5112 = vperm.xlu0 %5111, %v5056
          %v5113 = vpop.permute.xlu0 %5112
          %5116 = vset.pattern.permute.xlu0 0
          %5117 = vperm.xlu0 %5116, %v5057
          %v5118 = vpop.permute.xlu0 %5117
          %5121 = vset.pattern.permute.xlu0 0
          %5122 = vperm.xlu0 %5121, %v5058
          %v5123 = vpop.permute.xlu0 %5122
          %5126 = vset.pattern.permute.xlu0 0
          %5127 = vperm.xlu0 %5126, %v5059
          %v5128 = vpop.permute.xlu0 %5127
          %5131 = vset.pattern.permute.xlu0 0
          %5132 = vperm.xlu0 %5131, %v5060
          %v5133 = vpop.permute.xlu0 %5132
          %5136 = vset.pattern.permute.xlu0 0
          %5137 = vperm.xlu0 %5136, %v5061
          %v5138 = vpop.permute.xlu0 %5137
          %5141 = vset.pattern.permute.xlu0 0
          %5142 = vperm.xlu0 %5141, %v5062
          %v5143 = vpop.permute.xlu0 %5142
          %5146 = vset.pattern.permute.xlu0 0
          %5147 = vperm.xlu0 %5146, %v5063
          %v5148 = vpop.permute.xlu0 %5147
          %5151 = vset.pattern.permute.xlu0 0
          %5152 = vperm.xlu0 %5151, %v5064
          %v5153 = vpop.permute.xlu0 %5152
          %5156 = vset.pattern.permute.xlu0 0
          %5157 = vperm.xlu0 %5156, %v5065
          %v5158 = vpop.permute.xlu0 %5157
          %5161 = vset.pattern.permute.xlu0 0
          %5162 = vperm.xlu0 %5161, %v5066
          %v5163 = vpop.permute.xlu0 %5162
          %5166 = vset.pattern.permute.xlu0 0
          %5167 = vperm.xlu0 %5166, %v5067
          %v5168 = vpop.permute.xlu0 %5167
          %5171 = vset.pattern.permute.xlu0 0
          %5172 = vperm.xlu0 %5171, %v5068
          %v5173 = vpop.permute.xlu0 %5172
          %5176 = vset.pattern.permute.xlu0 0
          %5177 = vperm.xlu0 %5176, %v5069
          %v5178 = vpop.permute.xlu0 %5177
          %5181 = vset.pattern.permute.xlu0 0
          %5182 = vperm.xlu0 %5181, %v5070
          %v5183 = vpop.permute.xlu0 %5182
          %5186 = vset.pattern.permute.xlu0 0
          %5187 = vperm.xlu0 %5186, %v5071
          %v5188 = vpop.permute.xlu0 %5187
          %5191 = vset.pattern.permute.xlu0 0
          %5192 = vperm.xlu0 %5191, %v5072
          %v5193 = vpop.permute.xlu0 %5192
          %5196 = vset.pattern.permute.xlu0 0
          %5197 = vperm.xlu0 %5196, %v5073
          %v5198 = vpop.permute.xlu0 %5197
          %5201 = vset.pattern.permute.xlu0 0
          %5202 = vperm.xlu0 %5201, %v5074
          %v5203 = vpop.permute.xlu0 %5202
          %5206 = vset.pattern.permute.xlu0 0
          %5207 = vperm.xlu0 %5206, %v5075
          %v5208 = vpop.permute.xlu0 %5207
          %5211 = vset.pattern.permute.xlu0 0
          %5212 = vperm.xlu0 %5211, %v5076
          %v5213 = vpop.permute.xlu0 %5212
          %5216 = vset.pattern.permute.xlu0 0
          %5217 = vperm.xlu0 %5216, %v5077
          %v5218 = vpop.permute.xlu0 %5217
          %5221 = vset.pattern.permute.xlu0 0
          %5222 = vperm.xlu0 %5221, %v5078
          %v5223 = vpop.permute.xlu0 %5222
          %5226 = vset.pattern.permute.xlu0 0
          %5227 = vperm.xlu0 %5226, %v5079
          %v5228 = vpop.permute.xlu0 %5227
          %vm5230 = vcmask 392192
          %v5232 = vsel %vm5230, %v5014, 0
          %v5235 = vsel %vm5230, %v5015, 0
          %v5238 = vsel %vm5230, %v5016, 0
          %v5241 = vsel %vm5230, %v5017, 0
          %v5244 = vsel %vm5230, %v5018, 0
          %v5247 = vsel %vm5230, %v5019, 0
          %v5250 = vsel %vm5230, %v5020, 0
          %v5253 = vsel %vm5230, %v5021, 0
          %v5256 = vsel %vm5230, %v5022, 0
          %v5259 = vsel %vm5230, %v5023, 0
          %v5262 = vsel %vm5230, %v5024, 0
          %v5265 = vsel %vm5230, %v5025, 0
          %v5268 = vsel %vm5230, %v5026, 0
          %v5271 = vsel %vm5230, %v5027, 0
          %v5274 = vsel %vm5230, %v5028, 0
          %v5277 = vsel %vm5230, %v5029, 0
          %v5280 = vsel %vm5230, %v5030, 0
          %v5283 = vsel %vm5230, %v5031, 0
          %v5286 = vsel %vm5230, %v5032, 0
          %v5289 = vsel %vm5230, %v5033, 0
          %v5292 = vsel %vm5230, %v5034, 0
          %v5295 = vsel %vm5230, %v5035, 0
          %v5298 = vsel %vm5230, %v5036, 0
          %v5301 = vsel %vm5230, %v5037, 0
          %v5304 = vsel %vm5230, %v5038, 0
          %v5307 = vsel %vm5230, %v5039, 0
          %v5310 = vsel %vm5230, %v5040, 0
          %v5313 = vsel %vm5230, %v5041, 0
          %v5316 = vsel %vm5230, %v5042, 0
          %v5319 = vsel %vm5230, %v5043, 0
          %5321 = vmatpush.msra.mxu0 0.0
          %5322 = vmatpush.msra.mxu0 0.0
          %5323 = vmatpush.msra.mxu0 0.0
          %5324 = vmatpush.msra.mxu0 0.0
          %5325 = vmatpush.msra.mxu0 0.0
          %5326 = vmatpush.msra.mxu0 0.0
          %5327 = vmatpush.msra.mxu0 0.0
          %5328 = vmatpush.msra.mxu0 0.0
          %5329 = vmatpush.msra.mxu0 0.0
          %5330 = vmatpush.msra.mxu0 0.0
          %5331 = vmatpush.msra.mxu0 %v5049
          %5332 = vmatpush.msra.mxu0 %v5048
          %5333 = vmatpush.msra.mxu0 %v5047
          %5334 = vmatpush.msra.mxu0 %v5046
          %5335 = vmatpush.msra.mxu0 %v5045
          %5336 = vmatpush.msra.mxu0 %v5044
          %5337 = vmatmul.f32.gmra.mxu0 %v5232
          %v5338 = vpop.f32.mrf.mxu0
          %v5339 = vadd.f32 %v5083, %v5338
          %5340 = vmatmul.f32.gmra.mxu0 %v5235
          %v5341 = vpop.f32.mrf.mxu0
          %v5342 = vadd.f32 %v5088, %v5341
          %5343 = vmatmul.f32.gmra.mxu0 %v5238
          %v5344 = vpop.f32.mrf.mxu0
          %v5345 = vadd.f32 %v5093, %v5344
          %5346 = vmatmul.f32.gmra.mxu0 %v5241
          %v5347 = vpop.f32.mrf.mxu0
          %v5348 = vadd.f32 %v5098, %v5347
          %5349 = vmatmul.f32.gmra.mxu0 %v5244
          %v5350 = vpop.f32.mrf.mxu0
          %v5351 = vadd.f32 %v5103, %v5350
          %5352 = vmatmul.f32.gmra.mxu0 %v5247
          %v5353 = vpop.f32.mrf.mxu0
          %v5354 = vadd.f32 %v5108, %v5353
          %5355 = vmatmul.f32.gmra.mxu0 %v5250
          %v5356 = vpop.f32.mrf.mxu0
          %v5357 = vadd.f32 %v5113, %v5356
          %5358 = vmatmul.f32.gmra.mxu0 %v5253
          %v5359 = vpop.f32.mrf.mxu0
          %v5360 = vadd.f32 %v5118, %v5359
          %5361 = vmatmul.f32.gmra.mxu0 %v5256
          %v5362 = vpop.f32.mrf.mxu0
          %v5363 = vadd.f32 %v5123, %v5362
          %5364 = vmatmul.f32.gmra.mxu0 %v5259
          %v5365 = vpop.f32.mrf.mxu0
          %v5366 = vadd.f32 %v5128, %v5365
          %5367 = vmatmul.f32.gmra.mxu0 %v5262
          %v5368 = vpop.f32.mrf.mxu0
          %v5369 = vadd.f32 %v5133, %v5368
          %5370 = vmatmul.f32.gmra.mxu0 %v5265
          %v5371 = vpop.f32.mrf.mxu0
          %v5372 = vadd.f32 %v5138, %v5371
          %5373 = vmatmul.f32.gmra.mxu0 %v5268
          %v5374 = vpop.f32.mrf.mxu0
          %v5375 = vadd.f32 %v5143, %v5374
          %5376 = vmatmul.f32.gmra.mxu0 %v5271
          %v5377 = vpop.f32.mrf.mxu0
          %v5378 = vadd.f32 %v5148, %v5377
          %5379 = vmatmul.f32.gmra.mxu0 %v5274
          %v5380 = vpop.f32.mrf.mxu0
          %v5381 = vadd.f32 %v5153, %v5380
          %5382 = vmatmul.f32.gmra.mxu0 %v5277
          %v5383 = vpop.f32.mrf.mxu0
          %v5384 = vadd.f32 %v5158, %v5383
          %5385 = vmatmul.f32.gmra.mxu0 %v5280
          %v5386 = vpop.f32.mrf.mxu0
          %v5387 = vadd.f32 %v5163, %v5386
          %5388 = vmatmul.f32.gmra.mxu0 %v5283
          %v5389 = vpop.f32.mrf.mxu0
          %v5390 = vadd.f32 %v5168, %v5389
          %5391 = vmatmul.f32.gmra.mxu0 %v5286
          %v5392 = vpop.f32.mrf.mxu0
          %v5393 = vadd.f32 %v5173, %v5392
          %5394 = vmatmul.f32.gmra.mxu0 %v5289
          %v5395 = vpop.f32.mrf.mxu0
          %v5396 = vadd.f32 %v5178, %v5395
          %5397 = vmatmul.f32.gmra.mxu0 %v5292
          %v5398 = vpop.f32.mrf.mxu0
          %v5399 = vadd.f32 %v5183, %v5398
          %5400 = vmatmul.f32.gmra.mxu0 %v5295
          %v5401 = vpop.f32.mrf.mxu0
          %v5402 = vadd.f32 %v5188, %v5401
          %5403 = vmatmul.f32.gmra.mxu0 %v5298
          %v5404 = vpop.f32.mrf.mxu0
          %v5405 = vadd.f32 %v5193, %v5404
          %5406 = vmatmul.f32.gmra.mxu0 %v5301
          %v5407 = vpop.f32.mrf.mxu0
          %v5408 = vadd.f32 %v5198, %v5407
          %5409 = vmatmul.f32.gmra.mxu0 %v5304
          %v5410 = vpop.f32.mrf.mxu0
          %v5411 = vadd.f32 %v5203, %v5410
          %5412 = vmatmul.f32.gmra.mxu0 %v5307
          %v5413 = vpop.f32.mrf.mxu0
          %v5414 = vadd.f32 %v5208, %v5413
          %5415 = vmatmul.f32.gmra.mxu0 %v5310
          %v5416 = vpop.f32.mrf.mxu0
          %v5417 = vadd.f32 %v5213, %v5416
          %5418 = vmatmul.f32.gmra.mxu0 %v5313
          %v5419 = vpop.f32.mrf.mxu0
          %v5420 = vadd.f32 %v5218, %v5419
          %5421 = vmatmul.f32.gmra.mxu0 %v5316
          %v5422 = vpop.f32.mrf.mxu0
          %v5423 = vadd.f32 %v5223, %v5422
          %5424 = vmatmul.f32.gmra.mxu0 %v5319
          %v5425 = vpop.f32.mrf.mxu0
          %v5426 = vadd.f32 %v5228, %v5425
          %5427 = vdwg.mxu0
          %v5428 = vmax.f32 %v5339, 0.0
          %v5429 = vmax.f32 %v5342, 0.0
          %v5430 = vmax.f32 %v5345, 0.0
          %v5431 = vmax.f32 %v5348, 0.0
          %v5432 = vmax.f32 %v5351, 0.0
          %v5433 = vmax.f32 %v5354, 0.0
          %v5434 = vmax.f32 %v5357, 0.0
          %v5435 = vmax.f32 %v5360, 0.0
          %v5436 = vmax.f32 %v5363, 0.0
          %v5437 = vmax.f32 %v5366, 0.0
          %v5438 = vmax.f32 %v5369, 0.0
          %v5439 = vmax.f32 %v5372, 0.0
          %v5440 = vmax.f32 %v5375, 0.0
          %v5441 = vmax.f32 %v5378, 0.0
          %v5442 = vmax.f32 %v5381, 0.0
          %v5443 = vmax.f32 %v5384, 0.0
          %v5444 = vmax.f32 %v5387, 0.0
          %v5445 = vmax.f32 %v5390, 0.0
          %v5446 = vmax.f32 %v5393, 0.0
          %v5447 = vmax.f32 %v5396, 0.0
          %v5448 = vmax.f32 %v5399, 0.0
          %v5449 = vmax.f32 %v5402, 0.0
          %v5450 = vmax.f32 %v5405, 0.0
          %v5451 = vmax.f32 %v5408, 0.0
          %v5452 = vmax.f32 %v5411, 0.0
          %v5453 = vmax.f32 %v5414, 0.0
          %v5454 = vmax.f32 %v5417, 0.0
          %v5455 = vmax.f32 %v5420, 0.0
          %v5456 = vmax.f32 %v5423, 0.0
          %v5457 = vmax.f32 %v5426, 0.0
          %5488 = vrot.lane.b32.xlu0 %v5428, 127
          %v5489 = vpop.permute.xlu0 %5488
          %5490 = vrot.lane.b32.xlu0 %v5429, 127
          %v5491 = vpop.permute.xlu0 %5490
          %5492 = vrot.lane.b32.xlu0 %v5430, 127
          %v5493 = vpop.permute.xlu0 %5492
          %5494 = vrot.lane.b32.xlu0 %v5431, 127
          %v5495 = vpop.permute.xlu0 %5494
          %5496 = vrot.lane.b32.xlu0 %v5432, 127
          %v5497 = vpop.permute.xlu0 %5496
          %5498 = vrot.lane.b32.xlu0 %v5433, 127
          %v5499 = vpop.permute.xlu0 %5498
          %5500 = vrot.lane.b32.xlu0 %v5434, 127
          %v5501 = vpop.permute.xlu0 %5500
          %5502 = vrot.lane.b32.xlu0 %v5435, 127
          %v5503 = vpop.permute.xlu0 %5502
          %5504 = vrot.lane.b32.xlu0 %v5436, 127
          %v5505 = vpop.permute.xlu0 %5504
          %5506 = vrot.lane.b32.xlu0 %v5437, 127
          %v5507 = vpop.permute.xlu0 %5506
          %5508 = vrot.lane.b32.xlu0 %v5438, 127
          %v5509 = vpop.permute.xlu0 %5508
          %5510 = vrot.lane.b32.xlu0 %v5439, 127
          %v5511 = vpop.permute.xlu0 %5510
          %5512 = vrot.lane.b32.xlu0 %v5440, 127
          %v5513 = vpop.permute.xlu0 %5512
          %5514 = vrot.lane.b32.xlu0 %v5441, 127
          %v5515 = vpop.permute.xlu0 %5514
          %5516 = vrot.lane.b32.xlu0 %v5442, 127
          %v5517 = vpop.permute.xlu0 %5516
          %5518 = vrot.lane.b32.xlu0 %v5443, 127
          %v5519 = vpop.permute.xlu0 %5518
          %5520 = vrot.lane.b32.xlu0 %v5444, 127
          %v5521 = vpop.permute.xlu0 %5520
          %5522 = vrot.lane.b32.xlu0 %v5445, 127
          %v5523 = vpop.permute.xlu0 %5522
          %5524 = vrot.lane.b32.xlu0 %v5446, 127
          %v5525 = vpop.permute.xlu0 %5524
          %5526 = vrot.lane.b32.xlu0 %v5447, 127
          %v5527 = vpop.permute.xlu0 %5526
          %5528 = vrot.lane.b32.xlu0 %v5448, 127
          %v5529 = vpop.permute.xlu0 %5528
          %5530 = vrot.lane.b32.xlu0 %v5449, 127
          %v5531 = vpop.permute.xlu0 %5530
          %5532 = vrot.lane.b32.xlu0 %v5450, 127
          %v5533 = vpop.permute.xlu0 %5532
          %5534 = vrot.lane.b32.xlu0 %v5451, 127
          %v5535 = vpop.permute.xlu0 %5534
          %5536 = vrot.lane.b32.xlu0 %v5452, 127
          %v5537 = vpop.permute.xlu0 %5536
          %5538 = vrot.lane.b32.xlu0 %v5453, 127
          %v5539 = vpop.permute.xlu0 %5538
          %5540 = vrot.lane.b32.xlu0 %v5454, 127
          %v5541 = vpop.permute.xlu0 %5540
          %5542 = vrot.lane.b32.xlu0 %v5455, 127
          %v5543 = vpop.permute.xlu0 %5542
          %5544 = vrot.lane.b32.xlu0 %v5456, 127
          %v5545 = vpop.permute.xlu0 %5544
          %5546 = vrot.lane.b32.xlu0 %v5457, 127
          %v5547 = vpop.permute.xlu0 %5546
          %5578 = vrot.lane.b32.xlu0 %v5428, 126
          %v5579 = vpop.permute.xlu0 %5578
          %5580 = vrot.lane.b32.xlu0 %v5429, 126
          %v5581 = vpop.permute.xlu0 %5580
          %5582 = vrot.lane.b32.xlu0 %v5430, 126
          %v5583 = vpop.permute.xlu0 %5582
          %5584 = vrot.lane.b32.xlu0 %v5431, 126
          %v5585 = vpop.permute.xlu0 %5584
          %5586 = vrot.lane.b32.xlu0 %v5432, 126
          %v5587 = vpop.permute.xlu0 %5586
          %5588 = vrot.lane.b32.xlu0 %v5433, 126
          %v5589 = vpop.permute.xlu0 %5588
          %5590 = vrot.lane.b32.xlu0 %v5434, 126
          %v5591 = vpop.permute.xlu0 %5590
          %5592 = vrot.lane.b32.xlu0 %v5435, 126
          %v5593 = vpop.permute.xlu0 %5592
          %5594 = vrot.lane.b32.xlu0 %v5436, 126
          %v5595 = vpop.permute.xlu0 %5594
          %5596 = vrot.lane.b32.xlu0 %v5437, 126
          %v5597 = vpop.permute.xlu0 %5596
          %5598 = vrot.lane.b32.xlu0 %v5438, 126
          %v5599 = vpop.permute.xlu0 %5598
          %5600 = vrot.lane.b32.xlu0 %v5439, 126
          %v5601 = vpop.permute.xlu0 %5600
          %5602 = vrot.lane.b32.xlu0 %v5440, 126
          %v5603 = vpop.permute.xlu0 %5602
          %5604 = vrot.lane.b32.xlu0 %v5441, 126
          %v5605 = vpop.permute.xlu0 %5604
          %5606 = vrot.lane.b32.xlu0 %v5442, 126
          %v5607 = vpop.permute.xlu0 %5606
          %5608 = vrot.lane.b32.xlu0 %v5443, 126
          %v5609 = vpop.permute.xlu0 %5608
          %5610 = vrot.lane.b32.xlu0 %v5444, 126
          %v5611 = vpop.permute.xlu0 %5610
          %5612 = vrot.lane.b32.xlu0 %v5445, 126
          %v5613 = vpop.permute.xlu0 %5612
          %5614 = vrot.lane.b32.xlu0 %v5446, 126
          %v5615 = vpop.permute.xlu0 %5614
          %5616 = vrot.lane.b32.xlu0 %v5447, 126
          %v5617 = vpop.permute.xlu0 %5616
          %5618 = vrot.lane.b32.xlu0 %v5448, 126
          %v5619 = vpop.permute.xlu0 %5618
          %5620 = vrot.lane.b32.xlu0 %v5449, 126
          %v5621 = vpop.permute.xlu0 %5620
          %5622 = vrot.lane.b32.xlu0 %v5450, 126
          %v5623 = vpop.permute.xlu0 %5622
          %5624 = vrot.lane.b32.xlu0 %v5451, 126
          %v5625 = vpop.permute.xlu0 %5624
          %5626 = vrot.lane.b32.xlu0 %v5452, 126
          %v5627 = vpop.permute.xlu0 %5626
          %5628 = vrot.lane.b32.xlu0 %v5453, 126
          %v5629 = vpop.permute.xlu0 %5628
          %5630 = vrot.lane.b32.xlu0 %v5454, 126
          %v5631 = vpop.permute.xlu0 %5630
          %5632 = vrot.lane.b32.xlu0 %v5455, 126
          %v5633 = vpop.permute.xlu0 %5632
          %5634 = vrot.lane.b32.xlu0 %v5456, 126
          %v5635 = vpop.permute.xlu0 %5634
          %5636 = vrot.lane.b32.xlu0 %v5457, 126
          %v5637 = vpop.permute.xlu0 %5636
          %v5668 = vld [vmem:[%s7] sm:$0xff]
          %v5669 = vld [vmem:[%s7 + $0x8] sm:$0xff]
          %v5670 = vld [vmem:[%s7 + $0x10] sm:$0xff]
          %v5671 = vld [vmem:[%s7 + $0x18] sm:$0xff]
          %v5672 = vld [vmem:[%s7 + $0x20] sm:$0xff]
          %v5673 = vld [vmem:[%s7 + $0x28] sm:$0xff]
          %v5674 = vld [vmem:[%s7 + $0x30] sm:$0xff]
          %v5675 = vld [vmem:[%s7 + $0x38] sm:$0xff]
          %v5676 = vld [vmem:[%s7 + $0x40] sm:$0xff]
          %v5677 = vld [vmem:[%s7 + $0x48] sm:$0xff]
          %v5678 = vld [vmem:[%s7 + $0x50] sm:$0xff]
          %v5679 = vld [vmem:[%s7 + $0x58] sm:$0xff]
          %v5680 = vld [vmem:[%s7 + $0x60] sm:$0xff]
          %v5681 = vld [vmem:[%s7 + $0x68] sm:$0xff]
          %v5682 = vld [vmem:[%s7 + $0x70] sm:$0xff]
          %v5683 = vld [vmem:[%s7 + $0x78] sm:$0xff]
          %v5684 = vld [vmem:[%s7 + $0x80] sm:$0xff]
          %v5685 = vld [vmem:[%s7 + $0x88] sm:$0xff]
          %v5686 = vld [vmem:[%s7 + $0x90] sm:$0xff]
          %v5687 = vld [vmem:[%s7 + $0x98] sm:$0xff]
          %v5688 = vld [vmem:[%s7 + $0xa0] sm:$0xff]
          %v5689 = vld [vmem:[%s7 + $0xa8] sm:$0xff]
          %v5690 = vld [vmem:[%s7 + $0xb0] sm:$0xff]
          %v5691 = vld [vmem:[%s7 + $0xb8] sm:$0xff]
          %v5692 = vld [vmem:[%s7 + $0xc0] sm:$0xff]
          %v5693 = vld [vmem:[%s7 + $0xc8] sm:$0xff]
          %v5694 = vld [vmem:[%s7 + $0xd0] sm:$0xff]
          %v5695 = vld [vmem:[%s7 + $0xd8] sm:$0xff]
          %v5696 = vld [vmem:[%s7 + $0xe0] sm:$0xff]
          %v5697 = vld [vmem:[%s7 + $0xe8] sm:$0xff]
          %v5698 = vld [vmem:[%s7 + $0xf0] sm:$0xff]
          %v5699 = vld [vmem:[%s7 + $0xf8] sm:$0xff]
          %v5700 = vld [vmem:[%s7 + $0x100] sm:$0xff]
          %v5701 = vld [vmem:[%s7 + $0x108] sm:$0xff]
          %v5702 = vld [vmem:[%s7 + $0x110] sm:$0xff]
          %v5703 = vld [vmem:[%s7 + $0x118] sm:$0xff]
          %v5704 = vld [vmem:[%s7 + $0x120] sm:$0xff]
          %v5705 = vld [vmem:[%s7 + $0x128] sm:$0xff]
          %v5706 = vld [vmem:[%s7 + $0x130] sm:$0xff]
          %v5707 = vld [vmem:[%s7 + $0x138] sm:$0xff]
          %v5708 = vld [vmem:[%s7 + $0x140] sm:$0xff]
          %v5709 = vld [vmem:[%s7 + $0x148] sm:$0xff]
          %v5710 = vld [vmem:[%s7 + $0x150] sm:$0xff]
          %v5711 = vld [vmem:[%s7 + $0x158] sm:$0xff]
          %v5712 = vld [vmem:[%s7 + $0x160] sm:$0xff]
          %v5713 = vld [vmem:[%s7 + $0x168] sm:$0xff]
          %v5714 = vld [vmem:[%s7 + $0x170] sm:$0xff]
          %v5715 = vld [vmem:[%s7 + $0x178] sm:$0xff]
          %v5716 = vld [vmem:[%s7 + $0x180] sm:$0xff]
          %v5717 = vld [vmem:[%s7 + $0x188] sm:$0xff]
          %v5718 = vld [vmem:[%s7 + $0x190] sm:$0xff]
          %v5719 = vld [vmem:[%s7 + $0x198] sm:$0xff]
          %v5720 = vld [vmem:[%s7 + $0x1a0] sm:$0xff]
          %v5721 = vld [vmem:[%s7 + $0x1a8] sm:$0xff]
          %v5722 = vld [vmem:[%s7 + $0x1b0] sm:$0xff]
          %v5723 = vld [vmem:[%s7 + $0x1b8] sm:$0xff]
          %v5724 = vld [vmem:[%s7 + $0x1c0] sm:$0xff]
          %v5725 = vld [vmem:[%s7 + $0x1c8] sm:$0xff]
          %v5726 = vld [vmem:[%s7 + $0x1d0] sm:$0xff]
          %v5727 = vld [vmem:[%s7 + $0x1d8] sm:$0xff]
          %v5728 = vld [vmem:[%s7 + $0x1e0] sm:$0xff]
          %v5729 = vld [vmem:[%s7 + $0x1e8] sm:$0xff]
          %v5730 = vld [vmem:[%s7 + $0x1f0] sm:$0xff]
          %v5731 = vld [vmem:[%s7 + $0x1f8] sm:$0xff]
          %v5732 = vld [vmem:[%s7 + $0x200] sm:$0xff]
          %v5733 = vld [vmem:[%s7 + $0x208] sm:$0xff]
          %v5734 = vld [vmem:[%s7 + $0x210] sm:$0xff]
          %v5735 = vld [vmem:[%s7 + $0x218] sm:$0xff]
          %v5736 = vld [vmem:[%s7 + $0x220] sm:$0xff]
          %v5737 = vld [vmem:[%s7 + $0x228] sm:$0xff]
          %v5738 = vld [vmem:[%s7 + $0x230] sm:$0xff]
          %v5739 = vld [vmem:[%s7 + $0x238] sm:$0xff]
          %vm5740 = vcmask 654336
          %v5742 = vsel %vm5740, %v5673, 0
          %v5745 = vsel %vm5740, %v5679, 0
          %v5748 = vsel %vm5740, %v5685, 0
          %v5751 = vsel %vm5740, %v5691, 0
          %v5754 = vsel %vm5740, %v5697, 0
          %v5757 = vsel %vm5740, %v5703, 0
          %v5760 = vsel %vm5740, %v5709, 0
          %v5763 = vsel %vm5740, %v5715, 0
          %v5766 = vsel %vm5740, %v5721, 0
          %v5769 = vsel %vm5740, %v5727, 0
          %v5772 = vsel %vm5740, %v5733, 0
          %v5775 = vsel %vm5740, %v5739, 0
          %5777 = vmatpush.msra.mxu0 %v5443
          %5778 = vmatpush.msra.mxu0 %v5442
          %5779 = vmatpush.msra.mxu0 %v5441
          %5780 = vmatpush.msra.mxu0 %v5440
          %5781 = vmatpush.msra.mxu0 %v5439
          %5782 = vmatpush.msra.mxu0 %v5438
          %5783 = vmatpush.msra.mxu0 %v5437
          %5784 = vmatpush.msra.mxu0 %v5436
          %5785 = vmatpush.msra.mxu0 %v5435
          %5786 = vmatpush.msra.mxu0 %v5434
          %5787 = vmatpush.msra.mxu0 %v5433
          %5788 = vmatpush.msra.mxu0 %v5432
          %5789 = vmatpush.msra.mxu0 %v5431
          %5790 = vmatpush.msra.mxu0 %v5430
          %5791 = vmatpush.msra.mxu0 %v5429
          %5792 = vmatpush.msra.mxu0 %v5428
          %5793 = vmatmul.f32.gmra.mxu0 %v5668
          %v5794 = vpop.f32.mrf.mxu0
          %v5795 = vadd.f32 0.0, %v5794
          %5796 = vmatmul.f32.gmra.mxu0 %v5674
          %v5797 = vpop.f32.mrf.mxu0
          %v5798 = vadd.f32 0.0, %v5797
          %5799 = vmatmul.f32.gmra.mxu0 %v5680
          %v5800 = vpop.f32.mrf.mxu0
          %v5801 = vadd.f32 0.0, %v5800
          %5802 = vmatmul.f32.gmra.mxu0 %v5686
          %v5803 = vpop.f32.mrf.mxu0
          %v5804 = vadd.f32 0.0, %v5803
          %5805 = vmatmul.f32.gmra.mxu0 %v5692
          %v5806 = vpop.f32.mrf.mxu0
          %v5807 = vadd.f32 0.0, %v5806
          %5808 = vmatmul.f32.gmra.mxu0 %v5698
          %v5809 = vpop.f32.mrf.mxu0
          %v5810 = vadd.f32 0.0, %v5809
          %5811 = vmatmul.f32.gmra.mxu0 %v5704
          %v5812 = vpop.f32.mrf.mxu0
          %v5813 = vadd.f32 0.0, %v5812
          %5814 = vmatmul.f32.gmra.mxu0 %v5710
          %v5815 = vpop.f32.mrf.mxu0
          %v5816 = vadd.f32 0.0, %v5815
          %5817 = vmatmul.f32.gmra.mxu0 %v5716
          %v5818 = vpop.f32.mrf.mxu0
          %v5819 = vadd.f32 0.0, %v5818
          %5820 = vmatmul.f32.gmra.mxu0 %v5722
          %v5821 = vpop.f32.mrf.mxu0
          %v5822 = vadd.f32 0.0, %v5821
          %5823 = vmatmul.f32.gmra.mxu0 %v5728
          %v5824 = vpop.f32.mrf.mxu0
          %v5825 = vadd.f32 0.0, %v5824
          %5826 = vmatmul.f32.gmra.mxu0 %v5734
          %v5827 = vpop.f32.mrf.mxu0
          %v5828 = vadd.f32 0.0, %v5827
          %5829 = vdwg.mxu0
          %5830 = vmatpush.msra.mxu0 %v5491
          %5831 = vmatpush.msra.mxu0 %v5489
          %5832 = vmatpush.msra.mxu0 %v5457
          %5833 = vmatpush.msra.mxu0 %v5456
          %5834 = vmatpush.msra.mxu0 %v5455
          %5835 = vmatpush.msra.mxu0 %v5454
          %5836 = vmatpush.msra.mxu0 %v5453
          %5837 = vmatpush.msra.mxu0 %v5452
          %5838 = vmatpush.msra.mxu0 %v5451
          %5839 = vmatpush.msra.mxu0 %v5450
          %5840 = vmatpush.msra.mxu0 %v5449
          %5841 = vmatpush.msra.mxu0 %v5448
          %5842 = vmatpush.msra.mxu0 %v5447
          %5843 = vmatpush.msra.mxu0 %v5446
          %5844 = vmatpush.msra.mxu0 %v5445
          %5845 = vmatpush.msra.mxu0 %v5444
          %5846 = vmatmul.f32.gmra.mxu0 %v5669
          %v5847 = vpop.f32.mrf.mxu0
          %v5848 = vadd.f32 %v5795, %v5847
          %5849 = vmatmul.f32.gmra.mxu0 %v5675
          %v5850 = vpop.f32.mrf.mxu0
          %v5851 = vadd.f32 %v5798, %v5850
          %5852 = vmatmul.f32.gmra.mxu0 %v5681
          %v5853 = vpop.f32.mrf.mxu0
          %v5854 = vadd.f32 %v5801, %v5853
          %5855 = vmatmul.f32.gmra.mxu0 %v5687
          %v5856 = vpop.f32.mrf.mxu0
          %v5857 = vadd.f32 %v5804, %v5856
          %5858 = vmatmul.f32.gmra.mxu0 %v5693
          %v5859 = vpop.f32.mrf.mxu0
          %v5860 = vadd.f32 %v5807, %v5859
          %5861 = vmatmul.f32.gmra.mxu0 %v5699
          %v5862 = vpop.f32.mrf.mxu0
          %v5863 = vadd.f32 %v5810, %v5862
          %5864 = vmatmul.f32.gmra.mxu0 %v5705
          %v5865 = vpop.f32.mrf.mxu0
          %v5866 = vadd.f32 %v5813, %v5865
          %5867 = vmatmul.f32.gmra.mxu0 %v5711
          %v5868 = vpop.f32.mrf.mxu0
          %v5869 = vadd.f32 %v5816, %v5868
          %5870 = vmatmul.f32.gmra.mxu0 %v5717
          %v5871 = vpop.f32.mrf.mxu0
          %v5872 = vadd.f32 %v5819, %v5871
          %5873 = vmatmul.f32.gmra.mxu0 %v5723
          %v5874 = vpop.f32.mrf.mxu0
          %v5875 = vadd.f32 %v5822, %v5874
          %5876 = vmatmul.f32.gmra.mxu0 %v5729
          %v5877 = vpop.f32.mrf.mxu0
          %v5878 = vadd.f32 %v5825, %v5877
          %5879 = vmatmul.f32.gmra.mxu0 %v5735
          %v5880 = vpop.f32.mrf.mxu0
          %v5881 = vadd.f32 %v5828, %v5880
          %5882 = vdwg.mxu0
          %5883 = vmatpush.msra.mxu0 %v5523
          %5884 = vmatpush.msra.mxu0 %v5521
          %5885 = vmatpush.msra.mxu0 %v5519
          %5886 = vmatpush.msra.mxu0 %v5517
          %5887 = vmatpush.msra.mxu0 %v5515
          %5888 = vmatpush.msra.mxu0 %v5513
          %5889 = vmatpush.msra.mxu0 %v5511
          %5890 = vmatpush.msra.mxu0 %v5509
          %5891 = vmatpush.msra.mxu0 %v5507
          %5892 = vmatpush.msra.mxu0 %v5505
          %5893 = vmatpush.msra.mxu0 %v5503
          %5894 = vmatpush.msra.mxu0 %v5501
          %5895 = vmatpush.msra.mxu0 %v5499
          %5896 = vmatpush.msra.mxu0 %v5497
          %5897 = vmatpush.msra.mxu0 %v5495
          %5898 = vmatpush.msra.mxu0 %v5493
          %5899 = vmatmul.f32.gmra.mxu0 %v5670
          %v5900 = vpop.f32.mrf.mxu0
          %v5901 = vadd.f32 %v5848, %v5900
          %5902 = vmatmul.f32.gmra.mxu0 %v5676
          %v5903 = vpop.f32.mrf.mxu0
          %v5904 = vadd.f32 %v5851, %v5903
          %5905 = vmatmul.f32.gmra.mxu0 %v5682
          %v5906 = vpop.f32.mrf.mxu0
          %v5907 = vadd.f32 %v5854, %v5906
          %5908 = vmatmul.f32.gmra.mxu0 %v5688
          %v5909 = vpop.f32.mrf.mxu0
          %v5910 = vadd.f32 %v5857, %v5909
          %5911 = vmatmul.f32.gmra.mxu0 %v5694
          %v5912 = vpop.f32.mrf.mxu0
          %v5913 = vadd.f32 %v5860, %v5912
          %5914 = vmatmul.f32.gmra.mxu0 %v5700
          %v5915 = vpop.f32.mrf.mxu0
          %v5916 = vadd.f32 %v5863, %v5915
          %5917 = vmatmul.f32.gmra.mxu0 %v5706
          %v5918 = vpop.f32.mrf.mxu0
          %v5919 = vadd.f32 %v5866, %v5918
          %5920 = vmatmul.f32.gmra.mxu0 %v5712
          %v5921 = vpop.f32.mrf.mxu0
          %v5922 = vadd.f32 %v5869, %v5921
          %5923 = vmatmul.f32.gmra.mxu0 %v5718
          %v5924 = vpop.f32.mrf.mxu0
          %v5925 = vadd.f32 %v5872, %v5924
          %5926 = vmatmul.f32.gmra.mxu0 %v5724
          %v5927 = vpop.f32.mrf.mxu0
          %v5928 = vadd.f32 %v5875, %v5927
          %5929 = vmatmul.f32.gmra.mxu0 %v5730
          %v5930 = vpop.f32.mrf.mxu0
          %v5931 = vadd.f32 %v5878, %v5930
          %5932 = vmatmul.f32.gmra.mxu0 %v5736
          %v5933 = vpop.f32.mrf.mxu0
          %v5934 = vadd.f32 %v5881, %v5933
          %5935 = vdwg.mxu0
          %5936 = vmatpush.msra.mxu0 %v5585
          %5937 = vmatpush.msra.mxu0 %v5583
          %5938 = vmatpush.msra.mxu0 %v5581
          %5939 = vmatpush.msra.mxu0 %v5579
          %5940 = vmatpush.msra.mxu0 %v5547
          %5941 = vmatpush.msra.mxu0 %v5545
          %5942 = vmatpush.msra.mxu0 %v5543
          %5943 = vmatpush.msra.mxu0 %v5541
          %5944 = vmatpush.msra.mxu0 %v5539
          %5945 = vmatpush.msra.mxu0 %v5537
          %5946 = vmatpush.msra.mxu0 %v5535
          %5947 = vmatpush.msra.mxu0 %v5533
          %5948 = vmatpush.msra.mxu0 %v5531
          %5949 = vmatpush.msra.mxu0 %v5529
          %5950 = vmatpush.msra.mxu0 %v5527
          %5951 = vmatpush.msra.mxu0 %v5525
          %5952 = vmatmul.f32.gmra.mxu0 %v5671
          %v5953 = vpop.f32.mrf.mxu0
          %v5954 = vadd.f32 %v5901, %v5953
          %5955 = vmatmul.f32.gmra.mxu0 %v5677
          %v5956 = vpop.f32.mrf.mxu0
          %v5957 = vadd.f32 %v5904, %v5956
          %5958 = vmatmul.f32.gmra.mxu0 %v5683
          %v5959 = vpop.f32.mrf.mxu0
          %v5960 = vadd.f32 %v5907, %v5959
          %5961 = vmatmul.f32.gmra.mxu0 %v5689
          %v5962 = vpop.f32.mrf.mxu0
          %v5963 = vadd.f32 %v5910, %v5962
          %5964 = vmatmul.f32.gmra.mxu0 %v5695
          %v5965 = vpop.f32.mrf.mxu0
          %v5966 = vadd.f32 %v5913, %v5965
          %5967 = vmatmul.f32.gmra.mxu0 %v5701
          %v5968 = vpop.f32.mrf.mxu0
          %v5969 = vadd.f32 %v5916, %v5968
          %5970 = vmatmul.f32.gmra.mxu0 %v5707
          %v5971 = vpop.f32.mrf.mxu0
          %v5972 = vadd.f32 %v5919, %v5971
          %5973 = vmatmul.f32.gmra.mxu0 %v5713
          %v5974 = vpop.f32.mrf.mxu0
          %v5975 = vadd.f32 %v5922, %v5974
          %5976 = vmatmul.f32.gmra.mxu0 %v5719
          %v5977 = vpop.f32.mrf.mxu0
          %v5978 = vadd.f32 %v5925, %v5977
          %5979 = vmatmul.f32.gmra.mxu0 %v5725
          %v5980 = vpop.f32.mrf.mxu0
          %v5981 = vadd.f32 %v5928, %v5980
          %5982 = vmatmul.f32.gmra.mxu0 %v5731
          %v5983 = vpop.f32.mrf.mxu0
          %v5984 = vadd.f32 %v5931, %v5983
          %5985 = vmatmul.f32.gmra.mxu0 %v5737
          %v5986 = vpop.f32.mrf.mxu0
          %v5987 = vadd.f32 %v5934, %v5986
          %5988 = vdwg.mxu0
          %5989 = vmatpush.msra.mxu0 %v5617
          %5990 = vmatpush.msra.mxu0 %v5615
          %5991 = vmatpush.msra.mxu0 %v5613
          %5992 = vmatpush.msra.mxu0 %v5611
          %5993 = vmatpush.msra.mxu0 %v5609
          %5994 = vmatpush.msra.mxu0 %v5607
          %5995 = vmatpush.msra.mxu0 %v5605
          %5996 = vmatpush.msra.mxu0 %v5603
          %5997 = vmatpush.msra.mxu0 %v5601
          %5998 = vmatpush.msra.mxu0 %v5599
          %5999 = vmatpush.msra.mxu0 %v5597
          %6000 = vmatpush.msra.mxu0 %v5595
          %6001 = vmatpush.msra.mxu0 %v5593
          %6002 = vmatpush.msra.mxu0 %v5591
          %6003 = vmatpush.msra.mxu0 %v5589
          %6004 = vmatpush.msra.mxu0 %v5587
          %6005 = vmatmul.f32.gmra.mxu0 %v5672
          %v6006 = vpop.f32.mrf.mxu0
          %v6007 = vadd.f32 %v5954, %v6006
          %6008 = vmatmul.f32.gmra.mxu0 %v5678
          %v6009 = vpop.f32.mrf.mxu0
          %v6010 = vadd.f32 %v5957, %v6009
          %6011 = vmatmul.f32.gmra.mxu0 %v5684
          %v6012 = vpop.f32.mrf.mxu0
          %v6013 = vadd.f32 %v5960, %v6012
          %6014 = vmatmul.f32.gmra.mxu0 %v5690
          %v6015 = vpop.f32.mrf.mxu0
          %v6016 = vadd.f32 %v5963, %v6015
          %6017 = vmatmul.f32.gmra.mxu0 %v5696
          %v6018 = vpop.f32.mrf.mxu0
          %v6019 = vadd.f32 %v5966, %v6018
          %6020 = vmatmul.f32.gmra.mxu0 %v5702
          %v6021 = vpop.f32.mrf.mxu0
          %v6022 = vadd.f32 %v5969, %v6021
          %6023 = vmatmul.f32.gmra.mxu0 %v5708
          %v6024 = vpop.f32.mrf.mxu0
          %v6025 = vadd.f32 %v5972, %v6024
          %6026 = vmatmul.f32.gmra.mxu0 %v5714
          %v6027 = vpop.f32.mrf.mxu0
          %v6028 = vadd.f32 %v5975, %v6027
          %6029 = vmatmul.f32.gmra.mxu0 %v5720
          %v6030 = vpop.f32.mrf.mxu0
          %v6031 = vadd.f32 %v5978, %v6030
          %6032 = vmatmul.f32.gmra.mxu0 %v5726
          %v6033 = vpop.f32.mrf.mxu0
          %v6034 = vadd.f32 %v5981, %v6033
          %6035 = vmatmul.f32.gmra.mxu0 %v5732
          %v6036 = vpop.f32.mrf.mxu0
          %v6037 = vadd.f32 %v5984, %v6036
          %6038 = vmatmul.f32.gmra.mxu0 %v5738
          %v6039 = vpop.f32.mrf.mxu0
          %v6040 = vadd.f32 %v5987, %v6039
          %6041 = vdwg.mxu0
          %6042 = vmatpush.msra.mxu0 0.0
          %6043 = vmatpush.msra.mxu0 0.0
          %6044 = vmatpush.msra.mxu0 0.0
          %6045 = vmatpush.msra.mxu0 0.0
          %6046 = vmatpush.msra.mxu0 0.0
          %6047 = vmatpush.msra.mxu0 0.0
          %6048 = vmatpush.msra.mxu0 %v5637
          %6049 = vmatpush.msra.mxu0 %v5635
          %6050 = vmatpush.msra.mxu0 %v5633
          %6051 = vmatpush.msra.mxu0 %v5631
          %6052 = vmatpush.msra.mxu0 %v5629
          %6053 = vmatpush.msra.mxu0 %v5627
          %6054 = vmatpush.msra.mxu0 %v5625
          %6055 = vmatpush.msra.mxu0 %v5623
          %6056 = vmatpush.msra.mxu0 %v5621
          %6057 = vmatpush.msra.mxu0 %v5619
          %6058 = vmatmul.f32.gmra.mxu0 %v5742
          %v6059 = vpop.f32.mrf.mxu0
          %v6060 = vadd.f32 %v6007, %v6059
          %6061 = vmatmul.f32.gmra.mxu0 %v5745
          %v6062 = vpop.f32.mrf.mxu0
          %v6063 = vadd.f32 %v6010, %v6062
          %6064 = vmatmul.f32.gmra.mxu0 %v5748
          %v6065 = vpop.f32.mrf.mxu0
          %v6066 = vadd.f32 %v6013, %v6065
          %6067 = vmatmul.f32.gmra.mxu0 %v5751
          %v6068 = vpop.f32.mrf.mxu0
          %v6069 = vadd.f32 %v6016, %v6068
          %6070 = vmatmul.f32.gmra.mxu0 %v5754
          %v6071 = vpop.f32.mrf.mxu0
          %v6072 = vadd.f32 %v6019, %v6071
          %6073 = vmatmul.f32.gmra.mxu0 %v5757
          %v6074 = vpop.f32.mrf.mxu0
          %v6075 = vadd.f32 %v6022, %v6074
          %6076 = vmatmul.f32.gmra.mxu0 %v5760
          %v6077 = vpop.f32.mrf.mxu0
          %v6078 = vadd.f32 %v6025, %v6077
          %6079 = vmatmul.f32.gmra.mxu0 %v5763
          %v6080 = vpop.f32.mrf.mxu0
          %v6081 = vadd.f32 %v6028, %v6080
          %6082 = vmatmul.f32.gmra.mxu0 %v5766
          %v6083 = vpop.f32.mrf.mxu0
          %v6084 = vadd.f32 %v6031, %v6083
          %6085 = vmatmul.f32.gmra.mxu0 %v5769
          %v6086 = vpop.f32.mrf.mxu0
          %v6087 = vadd.f32 %v6034, %v6086
          %6088 = vmatmul.f32.gmra.mxu0 %v5772
          %v6089 = vpop.f32.mrf.mxu0
          %v6090 = vadd.f32 %v6037, %v6089
          %6091 = vmatmul.f32.gmra.mxu0 %v5775
          %v6092 = vpop.f32.mrf.mxu0
          %v6093 = vadd.f32 %v6040, %v6092
          %6094 = vdwg.mxu0
          %v6095 = vmax.f32 %v6060, %v6078
          %v6096 = vmax.f32 %v6063, %v6081
          %v6097 = vmax.f32 %v6066, %v6084
          %v6098 = vmax.f32 %v6069, %v6087
          %v6099 = vmax.f32 %v6072, %v6090
          %v6100 = vmax.f32 %v6075, %v6093
          %6107 = vrot.lane.b32.xlu0 %v6095, 127
          %v6108 = vpop.permute.xlu0 %6107
          %6109 = vrot.lane.b32.xlu0 %v6096, 127
          %v6110 = vpop.permute.xlu0 %6109
          %6111 = vrot.lane.b32.xlu0 %v6097, 127
          %v6112 = vpop.permute.xlu0 %6111
          %6113 = vrot.lane.b32.xlu0 %v6098, 127
          %v6114 = vpop.permute.xlu0 %6113
          %6115 = vrot.lane.b32.xlu0 %v6099, 127
          %v6116 = vpop.permute.xlu0 %6115
          %6117 = vrot.lane.b32.xlu0 %v6100, 127
          %v6118 = vpop.permute.xlu0 %6117
          %v6125 = vmax.f32 %v6095, %v6108
          %v6126 = vmax.f32 %v6096, %v6110
          %v6127 = vmax.f32 %v6097, %v6112
          %v6128 = vmax.f32 %v6098, %v6114
          %v6129 = vmax.f32 %v6099, %v6116
          %v6130 = vmax.f32 %v6100, %v6118
          %v6131 = vld [vmem:[%s9] sm:$0xff]
          %v6132 = vld [vmem:[%s9 + $0x8] sm:$0xff]
          %v6133 = vld [vmem:[%s9 + $0x10] sm:$0x1f]
          %v6134 = vld [vmem:[%s8] sm:$0xff]
          %v6135 = vld [vmem:[%s8 + $0x8] sm:$0xff]
          %v6136 = vld [vmem:[%s8 + $0x10] sm:$0xff]
          %v6137 = vld [vmem:[%s8 + $0x18] sm:$0xff]
          %v6138 = vld [vmem:[%s8 + $0x20] sm:$0xff]
          %v6139 = vld [vmem:[%s8 + $0x28] sm:$0xff]
          %6141 = vset.pattern.permute.xlu0 0
          %6142 = vperm.xlu0 %6141, %v6134
          %v6143 = vpop.permute.xlu0 %6142
          %6146 = vset.pattern.permute.xlu0 0
          %6147 = vperm.xlu0 %6146, %v6135
          %v6148 = vpop.permute.xlu0 %6147
          %6151 = vset.pattern.permute.xlu0 0
          %6152 = vperm.xlu0 %6151, %v6136
          %v6153 = vpop.permute.xlu0 %6152
          %6156 = vset.pattern.permute.xlu0 0
          %6157 = vperm.xlu0 %6156, %v6137
          %v6158 = vpop.permute.xlu0 %6157
          %6161 = vset.pattern.permute.xlu0 0
          %6162 = vperm.xlu0 %6161, %v6138
          %v6163 = vpop.permute.xlu0 %6162
          %6166 = vset.pattern.permute.xlu0 0
          %6167 = vperm.xlu0 %6166, %v6139
          %v6168 = vpop.permute.xlu0 %6167
          %vm6170 = vcmask 171008
          %v6172 = vsel %vm6170, %v6125, 0
          %v6175 = vsel %vm6170, %v6126, 0
          %v6178 = vsel %vm6170, %v6127, 0
          %v6181 = vsel %vm6170, %v6128, 0
          %v6184 = vsel %vm6170, %v6129, 0
          %v6187 = vsel %vm6170, %v6130, 0
          %v6190 = vsel %vm2501, %v6133, 0
          %6192 = vmatpush.msra.mxu0 0.0
          %6193 = vmatpush.msra.mxu0 0.0
          %6194 = vmatpush.msra.mxu0 0.0
          %6195 = vmatpush.msra.mxu0 0.0
          %6196 = vmatpush.msra.mxu0 0.0
          %6197 = vmatpush.msra.mxu0 0.0
          %6198 = vmatpush.msra.mxu0 0.0
          %6199 = vmatpush.msra.mxu0 0.0
          %6200 = vmatpush.msra.mxu0 0.0
          %6201 = vmatpush.msra.mxu0 0.0
          %6202 = vmatpush.msra.mxu0 0.0
          %6203 = vmatpush.msra.mxu0 0.0
          %6204 = vmatpush.msra.mxu0 0.0
          %6205 = vmatpush.msra.mxu0 %v6190
          %6206 = vmatpush.msra.mxu0 %v6132
          %6207 = vmatpush.msra.mxu0 %v6131
          %6208 = vmatmul.f32.gmra.mxu0 %v6172
          %v6209 = vpop.f32.mrf.mxu0
          %v6210 = vadd.f32 %v6143, %v6209
          %6211 = vmatmul.f32.gmra.mxu0 %v6175
          %v6212 = vpop.f32.mrf.mxu0
          %v6213 = vadd.f32 %v6148, %v6212
          %6214 = vmatmul.f32.gmra.mxu0 %v6178
          %v6215 = vpop.f32.mrf.mxu0
          %v6216 = vadd.f32 %v6153, %v6215
          %6217 = vmatmul.f32.gmra.mxu0 %v6181
          %v6218 = vpop.f32.mrf.mxu0
          %v6219 = vadd.f32 %v6158, %v6218
          %6220 = vmatmul.f32.gmra.mxu0 %v6184
          %v6221 = vpop.f32.mrf.mxu0
          %v6222 = vadd.f32 %v6163, %v6221
          %6223 = vmatmul.f32.gmra.mxu0 %v6187
          %v6224 = vpop.f32.mrf.mxu0
          %v6225 = vadd.f32 %v6168, %v6224
          %6226 = vdwg.mxu0
          %v6227 = vmax.f32 %v6210, 0.0
          %v6228 = vmax.f32 %v6213, 0.0
          %v6229 = vmax.f32 %v6216, 0.0
          %v6230 = vmax.f32 %v6219, 0.0
          %v6231 = vmax.f32 %v6222, 0.0
          %v6232 = vmax.f32 %v6225, 0.0
          %s6233 = smul.u32 %s526, 48
          %s6234 = scalar_lea.vmem [#allocation2], %s6233
          %vm6235 = vcmask 89088
          %6236 = vst.msk [vmem:[%s6234] sm:$0xff] %vm6235, %v6227
          %6237 = vst.msk [vmem:[%s6234 + $0x8] sm:$0xff] %vm6235, %v6228
          %6238 = vst.msk [vmem:[%s6234 + $0x10] sm:$0xff] %vm6235, %v6229
          %6239 = vst.msk [vmem:[%s6234 + $0x18] sm:$0xff] %vm6235, %v6230
          %6240 = vst.msk [vmem:[%s6234 + $0x20] sm:$0xff] %vm6235, %v6231
          %6241 = vst.msk [vmem:[%s6234 + $0x28] sm:$0xff] %vm6235, %v6232
        $region89: #{conv_encoder_forward.1} parent=83 // loop_footer
          %s530 = sadd.s32 1, %s526
        $region90: #{conv_encoder_forward.1} parent=83 // loop_footer_branch
          %525 = sbr.rel target = $region86
        $region91: #{conv_encoder_forward.1} parent=83 // loop_exit
          _
        %v6242 = vld [vmem:[#allocation2] sm:$0xff]
        %v6243 = vld [vmem:[#allocation2 + $0x8] sm:$0xff]
        %v6244 = vld [vmem:[#allocation2 + $0x10] sm:$0xff]
        %v6245 = vld [vmem:[#allocation2 + $0x18] sm:$0xff]
        %v6246 = vld [vmem:[#allocation2 + $0x20] sm:$0xff]
        %v6247 = vld [vmem:[#allocation2 + $0x28] sm:$0xff]
        %v6248 = vld [vmem:[#allocation2 + $0x30] sm:$0xff]
        %v6249 = vld [vmem:[#allocation2 + $0x38] sm:$0xff]
        %v6250 = vld [vmem:[#allocation2 + $0x40] sm:$0xff]
        %v6251 = vld [vmem:[#allocation2 + $0x48] sm:$0xff]
        %v6252 = vld [vmem:[#allocation2 + $0x50] sm:$0xff]
        %v6253 = vld [vmem:[#allocation2 + $0x58] sm:$0xff]
        %v6254 = vld [vmem:[#allocation2 + $0x60] sm:$0xff]
        %v6255 = vld [vmem:[#allocation2 + $0x68] sm:$0xff]
        %v6256 = vld [vmem:[#allocation2 + $0x70] sm:$0xff]
        %v6257 = vld [vmem:[#allocation2 + $0x78] sm:$0xff]
        %v6258 = vld [vmem:[#allocation2 + $0x80] sm:$0xff]
        %v6259 = vld [vmem:[#allocation2 + $0x88] sm:$0xff]
        %v6260 = vld [vmem:[#allocation2 + $0x90] sm:$0xff]
        %v6261 = vld [vmem:[#allocation2 + $0x98] sm:$0xff]
        %v6262 = vld [vmem:[#allocation2 + $0xa0] sm:$0xff]
        %v6263 = vld [vmem:[#allocation2 + $0xa8] sm:$0xff]
        %v6264 = vld [vmem:[#allocation2 + $0xb0] sm:$0xff]
        %v6265 = vld [vmem:[#allocation2 + $0xb8] sm:$0xff]
        %v6266 = vld [vmem:[#allocation2 + $0xc0] sm:$0xff]
        %v6267 = vld [vmem:[#allocation2 + $0xc8] sm:$0xff]
        %v6268 = vld [vmem:[#allocation2 + $0xd0] sm:$0xff]
        %v6269 = vld [vmem:[#allocation2 + $0xd8] sm:$0xff]
        %v6270 = vld [vmem:[#allocation2 + $0xe0] sm:$0xff]
        %v6271 = vld [vmem:[#allocation2 + $0xe8] sm:$0xff]
        %v6272 = vld [vmem:[#allocation2 + $0xf0] sm:$0xff]
        %v6273 = vld [vmem:[#allocation2 + $0xf8] sm:$0xff]
        %v6274 = vld [vmem:[#allocation2 + $0x100] sm:$0xff]
        %v6275 = vld [vmem:[#allocation2 + $0x108] sm:$0xff]
        %v6276 = vld [vmem:[#allocation2 + $0x110] sm:$0xff]
        %v6277 = vld [vmem:[#allocation2 + $0x118] sm:$0xff]
        %v6278 = vld [vmem:[#allocation2 + $0x120] sm:$0xff]
        %v6279 = vld [vmem:[#allocation2 + $0x128] sm:$0xff]
        %v6280 = vld [vmem:[#allocation2 + $0x130] sm:$0xff]
        %v6281 = vld [vmem:[#allocation2 + $0x138] sm:$0xff]
        %v6282 = vld [vmem:[#allocation2 + $0x140] sm:$0xff]
        %v6283 = vld [vmem:[#allocation2 + $0x148] sm:$0xff]
        %v6284 = vld [vmem:[#allocation2 + $0x150] sm:$0xff]
        %v6285 = vld [vmem:[#allocation2 + $0x158] sm:$0xff]
        %v6286 = vld [vmem:[#allocation2 + $0x160] sm:$0xff]
        %v6287 = vld [vmem:[#allocation2 + $0x168] sm:$0xff]
        %v6288 = vld [vmem:[#allocation2 + $0x170] sm:$0xff]
        %v6289 = vld [vmem:[#allocation2 + $0x178] sm:$0xff]
        %v6290 = vld [vmem:[%s10] sm:$0xff]
        %v6291 = vld [vmem:[%s10 + $0x8] sm:$0xff]
        %v6292 = vld [vmem:[%s10 + $0x10] sm:$0xff]
        %v6293 = vld [vmem:[%s10 + $0x18] sm:$0xff]
        %v6294 = vld [vmem:[%s10 + $0x20] sm:$0xff]
        %v6295 = vld [vmem:[%s10 + $0x28] sm:$0xff]
        %v6296 = vld [vmem:[%s10 + $0x30] sm:$0xff]
        %v6297 = vld [vmem:[%s10 + $0x38] sm:$0xff]
        %v6298 = vld [vmem:[%s10 + $0x40] sm:$0xff]
        %v6299 = vld [vmem:[%s10 + $0x48] sm:$0xff]
        %v6300 = vld [vmem:[%s10 + $0x50] sm:$0xff]
        %v6301 = vld [vmem:[%s10 + $0x58] sm:$0xff]
        %s6302 = scalar_lea.vmem %s10, 96
        %v6303 = vld [vmem:[%s6302] sm:$0xff]
        %v6304 = vld [vmem:[%s6302 + $0x8] sm:$0xff]
        %v6305 = vld [vmem:[%s6302 + $0x10] sm:$0xff]
        %v6306 = vld [vmem:[%s6302 + $0x18] sm:$0xff]
        %v6307 = vld [vmem:[%s6302 + $0x20] sm:$0xff]
        %v6308 = vld [vmem:[%s6302 + $0x28] sm:$0xff]
        %v6309 = vld [vmem:[%s6302 + $0x30] sm:$0xff]
        %v6310 = vld [vmem:[%s6302 + $0x38] sm:$0xff]
        %v6311 = vld [vmem:[%s6302 + $0x40] sm:$0xff]
        %v6312 = vld [vmem:[%s6302 + $0x48] sm:$0xff]
        %v6313 = vld [vmem:[%s6302 + $0x50] sm:$0xff]
        %v6314 = vld [vmem:[%s6302 + $0x58] sm:$0xff]
        %6363 = vset.pattern.permute.xlu0 1
        %6364 = vperm.xlu0 %6363, %v6242
        %v6365 = vpop.permute.xlu0 %6364
        %6366 = vset.pattern.permute.xlu0 1
        %6367 = vperm.xlu0 %6366, %v6243
        %v6368 = vpop.permute.xlu0 %6367
        %6369 = vset.pattern.permute.xlu0 1
        %6370 = vperm.xlu0 %6369, %v6244
        %v6371 = vpop.permute.xlu0 %6370
        %6372 = vset.pattern.permute.xlu0 1
        %6373 = vperm.xlu0 %6372, %v6245
        %v6374 = vpop.permute.xlu0 %6373
        %6375 = vset.pattern.permute.xlu0 1
        %6376 = vperm.xlu0 %6375, %v6246
        %v6377 = vpop.permute.xlu0 %6376
        %6378 = vset.pattern.permute.xlu0 1
        %6379 = vperm.xlu0 %6378, %v6247
        %v6380 = vpop.permute.xlu0 %6379
        %6381 = vset.pattern.permute.xlu0 1
        %6382 = vperm.xlu0 %6381, %v6248
        %v6383 = vpop.permute.xlu0 %6382
        %6384 = vset.pattern.permute.xlu0 1
        %6385 = vperm.xlu0 %6384, %v6249
        %v6386 = vpop.permute.xlu0 %6385
        %6387 = vset.pattern.permute.xlu0 1
        %6388 = vperm.xlu0 %6387, %v6250
        %v6389 = vpop.permute.xlu0 %6388
        %6390 = vset.pattern.permute.xlu0 1
        %6391 = vperm.xlu0 %6390, %v6251
        %v6392 = vpop.permute.xlu0 %6391
        %6393 = vset.pattern.permute.xlu0 1
        %6394 = vperm.xlu0 %6393, %v6252
        %v6395 = vpop.permute.xlu0 %6394
        %6396 = vset.pattern.permute.xlu0 1
        %6397 = vperm.xlu0 %6396, %v6253
        %v6398 = vpop.permute.xlu0 %6397
        %6399 = vset.pattern.permute.xlu0 1
        %6400 = vperm.xlu0 %6399, %v6254
        %v6401 = vpop.permute.xlu0 %6400
        %6402 = vset.pattern.permute.xlu0 1
        %6403 = vperm.xlu0 %6402, %v6255
        %v6404 = vpop.permute.xlu0 %6403
        %6405 = vset.pattern.permute.xlu0 1
        %6406 = vperm.xlu0 %6405, %v6256
        %v6407 = vpop.permute.xlu0 %6406
        %6408 = vset.pattern.permute.xlu0 1
        %6409 = vperm.xlu0 %6408, %v6257
        %v6410 = vpop.permute.xlu0 %6409
        %6411 = vset.pattern.permute.xlu0 1
        %6412 = vperm.xlu0 %6411, %v6258
        %v6413 = vpop.permute.xlu0 %6412
        %6414 = vset.pattern.permute.xlu0 1
        %6415 = vperm.xlu0 %6414, %v6259
        %v6416 = vpop.permute.xlu0 %6415
        %6417 = vset.pattern.permute.xlu0 1
        %6418 = vperm.xlu0 %6417, %v6260
        %v6419 = vpop.permute.xlu0 %6418
        %6420 = vset.pattern.permute.xlu0 1
        %6421 = vperm.xlu0 %6420, %v6261
        %v6422 = vpop.permute.xlu0 %6421
        %6423 = vset.pattern.permute.xlu0 1
        %6424 = vperm.xlu0 %6423, %v6262
        %v6425 = vpop.permute.xlu0 %6424
        %6426 = vset.pattern.permute.xlu0 1
        %6427 = vperm.xlu0 %6426, %v6263
        %v6428 = vpop.permute.xlu0 %6427
        %6429 = vset.pattern.permute.xlu0 1
        %6430 = vperm.xlu0 %6429, %v6264
        %v6431 = vpop.permute.xlu0 %6430
        %6432 = vset.pattern.permute.xlu0 1
        %6433 = vperm.xlu0 %6432, %v6265
        %v6434 = vpop.permute.xlu0 %6433
        %6435 = vset.pattern.permute.xlu0 1
        %6436 = vperm.xlu0 %6435, %v6266
        %v6437 = vpop.permute.xlu0 %6436
        %6438 = vset.pattern.permute.xlu0 1
        %6439 = vperm.xlu0 %6438, %v6267
        %v6440 = vpop.permute.xlu0 %6439
        %6441 = vset.pattern.permute.xlu0 1
        %6442 = vperm.xlu0 %6441, %v6268
        %v6443 = vpop.permute.xlu0 %6442
        %6444 = vset.pattern.permute.xlu0 1
        %6445 = vperm.xlu0 %6444, %v6269
        %v6446 = vpop.permute.xlu0 %6445
        %6447 = vset.pattern.permute.xlu0 1
        %6448 = vperm.xlu0 %6447, %v6270
        %v6449 = vpop.permute.xlu0 %6448
        %6450 = vset.pattern.permute.xlu0 1
        %6451 = vperm.xlu0 %6450, %v6271
        %v6452 = vpop.permute.xlu0 %6451
        %6453 = vset.pattern.permute.xlu0 1
        %6454 = vperm.xlu0 %6453, %v6272
        %v6455 = vpop.permute.xlu0 %6454
        %6456 = vset.pattern.permute.xlu0 1
        %6457 = vperm.xlu0 %6456, %v6273
        %v6458 = vpop.permute.xlu0 %6457
        %6459 = vset.pattern.permute.xlu0 1
        %6460 = vperm.xlu0 %6459, %v6274
        %v6461 = vpop.permute.xlu0 %6460
        %6462 = vset.pattern.permute.xlu0 1
        %6463 = vperm.xlu0 %6462, %v6275
        %v6464 = vpop.permute.xlu0 %6463
        %6465 = vset.pattern.permute.xlu0 1
        %6466 = vperm.xlu0 %6465, %v6276
        %v6467 = vpop.permute.xlu0 %6466
        %6468 = vset.pattern.permute.xlu0 1
        %6469 = vperm.xlu0 %6468, %v6277
        %v6470 = vpop.permute.xlu0 %6469
        %6471 = vset.pattern.permute.xlu0 1
        %6472 = vperm.xlu0 %6471, %v6278
        %v6473 = vpop.permute.xlu0 %6472
        %6474 = vset.pattern.permute.xlu0 1
        %6475 = vperm.xlu0 %6474, %v6279
        %v6476 = vpop.permute.xlu0 %6475
        %6477 = vset.pattern.permute.xlu0 1
        %6478 = vperm.xlu0 %6477, %v6280
        %v6479 = vpop.permute.xlu0 %6478
        %6480 = vset.pattern.permute.xlu0 1
        %6481 = vperm.xlu0 %6480, %v6281
        %v6482 = vpop.permute.xlu0 %6481
        %6483 = vset.pattern.permute.xlu0 1
        %6484 = vperm.xlu0 %6483, %v6282
        %v6485 = vpop.permute.xlu0 %6484
        %6486 = vset.pattern.permute.xlu0 1
        %6487 = vperm.xlu0 %6486, %v6283
        %v6488 = vpop.permute.xlu0 %6487
        %6489 = vset.pattern.permute.xlu0 1
        %6490 = vperm.xlu0 %6489, %v6284
        %v6491 = vpop.permute.xlu0 %6490
        %6492 = vset.pattern.permute.xlu0 1
        %6493 = vperm.xlu0 %6492, %v6285
        %v6494 = vpop.permute.xlu0 %6493
        %6495 = vset.pattern.permute.xlu0 1
        %6496 = vperm.xlu0 %6495, %v6286
        %v6497 = vpop.permute.xlu0 %6496
        %6498 = vset.pattern.permute.xlu0 1
        %6499 = vperm.xlu0 %6498, %v6287
        %v6500 = vpop.permute.xlu0 %6499
        %6501 = vset.pattern.permute.xlu0 1
        %6502 = vperm.xlu0 %6501, %v6288
        %v6503 = vpop.permute.xlu0 %6502
        %6504 = vset.pattern.permute.xlu0 1
        %6505 = vperm.xlu0 %6504, %v6289
        %v6506 = vpop.permute.xlu0 %6505
        %v6507 = vlaneseq
        %v6508 = vand.u32 %v6507, 127
        %v6509 = vperm.slane %v6365, %v6508
        %v6510 = vadd.s32 %v6508, 4294967288
        %v6511 = vperm.slane %v6368, %v6510
        %vm6512 = vcmask 130112
        %v6513 = vsel %vm6512, %v6511, %v6509
        %v6514 = vadd.s32 %v6508, 4294967280
        %v6515 = vperm.slane %v6371, %v6514
        %vm6516 = vcmask 195712
        %v6517 = vsel %vm6516, %v6515, %v6513
        %v6518 = vadd.s32 %v6508, 4294967272
        %v6519 = vperm.slane %v6374, %v6518
        %vm6520 = vcmask 261312
        %v6521 = vsel %vm6520, %v6519, %v6517
        %v6522 = vadd.s32 %v6508, 4294967264
        %v6523 = vperm.slane %v6377, %v6522
        %vm6524 = vcmask 326912
        %v6525 = vsel %vm6524, %v6523, %v6521
        %v6526 = vadd.s32 %v6508, 4294967256
        %v6527 = vperm.slane %v6380, %v6526
        %vm6528 = vcmask 392512
        %v6529 = vsel %vm6528, %v6527, %v6525
        %v6530 = vperm.slane %v6383, %v6508
        %v6531 = vperm.slane %v6386, %v6510
        %v6532 = vsel %vm6512, %v6531, %v6530
        %v6533 = vperm.slane %v6389, %v6514
        %v6534 = vsel %vm6516, %v6533, %v6532
        %v6535 = vperm.slane %v6392, %v6518
        %v6536 = vsel %vm6520, %v6535, %v6534
        %v6537 = vperm.slane %v6395, %v6522
        %v6538 = vsel %vm6524, %v6537, %v6536
        %v6539 = vperm.slane %v6398, %v6526
        %v6540 = vsel %vm6528, %v6539, %v6538
        %v6541 = vperm.slane %v6401, %v6508
        %v6542 = vperm.slane %v6404, %v6510
        %v6543 = vsel %vm6512, %v6542, %v6541
        %v6544 = vperm.slane %v6407, %v6514
        %v6545 = vsel %vm6516, %v6544, %v6543
        %v6546 = vperm.slane %v6410, %v6518
        %v6547 = vsel %vm6520, %v6546, %v6545
        %v6548 = vperm.slane %v6413, %v6522
        %v6549 = vsel %vm6524, %v6548, %v6547
        %v6550 = vperm.slane %v6416, %v6526
        %v6551 = vsel %vm6528, %v6550, %v6549
        %v6552 = vperm.slane %v6419, %v6508
        %v6553 = vperm.slane %v6422, %v6510
        %v6554 = vsel %vm6512, %v6553, %v6552
        %v6555 = vperm.slane %v6425, %v6514
        %v6556 = vsel %vm6516, %v6555, %v6554
        %v6557 = vperm.slane %v6428, %v6518
        %v6558 = vsel %vm6520, %v6557, %v6556
        %v6559 = vperm.slane %v6431, %v6522
        %v6560 = vsel %vm6524, %v6559, %v6558
        %v6561 = vperm.slane %v6434, %v6526
        %v6562 = vsel %vm6528, %v6561, %v6560
        %v6563 = vperm.slane %v6437, %v6508
        %v6564 = vperm.slane %v6440, %v6510
        %v6565 = vsel %vm6512, %v6564, %v6563
        %v6566 = vperm.slane %v6443, %v6514
        %v6567 = vsel %vm6516, %v6566, %v6565
        %v6568 = vperm.slane %v6446, %v6518
        %v6569 = vsel %vm6520, %v6568, %v6567
        %v6570 = vperm.slane %v6449, %v6522
        %v6571 = vsel %vm6524, %v6570, %v6569
        %v6572 = vperm.slane %v6452, %v6526
        %v6573 = vsel %vm6528, %v6572, %v6571
        %v6574 = vperm.slane %v6455, %v6508
        %v6575 = vperm.slane %v6458, %v6510
        %v6576 = vsel %vm6512, %v6575, %v6574
        %v6577 = vperm.slane %v6461, %v6514
        %v6578 = vsel %vm6516, %v6577, %v6576
        %v6579 = vperm.slane %v6464, %v6518
        %v6580 = vsel %vm6520, %v6579, %v6578
        %v6581 = vperm.slane %v6467, %v6522
        %v6582 = vsel %vm6524, %v6581, %v6580
        %v6583 = vperm.slane %v6470, %v6526
        %v6584 = vsel %vm6528, %v6583, %v6582
        %v6585 = vperm.slane %v6473, %v6508
        %v6586 = vperm.slane %v6476, %v6510
        %v6587 = vsel %vm6512, %v6586, %v6585
        %v6588 = vperm.slane %v6479, %v6514
        %v6589 = vsel %vm6516, %v6588, %v6587
        %v6590 = vperm.slane %v6482, %v6518
        %v6591 = vsel %vm6520, %v6590, %v6589
        %v6592 = vperm.slane %v6485, %v6522
        %v6593 = vsel %vm6524, %v6592, %v6591
        %v6594 = vperm.slane %v6488, %v6526
        %v6595 = vsel %vm6528, %v6594, %v6593
        %v6596 = vperm.slane %v6491, %v6508
        %v6597 = vperm.slane %v6494, %v6510
        %v6598 = vsel %vm6512, %v6597, %v6596
        %v6599 = vperm.slane %v6497, %v6514
        %v6600 = vsel %vm6516, %v6599, %v6598
        %v6601 = vperm.slane %v6500, %v6518
        %v6602 = vsel %vm6520, %v6601, %v6600
        %v6603 = vperm.slane %v6503, %v6522
        %v6604 = vsel %vm6524, %v6603, %v6602
        %v6605 = vperm.slane %v6506, %v6526
        %v6606 = vsel %vm6528, %v6605, %v6604
        %vm6607 = vcmask 1041409
        %v6608 = vsel %vm6607, %v6540, %v6529
        %vm6609 = vcmask 1042434
        %v6610 = vsel %vm6609, %v6551, %v6608
        %vm6611 = vcmask 1043459
        %v6612 = vsel %vm6611, %v6562, %v6610
        %vm6613 = vcmask 1044484
        %v6614 = vsel %vm6613, %v6573, %v6612
        %vm6615 = vcmask 1045509
        %v6616 = vsel %vm6615, %v6584, %v6614
        %vm6617 = vcmask 1046534
        %v6618 = vsel %vm6617, %v6595, %v6616
        %vm6619 = vcmask 1047559
        %v6620 = vsel %vm6619, %v6606, %v6618
        %vm6621 = vcmask 392192
        %v6622 = vsel %vm6621, %v6620, 0
        %6624 = vmatpush.msra.mxu0 0.0
        %6625 = vmatpush.msra.mxu0 0.0
        %6626 = vmatpush.msra.mxu0 0.0
        %6627 = vmatpush.msra.mxu0 0.0
        %6628 = vmatpush.msra.mxu0 0.0
        %6629 = vmatpush.msra.mxu0 0.0
        %6630 = vmatpush.msra.mxu0 0.0
        %6631 = vmatpush.msra.mxu0 0.0
        %6632 = vmatpush.msra.mxu0 0.0
        %6633 = vmatpush.msra.mxu0 0.0
        %6634 = vmatpush.msra.mxu0 %v6313
        %6635 = vmatpush.msra.mxu0 %v6311
        %6636 = vmatpush.msra.mxu0 %v6309
        %6637 = vmatpush.msra.mxu0 %v6307
        %6638 = vmatpush.msra.mxu0 %v6305
        %6639 = vmatpush.msra.mxu0 %v6303
        %6640 = vmatmul.f32.gmra.mxu0 %v6622
        %v6641 = vpop.f32.mrf.mxu0
        %v6642 = vadd.f32 0.0, %v6641
        %6643 = vdwg.mxu0
        %6644 = vmatpush.msra.mxu0 0.0
        %6645 = vmatpush.msra.mxu0 0.0
        %6646 = vmatpush.msra.mxu0 0.0
        %6647 = vmatpush.msra.mxu0 0.0
        %6648 = vmatpush.msra.mxu0 0.0
        %6649 = vmatpush.msra.mxu0 0.0
        %6650 = vmatpush.msra.mxu0 0.0
        %6651 = vmatpush.msra.mxu0 0.0
        %6652 = vmatpush.msra.mxu0 0.0
        %6653 = vmatpush.msra.mxu0 0.0
        %6654 = vmatpush.msra.mxu0 %v6314
        %6655 = vmatpush.msra.mxu0 %v6312
        %6656 = vmatpush.msra.mxu0 %v6310
        %6657 = vmatpush.msra.mxu0 %v6308
        %6658 = vmatpush.msra.mxu0 %v6306
        %6659 = vmatpush.msra.mxu0 %v6304
        %6660 = vmatmul.f32.gmra.mxu0 %v6622
        %v6661 = vpop.f32.mrf.mxu0
        %v6662 = vadd.f32 0.0, %v6661
        %6663 = vdwg.mxu0
        %s6664 = scalar_lea.vmem %s10, 192
        %v6665 = vld [vmem:[%s6664] sm:$0xff]
        %v6666 = vld [vmem:[%s6664 + $0x8] sm:$0xff]
        %v6667 = vld [vmem:[%s6664 + $0x10] sm:$0xff]
        %v6668 = vld [vmem:[%s6664 + $0x18] sm:$0xff]
        %v6669 = vld [vmem:[%s6664 + $0x20] sm:$0xff]
        %v6670 = vld [vmem:[%s6664 + $0x28] sm:$0xff]
        %v6671 = vld [vmem:[%s6664 + $0x30] sm:$0xff]
        %v6672 = vld [vmem:[%s6664 + $0x38] sm:$0xff]
        %v6673 = vld [vmem:[%s6664 + $0x40] sm:$0xff]
        %v6674 = vld [vmem:[%s6664 + $0x48] sm:$0xff]
        %v6675 = vld [vmem:[%s6664 + $0x50] sm:$0xff]
        %v6676 = vld [vmem:[%s6664 + $0x58] sm:$0xff]
        %s6677 = scalar_lea.vmem %s10, 288
        %v6678 = vld [vmem:[%s6677] sm:$0xff]
        %v6679 = vld [vmem:[%s6677 + $0x8] sm:$0xff]
        %v6680 = vld [vmem:[%s6677 + $0x10] sm:$0xff]
        %v6681 = vld [vmem:[%s6677 + $0x18] sm:$0xff]
        %v6682 = vld [vmem:[%s6677 + $0x20] sm:$0xff]
        %v6683 = vld [vmem:[%s6677 + $0x28] sm:$0xff]
        %v6684 = vld [vmem:[%s6677 + $0x30] sm:$0xff]
        %v6685 = vld [vmem:[%s6677 + $0x38] sm:$0xff]
        %v6686 = vld [vmem:[%s6677 + $0x40] sm:$0xff]
        %v6687 = vld [vmem:[%s6677 + $0x48] sm:$0xff]
        %v6688 = vld [vmem:[%s6677 + $0x50] sm:$0xff]
        %v6689 = vld [vmem:[%s6677 + $0x58] sm:$0xff]
        %6690 = vset.pattern.permute.xlu0 3
        %6691 = vperm.xlu0 %6690, %v6242
        %v6692 = vpop.permute.xlu0 %6691
        %6693 = vset.pattern.permute.xlu0 3
        %6694 = vperm.xlu0 %6693, %v6243
        %v6695 = vpop.permute.xlu0 %6694
        %6696 = vset.pattern.permute.xlu0 3
        %6697 = vperm.xlu0 %6696, %v6244
        %v6698 = vpop.permute.xlu0 %6697
        %6699 = vset.pattern.permute.xlu0 3
        %6700 = vperm.xlu0 %6699, %v6245
        %v6701 = vpop.permute.xlu0 %6700
        %6702 = vset.pattern.permute.xlu0 3
        %6703 = vperm.xlu0 %6702, %v6246
        %v6704 = vpop.permute.xlu0 %6703
        %6705 = vset.pattern.permute.xlu0 3
        %6706 = vperm.xlu0 %6705, %v6247
        %v6707 = vpop.permute.xlu0 %6706
        %6708 = vset.pattern.permute.xlu0 3
        %6709 = vperm.xlu0 %6708, %v6248
        %v6710 = vpop.permute.xlu0 %6709
        %6711 = vset.pattern.permute.xlu0 3
        %6712 = vperm.xlu0 %6711, %v6249
        %v6713 = vpop.permute.xlu0 %6712
        %6714 = vset.pattern.permute.xlu0 3
        %6715 = vperm.xlu0 %6714, %v6250
        %v6716 = vpop.permute.xlu0 %6715
        %6717 = vset.pattern.permute.xlu0 3
        %6718 = vperm.xlu0 %6717, %v6251
        %v6719 = vpop.permute.xlu0 %6718
        %6720 = vset.pattern.permute.xlu0 3
        %6721 = vperm.xlu0 %6720, %v6252
        %v6722 = vpop.permute.xlu0 %6721
        %6723 = vset.pattern.permute.xlu0 3
        %6724 = vperm.xlu0 %6723, %v6253
        %v6725 = vpop.permute.xlu0 %6724
        %6726 = vset.pattern.permute.xlu0 3
        %6727 = vperm.xlu0 %6726, %v6254
        %v6728 = vpop.permute.xlu0 %6727
        %6729 = vset.pattern.permute.xlu0 3
        %6730 = vperm.xlu0 %6729, %v6255
        %v6731 = vpop.permute.xlu0 %6730
        %6732 = vset.pattern.permute.xlu0 3
        %6733 = vperm.xlu0 %6732, %v6256
        %v6734 = vpop.permute.xlu0 %6733
        %6735 = vset.pattern.permute.xlu0 3
        %6736 = vperm.xlu0 %6735, %v6257
        %v6737 = vpop.permute.xlu0 %6736
        %6738 = vset.pattern.permute.xlu0 3
        %6739 = vperm.xlu0 %6738, %v6258
        %v6740 = vpop.permute.xlu0 %6739
        %6741 = vset.pattern.permute.xlu0 3
        %6742 = vperm.xlu0 %6741, %v6259
        %v6743 = vpop.permute.xlu0 %6742
        %6744 = vset.pattern.permute.xlu0 3
        %6745 = vperm.xlu0 %6744, %v6260
        %v6746 = vpop.permute.xlu0 %6745
        %6747 = vset.pattern.permute.xlu0 3
        %6748 = vperm.xlu0 %6747, %v6261
        %v6749 = vpop.permute.xlu0 %6748
        %6750 = vset.pattern.permute.xlu0 3
        %6751 = vperm.xlu0 %6750, %v6262
        %v6752 = vpop.permute.xlu0 %6751
        %6753 = vset.pattern.permute.xlu0 3
        %6754 = vperm.xlu0 %6753, %v6263
        %v6755 = vpop.permute.xlu0 %6754
        %6756 = vset.pattern.permute.xlu0 3
        %6757 = vperm.xlu0 %6756, %v6264
        %v6758 = vpop.permute.xlu0 %6757
        %6759 = vset.pattern.permute.xlu0 3
        %6760 = vperm.xlu0 %6759, %v6265
        %v6761 = vpop.permute.xlu0 %6760
        %6762 = vset.pattern.permute.xlu0 3
        %6763 = vperm.xlu0 %6762, %v6266
        %v6764 = vpop.permute.xlu0 %6763
        %6765 = vset.pattern.permute.xlu0 3
        %6766 = vperm.xlu0 %6765, %v6267
        %v6767 = vpop.permute.xlu0 %6766
        %6768 = vset.pattern.permute.xlu0 3
        %6769 = vperm.xlu0 %6768, %v6268
        %v6770 = vpop.permute.xlu0 %6769
        %6771 = vset.pattern.permute.xlu0 3
        %6772 = vperm.xlu0 %6771, %v6269
        %v6773 = vpop.permute.xlu0 %6772
        %6774 = vset.pattern.permute.xlu0 3
        %6775 = vperm.xlu0 %6774, %v6270
        %v6776 = vpop.permute.xlu0 %6775
        %6777 = vset.pattern.permute.xlu0 3
        %6778 = vperm.xlu0 %6777, %v6271
        %v6779 = vpop.permute.xlu0 %6778
        %6780 = vset.pattern.permute.xlu0 3
        %6781 = vperm.xlu0 %6780, %v6272
        %v6782 = vpop.permute.xlu0 %6781
        %6783 = vset.pattern.permute.xlu0 3
        %6784 = vperm.xlu0 %6783, %v6273
        %v6785 = vpop.permute.xlu0 %6784
        %6786 = vset.pattern.permute.xlu0 3
        %6787 = vperm.xlu0 %6786, %v6274
        %v6788 = vpop.permute.xlu0 %6787
        %6789 = vset.pattern.permute.xlu0 3
        %6790 = vperm.xlu0 %6789, %v6275
        %v6791 = vpop.permute.xlu0 %6790
        %6792 = vset.pattern.permute.xlu0 3
        %6793 = vperm.xlu0 %6792, %v6276
        %v6794 = vpop.permute.xlu0 %6793
        %6795 = vset.pattern.permute.xlu0 3
        %6796 = vperm.xlu0 %6795, %v6277
        %v6797 = vpop.permute.xlu0 %6796
        %6798 = vset.pattern.permute.xlu0 3
        %6799 = vperm.xlu0 %6798, %v6278
        %v6800 = vpop.permute.xlu0 %6799
        %6801 = vset.pattern.permute.xlu0 3
        %6802 = vperm.xlu0 %6801, %v6279
        %v6803 = vpop.permute.xlu0 %6802
        %6804 = vset.pattern.permute.xlu0 3
        %6805 = vperm.xlu0 %6804, %v6280
        %v6806 = vpop.permute.xlu0 %6805
        %6807 = vset.pattern.permute.xlu0 3
        %6808 = vperm.xlu0 %6807, %v6281
        %v6809 = vpop.permute.xlu0 %6808
        %6810 = vset.pattern.permute.xlu0 3
        %6811 = vperm.xlu0 %6810, %v6282
        %v6812 = vpop.permute.xlu0 %6811
        %6813 = vset.pattern.permute.xlu0 3
        %6814 = vperm.xlu0 %6813, %v6283
        %v6815 = vpop.permute.xlu0 %6814
        %6816 = vset.pattern.permute.xlu0 3
        %6817 = vperm.xlu0 %6816, %v6284
        %v6818 = vpop.permute.xlu0 %6817
        %6819 = vset.pattern.permute.xlu0 3
        %6820 = vperm.xlu0 %6819, %v6285
        %v6821 = vpop.permute.xlu0 %6820
        %6822 = vset.pattern.permute.xlu0 3
        %6823 = vperm.xlu0 %6822, %v6286
        %v6824 = vpop.permute.xlu0 %6823
        %6825 = vset.pattern.permute.xlu0 3
        %6826 = vperm.xlu0 %6825, %v6287
        %v6827 = vpop.permute.xlu0 %6826
        %6828 = vset.pattern.permute.xlu0 3
        %6829 = vperm.xlu0 %6828, %v6288
        %v6830 = vpop.permute.xlu0 %6829
        %6831 = vset.pattern.permute.xlu0 3
        %6832 = vperm.xlu0 %6831, %v6289
        %v6833 = vpop.permute.xlu0 %6832
        %v6834 = vperm.slane %v6692, %v6508
        %v6835 = vperm.slane %v6695, %v6510
        %v6836 = vsel %vm6512, %v6835, %v6834
        %v6837 = vperm.slane %v6698, %v6514
        %v6838 = vsel %vm6516, %v6837, %v6836
        %v6839 = vperm.slane %v6701, %v6518
        %v6840 = vsel %vm6520, %v6839, %v6838
        %v6841 = vperm.slane %v6704, %v6522
        %v6842 = vsel %vm6524, %v6841, %v6840
        %v6843 = vperm.slane %v6707, %v6526
        %v6844 = vsel %vm6528, %v6843, %v6842
        %v6845 = vperm.slane %v6710, %v6508
        %v6846 = vperm.slane %v6713, %v6510
        %v6847 = vsel %vm6512, %v6846, %v6845
        %v6848 = vperm.slane %v6716, %v6514
        %v6849 = vsel %vm6516, %v6848, %v6847
        %v6850 = vperm.slane %v6719, %v6518
        %v6851 = vsel %vm6520, %v6850, %v6849
        %v6852 = vperm.slane %v6722, %v6522
        %v6853 = vsel %vm6524, %v6852, %v6851
        %v6854 = vperm.slane %v6725, %v6526
        %v6855 = vsel %vm6528, %v6854, %v6853
        %v6856 = vperm.slane %v6728, %v6508
        %v6857 = vperm.slane %v6731, %v6510
        %v6858 = vsel %vm6512, %v6857, %v6856
        %v6859 = vperm.slane %v6734, %v6514
        %v6860 = vsel %vm6516, %v6859, %v6858
        %v6861 = vperm.slane %v6737, %v6518
        %v6862 = vsel %vm6520, %v6861, %v6860
        %v6863 = vperm.slane %v6740, %v6522
        %v6864 = vsel %vm6524, %v6863, %v6862
        %v6865 = vperm.slane %v6743, %v6526
        %v6866 = vsel %vm6528, %v6865, %v6864
        %v6867 = vperm.slane %v6746, %v6508
        %v6868 = vperm.slane %v6749, %v6510
        %v6869 = vsel %vm6512, %v6868, %v6867
        %v6870 = vperm.slane %v6752, %v6514
        %v6871 = vsel %vm6516, %v6870, %v6869
        %v6872 = vperm.slane %v6755, %v6518
        %v6873 = vsel %vm6520, %v6872, %v6871
        %v6874 = vperm.slane %v6758, %v6522
        %v6875 = vsel %vm6524, %v6874, %v6873
        %v6876 = vperm.slane %v6761, %v6526
        %v6877 = vsel %vm6528, %v6876, %v6875
        %v6878 = vperm.slane %v6764, %v6508
        %v6879 = vperm.slane %v6767, %v6510
        %v6880 = vsel %vm6512, %v6879, %v6878
        %v6881 = vperm.slane %v6770, %v6514
        %v6882 = vsel %vm6516, %v6881, %v6880
        %v6883 = vperm.slane %v6773, %v6518
        %v6884 = vsel %vm6520, %v6883, %v6882
        %v6885 = vperm.slane %v6776, %v6522
        %v6886 = vsel %vm6524, %v6885, %v6884
        %v6887 = vperm.slane %v6779, %v6526
        %v6888 = vsel %vm6528, %v6887, %v6886
        %v6889 = vperm.slane %v6782, %v6508
        %v6890 = vperm.slane %v6785, %v6510
        %v6891 = vsel %vm6512, %v6890, %v6889
        %v6892 = vperm.slane %v6788, %v6514
        %v6893 = vsel %vm6516, %v6892, %v6891
        %v6894 = vperm.slane %v6791, %v6518
        %v6895 = vsel %vm6520, %v6894, %v6893
        %v6896 = vperm.slane %v6794, %v6522
        %v6897 = vsel %vm6524, %v6896, %v6895
        %v6898 = vperm.slane %v6797, %v6526
        %v6899 = vsel %vm6528, %v6898, %v6897
        %v6900 = vperm.slane %v6800, %v6508
        %v6901 = vperm.slane %v6803, %v6510
        %v6902 = vsel %vm6512, %v6901, %v6900
        %v6903 = vperm.slane %v6806, %v6514
        %v6904 = vsel %vm6516, %v6903, %v6902
        %v6905 = vperm.slane %v6809, %v6518
        %v6906 = vsel %vm6520, %v6905, %v6904
        %v6907 = vperm.slane %v6812, %v6522
        %v6908 = vsel %vm6524, %v6907, %v6906
        %v6909 = vperm.slane %v6815, %v6526
        %v6910 = vsel %vm6528, %v6909, %v6908
        %v6911 = vperm.slane %v6818, %v6508
        %v6912 = vperm.slane %v6821, %v6510
        %v6913 = vsel %vm6512, %v6912, %v6911
        %v6914 = vperm.slane %v6824, %v6514
        %v6915 = vsel %vm6516, %v6914, %v6913
        %v6916 = vperm.slane %v6827, %v6518
        %v6917 = vsel %vm6520, %v6916, %v6915
        %v6918 = vperm.slane %v6830, %v6522
        %v6919 = vsel %vm6524, %v6918, %v6917
        %v6920 = vperm.slane %v6833, %v6526
        %v6921 = vsel %vm6528, %v6920, %v6919
        %v6922 = vsel %vm6607, %v6855, %v6844
        %v6923 = vsel %vm6609, %v6866, %v6922
        %v6924 = vsel %vm6611, %v6877, %v6923
        %v6925 = vsel %vm6613, %v6888, %v6924
        %v6926 = vsel %vm6615, %v6899, %v6925
        %v6927 = vsel %vm6617, %v6910, %v6926
        %v6928 = vsel %vm6619, %v6921, %v6927
        %v6929 = vsel %vm6621, %v6928, 0
        %6931 = vmatpush.msra.mxu0 0.0
        %6932 = vmatpush.msra.mxu0 0.0
        %6933 = vmatpush.msra.mxu0 0.0
        %6934 = vmatpush.msra.mxu0 0.0
        %6935 = vmatpush.msra.mxu0 0.0
        %6936 = vmatpush.msra.mxu0 0.0
        %6937 = vmatpush.msra.mxu0 0.0
        %6938 = vmatpush.msra.mxu0 0.0
        %6939 = vmatpush.msra.mxu0 0.0
        %6940 = vmatpush.msra.mxu0 0.0
        %6941 = vmatpush.msra.mxu0 %v6688
        %6942 = vmatpush.msra.mxu0 %v6686
        %6943 = vmatpush.msra.mxu0 %v6684
        %6944 = vmatpush.msra.mxu0 %v6682
        %6945 = vmatpush.msra.mxu0 %v6680
        %6946 = vmatpush.msra.mxu0 %v6678
        %6947 = vmatmul.f32.gmra.mxu0 %v6929
        %v6948 = vpop.f32.mrf.mxu0
        %v6949 = vadd.f32 0.0, %v6948
        %6950 = vdwg.mxu0
        %6951 = vmatpush.msra.mxu0 0.0
        %6952 = vmatpush.msra.mxu0 0.0
        %6953 = vmatpush.msra.mxu0 0.0
        %6954 = vmatpush.msra.mxu0 0.0
        %6955 = vmatpush.msra.mxu0 0.0
        %6956 = vmatpush.msra.mxu0 0.0
        %6957 = vmatpush.msra.mxu0 0.0
        %6958 = vmatpush.msra.mxu0 0.0
        %6959 = vmatpush.msra.mxu0 0.0
        %6960 = vmatpush.msra.mxu0 0.0
        %6961 = vmatpush.msra.mxu0 %v6689
        %6962 = vmatpush.msra.mxu0 %v6687
        %6963 = vmatpush.msra.mxu0 %v6685
        %6964 = vmatpush.msra.mxu0 %v6683
        %6965 = vmatpush.msra.mxu0 %v6681
        %6966 = vmatpush.msra.mxu0 %v6679
        %6967 = vmatmul.f32.gmra.mxu0 %v6929
        %v6968 = vpop.f32.mrf.mxu0
        %v6969 = vadd.f32 0.0, %v6968
        %6970 = vdwg.mxu0
        %s6971 = scalar_lea.vmem %s10, 384
        %v6972 = vld [vmem:[%s6971] sm:$0xff]
        %v6973 = vld [vmem:[%s6971 + $0x8] sm:$0xff]
        %v6974 = vld [vmem:[%s6971 + $0x10] sm:$0xff]
        %v6975 = vld [vmem:[%s6971 + $0x18] sm:$0xff]
        %v6976 = vld [vmem:[%s6971 + $0x20] sm:$0xff]
        %v6977 = vld [vmem:[%s6971 + $0x28] sm:$0xff]
        %v6978 = vld [vmem:[%s6971 + $0x30] sm:$0xff]
        %v6979 = vld [vmem:[%s6971 + $0x38] sm:$0xff]
        %v6980 = vld [vmem:[%s6971 + $0x40] sm:$0xff]
        %v6981 = vld [vmem:[%s6971 + $0x48] sm:$0xff]
        %v6982 = vld [vmem:[%s6971 + $0x50] sm:$0xff]
        %v6983 = vld [vmem:[%s6971 + $0x58] sm:$0xff]
        %s6984 = scalar_lea.vmem %s10, 480
        %v6985 = vld [vmem:[%s6984] sm:$0xff]
        %v6986 = vld [vmem:[%s6984 + $0x8] sm:$0xff]
        %v6987 = vld [vmem:[%s6984 + $0x10] sm:$0xff]
        %v6988 = vld [vmem:[%s6984 + $0x18] sm:$0xff]
        %v6989 = vld [vmem:[%s6984 + $0x20] sm:$0xff]
        %v6990 = vld [vmem:[%s6984 + $0x28] sm:$0xff]
        %v6991 = vld [vmem:[%s6984 + $0x30] sm:$0xff]
        %v6992 = vld [vmem:[%s6984 + $0x38] sm:$0xff]
        %v6993 = vld [vmem:[%s6984 + $0x40] sm:$0xff]
        %v6994 = vld [vmem:[%s6984 + $0x48] sm:$0xff]
        %v6995 = vld [vmem:[%s6984 + $0x50] sm:$0xff]
        %v6996 = vld [vmem:[%s6984 + $0x58] sm:$0xff]
        %6997 = vset.pattern.permute.xlu0 5
        %6998 = vperm.xlu0 %6997, %v6242
        %v6999 = vpop.permute.xlu0 %6998
        %7000 = vset.pattern.permute.xlu0 5
        %7001 = vperm.xlu0 %7000, %v6243
        %v7002 = vpop.permute.xlu0 %7001
        %7003 = vset.pattern.permute.xlu0 5
        %7004 = vperm.xlu0 %7003, %v6244
        %v7005 = vpop.permute.xlu0 %7004
        %7006 = vset.pattern.permute.xlu0 5
        %7007 = vperm.xlu0 %7006, %v6245
        %v7008 = vpop.permute.xlu0 %7007
        %7009 = vset.pattern.permute.xlu0 5
        %7010 = vperm.xlu0 %7009, %v6246
        %v7011 = vpop.permute.xlu0 %7010
        %7012 = vset.pattern.permute.xlu0 5
        %7013 = vperm.xlu0 %7012, %v6247
        %v7014 = vpop.permute.xlu0 %7013
        %7015 = vset.pattern.permute.xlu0 5
        %7016 = vperm.xlu0 %7015, %v6248
        %v7017 = vpop.permute.xlu0 %7016
        %7018 = vset.pattern.permute.xlu0 5
        %7019 = vperm.xlu0 %7018, %v6249
        %v7020 = vpop.permute.xlu0 %7019
        %7021 = vset.pattern.permute.xlu0 5
        %7022 = vperm.xlu0 %7021, %v6250
        %v7023 = vpop.permute.xlu0 %7022
        %7024 = vset.pattern.permute.xlu0 5
        %7025 = vperm.xlu0 %7024, %v6251
        %v7026 = vpop.permute.xlu0 %7025
        %7027 = vset.pattern.permute.xlu0 5
        %7028 = vperm.xlu0 %7027, %v6252
        %v7029 = vpop.permute.xlu0 %7028
        %7030 = vset.pattern.permute.xlu0 5
        %7031 = vperm.xlu0 %7030, %v6253
        %v7032 = vpop.permute.xlu0 %7031
        %7033 = vset.pattern.permute.xlu0 5
        %7034 = vperm.xlu0 %7033, %v6254
        %v7035 = vpop.permute.xlu0 %7034
        %7036 = vset.pattern.permute.xlu0 5
        %7037 = vperm.xlu0 %7036, %v6255
        %v7038 = vpop.permute.xlu0 %7037
        %7039 = vset.pattern.permute.xlu0 5
        %7040 = vperm.xlu0 %7039, %v6256
        %v7041 = vpop.permute.xlu0 %7040
        %7042 = vset.pattern.permute.xlu0 5
        %7043 = vperm.xlu0 %7042, %v6257
        %v7044 = vpop.permute.xlu0 %7043
        %7045 = vset.pattern.permute.xlu0 5
        %7046 = vperm.xlu0 %7045, %v6258
        %v7047 = vpop.permute.xlu0 %7046
        %7048 = vset.pattern.permute.xlu0 5
        %7049 = vperm.xlu0 %7048, %v6259
        %v7050 = vpop.permute.xlu0 %7049
        %7051 = vset.pattern.permute.xlu0 5
        %7052 = vperm.xlu0 %7051, %v6260
        %v7053 = vpop.permute.xlu0 %7052
        %7054 = vset.pattern.permute.xlu0 5
        %7055 = vperm.xlu0 %7054, %v6261
        %v7056 = vpop.permute.xlu0 %7055
        %7057 = vset.pattern.permute.xlu0 5
        %7058 = vperm.xlu0 %7057, %v6262
        %v7059 = vpop.permute.xlu0 %7058
        %7060 = vset.pattern.permute.xlu0 5
        %7061 = vperm.xlu0 %7060, %v6263
        %v7062 = vpop.permute.xlu0 %7061
        %7063 = vset.pattern.permute.xlu0 5
        %7064 = vperm.xlu0 %7063, %v6264
        %v7065 = vpop.permute.xlu0 %7064
        %7066 = vset.pattern.permute.xlu0 5
        %7067 = vperm.xlu0 %7066, %v6265
        %v7068 = vpop.permute.xlu0 %7067
        %7069 = vset.pattern.permute.xlu0 5
        %7070 = vperm.xlu0 %7069, %v6266
        %v7071 = vpop.permute.xlu0 %7070
        %7072 = vset.pattern.permute.xlu0 5
        %7073 = vperm.xlu0 %7072, %v6267
        %v7074 = vpop.permute.xlu0 %7073
        %7075 = vset.pattern.permute.xlu0 5
        %7076 = vperm.xlu0 %7075, %v6268
        %v7077 = vpop.permute.xlu0 %7076
        %7078 = vset.pattern.permute.xlu0 5
        %7079 = vperm.xlu0 %7078, %v6269
        %v7080 = vpop.permute.xlu0 %7079
        %7081 = vset.pattern.permute.xlu0 5
        %7082 = vperm.xlu0 %7081, %v6270
        %v7083 = vpop.permute.xlu0 %7082
        %7084 = vset.pattern.permute.xlu0 5
        %7085 = vperm.xlu0 %7084, %v6271
        %v7086 = vpop.permute.xlu0 %7085
        %7087 = vset.pattern.permute.xlu0 5
        %7088 = vperm.xlu0 %7087, %v6272
        %v7089 = vpop.permute.xlu0 %7088
        %7090 = vset.pattern.permute.xlu0 5
        %7091 = vperm.xlu0 %7090, %v6273
        %v7092 = vpop.permute.xlu0 %7091
        %7093 = vset.pattern.permute.xlu0 5
        %7094 = vperm.xlu0 %7093, %v6274
        %v7095 = vpop.permute.xlu0 %7094
        %7096 = vset.pattern.permute.xlu0 5
        %7097 = vperm.xlu0 %7096, %v6275
        %v7098 = vpop.permute.xlu0 %7097
        %7099 = vset.pattern.permute.xlu0 5
        %7100 = vperm.xlu0 %7099, %v6276
        %v7101 = vpop.permute.xlu0 %7100
        %7102 = vset.pattern.permute.xlu0 5
        %7103 = vperm.xlu0 %7102, %v6277
        %v7104 = vpop.permute.xlu0 %7103
        %7105 = vset.pattern.permute.xlu0 5
        %7106 = vperm.xlu0 %7105, %v6278
        %v7107 = vpop.permute.xlu0 %7106
        %7108 = vset.pattern.permute.xlu0 5
        %7109 = vperm.xlu0 %7108, %v6279
        %v7110 = vpop.permute.xlu0 %7109
        %7111 = vset.pattern.permute.xlu0 5
        %7112 = vperm.xlu0 %7111, %v6280
        %v7113 = vpop.permute.xlu0 %7112
        %7114 = vset.pattern.permute.xlu0 5
        %7115 = vperm.xlu0 %7114, %v6281
        %v7116 = vpop.permute.xlu0 %7115
        %7117 = vset.pattern.permute.xlu0 5
        %7118 = vperm.xlu0 %7117, %v6282
        %v7119 = vpop.permute.xlu0 %7118
        %7120 = vset.pattern.permute.xlu0 5
        %7121 = vperm.xlu0 %7120, %v6283
        %v7122 = vpop.permute.xlu0 %7121
        %7123 = vset.pattern.permute.xlu0 5
        %7124 = vperm.xlu0 %7123, %v6284
        %v7125 = vpop.permute.xlu0 %7124
        %7126 = vset.pattern.permute.xlu0 5
        %7127 = vperm.xlu0 %7126, %v6285
        %v7128 = vpop.permute.xlu0 %7127
        %7129 = vset.pattern.permute.xlu0 5
        %7130 = vperm.xlu0 %7129, %v6286
        %v7131 = vpop.permute.xlu0 %7130
        %7132 = vset.pattern.permute.xlu0 5
        %7133 = vperm.xlu0 %7132, %v6287
        %v7134 = vpop.permute.xlu0 %7133
        %7135 = vset.pattern.permute.xlu0 5
        %7136 = vperm.xlu0 %7135, %v6288
        %v7137 = vpop.permute.xlu0 %7136
        %7138 = vset.pattern.permute.xlu0 5
        %7139 = vperm.xlu0 %7138, %v6289
        %v7140 = vpop.permute.xlu0 %7139
        %v7141 = vperm.slane %v6999, %v6508
        %v7142 = vperm.slane %v7002, %v6510
        %v7143 = vsel %vm6512, %v7142, %v7141
        %v7144 = vperm.slane %v7005, %v6514
        %v7145 = vsel %vm6516, %v7144, %v7143
        %v7146 = vperm.slane %v7008, %v6518
        %v7147 = vsel %vm6520, %v7146, %v7145
        %v7148 = vperm.slane %v7011, %v6522
        %v7149 = vsel %vm6524, %v7148, %v7147
        %v7150 = vperm.slane %v7014, %v6526
        %v7151 = vsel %vm6528, %v7150, %v7149
        %v7152 = vperm.slane %v7017, %v6508
        %v7153 = vperm.slane %v7020, %v6510
        %v7154 = vsel %vm6512, %v7153, %v7152
        %v7155 = vperm.slane %v7023, %v6514
        %v7156 = vsel %vm6516, %v7155, %v7154
        %v7157 = vperm.slane %v7026, %v6518
        %v7158 = vsel %vm6520, %v7157, %v7156
        %v7159 = vperm.slane %v7029, %v6522
        %v7160 = vsel %vm6524, %v7159, %v7158
        %v7161 = vperm.slane %v7032, %v6526
        %v7162 = vsel %vm6528, %v7161, %v7160
        %v7163 = vperm.slane %v7035, %v6508
        %v7164 = vperm.slane %v7038, %v6510
        %v7165 = vsel %vm6512, %v7164, %v7163
        %v7166 = vperm.slane %v7041, %v6514
        %v7167 = vsel %vm6516, %v7166, %v7165
        %v7168 = vperm.slane %v7044, %v6518
        %v7169 = vsel %vm6520, %v7168, %v7167
        %v7170 = vperm.slane %v7047, %v6522
        %v7171 = vsel %vm6524, %v7170, %v7169
        %v7172 = vperm.slane %v7050, %v6526
        %v7173 = vsel %vm6528, %v7172, %v7171
        %v7174 = vperm.slane %v7053, %v6508
        %v7175 = vperm.slane %v7056, %v6510
        %v7176 = vsel %vm6512, %v7175, %v7174
        %v7177 = vperm.slane %v7059, %v6514
        %v7178 = vsel %vm6516, %v7177, %v7176
        %v7179 = vperm.slane %v7062, %v6518
        %v7180 = vsel %vm6520, %v7179, %v7178
        %v7181 = vperm.slane %v7065, %v6522
        %v7182 = vsel %vm6524, %v7181, %v7180
        %v7183 = vperm.slane %v7068, %v6526
        %v7184 = vsel %vm6528, %v7183, %v7182
        %v7185 = vperm.slane %v7071, %v6508
        %v7186 = vperm.slane %v7074, %v6510
        %v7187 = vsel %vm6512, %v7186, %v7185
        %v7188 = vperm.slane %v7077, %v6514
        %v7189 = vsel %vm6516, %v7188, %v7187
        %v7190 = vperm.slane %v7080, %v6518
        %v7191 = vsel %vm6520, %v7190, %v7189
        %v7192 = vperm.slane %v7083, %v6522
        %v7193 = vsel %vm6524, %v7192, %v7191
        %v7194 = vperm.slane %v7086, %v6526
        %v7195 = vsel %vm6528, %v7194, %v7193
        %v7196 = vperm.slane %v7089, %v6508
        %v7197 = vperm.slane %v7092, %v6510
        %v7198 = vsel %vm6512, %v7197, %v7196
        %v7199 = vperm.slane %v7095, %v6514
        %v7200 = vsel %vm6516, %v7199, %v7198
        %v7201 = vperm.slane %v7098, %v6518
        %v7202 = vsel %vm6520, %v7201, %v7200
        %v7203 = vperm.slane %v7101, %v6522
        %v7204 = vsel %vm6524, %v7203, %v7202
        %v7205 = vperm.slane %v7104, %v6526
        %v7206 = vsel %vm6528, %v7205, %v7204
        %v7207 = vperm.slane %v7107, %v6508
        %v7208 = vperm.slane %v7110, %v6510
        %v7209 = vsel %vm6512, %v7208, %v7207
        %v7210 = vperm.slane %v7113, %v6514
        %v7211 = vsel %vm6516, %v7210, %v7209
        %v7212 = vperm.slane %v7116, %v6518
        %v7213 = vsel %vm6520, %v7212, %v7211
        %v7214 = vperm.slane %v7119, %v6522
        %v7215 = vsel %vm6524, %v7214, %v7213
        %v7216 = vperm.slane %v7122, %v6526
        %v7217 = vsel %vm6528, %v7216, %v7215
        %v7218 = vperm.slane %v7125, %v6508
        %v7219 = vperm.slane %v7128, %v6510
        %v7220 = vsel %vm6512, %v7219, %v7218
        %v7221 = vperm.slane %v7131, %v6514
        %v7222 = vsel %vm6516, %v7221, %v7220
        %v7223 = vperm.slane %v7134, %v6518
        %v7224 = vsel %vm6520, %v7223, %v7222
        %v7225 = vperm.slane %v7137, %v6522
        %v7226 = vsel %vm6524, %v7225, %v7224
        %v7227 = vperm.slane %v7140, %v6526
        %v7228 = vsel %vm6528, %v7227, %v7226
        %v7229 = vsel %vm6607, %v7162, %v7151
        %v7230 = vsel %vm6609, %v7173, %v7229
        %v7231 = vsel %vm6611, %v7184, %v7230
        %v7232 = vsel %vm6613, %v7195, %v7231
        %v7233 = vsel %vm6615, %v7206, %v7232
        %v7234 = vsel %vm6617, %v7217, %v7233
        %v7235 = vsel %vm6619, %v7228, %v7234
        %v7236 = vsel %vm6621, %v7235, 0
        %7238 = vmatpush.msra.mxu0 0.0
        %7239 = vmatpush.msra.mxu0 0.0
        %7240 = vmatpush.msra.mxu0 0.0
        %7241 = vmatpush.msra.mxu0 0.0
        %7242 = vmatpush.msra.mxu0 0.0
        %7243 = vmatpush.msra.mxu0 0.0
        %7244 = vmatpush.msra.mxu0 0.0
        %7245 = vmatpush.msra.mxu0 0.0
        %7246 = vmatpush.msra.mxu0 0.0
        %7247 = vmatpush.msra.mxu0 0.0
        %7248 = vmatpush.msra.mxu0 %v6995
        %7249 = vmatpush.msra.mxu0 %v6993
        %7250 = vmatpush.msra.mxu0 %v6991
        %7251 = vmatpush.msra.mxu0 %v6989
        %7252 = vmatpush.msra.mxu0 %v6987
        %7253 = vmatpush.msra.mxu0 %v6985
        %7254 = vmatmul.f32.gmra.mxu0 %v7236
        %v7255 = vpop.f32.mrf.mxu0
        %v7256 = vadd.f32 0.0, %v7255
        %7257 = vdwg.mxu0
        %7258 = vmatpush.msra.mxu0 0.0
        %7259 = vmatpush.msra.mxu0 0.0
        %7260 = vmatpush.msra.mxu0 0.0
        %7261 = vmatpush.msra.mxu0 0.0
        %7262 = vmatpush.msra.mxu0 0.0
        %7263 = vmatpush.msra.mxu0 0.0
        %7264 = vmatpush.msra.mxu0 0.0
        %7265 = vmatpush.msra.mxu0 0.0
        %7266 = vmatpush.msra.mxu0 0.0
        %7267 = vmatpush.msra.mxu0 0.0
        %7268 = vmatpush.msra.mxu0 %v6996
        %7269 = vmatpush.msra.mxu0 %v6994
        %7270 = vmatpush.msra.mxu0 %v6992
        %7271 = vmatpush.msra.mxu0 %v6990
        %7272 = vmatpush.msra.mxu0 %v6988
        %7273 = vmatpush.msra.mxu0 %v6986
        %7274 = vmatmul.f32.gmra.mxu0 %v7236
        %v7275 = vpop.f32.mrf.mxu0
        %v7276 = vadd.f32 0.0, %v7275
        %7277 = vdwg.mxu0
        %s7278 = scalar_lea.vmem %s10, 576
        %v7279 = vld [vmem:[%s7278] sm:$0xff]
        %v7280 = vld [vmem:[%s7278 + $0x8] sm:$0xff]
        %v7281 = vld [vmem:[%s7278 + $0x10] sm:$0xff]
        %v7282 = vld [vmem:[%s7278 + $0x18] sm:$0xff]
        %v7283 = vld [vmem:[%s7278 + $0x20] sm:$0xff]
        %v7284 = vld [vmem:[%s7278 + $0x28] sm:$0xff]
        %v7285 = vld [vmem:[%s7278 + $0x30] sm:$0xff]
        %v7286 = vld [vmem:[%s7278 + $0x38] sm:$0xff]
        %v7287 = vld [vmem:[%s7278 + $0x40] sm:$0xff]
        %v7288 = vld [vmem:[%s7278 + $0x48] sm:$0xff]
        %v7289 = vld [vmem:[%s7278 + $0x50] sm:$0xff]
        %v7290 = vld [vmem:[%s7278 + $0x58] sm:$0xff]
        %s7291 = scalar_lea.vmem %s10, 672
        %v7292 = vld [vmem:[%s7291] sm:$0xff]
        %v7293 = vld [vmem:[%s7291 + $0x8] sm:$0xff]
        %v7294 = vld [vmem:[%s7291 + $0x10] sm:$0xff]
        %v7295 = vld [vmem:[%s7291 + $0x18] sm:$0xff]
        %v7296 = vld [vmem:[%s7291 + $0x20] sm:$0xff]
        %v7297 = vld [vmem:[%s7291 + $0x28] sm:$0xff]
        %v7298 = vld [vmem:[%s7291 + $0x30] sm:$0xff]
        %v7299 = vld [vmem:[%s7291 + $0x38] sm:$0xff]
        %v7300 = vld [vmem:[%s7291 + $0x40] sm:$0xff]
        %v7301 = vld [vmem:[%s7291 + $0x48] sm:$0xff]
        %v7302 = vld [vmem:[%s7291 + $0x50] sm:$0xff]
        %v7303 = vld [vmem:[%s7291 + $0x58] sm:$0xff]
        %7304 = vset.pattern.permute.xlu0 7
        %7305 = vperm.xlu0 %7304, %v6242
        %v7306 = vpop.permute.xlu0 %7305
        %7307 = vset.pattern.permute.xlu0 7
        %7308 = vperm.xlu0 %7307, %v6243
        %v7309 = vpop.permute.xlu0 %7308
        %7310 = vset.pattern.permute.xlu0 7
        %7311 = vperm.xlu0 %7310, %v6244
        %v7312 = vpop.permute.xlu0 %7311
        %7313 = vset.pattern.permute.xlu0 7
        %7314 = vperm.xlu0 %7313, %v6245
        %v7315 = vpop.permute.xlu0 %7314
        %7316 = vset.pattern.permute.xlu0 7
        %7317 = vperm.xlu0 %7316, %v6246
        %v7318 = vpop.permute.xlu0 %7317
        %7319 = vset.pattern.permute.xlu0 7
        %7320 = vperm.xlu0 %7319, %v6247
        %v7321 = vpop.permute.xlu0 %7320
        %7322 = vset.pattern.permute.xlu0 7
        %7323 = vperm.xlu0 %7322, %v6248
        %v7324 = vpop.permute.xlu0 %7323
        %7325 = vset.pattern.permute.xlu0 7
        %7326 = vperm.xlu0 %7325, %v6249
        %v7327 = vpop.permute.xlu0 %7326
        %7328 = vset.pattern.permute.xlu0 7
        %7329 = vperm.xlu0 %7328, %v6250
        %v7330 = vpop.permute.xlu0 %7329
        %7331 = vset.pattern.permute.xlu0 7
        %7332 = vperm.xlu0 %7331, %v6251
        %v7333 = vpop.permute.xlu0 %7332
        %7334 = vset.pattern.permute.xlu0 7
        %7335 = vperm.xlu0 %7334, %v6252
        %v7336 = vpop.permute.xlu0 %7335
        %7337 = vset.pattern.permute.xlu0 7
        %7338 = vperm.xlu0 %7337, %v6253
        %v7339 = vpop.permute.xlu0 %7338
        %7340 = vset.pattern.permute.xlu0 7
        %7341 = vperm.xlu0 %7340, %v6254
        %v7342 = vpop.permute.xlu0 %7341
        %7343 = vset.pattern.permute.xlu0 7
        %7344 = vperm.xlu0 %7343, %v6255
        %v7345 = vpop.permute.xlu0 %7344
        %7346 = vset.pattern.permute.xlu0 7
        %7347 = vperm.xlu0 %7346, %v6256
        %v7348 = vpop.permute.xlu0 %7347
        %7349 = vset.pattern.permute.xlu0 7
        %7350 = vperm.xlu0 %7349, %v6257
        %v7351 = vpop.permute.xlu0 %7350
        %7352 = vset.pattern.permute.xlu0 7
        %7353 = vperm.xlu0 %7352, %v6258
        %v7354 = vpop.permute.xlu0 %7353
        %7355 = vset.pattern.permute.xlu0 7
        %7356 = vperm.xlu0 %7355, %v6259
        %v7357 = vpop.permute.xlu0 %7356
        %7358 = vset.pattern.permute.xlu0 7
        %7359 = vperm.xlu0 %7358, %v6260
        %v7360 = vpop.permute.xlu0 %7359
        %7361 = vset.pattern.permute.xlu0 7
        %7362 = vperm.xlu0 %7361, %v6261
        %v7363 = vpop.permute.xlu0 %7362
        %7364 = vset.pattern.permute.xlu0 7
        %7365 = vperm.xlu0 %7364, %v6262
        %v7366 = vpop.permute.xlu0 %7365
        %7367 = vset.pattern.permute.xlu0 7
        %7368 = vperm.xlu0 %7367, %v6263
        %v7369 = vpop.permute.xlu0 %7368
        %7370 = vset.pattern.permute.xlu0 7
        %7371 = vperm.xlu0 %7370, %v6264
        %v7372 = vpop.permute.xlu0 %7371
        %7373 = vset.pattern.permute.xlu0 7
        %7374 = vperm.xlu0 %7373, %v6265
        %v7375 = vpop.permute.xlu0 %7374
        %7376 = vset.pattern.permute.xlu0 7
        %7377 = vperm.xlu0 %7376, %v6266
        %v7378 = vpop.permute.xlu0 %7377
        %7379 = vset.pattern.permute.xlu0 7
        %7380 = vperm.xlu0 %7379, %v6267
        %v7381 = vpop.permute.xlu0 %7380
        %7382 = vset.pattern.permute.xlu0 7
        %7383 = vperm.xlu0 %7382, %v6268
        %v7384 = vpop.permute.xlu0 %7383
        %7385 = vset.pattern.permute.xlu0 7
        %7386 = vperm.xlu0 %7385, %v6269
        %v7387 = vpop.permute.xlu0 %7386
        %7388 = vset.pattern.permute.xlu0 7
        %7389 = vperm.xlu0 %7388, %v6270
        %v7390 = vpop.permute.xlu0 %7389
        %7391 = vset.pattern.permute.xlu0 7
        %7392 = vperm.xlu0 %7391, %v6271
        %v7393 = vpop.permute.xlu0 %7392
        %7394 = vset.pattern.permute.xlu0 7
        %7395 = vperm.xlu0 %7394, %v6272
        %v7396 = vpop.permute.xlu0 %7395
        %7397 = vset.pattern.permute.xlu0 7
        %7398 = vperm.xlu0 %7397, %v6273
        %v7399 = vpop.permute.xlu0 %7398
        %7400 = vset.pattern.permute.xlu0 7
        %7401 = vperm.xlu0 %7400, %v6274
        %v7402 = vpop.permute.xlu0 %7401
        %7403 = vset.pattern.permute.xlu0 7
        %7404 = vperm.xlu0 %7403, %v6275
        %v7405 = vpop.permute.xlu0 %7404
        %7406 = vset.pattern.permute.xlu0 7
        %7407 = vperm.xlu0 %7406, %v6276
        %v7408 = vpop.permute.xlu0 %7407
        %7409 = vset.pattern.permute.xlu0 7
        %7410 = vperm.xlu0 %7409, %v6277
        %v7411 = vpop.permute.xlu0 %7410
        %7412 = vset.pattern.permute.xlu0 7
        %7413 = vperm.xlu0 %7412, %v6278
        %v7414 = vpop.permute.xlu0 %7413
        %7415 = vset.pattern.permute.xlu0 7
        %7416 = vperm.xlu0 %7415, %v6279
        %v7417 = vpop.permute.xlu0 %7416
        %7418 = vset.pattern.permute.xlu0 7
        %7419 = vperm.xlu0 %7418, %v6280
        %v7420 = vpop.permute.xlu0 %7419
        %7421 = vset.pattern.permute.xlu0 7
        %7422 = vperm.xlu0 %7421, %v6281
        %v7423 = vpop.permute.xlu0 %7422
        %7424 = vset.pattern.permute.xlu0 7
        %7425 = vperm.xlu0 %7424, %v6282
        %v7426 = vpop.permute.xlu0 %7425
        %7427 = vset.pattern.permute.xlu0 7
        %7428 = vperm.xlu0 %7427, %v6283
        %v7429 = vpop.permute.xlu0 %7428
        %7430 = vset.pattern.permute.xlu0 7
        %7431 = vperm.xlu0 %7430, %v6284
        %v7432 = vpop.permute.xlu0 %7431
        %7433 = vset.pattern.permute.xlu0 7
        %7434 = vperm.xlu0 %7433, %v6285
        %v7435 = vpop.permute.xlu0 %7434
        %7436 = vset.pattern.permute.xlu0 7
        %7437 = vperm.xlu0 %7436, %v6286
        %v7438 = vpop.permute.xlu0 %7437
        %7439 = vset.pattern.permute.xlu0 7
        %7440 = vperm.xlu0 %7439, %v6287
        %v7441 = vpop.permute.xlu0 %7440
        %7442 = vset.pattern.permute.xlu0 7
        %7443 = vperm.xlu0 %7442, %v6288
        %v7444 = vpop.permute.xlu0 %7443
        %7445 = vset.pattern.permute.xlu0 7
        %7446 = vperm.xlu0 %7445, %v6289
        %v7447 = vpop.permute.xlu0 %7446
        %v7448 = vperm.slane %v7306, %v6508
        %v7449 = vperm.slane %v7309, %v6510
        %v7450 = vsel %vm6512, %v7449, %v7448
        %v7451 = vperm.slane %v7312, %v6514
        %v7452 = vsel %vm6516, %v7451, %v7450
        %v7453 = vperm.slane %v7315, %v6518
        %v7454 = vsel %vm6520, %v7453, %v7452
        %v7455 = vperm.slane %v7318, %v6522
        %v7456 = vsel %vm6524, %v7455, %v7454
        %v7457 = vperm.slane %v7321, %v6526
        %v7458 = vsel %vm6528, %v7457, %v7456
        %v7459 = vperm.slane %v7324, %v6508
        %v7460 = vperm.slane %v7327, %v6510
        %v7461 = vsel %vm6512, %v7460, %v7459
        %v7462 = vperm.slane %v7330, %v6514
        %v7463 = vsel %vm6516, %v7462, %v7461
        %v7464 = vperm.slane %v7333, %v6518
        %v7465 = vsel %vm6520, %v7464, %v7463
        %v7466 = vperm.slane %v7336, %v6522
        %v7467 = vsel %vm6524, %v7466, %v7465
        %v7468 = vperm.slane %v7339, %v6526
        %v7469 = vsel %vm6528, %v7468, %v7467
        %v7470 = vperm.slane %v7342, %v6508
        %v7471 = vperm.slane %v7345, %v6510
        %v7472 = vsel %vm6512, %v7471, %v7470
        %v7473 = vperm.slane %v7348, %v6514
        %v7474 = vsel %vm6516, %v7473, %v7472
        %v7475 = vperm.slane %v7351, %v6518
        %v7476 = vsel %vm6520, %v7475, %v7474
        %v7477 = vperm.slane %v7354, %v6522
        %v7478 = vsel %vm6524, %v7477, %v7476
        %v7479 = vperm.slane %v7357, %v6526
        %v7480 = vsel %vm6528, %v7479, %v7478
        %v7481 = vperm.slane %v7360, %v6508
        %v7482 = vperm.slane %v7363, %v6510
        %v7483 = vsel %vm6512, %v7482, %v7481
        %v7484 = vperm.slane %v7366, %v6514
        %v7485 = vsel %vm6516, %v7484, %v7483
        %v7486 = vperm.slane %v7369, %v6518
        %v7487 = vsel %vm6520, %v7486, %v7485
        %v7488 = vperm.slane %v7372, %v6522
        %v7489 = vsel %vm6524, %v7488, %v7487
        %v7490 = vperm.slane %v7375, %v6526
        %v7491 = vsel %vm6528, %v7490, %v7489
        %v7492 = vperm.slane %v7378, %v6508
        %v7493 = vperm.slane %v7381, %v6510
        %v7494 = vsel %vm6512, %v7493, %v7492
        %v7495 = vperm.slane %v7384, %v6514
        %v7496 = vsel %vm6516, %v7495, %v7494
        %v7497 = vperm.slane %v7387, %v6518
        %v7498 = vsel %vm6520, %v7497, %v7496
        %v7499 = vperm.slane %v7390, %v6522
        %v7500 = vsel %vm6524, %v7499, %v7498
        %v7501 = vperm.slane %v7393, %v6526
        %v7502 = vsel %vm6528, %v7501, %v7500
        %v7503 = vperm.slane %v7396, %v6508
        %v7504 = vperm.slane %v7399, %v6510
        %v7505 = vsel %vm6512, %v7504, %v7503
        %v7506 = vperm.slane %v7402, %v6514
        %v7507 = vsel %vm6516, %v7506, %v7505
        %v7508 = vperm.slane %v7405, %v6518
        %v7509 = vsel %vm6520, %v7508, %v7507
        %v7510 = vperm.slane %v7408, %v6522
        %v7511 = vsel %vm6524, %v7510, %v7509
        %v7512 = vperm.slane %v7411, %v6526
        %v7513 = vsel %vm6528, %v7512, %v7511
        %v7514 = vperm.slane %v7414, %v6508
        %v7515 = vperm.slane %v7417, %v6510
        %v7516 = vsel %vm6512, %v7515, %v7514
        %v7517 = vperm.slane %v7420, %v6514
        %v7518 = vsel %vm6516, %v7517, %v7516
        %v7519 = vperm.slane %v7423, %v6518
        %v7520 = vsel %vm6520, %v7519, %v7518
        %v7521 = vperm.slane %v7426, %v6522
        %v7522 = vsel %vm6524, %v7521, %v7520
        %v7523 = vperm.slane %v7429, %v6526
        %v7524 = vsel %vm6528, %v7523, %v7522
        %v7525 = vperm.slane %v7432, %v6508
        %v7526 = vperm.slane %v7435, %v6510
        %v7527 = vsel %vm6512, %v7526, %v7525
        %v7528 = vperm.slane %v7438, %v6514
        %v7529 = vsel %vm6516, %v7528, %v7527
        %v7530 = vperm.slane %v7441, %v6518
        %v7531 = vsel %vm6520, %v7530, %v7529
        %v7532 = vperm.slane %v7444, %v6522
        %v7533 = vsel %vm6524, %v7532, %v7531
        %v7534 = vperm.slane %v7447, %v6526
        %v7535 = vsel %vm6528, %v7534, %v7533
        %v7536 = vsel %vm6607, %v7469, %v7458
        %v7537 = vsel %vm6609, %v7480, %v7536
        %v7538 = vsel %vm6611, %v7491, %v7537
        %v7539 = vsel %vm6613, %v7502, %v7538
        %v7540 = vsel %vm6615, %v7513, %v7539
        %v7541 = vsel %vm6617, %v7524, %v7540
        %v7542 = vsel %vm6619, %v7535, %v7541
        %v7543 = vsel %vm6621, %v7542, 0
        %7545 = vmatpush.msra.mxu0 0.0
        %7546 = vmatpush.msra.mxu0 0.0
        %7547 = vmatpush.msra.mxu0 0.0
        %7548 = vmatpush.msra.mxu0 0.0
        %7549 = vmatpush.msra.mxu0 0.0
        %7550 = vmatpush.msra.mxu0 0.0
        %7551 = vmatpush.msra.mxu0 0.0
        %7552 = vmatpush.msra.mxu0 0.0
        %7553 = vmatpush.msra.mxu0 0.0
        %7554 = vmatpush.msra.mxu0 0.0
        %7555 = vmatpush.msra.mxu0 %v7302
        %7556 = vmatpush.msra.mxu0 %v7300
        %7557 = vmatpush.msra.mxu0 %v7298
        %7558 = vmatpush.msra.mxu0 %v7296
        %7559 = vmatpush.msra.mxu0 %v7294
        %7560 = vmatpush.msra.mxu0 %v7292
        %7561 = vmatmul.f32.gmra.mxu0 %v7543
        %v7562 = vpop.f32.mrf.mxu0
        %v7563 = vadd.f32 0.0, %v7562
        %7564 = vdwg.mxu0
        %7565 = vmatpush.msra.mxu0 0.0
        %7566 = vmatpush.msra.mxu0 0.0
        %7567 = vmatpush.msra.mxu0 0.0
        %7568 = vmatpush.msra.mxu0 0.0
        %7569 = vmatpush.msra.mxu0 0.0
        %7570 = vmatpush.msra.mxu0 0.0
        %7571 = vmatpush.msra.mxu0 0.0
        %7572 = vmatpush.msra.mxu0 0.0
        %7573 = vmatpush.msra.mxu0 0.0
        %7574 = vmatpush.msra.mxu0 0.0
        %7575 = vmatpush.msra.mxu0 %v7303
        %7576 = vmatpush.msra.mxu0 %v7301
        %7577 = vmatpush.msra.mxu0 %v7299
        %7578 = vmatpush.msra.mxu0 %v7297
        %7579 = vmatpush.msra.mxu0 %v7295
        %7580 = vmatpush.msra.mxu0 %v7293
        %7581 = vmatmul.f32.gmra.mxu0 %v7543
        %v7582 = vpop.f32.mrf.mxu0
        %v7583 = vadd.f32 0.0, %v7582
        %7584 = vdwg.mxu0
        %s7585 = scalar_lea.vmem %s10, 768
        %v7586 = vld [vmem:[%s7585] sm:$0xff]
        %v7587 = vld [vmem:[%s7585 + $0x8] sm:$0xff]
        %v7588 = vld [vmem:[%s7585 + $0x10] sm:$0xff]
        %v7589 = vld [vmem:[%s7585 + $0x18] sm:$0xff]
        %v7590 = vld [vmem:[%s7585 + $0x20] sm:$0xff]
        %v7591 = vld [vmem:[%s7585 + $0x28] sm:$0xff]
        %v7592 = vld [vmem:[%s7585 + $0x30] sm:$0xff]
        %v7593 = vld [vmem:[%s7585 + $0x38] sm:$0xff]
        %v7594 = vld [vmem:[%s7585 + $0x40] sm:$0xff]
        %v7595 = vld [vmem:[%s7585 + $0x48] sm:$0xff]
        %v7596 = vld [vmem:[%s7585 + $0x50] sm:$0xff]
        %v7597 = vld [vmem:[%s7585 + $0x58] sm:$0xff]
        %s7598 = scalar_lea.vmem %s10, 864
        %v7599 = vld [vmem:[%s7598] sm:$0xff]
        %v7600 = vld [vmem:[%s7598 + $0x8] sm:$0xff]
        %v7601 = vld [vmem:[%s7598 + $0x10] sm:$0xff]
        %v7602 = vld [vmem:[%s7598 + $0x18] sm:$0xff]
        %v7603 = vld [vmem:[%s7598 + $0x20] sm:$0xff]
        %v7604 = vld [vmem:[%s7598 + $0x28] sm:$0xff]
        %v7605 = vld [vmem:[%s7598 + $0x30] sm:$0xff]
        %v7606 = vld [vmem:[%s7598 + $0x38] sm:$0xff]
        %v7607 = vld [vmem:[%s7598 + $0x40] sm:$0xff]
        %v7608 = vld [vmem:[%s7598 + $0x48] sm:$0xff]
        %v7609 = vld [vmem:[%s7598 + $0x50] sm:$0xff]
        %v7610 = vld [vmem:[%s7598 + $0x58] sm:$0xff]
        %7611 = vset.pattern.permute.xlu0 9
        %7612 = vperm.xlu0 %7611, %v6242
        %v7613 = vpop.permute.xlu0 %7612
        %7614 = vset.pattern.permute.xlu0 9
        %7615 = vperm.xlu0 %7614, %v6243
        %v7616 = vpop.permute.xlu0 %7615
        %7617 = vset.pattern.permute.xlu0 9
        %7618 = vperm.xlu0 %7617, %v6244
        %v7619 = vpop.permute.xlu0 %7618
        %7620 = vset.pattern.permute.xlu0 9
        %7621 = vperm.xlu0 %7620, %v6245
        %v7622 = vpop.permute.xlu0 %7621
        %7623 = vset.pattern.permute.xlu0 9
        %7624 = vperm.xlu0 %7623, %v6246
        %v7625 = vpop.permute.xlu0 %7624
        %7626 = vset.pattern.permute.xlu0 9
        %7627 = vperm.xlu0 %7626, %v6247
        %v7628 = vpop.permute.xlu0 %7627
        %7629 = vset.pattern.permute.xlu0 9
        %7630 = vperm.xlu0 %7629, %v6248
        %v7631 = vpop.permute.xlu0 %7630
        %7632 = vset.pattern.permute.xlu0 9
        %7633 = vperm.xlu0 %7632, %v6249
        %v7634 = vpop.permute.xlu0 %7633
        %7635 = vset.pattern.permute.xlu0 9
        %7636 = vperm.xlu0 %7635, %v6250
        %v7637 = vpop.permute.xlu0 %7636
        %7638 = vset.pattern.permute.xlu0 9
        %7639 = vperm.xlu0 %7638, %v6251
        %v7640 = vpop.permute.xlu0 %7639
        %7641 = vset.pattern.permute.xlu0 9
        %7642 = vperm.xlu0 %7641, %v6252
        %v7643 = vpop.permute.xlu0 %7642
        %7644 = vset.pattern.permute.xlu0 9
        %7645 = vperm.xlu0 %7644, %v6253
        %v7646 = vpop.permute.xlu0 %7645
        %7647 = vset.pattern.permute.xlu0 9
        %7648 = vperm.xlu0 %7647, %v6254
        %v7649 = vpop.permute.xlu0 %7648
        %7650 = vset.pattern.permute.xlu0 9
        %7651 = vperm.xlu0 %7650, %v6255
        %v7652 = vpop.permute.xlu0 %7651
        %7653 = vset.pattern.permute.xlu0 9
        %7654 = vperm.xlu0 %7653, %v6256
        %v7655 = vpop.permute.xlu0 %7654
        %7656 = vset.pattern.permute.xlu0 9
        %7657 = vperm.xlu0 %7656, %v6257
        %v7658 = vpop.permute.xlu0 %7657
        %7659 = vset.pattern.permute.xlu0 9
        %7660 = vperm.xlu0 %7659, %v6258
        %v7661 = vpop.permute.xlu0 %7660
        %7662 = vset.pattern.permute.xlu0 9
        %7663 = vperm.xlu0 %7662, %v6259
        %v7664 = vpop.permute.xlu0 %7663
        %7665 = vset.pattern.permute.xlu0 9
        %7666 = vperm.xlu0 %7665, %v6260
        %v7667 = vpop.permute.xlu0 %7666
        %7668 = vset.pattern.permute.xlu0 9
        %7669 = vperm.xlu0 %7668, %v6261
        %v7670 = vpop.permute.xlu0 %7669
        %7671 = vset.pattern.permute.xlu0 9
        %7672 = vperm.xlu0 %7671, %v6262
        %v7673 = vpop.permute.xlu0 %7672
        %7674 = vset.pattern.permute.xlu0 9
        %7675 = vperm.xlu0 %7674, %v6263
        %v7676 = vpop.permute.xlu0 %7675
        %7677 = vset.pattern.permute.xlu0 9
        %7678 = vperm.xlu0 %7677, %v6264
        %v7679 = vpop.permute.xlu0 %7678
        %7680 = vset.pattern.permute.xlu0 9
        %7681 = vperm.xlu0 %7680, %v6265
        %v7682 = vpop.permute.xlu0 %7681
        %7683 = vset.pattern.permute.xlu0 9
        %7684 = vperm.xlu0 %7683, %v6266
        %v7685 = vpop.permute.xlu0 %7684
        %7686 = vset.pattern.permute.xlu0 9
        %7687 = vperm.xlu0 %7686, %v6267
        %v7688 = vpop.permute.xlu0 %7687
        %7689 = vset.pattern.permute.xlu0 9
        %7690 = vperm.xlu0 %7689, %v6268
        %v7691 = vpop.permute.xlu0 %7690
        %7692 = vset.pattern.permute.xlu0 9
        %7693 = vperm.xlu0 %7692, %v6269
        %v7694 = vpop.permute.xlu0 %7693
        %7695 = vset.pattern.permute.xlu0 9
        %7696 = vperm.xlu0 %7695, %v6270
        %v7697 = vpop.permute.xlu0 %7696
        %7698 = vset.pattern.permute.xlu0 9
        %7699 = vperm.xlu0 %7698, %v6271
        %v7700 = vpop.permute.xlu0 %7699
        %7701 = vset.pattern.permute.xlu0 9
        %7702 = vperm.xlu0 %7701, %v6272
        %v7703 = vpop.permute.xlu0 %7702
        %7704 = vset.pattern.permute.xlu0 9
        %7705 = vperm.xlu0 %7704, %v6273
        %v7706 = vpop.permute.xlu0 %7705
        %7707 = vset.pattern.permute.xlu0 9
        %7708 = vperm.xlu0 %7707, %v6274
        %v7709 = vpop.permute.xlu0 %7708
        %7710 = vset.pattern.permute.xlu0 9
        %7711 = vperm.xlu0 %7710, %v6275
        %v7712 = vpop.permute.xlu0 %7711
        %7713 = vset.pattern.permute.xlu0 9
        %7714 = vperm.xlu0 %7713, %v6276
        %v7715 = vpop.permute.xlu0 %7714
        %7716 = vset.pattern.permute.xlu0 9
        %7717 = vperm.xlu0 %7716, %v6277
        %v7718 = vpop.permute.xlu0 %7717
        %7719 = vset.pattern.permute.xlu0 9
        %7720 = vperm.xlu0 %7719, %v6278
        %v7721 = vpop.permute.xlu0 %7720
        %7722 = vset.pattern.permute.xlu0 9
        %7723 = vperm.xlu0 %7722, %v6279
        %v7724 = vpop.permute.xlu0 %7723
        %7725 = vset.pattern.permute.xlu0 9
        %7726 = vperm.xlu0 %7725, %v6280
        %v7727 = vpop.permute.xlu0 %7726
        %7728 = vset.pattern.permute.xlu0 9
        %7729 = vperm.xlu0 %7728, %v6281
        %v7730 = vpop.permute.xlu0 %7729
        %7731 = vset.pattern.permute.xlu0 9
        %7732 = vperm.xlu0 %7731, %v6282
        %v7733 = vpop.permute.xlu0 %7732
        %7734 = vset.pattern.permute.xlu0 9
        %7735 = vperm.xlu0 %7734, %v6283
        %v7736 = vpop.permute.xlu0 %7735
        %7737 = vset.pattern.permute.xlu0 9
        %7738 = vperm.xlu0 %7737, %v6284
        %v7739 = vpop.permute.xlu0 %7738
        %7740 = vset.pattern.permute.xlu0 9
        %7741 = vperm.xlu0 %7740, %v6285
        %v7742 = vpop.permute.xlu0 %7741
        %7743 = vset.pattern.permute.xlu0 9
        %7744 = vperm.xlu0 %7743, %v6286
        %v7745 = vpop.permute.xlu0 %7744
        %7746 = vset.pattern.permute.xlu0 9
        %7747 = vperm.xlu0 %7746, %v6287
        %v7748 = vpop.permute.xlu0 %7747
        %7749 = vset.pattern.permute.xlu0 9
        %7750 = vperm.xlu0 %7749, %v6288
        %v7751 = vpop.permute.xlu0 %7750
        %7752 = vset.pattern.permute.xlu0 9
        %7753 = vperm.xlu0 %7752, %v6289
        %v7754 = vpop.permute.xlu0 %7753
        %v7755 = vperm.slane %v7613, %v6508
        %v7756 = vperm.slane %v7616, %v6510
        %v7757 = vsel %vm6512, %v7756, %v7755
        %v7758 = vperm.slane %v7619, %v6514
        %v7759 = vsel %vm6516, %v7758, %v7757
        %v7760 = vperm.slane %v7622, %v6518
        %v7761 = vsel %vm6520, %v7760, %v7759
        %v7762 = vperm.slane %v7625, %v6522
        %v7763 = vsel %vm6524, %v7762, %v7761
        %v7764 = vperm.slane %v7628, %v6526
        %v7765 = vsel %vm6528, %v7764, %v7763
        %v7766 = vperm.slane %v7631, %v6508
        %v7767 = vperm.slane %v7634, %v6510
        %v7768 = vsel %vm6512, %v7767, %v7766
        %v7769 = vperm.slane %v7637, %v6514
        %v7770 = vsel %vm6516, %v7769, %v7768
        %v7771 = vperm.slane %v7640, %v6518
        %v7772 = vsel %vm6520, %v7771, %v7770
        %v7773 = vperm.slane %v7643, %v6522
        %v7774 = vsel %vm6524, %v7773, %v7772
        %v7775 = vperm.slane %v7646, %v6526
        %v7776 = vsel %vm6528, %v7775, %v7774
        %v7777 = vperm.slane %v7649, %v6508
        %v7778 = vperm.slane %v7652, %v6510
        %v7779 = vsel %vm6512, %v7778, %v7777
        %v7780 = vperm.slane %v7655, %v6514
        %v7781 = vsel %vm6516, %v7780, %v7779
        %v7782 = vperm.slane %v7658, %v6518
        %v7783 = vsel %vm6520, %v7782, %v7781
        %v7784 = vperm.slane %v7661, %v6522
        %v7785 = vsel %vm6524, %v7784, %v7783
        %v7786 = vperm.slane %v7664, %v6526
        %v7787 = vsel %vm6528, %v7786, %v7785
        %v7788 = vperm.slane %v7667, %v6508
        %v7789 = vperm.slane %v7670, %v6510
        %v7790 = vsel %vm6512, %v7789, %v7788
        %v7791 = vperm.slane %v7673, %v6514
        %v7792 = vsel %vm6516, %v7791, %v7790
        %v7793 = vperm.slane %v7676, %v6518
        %v7794 = vsel %vm6520, %v7793, %v7792
        %v7795 = vperm.slane %v7679, %v6522
        %v7796 = vsel %vm6524, %v7795, %v7794
        %v7797 = vperm.slane %v7682, %v6526
        %v7798 = vsel %vm6528, %v7797, %v7796
        %v7799 = vperm.slane %v7685, %v6508
        %v7800 = vperm.slane %v7688, %v6510
        %v7801 = vsel %vm6512, %v7800, %v7799
        %v7802 = vperm.slane %v7691, %v6514
        %v7803 = vsel %vm6516, %v7802, %v7801
        %v7804 = vperm.slane %v7694, %v6518
        %v7805 = vsel %vm6520, %v7804, %v7803
        %v7806 = vperm.slane %v7697, %v6522
        %v7807 = vsel %vm6524, %v7806, %v7805
        %v7808 = vperm.slane %v7700, %v6526
        %v7809 = vsel %vm6528, %v7808, %v7807
        %v7810 = vperm.slane %v7703, %v6508
        %v7811 = vperm.slane %v7706, %v6510
        %v7812 = vsel %vm6512, %v7811, %v7810
        %v7813 = vperm.slane %v7709, %v6514
        %v7814 = vsel %vm6516, %v7813, %v7812
        %v7815 = vperm.slane %v7712, %v6518
        %v7816 = vsel %vm6520, %v7815, %v7814
        %v7817 = vperm.slane %v7715, %v6522
        %v7818 = vsel %vm6524, %v7817, %v7816
        %v7819 = vperm.slane %v7718, %v6526
        %v7820 = vsel %vm6528, %v7819, %v7818
        %v7821 = vperm.slane %v7721, %v6508
        %v7822 = vperm.slane %v7724, %v6510
        %v7823 = vsel %vm6512, %v7822, %v7821
        %v7824 = vperm.slane %v7727, %v6514
        %v7825 = vsel %vm6516, %v7824, %v7823
        %v7826 = vperm.slane %v7730, %v6518
        %v7827 = vsel %vm6520, %v7826, %v7825
        %v7828 = vperm.slane %v7733, %v6522
        %v7829 = vsel %vm6524, %v7828, %v7827
        %v7830 = vperm.slane %v7736, %v6526
        %v7831 = vsel %vm6528, %v7830, %v7829
        %v7832 = vperm.slane %v7739, %v6508
        %v7833 = vperm.slane %v7742, %v6510
        %v7834 = vsel %vm6512, %v7833, %v7832
        %v7835 = vperm.slane %v7745, %v6514
        %v7836 = vsel %vm6516, %v7835, %v7834
        %v7837 = vperm.slane %v7748, %v6518
        %v7838 = vsel %vm6520, %v7837, %v7836
        %v7839 = vperm.slane %v7751, %v6522
        %v7840 = vsel %vm6524, %v7839, %v7838
        %v7841 = vperm.slane %v7754, %v6526
        %v7842 = vsel %vm6528, %v7841, %v7840
        %v7843 = vsel %vm6607, %v7776, %v7765
        %v7844 = vsel %vm6609, %v7787, %v7843
        %v7845 = vsel %vm6611, %v7798, %v7844
        %v7846 = vsel %vm6613, %v7809, %v7845
        %v7847 = vsel %vm6615, %v7820, %v7846
        %v7848 = vsel %vm6617, %v7831, %v7847
        %v7849 = vsel %vm6619, %v7842, %v7848
        %v7850 = vsel %vm6621, %v7849, 0
        %7852 = vmatpush.msra.mxu0 0.0
        %7853 = vmatpush.msra.mxu0 0.0
        %7854 = vmatpush.msra.mxu0 0.0
        %7855 = vmatpush.msra.mxu0 0.0
        %7856 = vmatpush.msra.mxu0 0.0
        %7857 = vmatpush.msra.mxu0 0.0
        %7858 = vmatpush.msra.mxu0 0.0
        %7859 = vmatpush.msra.mxu0 0.0
        %7860 = vmatpush.msra.mxu0 0.0
        %7861 = vmatpush.msra.mxu0 0.0
        %7862 = vmatpush.msra.mxu0 %v7609
        %7863 = vmatpush.msra.mxu0 %v7607
        %7864 = vmatpush.msra.mxu0 %v7605
        %7865 = vmatpush.msra.mxu0 %v7603
        %7866 = vmatpush.msra.mxu0 %v7601
        %7867 = vmatpush.msra.mxu0 %v7599
        %7868 = vmatmul.f32.gmra.mxu0 %v7850
        %v7869 = vpop.f32.mrf.mxu0
        %v7870 = vadd.f32 0.0, %v7869
        %7871 = vdwg.mxu0
        %7872 = vmatpush.msra.mxu0 0.0
        %7873 = vmatpush.msra.mxu0 0.0
        %7874 = vmatpush.msra.mxu0 0.0
        %7875 = vmatpush.msra.mxu0 0.0
        %7876 = vmatpush.msra.mxu0 0.0
        %7877 = vmatpush.msra.mxu0 0.0
        %7878 = vmatpush.msra.mxu0 0.0
        %7879 = vmatpush.msra.mxu0 0.0
        %7880 = vmatpush.msra.mxu0 0.0
        %7881 = vmatpush.msra.mxu0 0.0
        %7882 = vmatpush.msra.mxu0 %v7610
        %7883 = vmatpush.msra.mxu0 %v7608
        %7884 = vmatpush.msra.mxu0 %v7606
        %7885 = vmatpush.msra.mxu0 %v7604
        %7886 = vmatpush.msra.mxu0 %v7602
        %7887 = vmatpush.msra.mxu0 %v7600
        %7888 = vmatmul.f32.gmra.mxu0 %v7850
        %v7889 = vpop.f32.mrf.mxu0
        %v7890 = vadd.f32 0.0, %v7889
        %7891 = vdwg.mxu0
        %s7892 = scalar_lea.vmem %s10, 960
        %v7893 = vld [vmem:[%s7892] sm:$0xff]
        %v7894 = vld [vmem:[%s7892 + $0x8] sm:$0xff]
        %v7895 = vld [vmem:[%s7892 + $0x10] sm:$0xff]
        %v7896 = vld [vmem:[%s7892 + $0x18] sm:$0xff]
        %v7897 = vld [vmem:[%s7892 + $0x20] sm:$0xff]
        %v7898 = vld [vmem:[%s7892 + $0x28] sm:$0xff]
        %v7899 = vld [vmem:[%s7892 + $0x30] sm:$0xff]
        %v7900 = vld [vmem:[%s7892 + $0x38] sm:$0xff]
        %v7901 = vld [vmem:[%s7892 + $0x40] sm:$0xff]
        %v7902 = vld [vmem:[%s7892 + $0x48] sm:$0xff]
        %v7903 = vld [vmem:[%s7892 + $0x50] sm:$0xff]
        %v7904 = vld [vmem:[%s7892 + $0x58] sm:$0xff]
        %7905 = vset.pattern.permute.xlu0 10
        %7906 = vperm.xlu0 %7905, %v6242
        %v7907 = vpop.permute.xlu0 %7906
        %7908 = vset.pattern.permute.xlu0 10
        %7909 = vperm.xlu0 %7908, %v6243
        %v7910 = vpop.permute.xlu0 %7909
        %7911 = vset.pattern.permute.xlu0 10
        %7912 = vperm.xlu0 %7911, %v6244
        %v7913 = vpop.permute.xlu0 %7912
        %7914 = vset.pattern.permute.xlu0 10
        %7915 = vperm.xlu0 %7914, %v6245
        %v7916 = vpop.permute.xlu0 %7915
        %7917 = vset.pattern.permute.xlu0 10
        %7918 = vperm.xlu0 %7917, %v6246
        %v7919 = vpop.permute.xlu0 %7918
        %7920 = vset.pattern.permute.xlu0 10
        %7921 = vperm.xlu0 %7920, %v6247
        %v7922 = vpop.permute.xlu0 %7921
        %7923 = vset.pattern.permute.xlu0 10
        %7924 = vperm.xlu0 %7923, %v6248
        %v7925 = vpop.permute.xlu0 %7924
        %7926 = vset.pattern.permute.xlu0 10
        %7927 = vperm.xlu0 %7926, %v6249
        %v7928 = vpop.permute.xlu0 %7927
        %7929 = vset.pattern.permute.xlu0 10
        %7930 = vperm.xlu0 %7929, %v6250
        %v7931 = vpop.permute.xlu0 %7930
        %7932 = vset.pattern.permute.xlu0 10
        %7933 = vperm.xlu0 %7932, %v6251
        %v7934 = vpop.permute.xlu0 %7933
        %7935 = vset.pattern.permute.xlu0 10
        %7936 = vperm.xlu0 %7935, %v6252
        %v7937 = vpop.permute.xlu0 %7936
        %7938 = vset.pattern.permute.xlu0 10
        %7939 = vperm.xlu0 %7938, %v6253
        %v7940 = vpop.permute.xlu0 %7939
        %7941 = vset.pattern.permute.xlu0 10
        %7942 = vperm.xlu0 %7941, %v6254
        %v7943 = vpop.permute.xlu0 %7942
        %7944 = vset.pattern.permute.xlu0 10
        %7945 = vperm.xlu0 %7944, %v6255
        %v7946 = vpop.permute.xlu0 %7945
        %7947 = vset.pattern.permute.xlu0 10
        %7948 = vperm.xlu0 %7947, %v6256
        %v7949 = vpop.permute.xlu0 %7948
        %7950 = vset.pattern.permute.xlu0 10
        %7951 = vperm.xlu0 %7950, %v6257
        %v7952 = vpop.permute.xlu0 %7951
        %7953 = vset.pattern.permute.xlu0 10
        %7954 = vperm.xlu0 %7953, %v6258
        %v7955 = vpop.permute.xlu0 %7954
        %7956 = vset.pattern.permute.xlu0 10
        %7957 = vperm.xlu0 %7956, %v6259
        %v7958 = vpop.permute.xlu0 %7957
        %7959 = vset.pattern.permute.xlu0 10
        %7960 = vperm.xlu0 %7959, %v6260
        %v7961 = vpop.permute.xlu0 %7960
        %7962 = vset.pattern.permute.xlu0 10
        %7963 = vperm.xlu0 %7962, %v6261
        %v7964 = vpop.permute.xlu0 %7963
        %7965 = vset.pattern.permute.xlu0 10
        %7966 = vperm.xlu0 %7965, %v6262
        %v7967 = vpop.permute.xlu0 %7966
        %7968 = vset.pattern.permute.xlu0 10
        %7969 = vperm.xlu0 %7968, %v6263
        %v7970 = vpop.permute.xlu0 %7969
        %7971 = vset.pattern.permute.xlu0 10
        %7972 = vperm.xlu0 %7971, %v6264
        %v7973 = vpop.permute.xlu0 %7972
        %7974 = vset.pattern.permute.xlu0 10
        %7975 = vperm.xlu0 %7974, %v6265
        %v7976 = vpop.permute.xlu0 %7975
        %7977 = vset.pattern.permute.xlu0 10
        %7978 = vperm.xlu0 %7977, %v6266
        %v7979 = vpop.permute.xlu0 %7978
        %7980 = vset.pattern.permute.xlu0 10
        %7981 = vperm.xlu0 %7980, %v6267
        %v7982 = vpop.permute.xlu0 %7981
        %7983 = vset.pattern.permute.xlu0 10
        %7984 = vperm.xlu0 %7983, %v6268
        %v7985 = vpop.permute.xlu0 %7984
        %7986 = vset.pattern.permute.xlu0 10
        %7987 = vperm.xlu0 %7986, %v6269
        %v7988 = vpop.permute.xlu0 %7987
        %7989 = vset.pattern.permute.xlu0 10
        %7990 = vperm.xlu0 %7989, %v6270
        %v7991 = vpop.permute.xlu0 %7990
        %7992 = vset.pattern.permute.xlu0 10
        %7993 = vperm.xlu0 %7992, %v6271
        %v7994 = vpop.permute.xlu0 %7993
        %7995 = vset.pattern.permute.xlu0 10
        %7996 = vperm.xlu0 %7995, %v6272
        %v7997 = vpop.permute.xlu0 %7996
        %7998 = vset.pattern.permute.xlu0 10
        %7999 = vperm.xlu0 %7998, %v6273
        %v8000 = vpop.permute.xlu0 %7999
        %8001 = vset.pattern.permute.xlu0 10
        %8002 = vperm.xlu0 %8001, %v6274
        %v8003 = vpop.permute.xlu0 %8002
        %8004 = vset.pattern.permute.xlu0 10
        %8005 = vperm.xlu0 %8004, %v6275
        %v8006 = vpop.permute.xlu0 %8005
        %8007 = vset.pattern.permute.xlu0 10
        %8008 = vperm.xlu0 %8007, %v6276
        %v8009 = vpop.permute.xlu0 %8008
        %8010 = vset.pattern.permute.xlu0 10
        %8011 = vperm.xlu0 %8010, %v6277
        %v8012 = vpop.permute.xlu0 %8011
        %8013 = vset.pattern.permute.xlu0 10
        %8014 = vperm.xlu0 %8013, %v6278
        %v8015 = vpop.permute.xlu0 %8014
        %8016 = vset.pattern.permute.xlu0 10
        %8017 = vperm.xlu0 %8016, %v6279
        %v8018 = vpop.permute.xlu0 %8017
        %8019 = vset.pattern.permute.xlu0 10
        %8020 = vperm.xlu0 %8019, %v6280
        %v8021 = vpop.permute.xlu0 %8020
        %8022 = vset.pattern.permute.xlu0 10
        %8023 = vperm.xlu0 %8022, %v6281
        %v8024 = vpop.permute.xlu0 %8023
        %8025 = vset.pattern.permute.xlu0 10
        %8026 = vperm.xlu0 %8025, %v6282
        %v8027 = vpop.permute.xlu0 %8026
        %8028 = vset.pattern.permute.xlu0 10
        %8029 = vperm.xlu0 %8028, %v6283
        %v8030 = vpop.permute.xlu0 %8029
        %8031 = vset.pattern.permute.xlu0 10
        %8032 = vperm.xlu0 %8031, %v6284
        %v8033 = vpop.permute.xlu0 %8032
        %8034 = vset.pattern.permute.xlu0 10
        %8035 = vperm.xlu0 %8034, %v6285
        %v8036 = vpop.permute.xlu0 %8035
        %8037 = vset.pattern.permute.xlu0 10
        %8038 = vperm.xlu0 %8037, %v6286
        %v8039 = vpop.permute.xlu0 %8038
        %8040 = vset.pattern.permute.xlu0 10
        %8041 = vperm.xlu0 %8040, %v6287
        %v8042 = vpop.permute.xlu0 %8041
        %8043 = vset.pattern.permute.xlu0 10
        %8044 = vperm.xlu0 %8043, %v6288
        %v8045 = vpop.permute.xlu0 %8044
        %8046 = vset.pattern.permute.xlu0 10
        %8047 = vperm.xlu0 %8046, %v6289
        %v8048 = vpop.permute.xlu0 %8047
        %v8049 = vperm.slane %v7907, %v6508
        %v8050 = vperm.slane %v7910, %v6510
        %v8051 = vsel %vm6512, %v8050, %v8049
        %v8052 = vperm.slane %v7913, %v6514
        %v8053 = vsel %vm6516, %v8052, %v8051
        %v8054 = vperm.slane %v7916, %v6518
        %v8055 = vsel %vm6520, %v8054, %v8053
        %v8056 = vperm.slane %v7919, %v6522
        %v8057 = vsel %vm6524, %v8056, %v8055
        %v8058 = vperm.slane %v7922, %v6526
        %v8059 = vsel %vm6528, %v8058, %v8057
        %v8060 = vperm.slane %v7925, %v6508
        %v8061 = vperm.slane %v7928, %v6510
        %v8062 = vsel %vm6512, %v8061, %v8060
        %v8063 = vperm.slane %v7931, %v6514
        %v8064 = vsel %vm6516, %v8063, %v8062
        %v8065 = vperm.slane %v7934, %v6518
        %v8066 = vsel %vm6520, %v8065, %v8064
        %v8067 = vperm.slane %v7937, %v6522
        %v8068 = vsel %vm6524, %v8067, %v8066
        %v8069 = vperm.slane %v7940, %v6526
        %v8070 = vsel %vm6528, %v8069, %v8068
        %v8071 = vperm.slane %v7943, %v6508
        %v8072 = vperm.slane %v7946, %v6510
        %v8073 = vsel %vm6512, %v8072, %v8071
        %v8074 = vperm.slane %v7949, %v6514
        %v8075 = vsel %vm6516, %v8074, %v8073
        %v8076 = vperm.slane %v7952, %v6518
        %v8077 = vsel %vm6520, %v8076, %v8075
        %v8078 = vperm.slane %v7955, %v6522
        %v8079 = vsel %vm6524, %v8078, %v8077
        %v8080 = vperm.slane %v7958, %v6526
        %v8081 = vsel %vm6528, %v8080, %v8079
        %v8082 = vperm.slane %v7961, %v6508
        %v8083 = vperm.slane %v7964, %v6510
        %v8084 = vsel %vm6512, %v8083, %v8082
        %v8085 = vperm.slane %v7967, %v6514
        %v8086 = vsel %vm6516, %v8085, %v8084
        %v8087 = vperm.slane %v7970, %v6518
        %v8088 = vsel %vm6520, %v8087, %v8086
        %v8089 = vperm.slane %v7973, %v6522
        %v8090 = vsel %vm6524, %v8089, %v8088
        %v8091 = vperm.slane %v7976, %v6526
        %v8092 = vsel %vm6528, %v8091, %v8090
        %v8093 = vperm.slane %v7979, %v6508
        %v8094 = vperm.slane %v7982, %v6510
        %v8095 = vsel %vm6512, %v8094, %v8093
        %v8096 = vperm.slane %v7985, %v6514
        %v8097 = vsel %vm6516, %v8096, %v8095
        %v8098 = vperm.slane %v7988, %v6518
        %v8099 = vsel %vm6520, %v8098, %v8097
        %v8100 = vperm.slane %v7991, %v6522
        %v8101 = vsel %vm6524, %v8100, %v8099
        %v8102 = vperm.slane %v7994, %v6526
        %v8103 = vsel %vm6528, %v8102, %v8101
        %v8104 = vperm.slane %v7997, %v6508
        %v8105 = vperm.slane %v8000, %v6510
        %v8106 = vsel %vm6512, %v8105, %v8104
        %v8107 = vperm.slane %v8003, %v6514
        %v8108 = vsel %vm6516, %v8107, %v8106
        %v8109 = vperm.slane %v8006, %v6518
        %v8110 = vsel %vm6520, %v8109, %v8108
        %v8111 = vperm.slane %v8009, %v6522
        %v8112 = vsel %vm6524, %v8111, %v8110
        %v8113 = vperm.slane %v8012, %v6526
        %v8114 = vsel %vm6528, %v8113, %v8112
        %v8115 = vperm.slane %v8015, %v6508
        %v8116 = vperm.slane %v8018, %v6510
        %v8117 = vsel %vm6512, %v8116, %v8115
        %v8118 = vperm.slane %v8021, %v6514
        %v8119 = vsel %vm6516, %v8118, %v8117
        %v8120 = vperm.slane %v8024, %v6518
        %v8121 = vsel %vm6520, %v8120, %v8119
        %v8122 = vperm.slane %v8027, %v6522
        %v8123 = vsel %vm6524, %v8122, %v8121
        %v8124 = vperm.slane %v8030, %v6526
        %v8125 = vsel %vm6528, %v8124, %v8123
        %v8126 = vperm.slane %v8033, %v6508
        %v8127 = vperm.slane %v8036, %v6510
        %v8128 = vsel %vm6512, %v8127, %v8126
        %v8129 = vperm.slane %v8039, %v6514
        %v8130 = vsel %vm6516, %v8129, %v8128
        %v8131 = vperm.slane %v8042, %v6518
        %v8132 = vsel %vm6520, %v8131, %v8130
        %v8133 = vperm.slane %v8045, %v6522
        %v8134 = vsel %vm6524, %v8133, %v8132
        %v8135 = vperm.slane %v8048, %v6526
        %v8136 = vsel %vm6528, %v8135, %v8134
        %v8137 = vsel %vm6607, %v8070, %v8059
        %v8138 = vsel %vm6609, %v8081, %v8137
        %v8139 = vsel %vm6611, %v8092, %v8138
        %v8140 = vsel %vm6613, %v8103, %v8139
        %v8141 = vsel %vm6615, %v8114, %v8140
        %v8142 = vsel %vm6617, %v8125, %v8141
        %v8143 = vsel %vm6619, %v8136, %v8142
        %v8144 = vsel %vm6621, %v8143, 0
        %8146 = vmatpush.msra.mxu0 0.0
        %8147 = vmatpush.msra.mxu0 0.0
        %8148 = vmatpush.msra.mxu0 0.0
        %8149 = vmatpush.msra.mxu0 0.0
        %8150 = vmatpush.msra.mxu0 0.0
        %8151 = vmatpush.msra.mxu0 0.0
        %8152 = vmatpush.msra.mxu0 0.0
        %8153 = vmatpush.msra.mxu0 0.0
        %8154 = vmatpush.msra.mxu0 0.0
        %8155 = vmatpush.msra.mxu0 0.0
        %8156 = vmatpush.msra.mxu0 %v7903
        %8157 = vmatpush.msra.mxu0 %v7901
        %8158 = vmatpush.msra.mxu0 %v7899
        %8159 = vmatpush.msra.mxu0 %v7897
        %8160 = vmatpush.msra.mxu0 %v7895
        %8161 = vmatpush.msra.mxu0 %v7893
        %8162 = vmatmul.f32.gmra.mxu0 %v8144
        %v8163 = vpop.f32.mrf.mxu0
        %v8164 = vadd.f32 0.0, %v8163
        %8165 = vdwg.mxu0
        %8166 = vmatpush.msra.mxu0 0.0
        %8167 = vmatpush.msra.mxu0 0.0
        %8168 = vmatpush.msra.mxu0 0.0
        %8169 = vmatpush.msra.mxu0 0.0
        %8170 = vmatpush.msra.mxu0 0.0
        %8171 = vmatpush.msra.mxu0 0.0
        %8172 = vmatpush.msra.mxu0 0.0
        %8173 = vmatpush.msra.mxu0 0.0
        %8174 = vmatpush.msra.mxu0 0.0
        %8175 = vmatpush.msra.mxu0 0.0
        %8176 = vmatpush.msra.mxu0 %v7904
        %8177 = vmatpush.msra.mxu0 %v7902
        %8178 = vmatpush.msra.mxu0 %v7900
        %8179 = vmatpush.msra.mxu0 %v7898
        %8180 = vmatpush.msra.mxu0 %v7896
        %8181 = vmatpush.msra.mxu0 %v7894
        %8182 = vmatmul.f32.gmra.mxu0 %v8144
        %v8183 = vpop.f32.mrf.mxu0
        %v8184 = vadd.f32 0.0, %v8183
        %8185 = vdwg.mxu0
        %8186 = vset.pattern.permute.xlu0 0
        %8187 = vperm.xlu0 %8186, %v6242
        %v8188 = vpop.permute.xlu0 %8187
        %8189 = vset.pattern.permute.xlu0 0
        %8190 = vperm.xlu0 %8189, %v6243
        %v8191 = vpop.permute.xlu0 %8190
        %8192 = vset.pattern.permute.xlu0 0
        %8193 = vperm.xlu0 %8192, %v6244
        %v8194 = vpop.permute.xlu0 %8193
        %8195 = vset.pattern.permute.xlu0 0
        %8196 = vperm.xlu0 %8195, %v6245
        %v8197 = vpop.permute.xlu0 %8196
        %8198 = vset.pattern.permute.xlu0 0
        %8199 = vperm.xlu0 %8198, %v6246
        %v8200 = vpop.permute.xlu0 %8199
        %8201 = vset.pattern.permute.xlu0 0
        %8202 = vperm.xlu0 %8201, %v6247
        %v8203 = vpop.permute.xlu0 %8202
        %8204 = vset.pattern.permute.xlu0 0
        %8205 = vperm.xlu0 %8204, %v6248
        %v8206 = vpop.permute.xlu0 %8205
        %8207 = vset.pattern.permute.xlu0 0
        %8208 = vperm.xlu0 %8207, %v6249
        %v8209 = vpop.permute.xlu0 %8208
        %8210 = vset.pattern.permute.xlu0 0
        %8211 = vperm.xlu0 %8210, %v6250
        %v8212 = vpop.permute.xlu0 %8211
        %8213 = vset.pattern.permute.xlu0 0
        %8214 = vperm.xlu0 %8213, %v6251
        %v8215 = vpop.permute.xlu0 %8214
        %8216 = vset.pattern.permute.xlu0 0
        %8217 = vperm.xlu0 %8216, %v6252
        %v8218 = vpop.permute.xlu0 %8217
        %8219 = vset.pattern.permute.xlu0 0
        %8220 = vperm.xlu0 %8219, %v6253
        %v8221 = vpop.permute.xlu0 %8220
        %8222 = vset.pattern.permute.xlu0 0
        %8223 = vperm.xlu0 %8222, %v6254
        %v8224 = vpop.permute.xlu0 %8223
        %8225 = vset.pattern.permute.xlu0 0
        %8226 = vperm.xlu0 %8225, %v6255
        %v8227 = vpop.permute.xlu0 %8226
        %8228 = vset.pattern.permute.xlu0 0
        %8229 = vperm.xlu0 %8228, %v6256
        %v8230 = vpop.permute.xlu0 %8229
        %8231 = vset.pattern.permute.xlu0 0
        %8232 = vperm.xlu0 %8231, %v6257
        %v8233 = vpop.permute.xlu0 %8232
        %8234 = vset.pattern.permute.xlu0 0
        %8235 = vperm.xlu0 %8234, %v6258
        %v8236 = vpop.permute.xlu0 %8235
        %8237 = vset.pattern.permute.xlu0 0
        %8238 = vperm.xlu0 %8237, %v6259
        %v8239 = vpop.permute.xlu0 %8238
        %8240 = vset.pattern.permute.xlu0 0
        %8241 = vperm.xlu0 %8240, %v6260
        %v8242 = vpop.permute.xlu0 %8241
        %8243 = vset.pattern.permute.xlu0 0
        %8244 = vperm.xlu0 %8243, %v6261
        %v8245 = vpop.permute.xlu0 %8244
        %8246 = vset.pattern.permute.xlu0 0
        %8247 = vperm.xlu0 %8246, %v6262
        %v8248 = vpop.permute.xlu0 %8247
        %8249 = vset.pattern.permute.xlu0 0
        %8250 = vperm.xlu0 %8249, %v6263
        %v8251 = vpop.permute.xlu0 %8250
        %8252 = vset.pattern.permute.xlu0 0
        %8253 = vperm.xlu0 %8252, %v6264
        %v8254 = vpop.permute.xlu0 %8253
        %8255 = vset.pattern.permute.xlu0 0
        %8256 = vperm.xlu0 %8255, %v6265
        %v8257 = vpop.permute.xlu0 %8256
        %8258 = vset.pattern.permute.xlu0 0
        %8259 = vperm.xlu0 %8258, %v6266
        %v8260 = vpop.permute.xlu0 %8259
        %8261 = vset.pattern.permute.xlu0 0
        %8262 = vperm.xlu0 %8261, %v6267
        %v8263 = vpop.permute.xlu0 %8262
        %8264 = vset.pattern.permute.xlu0 0
        %8265 = vperm.xlu0 %8264, %v6268
        %v8266 = vpop.permute.xlu0 %8265
        %8267 = vset.pattern.permute.xlu0 0
        %8268 = vperm.xlu0 %8267, %v6269
        %v8269 = vpop.permute.xlu0 %8268
        %8270 = vset.pattern.permute.xlu0 0
        %8271 = vperm.xlu0 %8270, %v6270
        %v8272 = vpop.permute.xlu0 %8271
        %8273 = vset.pattern.permute.xlu0 0
        %8274 = vperm.xlu0 %8273, %v6271
        %v8275 = vpop.permute.xlu0 %8274
        %8276 = vset.pattern.permute.xlu0 0
        %8277 = vperm.xlu0 %8276, %v6272
        %v8278 = vpop.permute.xlu0 %8277
        %8279 = vset.pattern.permute.xlu0 0
        %8280 = vperm.xlu0 %8279, %v6273
        %v8281 = vpop.permute.xlu0 %8280
        %8282 = vset.pattern.permute.xlu0 0
        %8283 = vperm.xlu0 %8282, %v6274
        %v8284 = vpop.permute.xlu0 %8283
        %8285 = vset.pattern.permute.xlu0 0
        %8286 = vperm.xlu0 %8285, %v6275
        %v8287 = vpop.permute.xlu0 %8286
        %8288 = vset.pattern.permute.xlu0 0
        %8289 = vperm.xlu0 %8288, %v6276
        %v8290 = vpop.permute.xlu0 %8289
        %8291 = vset.pattern.permute.xlu0 0
        %8292 = vperm.xlu0 %8291, %v6277
        %v8293 = vpop.permute.xlu0 %8292
        %8294 = vset.pattern.permute.xlu0 0
        %8295 = vperm.xlu0 %8294, %v6278
        %v8296 = vpop.permute.xlu0 %8295
        %8297 = vset.pattern.permute.xlu0 0
        %8298 = vperm.xlu0 %8297, %v6279
        %v8299 = vpop.permute.xlu0 %8298
        %8300 = vset.pattern.permute.xlu0 0
        %8301 = vperm.xlu0 %8300, %v6280
        %v8302 = vpop.permute.xlu0 %8301
        %8303 = vset.pattern.permute.xlu0 0
        %8304 = vperm.xlu0 %8303, %v6281
        %v8305 = vpop.permute.xlu0 %8304
        %8306 = vset.pattern.permute.xlu0 0
        %8307 = vperm.xlu0 %8306, %v6282
        %v8308 = vpop.permute.xlu0 %8307
        %8309 = vset.pattern.permute.xlu0 0
        %8310 = vperm.xlu0 %8309, %v6283
        %v8311 = vpop.permute.xlu0 %8310
        %8312 = vset.pattern.permute.xlu0 0
        %8313 = vperm.xlu0 %8312, %v6284
        %v8314 = vpop.permute.xlu0 %8313
        %8315 = vset.pattern.permute.xlu0 0
        %8316 = vperm.xlu0 %8315, %v6285
        %v8317 = vpop.permute.xlu0 %8316
        %8318 = vset.pattern.permute.xlu0 0
        %8319 = vperm.xlu0 %8318, %v6286
        %v8320 = vpop.permute.xlu0 %8319
        %8321 = vset.pattern.permute.xlu0 0
        %8322 = vperm.xlu0 %8321, %v6287
        %v8323 = vpop.permute.xlu0 %8322
        %8324 = vset.pattern.permute.xlu0 0
        %8325 = vperm.xlu0 %8324, %v6288
        %v8326 = vpop.permute.xlu0 %8325
        %8327 = vset.pattern.permute.xlu0 0
        %8328 = vperm.xlu0 %8327, %v6289
        %v8329 = vpop.permute.xlu0 %8328
        %v8330 = vperm.slane %v8188, %v6508
        %v8331 = vperm.slane %v8191, %v6510
        %v8332 = vsel %vm6512, %v8331, %v8330
        %v8333 = vperm.slane %v8194, %v6514
        %v8334 = vsel %vm6516, %v8333, %v8332
        %v8335 = vperm.slane %v8197, %v6518
        %v8336 = vsel %vm6520, %v8335, %v8334
        %v8337 = vperm.slane %v8200, %v6522
        %v8338 = vsel %vm6524, %v8337, %v8336
        %v8339 = vperm.slane %v8203, %v6526
        %v8340 = vsel %vm6528, %v8339, %v8338
        %v8341 = vperm.slane %v8206, %v6508
        %v8342 = vperm.slane %v8209, %v6510
        %v8343 = vsel %vm6512, %v8342, %v8341
        %v8344 = vperm.slane %v8212, %v6514
        %v8345 = vsel %vm6516, %v8344, %v8343
        %v8346 = vperm.slane %v8215, %v6518
        %v8347 = vsel %vm6520, %v8346, %v8345
        %v8348 = vperm.slane %v8218, %v6522
        %v8349 = vsel %vm6524, %v8348, %v8347
        %v8350 = vperm.slane %v8221, %v6526
        %v8351 = vsel %vm6528, %v8350, %v8349
        %v8352 = vperm.slane %v8224, %v6508
        %v8353 = vperm.slane %v8227, %v6510
        %v8354 = vsel %vm6512, %v8353, %v8352
        %v8355 = vperm.slane %v8230, %v6514
        %v8356 = vsel %vm6516, %v8355, %v8354
        %v8357 = vperm.slane %v8233, %v6518
        %v8358 = vsel %vm6520, %v8357, %v8356
        %v8359 = vperm.slane %v8236, %v6522
        %v8360 = vsel %vm6524, %v8359, %v8358
        %v8361 = vperm.slane %v8239, %v6526
        %v8362 = vsel %vm6528, %v8361, %v8360
        %v8363 = vperm.slane %v8242, %v6508
        %v8364 = vperm.slane %v8245, %v6510
        %v8365 = vsel %vm6512, %v8364, %v8363
        %v8366 = vperm.slane %v8248, %v6514
        %v8367 = vsel %vm6516, %v8366, %v8365
        %v8368 = vperm.slane %v8251, %v6518
        %v8369 = vsel %vm6520, %v8368, %v8367
        %v8370 = vperm.slane %v8254, %v6522
        %v8371 = vsel %vm6524, %v8370, %v8369
        %v8372 = vperm.slane %v8257, %v6526
        %v8373 = vsel %vm6528, %v8372, %v8371
        %v8374 = vperm.slane %v8260, %v6508
        %v8375 = vperm.slane %v8263, %v6510
        %v8376 = vsel %vm6512, %v8375, %v8374
        %v8377 = vperm.slane %v8266, %v6514
        %v8378 = vsel %vm6516, %v8377, %v8376
        %v8379 = vperm.slane %v8269, %v6518
        %v8380 = vsel %vm6520, %v8379, %v8378
        %v8381 = vperm.slane %v8272, %v6522
        %v8382 = vsel %vm6524, %v8381, %v8380
        %v8383 = vperm.slane %v8275, %v6526
        %v8384 = vsel %vm6528, %v8383, %v8382
        %v8385 = vperm.slane %v8278, %v6508
        %v8386 = vperm.slane %v8281, %v6510
        %v8387 = vsel %vm6512, %v8386, %v8385
        %v8388 = vperm.slane %v8284, %v6514
        %v8389 = vsel %vm6516, %v8388, %v8387
        %v8390 = vperm.slane %v8287, %v6518
        %v8391 = vsel %vm6520, %v8390, %v8389
        %v8392 = vperm.slane %v8290, %v6522
        %v8393 = vsel %vm6524, %v8392, %v8391
        %v8394 = vperm.slane %v8293, %v6526
        %v8395 = vsel %vm6528, %v8394, %v8393
        %v8396 = vperm.slane %v8296, %v6508
        %v8397 = vperm.slane %v8299, %v6510
        %v8398 = vsel %vm6512, %v8397, %v8396
        %v8399 = vperm.slane %v8302, %v6514
        %v8400 = vsel %vm6516, %v8399, %v8398
        %v8401 = vperm.slane %v8305, %v6518
        %v8402 = vsel %vm6520, %v8401, %v8400
        %v8403 = vperm.slane %v8308, %v6522
        %v8404 = vsel %vm6524, %v8403, %v8402
        %v8405 = vperm.slane %v8311, %v6526
        %v8406 = vsel %vm6528, %v8405, %v8404
        %v8407 = vperm.slane %v8314, %v6508
        %v8408 = vperm.slane %v8317, %v6510
        %v8409 = vsel %vm6512, %v8408, %v8407
        %v8410 = vperm.slane %v8320, %v6514
        %v8411 = vsel %vm6516, %v8410, %v8409
        %v8412 = vperm.slane %v8323, %v6518
        %v8413 = vsel %vm6520, %v8412, %v8411
        %v8414 = vperm.slane %v8326, %v6522
        %v8415 = vsel %vm6524, %v8414, %v8413
        %v8416 = vperm.slane %v8329, %v6526
        %v8417 = vsel %vm6528, %v8416, %v8415
        %v8418 = vsel %vm6607, %v8351, %v8340
        %v8419 = vsel %vm6609, %v8362, %v8418
        %v8420 = vsel %vm6611, %v8373, %v8419
        %v8421 = vsel %vm6613, %v8384, %v8420
        %v8422 = vsel %vm6615, %v8395, %v8421
        %v8423 = vsel %vm6617, %v8406, %v8422
        %v8424 = vsel %vm6619, %v8417, %v8423
        %v8425 = vsel %vm6621, %v8424, 0
        %8427 = vmatpush.msra.mxu0 0.0
        %8428 = vmatpush.msra.mxu0 0.0
        %8429 = vmatpush.msra.mxu0 0.0
        %8430 = vmatpush.msra.mxu0 0.0
        %8431 = vmatpush.msra.mxu0 0.0
        %8432 = vmatpush.msra.mxu0 0.0
        %8433 = vmatpush.msra.mxu0 0.0
        %8434 = vmatpush.msra.mxu0 0.0
        %8435 = vmatpush.msra.mxu0 0.0
        %8436 = vmatpush.msra.mxu0 0.0
        %8437 = vmatpush.msra.mxu0 %v6300
        %8438 = vmatpush.msra.mxu0 %v6298
        %8439 = vmatpush.msra.mxu0 %v6296
        %8440 = vmatpush.msra.mxu0 %v6294
        %8441 = vmatpush.msra.mxu0 %v6292
        %8442 = vmatpush.msra.mxu0 %v6290
        %8443 = vmatmul.f32.gmra.mxu0 %v8425
        %v8444 = vpop.f32.mrf.mxu0
        %v8445 = vadd.f32 %v6642, %v8444
        %8446 = vdwg.mxu0
        %8447 = vmatpush.msra.mxu0 0.0
        %8448 = vmatpush.msra.mxu0 0.0
        %8449 = vmatpush.msra.mxu0 0.0
        %8450 = vmatpush.msra.mxu0 0.0
        %8451 = vmatpush.msra.mxu0 0.0
        %8452 = vmatpush.msra.mxu0 0.0
        %8453 = vmatpush.msra.mxu0 0.0
        %8454 = vmatpush.msra.mxu0 0.0
        %8455 = vmatpush.msra.mxu0 0.0
        %8456 = vmatpush.msra.mxu0 0.0
        %8457 = vmatpush.msra.mxu0 %v6301
        %8458 = vmatpush.msra.mxu0 %v6299
        %8459 = vmatpush.msra.mxu0 %v6297
        %8460 = vmatpush.msra.mxu0 %v6295
        %8461 = vmatpush.msra.mxu0 %v6293
        %8462 = vmatpush.msra.mxu0 %v6291
        %8463 = vmatmul.f32.gmra.mxu0 %v8425
        %v8464 = vpop.f32.mrf.mxu0
        %v8465 = vadd.f32 %v6662, %v8464
        %8466 = vdwg.mxu0
        %8467 = vset.pattern.permute.xlu0 2
        %8468 = vperm.xlu0 %8467, %v6242
        %v8469 = vpop.permute.xlu0 %8468
        %8470 = vset.pattern.permute.xlu0 2
        %8471 = vperm.xlu0 %8470, %v6243
        %v8472 = vpop.permute.xlu0 %8471
        %8473 = vset.pattern.permute.xlu0 2
        %8474 = vperm.xlu0 %8473, %v6244
        %v8475 = vpop.permute.xlu0 %8474
        %8476 = vset.pattern.permute.xlu0 2
        %8477 = vperm.xlu0 %8476, %v6245
        %v8478 = vpop.permute.xlu0 %8477
        %8479 = vset.pattern.permute.xlu0 2
        %8480 = vperm.xlu0 %8479, %v6246
        %v8481 = vpop.permute.xlu0 %8480
        %8482 = vset.pattern.permute.xlu0 2
        %8483 = vperm.xlu0 %8482, %v6247
        %v8484 = vpop.permute.xlu0 %8483
        %8485 = vset.pattern.permute.xlu0 2
        %8486 = vperm.xlu0 %8485, %v6248
        %v8487 = vpop.permute.xlu0 %8486
        %8488 = vset.pattern.permute.xlu0 2
        %8489 = vperm.xlu0 %8488, %v6249
        %v8490 = vpop.permute.xlu0 %8489
        %8491 = vset.pattern.permute.xlu0 2
        %8492 = vperm.xlu0 %8491, %v6250
        %v8493 = vpop.permute.xlu0 %8492
        %8494 = vset.pattern.permute.xlu0 2
        %8495 = vperm.xlu0 %8494, %v6251
        %v8496 = vpop.permute.xlu0 %8495
        %8497 = vset.pattern.permute.xlu0 2
        %8498 = vperm.xlu0 %8497, %v6252
        %v8499 = vpop.permute.xlu0 %8498
        %8500 = vset.pattern.permute.xlu0 2
        %8501 = vperm.xlu0 %8500, %v6253
        %v8502 = vpop.permute.xlu0 %8501
        %8503 = vset.pattern.permute.xlu0 2
        %8504 = vperm.xlu0 %8503, %v6254
        %v8505 = vpop.permute.xlu0 %8504
        %8506 = vset.pattern.permute.xlu0 2
        %8507 = vperm.xlu0 %8506, %v6255
        %v8508 = vpop.permute.xlu0 %8507
        %8509 = vset.pattern.permute.xlu0 2
        %8510 = vperm.xlu0 %8509, %v6256
        %v8511 = vpop.permute.xlu0 %8510
        %8512 = vset.pattern.permute.xlu0 2
        %8513 = vperm.xlu0 %8512, %v6257
        %v8514 = vpop.permute.xlu0 %8513
        %8515 = vset.pattern.permute.xlu0 2
        %8516 = vperm.xlu0 %8515, %v6258
        %v8517 = vpop.permute.xlu0 %8516
        %8518 = vset.pattern.permute.xlu0 2
        %8519 = vperm.xlu0 %8518, %v6259
        %v8520 = vpop.permute.xlu0 %8519
        %8521 = vset.pattern.permute.xlu0 2
        %8522 = vperm.xlu0 %8521, %v6260
        %v8523 = vpop.permute.xlu0 %8522
        %8524 = vset.pattern.permute.xlu0 2
        %8525 = vperm.xlu0 %8524, %v6261
        %v8526 = vpop.permute.xlu0 %8525
        %8527 = vset.pattern.permute.xlu0 2
        %8528 = vperm.xlu0 %8527, %v6262
        %v8529 = vpop.permute.xlu0 %8528
        %8530 = vset.pattern.permute.xlu0 2
        %8531 = vperm.xlu0 %8530, %v6263
        %v8532 = vpop.permute.xlu0 %8531
        %8533 = vset.pattern.permute.xlu0 2
        %8534 = vperm.xlu0 %8533, %v6264
        %v8535 = vpop.permute.xlu0 %8534
        %8536 = vset.pattern.permute.xlu0 2
        %8537 = vperm.xlu0 %8536, %v6265
        %v8538 = vpop.permute.xlu0 %8537
        %8539 = vset.pattern.permute.xlu0 2
        %8540 = vperm.xlu0 %8539, %v6266
        %v8541 = vpop.permute.xlu0 %8540
        %8542 = vset.pattern.permute.xlu0 2
        %8543 = vperm.xlu0 %8542, %v6267
        %v8544 = vpop.permute.xlu0 %8543
        %8545 = vset.pattern.permute.xlu0 2
        %8546 = vperm.xlu0 %8545, %v6268
        %v8547 = vpop.permute.xlu0 %8546
        %8548 = vset.pattern.permute.xlu0 2
        %8549 = vperm.xlu0 %8548, %v6269
        %v8550 = vpop.permute.xlu0 %8549
        %8551 = vset.pattern.permute.xlu0 2
        %8552 = vperm.xlu0 %8551, %v6270
        %v8553 = vpop.permute.xlu0 %8552
        %8554 = vset.pattern.permute.xlu0 2
        %8555 = vperm.xlu0 %8554, %v6271
        %v8556 = vpop.permute.xlu0 %8555
        %8557 = vset.pattern.permute.xlu0 2
        %8558 = vperm.xlu0 %8557, %v6272
        %v8559 = vpop.permute.xlu0 %8558
        %8560 = vset.pattern.permute.xlu0 2
        %8561 = vperm.xlu0 %8560, %v6273
        %v8562 = vpop.permute.xlu0 %8561
        %8563 = vset.pattern.permute.xlu0 2
        %8564 = vperm.xlu0 %8563, %v6274
        %v8565 = vpop.permute.xlu0 %8564
        %8566 = vset.pattern.permute.xlu0 2
        %8567 = vperm.xlu0 %8566, %v6275
        %v8568 = vpop.permute.xlu0 %8567
        %8569 = vset.pattern.permute.xlu0 2
        %8570 = vperm.xlu0 %8569, %v6276
        %v8571 = vpop.permute.xlu0 %8570
        %8572 = vset.pattern.permute.xlu0 2
        %8573 = vperm.xlu0 %8572, %v6277
        %v8574 = vpop.permute.xlu0 %8573
        %8575 = vset.pattern.permute.xlu0 2
        %8576 = vperm.xlu0 %8575, %v6278
        %v8577 = vpop.permute.xlu0 %8576
        %8578 = vset.pattern.permute.xlu0 2
        %8579 = vperm.xlu0 %8578, %v6279
        %v8580 = vpop.permute.xlu0 %8579
        %8581 = vset.pattern.permute.xlu0 2
        %8582 = vperm.xlu0 %8581, %v6280
        %v8583 = vpop.permute.xlu0 %8582
        %8584 = vset.pattern.permute.xlu0 2
        %8585 = vperm.xlu0 %8584, %v6281
        %v8586 = vpop.permute.xlu0 %8585
        %8587 = vset.pattern.permute.xlu0 2
        %8588 = vperm.xlu0 %8587, %v6282
        %v8589 = vpop.permute.xlu0 %8588
        %8590 = vset.pattern.permute.xlu0 2
        %8591 = vperm.xlu0 %8590, %v6283
        %v8592 = vpop.permute.xlu0 %8591
        %8593 = vset.pattern.permute.xlu0 2
        %8594 = vperm.xlu0 %8593, %v6284
        %v8595 = vpop.permute.xlu0 %8594
        %8596 = vset.pattern.permute.xlu0 2
        %8597 = vperm.xlu0 %8596, %v6285
        %v8598 = vpop.permute.xlu0 %8597
        %8599 = vset.pattern.permute.xlu0 2
        %8600 = vperm.xlu0 %8599, %v6286
        %v8601 = vpop.permute.xlu0 %8600
        %8602 = vset.pattern.permute.xlu0 2
        %8603 = vperm.xlu0 %8602, %v6287
        %v8604 = vpop.permute.xlu0 %8603
        %8605 = vset.pattern.permute.xlu0 2
        %8606 = vperm.xlu0 %8605, %v6288
        %v8607 = vpop.permute.xlu0 %8606
        %8608 = vset.pattern.permute.xlu0 2
        %8609 = vperm.xlu0 %8608, %v6289
        %v8610 = vpop.permute.xlu0 %8609
        %v8611 = vperm.slane %v8469, %v6508
        %v8612 = vperm.slane %v8472, %v6510
        %v8613 = vsel %vm6512, %v8612, %v8611
        %v8614 = vperm.slane %v8475, %v6514
        %v8615 = vsel %vm6516, %v8614, %v8613
        %v8616 = vperm.slane %v8478, %v6518
        %v8617 = vsel %vm6520, %v8616, %v8615
        %v8618 = vperm.slane %v8481, %v6522
        %v8619 = vsel %vm6524, %v8618, %v8617
        %v8620 = vperm.slane %v8484, %v6526
        %v8621 = vsel %vm6528, %v8620, %v8619
        %v8622 = vperm.slane %v8487, %v6508
        %v8623 = vperm.slane %v8490, %v6510
        %v8624 = vsel %vm6512, %v8623, %v8622
        %v8625 = vperm.slane %v8493, %v6514
        %v8626 = vsel %vm6516, %v8625, %v8624
        %v8627 = vperm.slane %v8496, %v6518
        %v8628 = vsel %vm6520, %v8627, %v8626
        %v8629 = vperm.slane %v8499, %v6522
        %v8630 = vsel %vm6524, %v8629, %v8628
        %v8631 = vperm.slane %v8502, %v6526
        %v8632 = vsel %vm6528, %v8631, %v8630
        %v8633 = vperm.slane %v8505, %v6508
        %v8634 = vperm.slane %v8508, %v6510
        %v8635 = vsel %vm6512, %v8634, %v8633
        %v8636 = vperm.slane %v8511, %v6514
        %v8637 = vsel %vm6516, %v8636, %v8635
        %v8638 = vperm.slane %v8514, %v6518
        %v8639 = vsel %vm6520, %v8638, %v8637
        %v8640 = vperm.slane %v8517, %v6522
        %v8641 = vsel %vm6524, %v8640, %v8639
        %v8642 = vperm.slane %v8520, %v6526
        %v8643 = vsel %vm6528, %v8642, %v8641
        %v8644 = vperm.slane %v8523, %v6508
        %v8645 = vperm.slane %v8526, %v6510
        %v8646 = vsel %vm6512, %v8645, %v8644
        %v8647 = vperm.slane %v8529, %v6514
        %v8648 = vsel %vm6516, %v8647, %v8646
        %v8649 = vperm.slane %v8532, %v6518
        %v8650 = vsel %vm6520, %v8649, %v8648
        %v8651 = vperm.slane %v8535, %v6522
        %v8652 = vsel %vm6524, %v8651, %v8650
        %v8653 = vperm.slane %v8538, %v6526
        %v8654 = vsel %vm6528, %v8653, %v8652
        %v8655 = vperm.slane %v8541, %v6508
        %v8656 = vperm.slane %v8544, %v6510
        %v8657 = vsel %vm6512, %v8656, %v8655
        %v8658 = vperm.slane %v8547, %v6514
        %v8659 = vsel %vm6516, %v8658, %v8657
        %v8660 = vperm.slane %v8550, %v6518
        %v8661 = vsel %vm6520, %v8660, %v8659
        %v8662 = vperm.slane %v8553, %v6522
        %v8663 = vsel %vm6524, %v8662, %v8661
        %v8664 = vperm.slane %v8556, %v6526
        %v8665 = vsel %vm6528, %v8664, %v8663
        %v8666 = vperm.slane %v8559, %v6508
        %v8667 = vperm.slane %v8562, %v6510
        %v8668 = vsel %vm6512, %v8667, %v8666
        %v8669 = vperm.slane %v8565, %v6514
        %v8670 = vsel %vm6516, %v8669, %v8668
        %v8671 = vperm.slane %v8568, %v6518
        %v8672 = vsel %vm6520, %v8671, %v8670
        %v8673 = vperm.slane %v8571, %v6522
        %v8674 = vsel %vm6524, %v8673, %v8672
        %v8675 = vperm.slane %v8574, %v6526
        %v8676 = vsel %vm6528, %v8675, %v8674
        %v8677 = vperm.slane %v8577, %v6508
        %v8678 = vperm.slane %v8580, %v6510
        %v8679 = vsel %vm6512, %v8678, %v8677
        %v8680 = vperm.slane %v8583, %v6514
        %v8681 = vsel %vm6516, %v8680, %v8679
        %v8682 = vperm.slane %v8586, %v6518
        %v8683 = vsel %vm6520, %v8682, %v8681
        %v8684 = vperm.slane %v8589, %v6522
        %v8685 = vsel %vm6524, %v8684, %v8683
        %v8686 = vperm.slane %v8592, %v6526
        %v8687 = vsel %vm6528, %v8686, %v8685
        %v8688 = vperm.slane %v8595, %v6508
        %v8689 = vperm.slane %v8598, %v6510
        %v8690 = vsel %vm6512, %v8689, %v8688
        %v8691 = vperm.slane %v8601, %v6514
        %v8692 = vsel %vm6516, %v8691, %v8690
        %v8693 = vperm.slane %v8604, %v6518
        %v8694 = vsel %vm6520, %v8693, %v8692
        %v8695 = vperm.slane %v8607, %v6522
        %v8696 = vsel %vm6524, %v8695, %v8694
        %v8697 = vperm.slane %v8610, %v6526
        %v8698 = vsel %vm6528, %v8697, %v8696
        %v8699 = vsel %vm6607, %v8632, %v8621
        %v8700 = vsel %vm6609, %v8643, %v8699
        %v8701 = vsel %vm6611, %v8654, %v8700
        %v8702 = vsel %vm6613, %v8665, %v8701
        %v8703 = vsel %vm6615, %v8676, %v8702
        %v8704 = vsel %vm6617, %v8687, %v8703
        %v8705 = vsel %vm6619, %v8698, %v8704
        %v8706 = vsel %vm6621, %v8705, 0
        %8708 = vmatpush.msra.mxu0 0.0
        %8709 = vmatpush.msra.mxu0 0.0
        %8710 = vmatpush.msra.mxu0 0.0
        %8711 = vmatpush.msra.mxu0 0.0
        %8712 = vmatpush.msra.mxu0 0.0
        %8713 = vmatpush.msra.mxu0 0.0
        %8714 = vmatpush.msra.mxu0 0.0
        %8715 = vmatpush.msra.mxu0 0.0
        %8716 = vmatpush.msra.mxu0 0.0
        %8717 = vmatpush.msra.mxu0 0.0
        %8718 = vmatpush.msra.mxu0 %v6675
        %8719 = vmatpush.msra.mxu0 %v6673
        %8720 = vmatpush.msra.mxu0 %v6671
        %8721 = vmatpush.msra.mxu0 %v6669
        %8722 = vmatpush.msra.mxu0 %v6667
        %8723 = vmatpush.msra.mxu0 %v6665
        %8724 = vmatmul.f32.gmra.mxu0 %v8706
        %v8725 = vpop.f32.mrf.mxu0
        %v8726 = vadd.f32 %v6949, %v8725
        %8727 = vdwg.mxu0
        %8728 = vmatpush.msra.mxu0 0.0
        %8729 = vmatpush.msra.mxu0 0.0
        %8730 = vmatpush.msra.mxu0 0.0
        %8731 = vmatpush.msra.mxu0 0.0
        %8732 = vmatpush.msra.mxu0 0.0
        %8733 = vmatpush.msra.mxu0 0.0
        %8734 = vmatpush.msra.mxu0 0.0
        %8735 = vmatpush.msra.mxu0 0.0
        %8736 = vmatpush.msra.mxu0 0.0
        %8737 = vmatpush.msra.mxu0 0.0
        %8738 = vmatpush.msra.mxu0 %v6676
        %8739 = vmatpush.msra.mxu0 %v6674
        %8740 = vmatpush.msra.mxu0 %v6672
        %8741 = vmatpush.msra.mxu0 %v6670
        %8742 = vmatpush.msra.mxu0 %v6668
        %8743 = vmatpush.msra.mxu0 %v6666
        %8744 = vmatmul.f32.gmra.mxu0 %v8706
        %v8745 = vpop.f32.mrf.mxu0
        %v8746 = vadd.f32 %v6969, %v8745
        %8747 = vdwg.mxu0
        %8748 = vset.pattern.permute.xlu0 4
        %8749 = vperm.xlu0 %8748, %v6242
        %v8750 = vpop.permute.xlu0 %8749
        %8751 = vset.pattern.permute.xlu0 4
        %8752 = vperm.xlu0 %8751, %v6243
        %v8753 = vpop.permute.xlu0 %8752
        %8754 = vset.pattern.permute.xlu0 4
        %8755 = vperm.xlu0 %8754, %v6244
        %v8756 = vpop.permute.xlu0 %8755
        %8757 = vset.pattern.permute.xlu0 4
        %8758 = vperm.xlu0 %8757, %v6245
        %v8759 = vpop.permute.xlu0 %8758
        %8760 = vset.pattern.permute.xlu0 4
        %8761 = vperm.xlu0 %8760, %v6246
        %v8762 = vpop.permute.xlu0 %8761
        %8763 = vset.pattern.permute.xlu0 4
        %8764 = vperm.xlu0 %8763, %v6247
        %v8765 = vpop.permute.xlu0 %8764
        %8766 = vset.pattern.permute.xlu0 4
        %8767 = vperm.xlu0 %8766, %v6248
        %v8768 = vpop.permute.xlu0 %8767
        %8769 = vset.pattern.permute.xlu0 4
        %8770 = vperm.xlu0 %8769, %v6249
        %v8771 = vpop.permute.xlu0 %8770
        %8772 = vset.pattern.permute.xlu0 4
        %8773 = vperm.xlu0 %8772, %v6250
        %v8774 = vpop.permute.xlu0 %8773
        %8775 = vset.pattern.permute.xlu0 4
        %8776 = vperm.xlu0 %8775, %v6251
        %v8777 = vpop.permute.xlu0 %8776
        %8778 = vset.pattern.permute.xlu0 4
        %8779 = vperm.xlu0 %8778, %v6252
        %v8780 = vpop.permute.xlu0 %8779
        %8781 = vset.pattern.permute.xlu0 4
        %8782 = vperm.xlu0 %8781, %v6253
        %v8783 = vpop.permute.xlu0 %8782
        %8784 = vset.pattern.permute.xlu0 4
        %8785 = vperm.xlu0 %8784, %v6254
        %v8786 = vpop.permute.xlu0 %8785
        %8787 = vset.pattern.permute.xlu0 4
        %8788 = vperm.xlu0 %8787, %v6255
        %v8789 = vpop.permute.xlu0 %8788
        %8790 = vset.pattern.permute.xlu0 4
        %8791 = vperm.xlu0 %8790, %v6256
        %v8792 = vpop.permute.xlu0 %8791
        %8793 = vset.pattern.permute.xlu0 4
        %8794 = vperm.xlu0 %8793, %v6257
        %v8795 = vpop.permute.xlu0 %8794
        %8796 = vset.pattern.permute.xlu0 4
        %8797 = vperm.xlu0 %8796, %v6258
        %v8798 = vpop.permute.xlu0 %8797
        %8799 = vset.pattern.permute.xlu0 4
        %8800 = vperm.xlu0 %8799, %v6259
        %v8801 = vpop.permute.xlu0 %8800
        %8802 = vset.pattern.permute.xlu0 4
        %8803 = vperm.xlu0 %8802, %v6260
        %v8804 = vpop.permute.xlu0 %8803
        %8805 = vset.pattern.permute.xlu0 4
        %8806 = vperm.xlu0 %8805, %v6261
        %v8807 = vpop.permute.xlu0 %8806
        %8808 = vset.pattern.permute.xlu0 4
        %8809 = vperm.xlu0 %8808, %v6262
        %v8810 = vpop.permute.xlu0 %8809
        %8811 = vset.pattern.permute.xlu0 4
        %8812 = vperm.xlu0 %8811, %v6263
        %v8813 = vpop.permute.xlu0 %8812
        %8814 = vset.pattern.permute.xlu0 4
        %8815 = vperm.xlu0 %8814, %v6264
        %v8816 = vpop.permute.xlu0 %8815
        %8817 = vset.pattern.permute.xlu0 4
        %8818 = vperm.xlu0 %8817, %v6265
        %v8819 = vpop.permute.xlu0 %8818
        %8820 = vset.pattern.permute.xlu0 4
        %8821 = vperm.xlu0 %8820, %v6266
        %v8822 = vpop.permute.xlu0 %8821
        %8823 = vset.pattern.permute.xlu0 4
        %8824 = vperm.xlu0 %8823, %v6267
        %v8825 = vpop.permute.xlu0 %8824
        %8826 = vset.pattern.permute.xlu0 4
        %8827 = vperm.xlu0 %8826, %v6268
        %v8828 = vpop.permute.xlu0 %8827
        %8829 = vset.pattern.permute.xlu0 4
        %8830 = vperm.xlu0 %8829, %v6269
        %v8831 = vpop.permute.xlu0 %8830
        %8832 = vset.pattern.permute.xlu0 4
        %8833 = vperm.xlu0 %8832, %v6270
        %v8834 = vpop.permute.xlu0 %8833
        %8835 = vset.pattern.permute.xlu0 4
        %8836 = vperm.xlu0 %8835, %v6271
        %v8837 = vpop.permute.xlu0 %8836
        %8838 = vset.pattern.permute.xlu0 4
        %8839 = vperm.xlu0 %8838, %v6272
        %v8840 = vpop.permute.xlu0 %8839
        %8841 = vset.pattern.permute.xlu0 4
        %8842 = vperm.xlu0 %8841, %v6273
        %v8843 = vpop.permute.xlu0 %8842
        %8844 = vset.pattern.permute.xlu0 4
        %8845 = vperm.xlu0 %8844, %v6274
        %v8846 = vpop.permute.xlu0 %8845
        %8847 = vset.pattern.permute.xlu0 4
        %8848 = vperm.xlu0 %8847, %v6275
        %v8849 = vpop.permute.xlu0 %8848
        %8850 = vset.pattern.permute.xlu0 4
        %8851 = vperm.xlu0 %8850, %v6276
        %v8852 = vpop.permute.xlu0 %8851
        %8853 = vset.pattern.permute.xlu0 4
        %8854 = vperm.xlu0 %8853, %v6277
        %v8855 = vpop.permute.xlu0 %8854
        %8856 = vset.pattern.permute.xlu0 4
        %8857 = vperm.xlu0 %8856, %v6278
        %v8858 = vpop.permute.xlu0 %8857
        %8859 = vset.pattern.permute.xlu0 4
        %8860 = vperm.xlu0 %8859, %v6279
        %v8861 = vpop.permute.xlu0 %8860
        %8862 = vset.pattern.permute.xlu0 4
        %8863 = vperm.xlu0 %8862, %v6280
        %v8864 = vpop.permute.xlu0 %8863
        %8865 = vset.pattern.permute.xlu0 4
        %8866 = vperm.xlu0 %8865, %v6281
        %v8867 = vpop.permute.xlu0 %8866
        %8868 = vset.pattern.permute.xlu0 4
        %8869 = vperm.xlu0 %8868, %v6282
        %v8870 = vpop.permute.xlu0 %8869
        %8871 = vset.pattern.permute.xlu0 4
        %8872 = vperm.xlu0 %8871, %v6283
        %v8873 = vpop.permute.xlu0 %8872
        %8874 = vset.pattern.permute.xlu0 4
        %8875 = vperm.xlu0 %8874, %v6284
        %v8876 = vpop.permute.xlu0 %8875
        %8877 = vset.pattern.permute.xlu0 4
        %8878 = vperm.xlu0 %8877, %v6285
        %v8879 = vpop.permute.xlu0 %8878
        %8880 = vset.pattern.permute.xlu0 4
        %8881 = vperm.xlu0 %8880, %v6286
        %v8882 = vpop.permute.xlu0 %8881
        %8883 = vset.pattern.permute.xlu0 4
        %8884 = vperm.xlu0 %8883, %v6287
        %v8885 = vpop.permute.xlu0 %8884
        %8886 = vset.pattern.permute.xlu0 4
        %8887 = vperm.xlu0 %8886, %v6288
        %v8888 = vpop.permute.xlu0 %8887
        %8889 = vset.pattern.permute.xlu0 4
        %8890 = vperm.xlu0 %8889, %v6289
        %v8891 = vpop.permute.xlu0 %8890
        %v8892 = vperm.slane %v8750, %v6508
        %v8893 = vperm.slane %v8753, %v6510
        %v8894 = vsel %vm6512, %v8893, %v8892
        %v8895 = vperm.slane %v8756, %v6514
        %v8896 = vsel %vm6516, %v8895, %v8894
        %v8897 = vperm.slane %v8759, %v6518
        %v8898 = vsel %vm6520, %v8897, %v8896
        %v8899 = vperm.slane %v8762, %v6522
        %v8900 = vsel %vm6524, %v8899, %v8898
        %v8901 = vperm.slane %v8765, %v6526
        %v8902 = vsel %vm6528, %v8901, %v8900
        %v8903 = vperm.slane %v8768, %v6508
        %v8904 = vperm.slane %v8771, %v6510
        %v8905 = vsel %vm6512, %v8904, %v8903
        %v8906 = vperm.slane %v8774, %v6514
        %v8907 = vsel %vm6516, %v8906, %v8905
        %v8908 = vperm.slane %v8777, %v6518
        %v8909 = vsel %vm6520, %v8908, %v8907
        %v8910 = vperm.slane %v8780, %v6522
        %v8911 = vsel %vm6524, %v8910, %v8909
        %v8912 = vperm.slane %v8783, %v6526
        %v8913 = vsel %vm6528, %v8912, %v8911
        %v8914 = vperm.slane %v8786, %v6508
        %v8915 = vperm.slane %v8789, %v6510
        %v8916 = vsel %vm6512, %v8915, %v8914
        %v8917 = vperm.slane %v8792, %v6514
        %v8918 = vsel %vm6516, %v8917, %v8916
        %v8919 = vperm.slane %v8795, %v6518
        %v8920 = vsel %vm6520, %v8919, %v8918
        %v8921 = vperm.slane %v8798, %v6522
        %v8922 = vsel %vm6524, %v8921, %v8920
        %v8923 = vperm.slane %v8801, %v6526
        %v8924 = vsel %vm6528, %v8923, %v8922
        %v8925 = vperm.slane %v8804, %v6508
        %v8926 = vperm.slane %v8807, %v6510
        %v8927 = vsel %vm6512, %v8926, %v8925
        %v8928 = vperm.slane %v8810, %v6514
        %v8929 = vsel %vm6516, %v8928, %v8927
        %v8930 = vperm.slane %v8813, %v6518
        %v8931 = vsel %vm6520, %v8930, %v8929
        %v8932 = vperm.slane %v8816, %v6522
        %v8933 = vsel %vm6524, %v8932, %v8931
        %v8934 = vperm.slane %v8819, %v6526
        %v8935 = vsel %vm6528, %v8934, %v8933
        %v8936 = vperm.slane %v8822, %v6508
        %v8937 = vperm.slane %v8825, %v6510
        %v8938 = vsel %vm6512, %v8937, %v8936
        %v8939 = vperm.slane %v8828, %v6514
        %v8940 = vsel %vm6516, %v8939, %v8938
        %v8941 = vperm.slane %v8831, %v6518
        %v8942 = vsel %vm6520, %v8941, %v8940
        %v8943 = vperm.slane %v8834, %v6522
        %v8944 = vsel %vm6524, %v8943, %v8942
        %v8945 = vperm.slane %v8837, %v6526
        %v8946 = vsel %vm6528, %v8945, %v8944
        %v8947 = vperm.slane %v8840, %v6508
        %v8948 = vperm.slane %v8843, %v6510
        %v8949 = vsel %vm6512, %v8948, %v8947
        %v8950 = vperm.slane %v8846, %v6514
        %v8951 = vsel %vm6516, %v8950, %v8949
        %v8952 = vperm.slane %v8849, %v6518
        %v8953 = vsel %vm6520, %v8952, %v8951
        %v8954 = vperm.slane %v8852, %v6522
        %v8955 = vsel %vm6524, %v8954, %v8953
        %v8956 = vperm.slane %v8855, %v6526
        %v8957 = vsel %vm6528, %v8956, %v8955
        %v8958 = vperm.slane %v8858, %v6508
        %v8959 = vperm.slane %v8861, %v6510
        %v8960 = vsel %vm6512, %v8959, %v8958
        %v8961 = vperm.slane %v8864, %v6514
        %v8962 = vsel %vm6516, %v8961, %v8960
        %v8963 = vperm.slane %v8867, %v6518
        %v8964 = vsel %vm6520, %v8963, %v8962
        %v8965 = vperm.slane %v8870, %v6522
        %v8966 = vsel %vm6524, %v8965, %v8964
        %v8967 = vperm.slane %v8873, %v6526
        %v8968 = vsel %vm6528, %v8967, %v8966
        %v8969 = vperm.slane %v8876, %v6508
        %v8970 = vperm.slane %v8879, %v6510
        %v8971 = vsel %vm6512, %v8970, %v8969
        %v8972 = vperm.slane %v8882, %v6514
        %v8973 = vsel %vm6516, %v8972, %v8971
        %v8974 = vperm.slane %v8885, %v6518
        %v8975 = vsel %vm6520, %v8974, %v8973
        %v8976 = vperm.slane %v8888, %v6522
        %v8977 = vsel %vm6524, %v8976, %v8975
        %v8978 = vperm.slane %v8891, %v6526
        %v8979 = vsel %vm6528, %v8978, %v8977
        %v8980 = vsel %vm6607, %v8913, %v8902
        %v8981 = vsel %vm6609, %v8924, %v8980
        %v8982 = vsel %vm6611, %v8935, %v8981
        %v8983 = vsel %vm6613, %v8946, %v8982
        %v8984 = vsel %vm6615, %v8957, %v8983
        %v8985 = vsel %vm6617, %v8968, %v8984
        %v8986 = vsel %vm6619, %v8979, %v8985
        %v8987 = vsel %vm6621, %v8986, 0
        %8989 = vmatpush.msra.mxu0 0.0
        %8990 = vmatpush.msra.mxu0 0.0
        %8991 = vmatpush.msra.mxu0 0.0
        %8992 = vmatpush.msra.mxu0 0.0
        %8993 = vmatpush.msra.mxu0 0.0
        %8994 = vmatpush.msra.mxu0 0.0
        %8995 = vmatpush.msra.mxu0 0.0
        %8996 = vmatpush.msra.mxu0 0.0
        %8997 = vmatpush.msra.mxu0 0.0
        %8998 = vmatpush.msra.mxu0 0.0
        %8999 = vmatpush.msra.mxu0 %v6982
        %9000 = vmatpush.msra.mxu0 %v6980
        %9001 = vmatpush.msra.mxu0 %v6978
        %9002 = vmatpush.msra.mxu0 %v6976
        %9003 = vmatpush.msra.mxu0 %v6974
        %9004 = vmatpush.msra.mxu0 %v6972
        %9005 = vmatmul.f32.gmra.mxu0 %v8987
        %v9006 = vpop.f32.mrf.mxu0
        %v9007 = vadd.f32 %v7256, %v9006
        %9008 = vdwg.mxu0
        %9009 = vmatpush.msra.mxu0 0.0
        %9010 = vmatpush.msra.mxu0 0.0
        %9011 = vmatpush.msra.mxu0 0.0
        %9012 = vmatpush.msra.mxu0 0.0
        %9013 = vmatpush.msra.mxu0 0.0
        %9014 = vmatpush.msra.mxu0 0.0
        %9015 = vmatpush.msra.mxu0 0.0
        %9016 = vmatpush.msra.mxu0 0.0
        %9017 = vmatpush.msra.mxu0 0.0
        %9018 = vmatpush.msra.mxu0 0.0
        %9019 = vmatpush.msra.mxu0 %v6983
        %9020 = vmatpush.msra.mxu0 %v6981
        %9021 = vmatpush.msra.mxu0 %v6979
        %9022 = vmatpush.msra.mxu0 %v6977
        %9023 = vmatpush.msra.mxu0 %v6975
        %9024 = vmatpush.msra.mxu0 %v6973
        %9025 = vmatmul.f32.gmra.mxu0 %v8987
        %v9026 = vpop.f32.mrf.mxu0
        %v9027 = vadd.f32 %v7276, %v9026
        %9028 = vdwg.mxu0
        %9029 = vset.pattern.permute.xlu0 6
        %9030 = vperm.xlu0 %9029, %v6242
        %v9031 = vpop.permute.xlu0 %9030
        %9032 = vset.pattern.permute.xlu0 6
        %9033 = vperm.xlu0 %9032, %v6243
        %v9034 = vpop.permute.xlu0 %9033
        %9035 = vset.pattern.permute.xlu0 6
        %9036 = vperm.xlu0 %9035, %v6244
        %v9037 = vpop.permute.xlu0 %9036
        %9038 = vset.pattern.permute.xlu0 6
        %9039 = vperm.xlu0 %9038, %v6245
        %v9040 = vpop.permute.xlu0 %9039
        %9041 = vset.pattern.permute.xlu0 6
        %9042 = vperm.xlu0 %9041, %v6246
        %v9043 = vpop.permute.xlu0 %9042
        %9044 = vset.pattern.permute.xlu0 6
        %9045 = vperm.xlu0 %9044, %v6247
        %v9046 = vpop.permute.xlu0 %9045
        %9047 = vset.pattern.permute.xlu0 6
        %9048 = vperm.xlu0 %9047, %v6248
        %v9049 = vpop.permute.xlu0 %9048
        %9050 = vset.pattern.permute.xlu0 6
        %9051 = vperm.xlu0 %9050, %v6249
        %v9052 = vpop.permute.xlu0 %9051
        %9053 = vset.pattern.permute.xlu0 6
        %9054 = vperm.xlu0 %9053, %v6250
        %v9055 = vpop.permute.xlu0 %9054
        %9056 = vset.pattern.permute.xlu0 6
        %9057 = vperm.xlu0 %9056, %v6251
        %v9058 = vpop.permute.xlu0 %9057
        %9059 = vset.pattern.permute.xlu0 6
        %9060 = vperm.xlu0 %9059, %v6252
        %v9061 = vpop.permute.xlu0 %9060
        %9062 = vset.pattern.permute.xlu0 6
        %9063 = vperm.xlu0 %9062, %v6253
        %v9064 = vpop.permute.xlu0 %9063
        %9065 = vset.pattern.permute.xlu0 6
        %9066 = vperm.xlu0 %9065, %v6254
        %v9067 = vpop.permute.xlu0 %9066
        %9068 = vset.pattern.permute.xlu0 6
        %9069 = vperm.xlu0 %9068, %v6255
        %v9070 = vpop.permute.xlu0 %9069
        %9071 = vset.pattern.permute.xlu0 6
        %9072 = vperm.xlu0 %9071, %v6256
        %v9073 = vpop.permute.xlu0 %9072
        %9074 = vset.pattern.permute.xlu0 6
        %9075 = vperm.xlu0 %9074, %v6257
        %v9076 = vpop.permute.xlu0 %9075
        %9077 = vset.pattern.permute.xlu0 6
        %9078 = vperm.xlu0 %9077, %v6258
        %v9079 = vpop.permute.xlu0 %9078
        %9080 = vset.pattern.permute.xlu0 6
        %9081 = vperm.xlu0 %9080, %v6259
        %v9082 = vpop.permute.xlu0 %9081
        %9083 = vset.pattern.permute.xlu0 6
        %9084 = vperm.xlu0 %9083, %v6260
        %v9085 = vpop.permute.xlu0 %9084
        %9086 = vset.pattern.permute.xlu0 6
        %9087 = vperm.xlu0 %9086, %v6261
        %v9088 = vpop.permute.xlu0 %9087
        %9089 = vset.pattern.permute.xlu0 6
        %9090 = vperm.xlu0 %9089, %v6262
        %v9091 = vpop.permute.xlu0 %9090
        %9092 = vset.pattern.permute.xlu0 6
        %9093 = vperm.xlu0 %9092, %v6263
        %v9094 = vpop.permute.xlu0 %9093
        %9095 = vset.pattern.permute.xlu0 6
        %9096 = vperm.xlu0 %9095, %v6264
        %v9097 = vpop.permute.xlu0 %9096
        %9098 = vset.pattern.permute.xlu0 6
        %9099 = vperm.xlu0 %9098, %v6265
        %v9100 = vpop.permute.xlu0 %9099
        %9101 = vset.pattern.permute.xlu0 6
        %9102 = vperm.xlu0 %9101, %v6266
        %v9103 = vpop.permute.xlu0 %9102
        %9104 = vset.pattern.permute.xlu0 6
        %9105 = vperm.xlu0 %9104, %v6267
        %v9106 = vpop.permute.xlu0 %9105
        %9107 = vset.pattern.permute.xlu0 6
        %9108 = vperm.xlu0 %9107, %v6268
        %v9109 = vpop.permute.xlu0 %9108
        %9110 = vset.pattern.permute.xlu0 6
        %9111 = vperm.xlu0 %9110, %v6269
        %v9112 = vpop.permute.xlu0 %9111
        %9113 = vset.pattern.permute.xlu0 6
        %9114 = vperm.xlu0 %9113, %v6270
        %v9115 = vpop.permute.xlu0 %9114
        %9116 = vset.pattern.permute.xlu0 6
        %9117 = vperm.xlu0 %9116, %v6271
        %v9118 = vpop.permute.xlu0 %9117
        %9119 = vset.pattern.permute.xlu0 6
        %9120 = vperm.xlu0 %9119, %v6272
        %v9121 = vpop.permute.xlu0 %9120
        %9122 = vset.pattern.permute.xlu0 6
        %9123 = vperm.xlu0 %9122, %v6273
        %v9124 = vpop.permute.xlu0 %9123
        %9125 = vset.pattern.permute.xlu0 6
        %9126 = vperm.xlu0 %9125, %v6274
        %v9127 = vpop.permute.xlu0 %9126
        %9128 = vset.pattern.permute.xlu0 6
        %9129 = vperm.xlu0 %9128, %v6275
        %v9130 = vpop.permute.xlu0 %9129
        %9131 = vset.pattern.permute.xlu0 6
        %9132 = vperm.xlu0 %9131, %v6276
        %v9133 = vpop.permute.xlu0 %9132
        %9134 = vset.pattern.permute.xlu0 6
        %9135 = vperm.xlu0 %9134, %v6277
        %v9136 = vpop.permute.xlu0 %9135
        %9137 = vset.pattern.permute.xlu0 6
        %9138 = vperm.xlu0 %9137, %v6278
        %v9139 = vpop.permute.xlu0 %9138
        %9140 = vset.pattern.permute.xlu0 6
        %9141 = vperm.xlu0 %9140, %v6279
        %v9142 = vpop.permute.xlu0 %9141
        %9143 = vset.pattern.permute.xlu0 6
        %9144 = vperm.xlu0 %9143, %v6280
        %v9145 = vpop.permute.xlu0 %9144
        %9146 = vset.pattern.permute.xlu0 6
        %9147 = vperm.xlu0 %9146, %v6281
        %v9148 = vpop.permute.xlu0 %9147
        %9149 = vset.pattern.permute.xlu0 6
        %9150 = vperm.xlu0 %9149, %v6282
        %v9151 = vpop.permute.xlu0 %9150
        %9152 = vset.pattern.permute.xlu0 6
        %9153 = vperm.xlu0 %9152, %v6283
        %v9154 = vpop.permute.xlu0 %9153
        %9155 = vset.pattern.permute.xlu0 6
        %9156 = vperm.xlu0 %9155, %v6284
        %v9157 = vpop.permute.xlu0 %9156
        %9158 = vset.pattern.permute.xlu0 6
        %9159 = vperm.xlu0 %9158, %v6285
        %v9160 = vpop.permute.xlu0 %9159
        %9161 = vset.pattern.permute.xlu0 6
        %9162 = vperm.xlu0 %9161, %v6286
        %v9163 = vpop.permute.xlu0 %9162
        %9164 = vset.pattern.permute.xlu0 6
        %9165 = vperm.xlu0 %9164, %v6287
        %v9166 = vpop.permute.xlu0 %9165
        %9167 = vset.pattern.permute.xlu0 6
        %9168 = vperm.xlu0 %9167, %v6288
        %v9169 = vpop.permute.xlu0 %9168
        %9170 = vset.pattern.permute.xlu0 6
        %9171 = vperm.xlu0 %9170, %v6289
        %v9172 = vpop.permute.xlu0 %9171
        %v9173 = vperm.slane %v9031, %v6508
        %v9174 = vperm.slane %v9034, %v6510
        %v9175 = vsel %vm6512, %v9174, %v9173
        %v9176 = vperm.slane %v9037, %v6514
        %v9177 = vsel %vm6516, %v9176, %v9175
        %v9178 = vperm.slane %v9040, %v6518
        %v9179 = vsel %vm6520, %v9178, %v9177
        %v9180 = vperm.slane %v9043, %v6522
        %v9181 = vsel %vm6524, %v9180, %v9179
        %v9182 = vperm.slane %v9046, %v6526
        %v9183 = vsel %vm6528, %v9182, %v9181
        %v9184 = vperm.slane %v9049, %v6508
        %v9185 = vperm.slane %v9052, %v6510
        %v9186 = vsel %vm6512, %v9185, %v9184
        %v9187 = vperm.slane %v9055, %v6514
        %v9188 = vsel %vm6516, %v9187, %v9186
        %v9189 = vperm.slane %v9058, %v6518
        %v9190 = vsel %vm6520, %v9189, %v9188
        %v9191 = vperm.slane %v9061, %v6522
        %v9192 = vsel %vm6524, %v9191, %v9190
        %v9193 = vperm.slane %v9064, %v6526
        %v9194 = vsel %vm6528, %v9193, %v9192
        %v9195 = vperm.slane %v9067, %v6508
        %v9196 = vperm.slane %v9070, %v6510
        %v9197 = vsel %vm6512, %v9196, %v9195
        %v9198 = vperm.slane %v9073, %v6514
        %v9199 = vsel %vm6516, %v9198, %v9197
        %v9200 = vperm.slane %v9076, %v6518
        %v9201 = vsel %vm6520, %v9200, %v9199
        %v9202 = vperm.slane %v9079, %v6522
        %v9203 = vsel %vm6524, %v9202, %v9201
        %v9204 = vperm.slane %v9082, %v6526
        %v9205 = vsel %vm6528, %v9204, %v9203
        %v9206 = vperm.slane %v9085, %v6508
        %v9207 = vperm.slane %v9088, %v6510
        %v9208 = vsel %vm6512, %v9207, %v9206
        %v9209 = vperm.slane %v9091, %v6514
        %v9210 = vsel %vm6516, %v9209, %v9208
        %v9211 = vperm.slane %v9094, %v6518
        %v9212 = vsel %vm6520, %v9211, %v9210
        %v9213 = vperm.slane %v9097, %v6522
        %v9214 = vsel %vm6524, %v9213, %v9212
        %v9215 = vperm.slane %v9100, %v6526
        %v9216 = vsel %vm6528, %v9215, %v9214
        %v9217 = vperm.slane %v9103, %v6508
        %v9218 = vperm.slane %v9106, %v6510
        %v9219 = vsel %vm6512, %v9218, %v9217
        %v9220 = vperm.slane %v9109, %v6514
        %v9221 = vsel %vm6516, %v9220, %v9219
        %v9222 = vperm.slane %v9112, %v6518
        %v9223 = vsel %vm6520, %v9222, %v9221
        %v9224 = vperm.slane %v9115, %v6522
        %v9225 = vsel %vm6524, %v9224, %v9223
        %v9226 = vperm.slane %v9118, %v6526
        %v9227 = vsel %vm6528, %v9226, %v9225
        %v9228 = vperm.slane %v9121, %v6508
        %v9229 = vperm.slane %v9124, %v6510
        %v9230 = vsel %vm6512, %v9229, %v9228
        %v9231 = vperm.slane %v9127, %v6514
        %v9232 = vsel %vm6516, %v9231, %v9230
        %v9233 = vperm.slane %v9130, %v6518
        %v9234 = vsel %vm6520, %v9233, %v9232
        %v9235 = vperm.slane %v9133, %v6522
        %v9236 = vsel %vm6524, %v9235, %v9234
        %v9237 = vperm.slane %v9136, %v6526
        %v9238 = vsel %vm6528, %v9237, %v9236
        %v9239 = vperm.slane %v9139, %v6508
        %v9240 = vperm.slane %v9142, %v6510
        %v9241 = vsel %vm6512, %v9240, %v9239
        %v9242 = vperm.slane %v9145, %v6514
        %v9243 = vsel %vm6516, %v9242, %v9241
        %v9244 = vperm.slane %v9148, %v6518
        %v9245 = vsel %vm6520, %v9244, %v9243
        %v9246 = vperm.slane %v9151, %v6522
        %v9247 = vsel %vm6524, %v9246, %v9245
        %v9248 = vperm.slane %v9154, %v6526
        %v9249 = vsel %vm6528, %v9248, %v9247
        %v9250 = vperm.slane %v9157, %v6508
        %v9251 = vperm.slane %v9160, %v6510
        %v9252 = vsel %vm6512, %v9251, %v9250
        %v9253 = vperm.slane %v9163, %v6514
        %v9254 = vsel %vm6516, %v9253, %v9252
        %v9255 = vperm.slane %v9166, %v6518
        %v9256 = vsel %vm6520, %v9255, %v9254
        %v9257 = vperm.slane %v9169, %v6522
        %v9258 = vsel %vm6524, %v9257, %v9256
        %v9259 = vperm.slane %v9172, %v6526
        %v9260 = vsel %vm6528, %v9259, %v9258
        %v9261 = vsel %vm6607, %v9194, %v9183
        %v9262 = vsel %vm6609, %v9205, %v9261
        %v9263 = vsel %vm6611, %v9216, %v9262
        %v9264 = vsel %vm6613, %v9227, %v9263
        %v9265 = vsel %vm6615, %v9238, %v9264
        %v9266 = vsel %vm6617, %v9249, %v9265
        %v9267 = vsel %vm6619, %v9260, %v9266
        %v9268 = vsel %vm6621, %v9267, 0
        %9270 = vmatpush.msra.mxu0 0.0
        %9271 = vmatpush.msra.mxu0 0.0
        %9272 = vmatpush.msra.mxu0 0.0
        %9273 = vmatpush.msra.mxu0 0.0
        %9274 = vmatpush.msra.mxu0 0.0
        %9275 = vmatpush.msra.mxu0 0.0
        %9276 = vmatpush.msra.mxu0 0.0
        %9277 = vmatpush.msra.mxu0 0.0
        %9278 = vmatpush.msra.mxu0 0.0
        %9279 = vmatpush.msra.mxu0 0.0
        %9280 = vmatpush.msra.mxu0 %v7289
        %9281 = vmatpush.msra.mxu0 %v7287
        %9282 = vmatpush.msra.mxu0 %v7285
        %9283 = vmatpush.msra.mxu0 %v7283
        %9284 = vmatpush.msra.mxu0 %v7281
        %9285 = vmatpush.msra.mxu0 %v7279
        %9286 = vmatmul.f32.gmra.mxu0 %v9268
        %v9287 = vpop.f32.mrf.mxu0
        %v9288 = vadd.f32 %v7563, %v9287
        %9289 = vdwg.mxu0
        %9290 = vmatpush.msra.mxu0 0.0
        %9291 = vmatpush.msra.mxu0 0.0
        %9292 = vmatpush.msra.mxu0 0.0
        %9293 = vmatpush.msra.mxu0 0.0
        %9294 = vmatpush.msra.mxu0 0.0
        %9295 = vmatpush.msra.mxu0 0.0
        %9296 = vmatpush.msra.mxu0 0.0
        %9297 = vmatpush.msra.mxu0 0.0
        %9298 = vmatpush.msra.mxu0 0.0
        %9299 = vmatpush.msra.mxu0 0.0
        %9300 = vmatpush.msra.mxu0 %v7290
        %9301 = vmatpush.msra.mxu0 %v7288
        %9302 = vmatpush.msra.mxu0 %v7286
        %9303 = vmatpush.msra.mxu0 %v7284
        %9304 = vmatpush.msra.mxu0 %v7282
        %9305 = vmatpush.msra.mxu0 %v7280
        %9306 = vmatmul.f32.gmra.mxu0 %v9268
        %v9307 = vpop.f32.mrf.mxu0
        %v9308 = vadd.f32 %v7583, %v9307
        %9309 = vdwg.mxu0
        %9310 = vset.pattern.permute.xlu0 8
        %9311 = vperm.xlu0 %9310, %v6242
        %v9312 = vpop.permute.xlu0 %9311
        %9313 = vset.pattern.permute.xlu0 8
        %9314 = vperm.xlu0 %9313, %v6243
        %v9315 = vpop.permute.xlu0 %9314
        %9316 = vset.pattern.permute.xlu0 8
        %9317 = vperm.xlu0 %9316, %v6244
        %v9318 = vpop.permute.xlu0 %9317
        %9319 = vset.pattern.permute.xlu0 8
        %9320 = vperm.xlu0 %9319, %v6245
        %v9321 = vpop.permute.xlu0 %9320
        %9322 = vset.pattern.permute.xlu0 8
        %9323 = vperm.xlu0 %9322, %v6246
        %v9324 = vpop.permute.xlu0 %9323
        %9325 = vset.pattern.permute.xlu0 8
        %9326 = vperm.xlu0 %9325, %v6247
        %v9327 = vpop.permute.xlu0 %9326
        %9328 = vset.pattern.permute.xlu0 8
        %9329 = vperm.xlu0 %9328, %v6248
        %v9330 = vpop.permute.xlu0 %9329
        %9331 = vset.pattern.permute.xlu0 8
        %9332 = vperm.xlu0 %9331, %v6249
        %v9333 = vpop.permute.xlu0 %9332
        %9334 = vset.pattern.permute.xlu0 8
        %9335 = vperm.xlu0 %9334, %v6250
        %v9336 = vpop.permute.xlu0 %9335
        %9337 = vset.pattern.permute.xlu0 8
        %9338 = vperm.xlu0 %9337, %v6251
        %v9339 = vpop.permute.xlu0 %9338
        %9340 = vset.pattern.permute.xlu0 8
        %9341 = vperm.xlu0 %9340, %v6252
        %v9342 = vpop.permute.xlu0 %9341
        %9343 = vset.pattern.permute.xlu0 8
        %9344 = vperm.xlu0 %9343, %v6253
        %v9345 = vpop.permute.xlu0 %9344
        %9346 = vset.pattern.permute.xlu0 8
        %9347 = vperm.xlu0 %9346, %v6254
        %v9348 = vpop.permute.xlu0 %9347
        %9349 = vset.pattern.permute.xlu0 8
        %9350 = vperm.xlu0 %9349, %v6255
        %v9351 = vpop.permute.xlu0 %9350
        %9352 = vset.pattern.permute.xlu0 8
        %9353 = vperm.xlu0 %9352, %v6256
        %v9354 = vpop.permute.xlu0 %9353
        %9355 = vset.pattern.permute.xlu0 8
        %9356 = vperm.xlu0 %9355, %v6257
        %v9357 = vpop.permute.xlu0 %9356
        %9358 = vset.pattern.permute.xlu0 8
        %9359 = vperm.xlu0 %9358, %v6258
        %v9360 = vpop.permute.xlu0 %9359
        %9361 = vset.pattern.permute.xlu0 8
        %9362 = vperm.xlu0 %9361, %v6259
        %v9363 = vpop.permute.xlu0 %9362
        %9364 = vset.pattern.permute.xlu0 8
        %9365 = vperm.xlu0 %9364, %v6260
        %v9366 = vpop.permute.xlu0 %9365
        %9367 = vset.pattern.permute.xlu0 8
        %9368 = vperm.xlu0 %9367, %v6261
        %v9369 = vpop.permute.xlu0 %9368
        %9370 = vset.pattern.permute.xlu0 8
        %9371 = vperm.xlu0 %9370, %v6262
        %v9372 = vpop.permute.xlu0 %9371
        %9373 = vset.pattern.permute.xlu0 8
        %9374 = vperm.xlu0 %9373, %v6263
        %v9375 = vpop.permute.xlu0 %9374
        %9376 = vset.pattern.permute.xlu0 8
        %9377 = vperm.xlu0 %9376, %v6264
        %v9378 = vpop.permute.xlu0 %9377
        %9379 = vset.pattern.permute.xlu0 8
        %9380 = vperm.xlu0 %9379, %v6265
        %v9381 = vpop.permute.xlu0 %9380
        %9382 = vset.pattern.permute.xlu0 8
        %9383 = vperm.xlu0 %9382, %v6266
        %v9384 = vpop.permute.xlu0 %9383
        %9385 = vset.pattern.permute.xlu0 8
        %9386 = vperm.xlu0 %9385, %v6267
        %v9387 = vpop.permute.xlu0 %9386
        %9388 = vset.pattern.permute.xlu0 8
        %9389 = vperm.xlu0 %9388, %v6268
        %v9390 = vpop.permute.xlu0 %9389
        %9391 = vset.pattern.permute.xlu0 8
        %9392 = vperm.xlu0 %9391, %v6269
        %v9393 = vpop.permute.xlu0 %9392
        %9394 = vset.pattern.permute.xlu0 8
        %9395 = vperm.xlu0 %9394, %v6270
        %v9396 = vpop.permute.xlu0 %9395
        %9397 = vset.pattern.permute.xlu0 8
        %9398 = vperm.xlu0 %9397, %v6271
        %v9399 = vpop.permute.xlu0 %9398
        %9400 = vset.pattern.permute.xlu0 8
        %9401 = vperm.xlu0 %9400, %v6272
        %v9402 = vpop.permute.xlu0 %9401
        %9403 = vset.pattern.permute.xlu0 8
        %9404 = vperm.xlu0 %9403, %v6273
        %v9405 = vpop.permute.xlu0 %9404
        %9406 = vset.pattern.permute.xlu0 8
        %9407 = vperm.xlu0 %9406, %v6274
        %v9408 = vpop.permute.xlu0 %9407
        %9409 = vset.pattern.permute.xlu0 8
        %9410 = vperm.xlu0 %9409, %v6275
        %v9411 = vpop.permute.xlu0 %9410
        %9412 = vset.pattern.permute.xlu0 8
        %9413 = vperm.xlu0 %9412, %v6276
        %v9414 = vpop.permute.xlu0 %9413
        %9415 = vset.pattern.permute.xlu0 8
        %9416 = vperm.xlu0 %9415, %v6277
        %v9417 = vpop.permute.xlu0 %9416
        %9418 = vset.pattern.permute.xlu0 8
        %9419 = vperm.xlu0 %9418, %v6278
        %v9420 = vpop.permute.xlu0 %9419
        %9421 = vset.pattern.permute.xlu0 8
        %9422 = vperm.xlu0 %9421, %v6279
        %v9423 = vpop.permute.xlu0 %9422
        %9424 = vset.pattern.permute.xlu0 8
        %9425 = vperm.xlu0 %9424, %v6280
        %v9426 = vpop.permute.xlu0 %9425
        %9427 = vset.pattern.permute.xlu0 8
        %9428 = vperm.xlu0 %9427, %v6281
        %v9429 = vpop.permute.xlu0 %9428
        %9430 = vset.pattern.permute.xlu0 8
        %9431 = vperm.xlu0 %9430, %v6282
        %v9432 = vpop.permute.xlu0 %9431
        %9433 = vset.pattern.permute.xlu0 8
        %9434 = vperm.xlu0 %9433, %v6283
        %v9435 = vpop.permute.xlu0 %9434
        %9436 = vset.pattern.permute.xlu0 8
        %9437 = vperm.xlu0 %9436, %v6284
        %v9438 = vpop.permute.xlu0 %9437
        %9439 = vset.pattern.permute.xlu0 8
        %9440 = vperm.xlu0 %9439, %v6285
        %v9441 = vpop.permute.xlu0 %9440
        %9442 = vset.pattern.permute.xlu0 8
        %9443 = vperm.xlu0 %9442, %v6286
        %v9444 = vpop.permute.xlu0 %9443
        %9445 = vset.pattern.permute.xlu0 8
        %9446 = vperm.xlu0 %9445, %v6287
        %v9447 = vpop.permute.xlu0 %9446
        %9448 = vset.pattern.permute.xlu0 8
        %9449 = vperm.xlu0 %9448, %v6288
        %v9450 = vpop.permute.xlu0 %9449
        %9451 = vset.pattern.permute.xlu0 8
        %9452 = vperm.xlu0 %9451, %v6289
        %v9453 = vpop.permute.xlu0 %9452
        %v9454 = vperm.slane %v9312, %v6508
        %v9455 = vperm.slane %v9315, %v6510
        %v9456 = vsel %vm6512, %v9455, %v9454
        %v9457 = vperm.slane %v9318, %v6514
        %v9458 = vsel %vm6516, %v9457, %v9456
        %v9459 = vperm.slane %v9321, %v6518
        %v9460 = vsel %vm6520, %v9459, %v9458
        %v9461 = vperm.slane %v9324, %v6522
        %v9462 = vsel %vm6524, %v9461, %v9460
        %v9463 = vperm.slane %v9327, %v6526
        %v9464 = vsel %vm6528, %v9463, %v9462
        %v9465 = vperm.slane %v9330, %v6508
        %v9466 = vperm.slane %v9333, %v6510
        %v9467 = vsel %vm6512, %v9466, %v9465
        %v9468 = vperm.slane %v9336, %v6514
        %v9469 = vsel %vm6516, %v9468, %v9467
        %v9470 = vperm.slane %v9339, %v6518
        %v9471 = vsel %vm6520, %v9470, %v9469
        %v9472 = vperm.slane %v9342, %v6522
        %v9473 = vsel %vm6524, %v9472, %v9471
        %v9474 = vperm.slane %v9345, %v6526
        %v9475 = vsel %vm6528, %v9474, %v9473
        %v9476 = vperm.slane %v9348, %v6508
        %v9477 = vperm.slane %v9351, %v6510
        %v9478 = vsel %vm6512, %v9477, %v9476
        %v9479 = vperm.slane %v9354, %v6514
        %v9480 = vsel %vm6516, %v9479, %v9478
        %v9481 = vperm.slane %v9357, %v6518
        %v9482 = vsel %vm6520, %v9481, %v9480
        %v9483 = vperm.slane %v9360, %v6522
        %v9484 = vsel %vm6524, %v9483, %v9482
        %v9485 = vperm.slane %v9363, %v6526
        %v9486 = vsel %vm6528, %v9485, %v9484
        %v9487 = vperm.slane %v9366, %v6508
        %v9488 = vperm.slane %v9369, %v6510
        %v9489 = vsel %vm6512, %v9488, %v9487
        %v9490 = vperm.slane %v9372, %v6514
        %v9491 = vsel %vm6516, %v9490, %v9489
        %v9492 = vperm.slane %v9375, %v6518
        %v9493 = vsel %vm6520, %v9492, %v9491
        %v9494 = vperm.slane %v9378, %v6522
        %v9495 = vsel %vm6524, %v9494, %v9493
        %v9496 = vperm.slane %v9381, %v6526
        %v9497 = vsel %vm6528, %v9496, %v9495
        %v9498 = vperm.slane %v9384, %v6508
        %v9499 = vperm.slane %v9387, %v6510
        %v9500 = vsel %vm6512, %v9499, %v9498
        %v9501 = vperm.slane %v9390, %v6514
        %v9502 = vsel %vm6516, %v9501, %v9500
        %v9503 = vperm.slane %v9393, %v6518
        %v9504 = vsel %vm6520, %v9503, %v9502
        %v9505 = vperm.slane %v9396, %v6522
        %v9506 = vsel %vm6524, %v9505, %v9504
        %v9507 = vperm.slane %v9399, %v6526
        %v9508 = vsel %vm6528, %v9507, %v9506
        %v9509 = vperm.slane %v9402, %v6508
        %v9510 = vperm.slane %v9405, %v6510
        %v9511 = vsel %vm6512, %v9510, %v9509
        %v9512 = vperm.slane %v9408, %v6514
        %v9513 = vsel %vm6516, %v9512, %v9511
        %v9514 = vperm.slane %v9411, %v6518
        %v9515 = vsel %vm6520, %v9514, %v9513
        %v9516 = vperm.slane %v9414, %v6522
        %v9517 = vsel %vm6524, %v9516, %v9515
        %v9518 = vperm.slane %v9417, %v6526
        %v9519 = vsel %vm6528, %v9518, %v9517
        %v9520 = vperm.slane %v9420, %v6508
        %v9521 = vperm.slane %v9423, %v6510
        %v9522 = vsel %vm6512, %v9521, %v9520
        %v9523 = vperm.slane %v9426, %v6514
        %v9524 = vsel %vm6516, %v9523, %v9522
        %v9525 = vperm.slane %v9429, %v6518
        %v9526 = vsel %vm6520, %v9525, %v9524
        %v9527 = vperm.slane %v9432, %v6522
        %v9528 = vsel %vm6524, %v9527, %v9526
        %v9529 = vperm.slane %v9435, %v6526
        %v9530 = vsel %vm6528, %v9529, %v9528
        %v9531 = vperm.slane %v9438, %v6508
        %v9532 = vperm.slane %v9441, %v6510
        %v9533 = vsel %vm6512, %v9532, %v9531
        %v9534 = vperm.slane %v9444, %v6514
        %v9535 = vsel %vm6516, %v9534, %v9533
        %v9536 = vperm.slane %v9447, %v6518
        %v9537 = vsel %vm6520, %v9536, %v9535
        %v9538 = vperm.slane %v9450, %v6522
        %v9539 = vsel %vm6524, %v9538, %v9537
        %v9540 = vperm.slane %v9453, %v6526
        %v9541 = vsel %vm6528, %v9540, %v9539
        %v9542 = vsel %vm6607, %v9475, %v9464
        %v9543 = vsel %vm6609, %v9486, %v9542
        %v9544 = vsel %vm6611, %v9497, %v9543
        %v9545 = vsel %vm6613, %v9508, %v9544
        %v9546 = vsel %vm6615, %v9519, %v9545
        %v9547 = vsel %vm6617, %v9530, %v9546
        %v9548 = vsel %vm6619, %v9541, %v9547
        %v9549 = vsel %vm6621, %v9548, 0
        %9551 = vmatpush.msra.mxu0 0.0
        %9552 = vmatpush.msra.mxu0 0.0
        %9553 = vmatpush.msra.mxu0 0.0
        %9554 = vmatpush.msra.mxu0 0.0
        %9555 = vmatpush.msra.mxu0 0.0
        %9556 = vmatpush.msra.mxu0 0.0
        %9557 = vmatpush.msra.mxu0 0.0
        %9558 = vmatpush.msra.mxu0 0.0
        %9559 = vmatpush.msra.mxu0 0.0
        %9560 = vmatpush.msra.mxu0 0.0
        %9561 = vmatpush.msra.mxu0 %v7596
        %9562 = vmatpush.msra.mxu0 %v7594
        %9563 = vmatpush.msra.mxu0 %v7592
        %9564 = vmatpush.msra.mxu0 %v7590
        %9565 = vmatpush.msra.mxu0 %v7588
        %9566 = vmatpush.msra.mxu0 %v7586
        %9567 = vmatmul.f32.gmra.mxu0 %v9549
        %v9568 = vpop.f32.mrf.mxu0
        %v9569 = vadd.f32 %v7870, %v9568
        %9570 = vdwg.mxu0
        %9571 = vmatpush.msra.mxu0 0.0
        %9572 = vmatpush.msra.mxu0 0.0
        %9573 = vmatpush.msra.mxu0 0.0
        %9574 = vmatpush.msra.mxu0 0.0
        %9575 = vmatpush.msra.mxu0 0.0
        %9576 = vmatpush.msra.mxu0 0.0
        %9577 = vmatpush.msra.mxu0 0.0
        %9578 = vmatpush.msra.mxu0 0.0
        %9579 = vmatpush.msra.mxu0 0.0
        %9580 = vmatpush.msra.mxu0 0.0
        %9581 = vmatpush.msra.mxu0 %v7597
        %9582 = vmatpush.msra.mxu0 %v7595
        %9583 = vmatpush.msra.mxu0 %v7593
        %9584 = vmatpush.msra.mxu0 %v7591
        %9585 = vmatpush.msra.mxu0 %v7589
        %9586 = vmatpush.msra.mxu0 %v7587
        %9587 = vmatmul.f32.gmra.mxu0 %v9549
        %v9588 = vpop.f32.mrf.mxu0
        %v9589 = vadd.f32 %v7890, %v9588
        %9590 = vdwg.mxu0
        %v9591 = vadd.f32 %v8445, %v8726
        %v9592 = vadd.f32 %v8465, %v8746
        %v9593 = vadd.f32 %v9007, %v9288
        %v9594 = vadd.f32 %v9027, %v9308
        %v9595 = vadd.f32 %v9569, %v8164
        %v9596 = vadd.f32 %v9589, %v8184
        %v9597 = vadd.f32 %v9591, %v9593
        %v9598 = vadd.f32 %v9592, %v9594
        %v9599 = vadd.f32 %v9597, %v9595
        %v9600 = vadd.f32 %v9598, %v9596
        %v9601 = vld [vmem:[%s11] sm:$0x3]
        %v9603 = vperm.slane %v9601, 0
        %v9604 = vperm.slane %v9601, 1
        %v9607 = vadd.f32 %v9599, %v9603
        %v9608 = vadd.f32 %v9600, %v9604
        %v9609 = vmax.f32 %v9607, 0.0
        %v9610 = vmax.f32 %v9608, 0.0
        %v9611 = vld [vmem:[%s12] sm:$0xff]
        %v9612 = vld [vmem:[%s12 + $0x8] sm:$0xff]
        %v9613 = vld [vmem:[%s12 + $0x10] sm:$0xff]
        %v9614 = vld [vmem:[%s12 + $0x18] sm:$0xff]
        %v9615 = vld [vmem:[%s12 + $0x20] sm:$0xff]
        %v9616 = vld [vmem:[%s12 + $0x28] sm:$0xff]
        %v9617 = vld [vmem:[%s12 + $0x30] sm:$0xff]
        %v9618 = vld [vmem:[%s12 + $0x38] sm:$0xff]
        %v9619 = vld [vmem:[%s12 + $0x40] sm:$0xff]
        %v9620 = vld [vmem:[%s12 + $0x48] sm:$0xff]
        %v9621 = vld [vmem:[%s12 + $0x50] sm:$0xff]
        %v9622 = vld [vmem:[%s12 + $0x58] sm:$0xff]
        %v9623 = vld [vmem:[%s12 + $0x60] sm:$0xff]
        %v9624 = vld [vmem:[%s12 + $0x68] sm:$0xff]
        %v9625 = vld [vmem:[%s12 + $0x70] sm:$0xff]
        %v9626 = vld [vmem:[%s12 + $0x78] sm:$0xff]
        %v9627 = vld [vmem:[%s12 + $0x80] sm:$0xff]
        %v9628 = vld [vmem:[%s12 + $0x88] sm:$0xff]
        %v9629 = vld [vmem:[%s12 + $0x90] sm:$0xff]
        %v9630 = vld [vmem:[%s12 + $0x98] sm:$0xff]
        %v9631 = vld [vmem:[%s12 + $0xa0] sm:$0xff]
        %v9632 = vld [vmem:[%s12 + $0xa8] sm:$0xff]
        %v9633 = vld [vmem:[%s12 + $0xb0] sm:$0xff]
        %v9634 = vld [vmem:[%s12 + $0xb8] sm:$0xff]
        %v9635 = vld [vmem:[%s12 + $0xc0] sm:$0xff]
        %v9636 = vld [vmem:[%s12 + $0xc8] sm:$0xff]
        %v9637 = vld [vmem:[%s12 + $0xd0] sm:$0xff]
        %v9638 = vld [vmem:[%s12 + $0xd8] sm:$0xff]
        %v9639 = vld [vmem:[%s12 + $0xe0] sm:$0xff]
        %v9640 = vld [vmem:[%s12 + $0xe8] sm:$0xff]
        %v9641 = vld [vmem:[%s12 + $0xf0] sm:$0xff]
        %v9642 = vld [vmem:[%s12 + $0xf8] sm:$0xff]
        %v9643 = vld [vmem:[%s13] sm:$0x1]
        %v9645 = vperm.slane %v9643, 0
        %9647 = vmatpush.msra.mxu0 %v9626
        %9648 = vmatpush.msra.mxu0 %v9625
        %9649 = vmatpush.msra.mxu0 %v9624
        %9650 = vmatpush.msra.mxu0 %v9623
        %9651 = vmatpush.msra.mxu0 %v9622
        %9652 = vmatpush.msra.mxu0 %v9621
        %9653 = vmatpush.msra.mxu0 %v9620
        %9654 = vmatpush.msra.mxu0 %v9619
        %9655 = vmatpush.msra.mxu0 %v9618
        %9656 = vmatpush.msra.mxu0 %v9617
        %9657 = vmatpush.msra.mxu0 %v9616
        %9658 = vmatpush.msra.mxu0 %v9615
        %9659 = vmatpush.msra.mxu0 %v9614
        %9660 = vmatpush.msra.mxu0 %v9613
        %9661 = vmatpush.msra.mxu0 %v9612
        %9662 = vmatpush.msra.mxu0 %v9611
        %9663 = vmatmul.f32.gmra.mxu0 %v9609
        %v9664 = vpop.f32.mrf.mxu0
        %v9665 = vadd.f32 %v9645, %v9664
        %9666 = vdwg.mxu0
        %9667 = vmatpush.msra.mxu0 %v9642
        %9668 = vmatpush.msra.mxu0 %v9641
        %9669 = vmatpush.msra.mxu0 %v9640
        %9670 = vmatpush.msra.mxu0 %v9639
        %9671 = vmatpush.msra.mxu0 %v9638
        %9672 = vmatpush.msra.mxu0 %v9637
        %9673 = vmatpush.msra.mxu0 %v9636
        %9674 = vmatpush.msra.mxu0 %v9635
        %9675 = vmatpush.msra.mxu0 %v9634
        %9676 = vmatpush.msra.mxu0 %v9633
        %9677 = vmatpush.msra.mxu0 %v9632
        %9678 = vmatpush.msra.mxu0 %v9631
        %9679 = vmatpush.msra.mxu0 %v9630
        %9680 = vmatpush.msra.mxu0 %v9629
        %9681 = vmatpush.msra.mxu0 %v9628
        %9682 = vmatpush.msra.mxu0 %v9627
        %9683 = vmatmul.f32.gmra.mxu0 %v9610
        %v9684 = vpop.f32.mrf.mxu0
        %v9685 = vadd.f32 %v9665, %v9684
        %9686 = vdwg.mxu0
        %v9687 = vmax.f32 %v9685, 0.0
        %v9688 = vld [vmem:[%s14] sm:$0xff]
        %v9689 = vld [vmem:[%s14 + $0x8] sm:$0xff]
        %v9690 = vld [vmem:[%s14 + $0x10] sm:$0xff]
        %v9691 = vld [vmem:[%s14 + $0x18] sm:$0xff]
        %v9692 = vld [vmem:[%s14 + $0x20] sm:$0xff]
        %v9693 = vld [vmem:[%s14 + $0x28] sm:$0xff]
        %v9694 = vld [vmem:[%s14 + $0x30] sm:$0xff]
        %v9695 = vld [vmem:[%s14 + $0x38] sm:$0xff]
        %v9696 = vld [vmem:[%s15] sm:$0x1]
        %v9698 = vperm.slane %v9696, 0
        %vm9700 = vcmask 523264
        %v9702 = vsel %vm9700, %v9687, 0
        %9704 = vmatpush.msra.mxu0 0.0
        %9705 = vmatpush.msra.mxu0 0.0
        %9706 = vmatpush.msra.mxu0 0.0
        %9707 = vmatpush.msra.mxu0 0.0
        %9708 = vmatpush.msra.mxu0 0.0
        %9709 = vmatpush.msra.mxu0 0.0
        %9710 = vmatpush.msra.mxu0 0.0
        %9711 = vmatpush.msra.mxu0 0.0
        %9712 = vmatpush.msra.mxu0 %v9695
        %9713 = vmatpush.msra.mxu0 %v9694
        %9714 = vmatpush.msra.mxu0 %v9693
        %9715 = vmatpush.msra.mxu0 %v9692
        %9716 = vmatpush.msra.mxu0 %v9691
        %9717 = vmatpush.msra.mxu0 %v9690
        %9718 = vmatpush.msra.mxu0 %v9689
        %9719 = vmatpush.msra.mxu0 %v9688
        %9720 = vmatmul.f32.gmra.mxu0 %v9702
        %v9721 = vpop.f32.mrf.mxu0
        %v9722 = vadd.f32 %v9698, %v9721
        %9723 = vdwg.mxu0
        %v9724 = vmax.f32 %v9722, 0.0
        %vm9725 = vcmask 261120
        %9726 = vst.msk [vmem:[%s517] sm:$0xff] %vm9725, %v9724
        %s9727 = sand.u32 %s379, 1
        %s9728 = scalar_lea.sflag [#allocation4], %s9727
        %s9729 = sand.u32 %s379, 1
        %s9730 = smul.addr %s9729, 8
        %s9731 = scalar_lea.vmem [#allocation3], %s9730
        // Predicated region
        $region92: #{conv_encoder_forward.1} parent=83 // pred_check
          %p9732 = pneg %p389
        $region93: #{conv_encoder_forward.1} parent=83 // pred_check_branch
          %9734 = sbr.rel (%p9732) target = $region95
        $region94: #{conv_encoder_forward.1} parent=83 // pred_region
          %9736 = vsyncadd %s9728, 0
          %s9737 = smul.addr %s30, 8
          %s9738 = scalar_lea.hbm %s16, %s9737
          %s9740 = sshll.u32 %s9731, 4
          %s9741 = int_to_ptr.vmem [resolvable:$true] %s9740
          %s9742 = sshll.u32 %s9738, 4
          %s9743 = int_to_ptr.hbm [resolvable:$true] %s9742
          %9745 = dma.vmem_to_hbm [thread:$0]  %s9741, 128, %s9743, %s9728
        $region95: #{conv_encoder_forward.1} parent=83 // pred_fallthru
          _
      $region84: #{conv_encoder_forward.1} parent=5 // pred_fallthru
        _
      %p9746 = scmp.le.s32.totalorder 2, %s25
      // Predicated region
      $region96: #{conv_encoder_forward.1} parent=5 // pred_check
        %p9747 = pneg %p9746
      $region97: #{conv_encoder_forward.1} parent=5 // pred_check_branch
        %9749 = sbr.rel (%p9747) target = $region99
      $region98: #{conv_encoder_forward.1} parent=5 // pred_region
        %s9750 = ssub.s32 %s25, 2
        // Predicated region
        $region100: #{conv_encoder_forward.1} parent=98 // pred_check
          %p9751 = pneg %p395
        $region101: #{conv_encoder_forward.1} parent=98 // pred_check_branch
          %9753 = sbr.rel (%p9751) target = $region103
        $region102: #{conv_encoder_forward.1} parent=98 // pred_region
          %s9754 = sand.u32 %s380, 1
          %s9755 = scalar_lea.sflag [#allocation4], %s9754
          %s9756 = sand.u32 %s380, 1
          %s9757 = smul.addr %s9756, 8
          %s9758 = scalar_lea.vmem [#allocation3], %s9757
          %9760 = dma.done %s9755, 128
        $region103: #{conv_encoder_forward.1} parent=98 // pred_fallthru
          _
      $region99: #{conv_encoder_forward.1} parent=5 // pred_fallthru
        _
    $region6: #{conv_encoder_forward.1} parent=1 // loop_footer
      %s29 = sadd.s32 1, %s25
    $region7: #{conv_encoder_forward.1} parent=1 // loop_footer_branch
      %24 = sbr.rel target = $region3
    $region8: #{conv_encoder_forward.1} parent=1 // loop_exit
      _
    %9761 = vsyncpa [#allocation4], 1
    %s9762 = scalar_lea.sflag [#allocation4], 1
    %9763 = vsyncpa %s9762, 1

</llo_original>
